<compile_context>
chip_gen: v7x
topology: tpu7x:2x2x1
jax: 0.10.0
libtpu: 0.0.40
codegen_flags: <defaults>
</compile_context>

<pallas_src>
import math
import functools

import jax
import jax.numpy as jnp
import numpy as np
from jax import lax
from jax.experimental import pallas as pl
from jax.experimental.pallas import tpu as pltpu

# Keep XLA's f32 matmul precision high so the pure-JAX reference matches the MXU kernel.
jax.config.update("jax_default_matmul_precision", "highest")

NEG_INF = -1e20
LN_EPS = 1e-5
LEAKY_SLOPE = 0.01


def _layer_norm(x, gamma, beta):
    mu = jnp.mean(x, axis=-1, keepdims=True)
    var = jnp.mean((x - mu) ** 2, axis=-1, keepdims=True)
    return (x - mu) * lax.rsqrt(var + LN_EPS) * gamma + beta


def _leaky(x):
    return jnp.where(x >= 0, x, LEAKY_SLOPE * x)


def _make_kernel(n_head, after_norm, inv_scale, lane_dense):
    """Builds the per-batch-chunk kernel (static config closed over)."""

    def kernel(x_ref, mask_ref, pw_ref, w1_ref, w2_ref, vec_ref, o_ref):
        Bc, L, H = x_ref.shape
        Hhid = w1_ref.shape[1]
        d = H // n_head
        N = Bc * L

        # Collapse leading dims only (no lane relayout).
        x_flat = x_ref[...].reshape(N, H)        # (N, H)
        m_flat = mask_ref[...].reshape(N, 1)     # (N, 1), 1.0 = valid token, 0.0 = pad

        # Packed bias / LayerNorm vectors.
        b1 = vec_ref[0:1, :Hhid]
        b2 = vec_ref[1:2, :H]
        g1 = vec_ref[2:3, :H]
        be1 = vec_ref[3:4, :H]
        g2 = vec_ref[4:5, :H]
        be2 = vec_ref[5:6, :H]

        residual = x_flat
        # pre-norm if after_norm == False
        x_attn = x_flat if after_norm else _layer_norm(x_flat, g1, be1)

        # root[l, :] = x_attn[row 0 of its batch, :] at valid rows, 0 at pad rows
        root = jnp.concatenate(
            [jnp.broadcast_to(x_attn[b * L:b * L + 1, :], (L, H)) for b in range(Bc)],
            axis=0) * m_flat

        # ---- root-enhanced multi-head attention ----
        wq, wxk, wrk, wxv, wrv = (pw_ref[i] for i in range(5))
        q = jnp.dot(x_attn, wq, preferred_element_type=jnp.float32)
        k = (jnp.dot(x_attn, wxk, preferred_element_type=jnp.float32)
             + jnp.dot(root, wrk, preferred_element_type=jnp.float32))
        v = (jnp.dot(x_attn, wxv, preferred_element_type=jnp.float32)
             + jnp.dot(root, wrv, preferred_element_type=jnp.float32))

        # Build (batch*head, L, d) views with static slices + leading-dim concats
        # (no transposes / lane-crossing reshapes).
        def split_heads(t):
            return jnp.concatenate(
                [t[b * L:(b + 1) * L, h * d:(h + 1) * d][None]
                 for b in range(Bc) for h in range(n_head)], axis=0)

        qh, kh, vh = split_heads(q), split_heads(k), split_heads(v)
        mq = jnp.concatenate(
            [m_flat[b * L:(b + 1) * L, :][None]
             for b in range(Bc) for _ in range(n_head)], axis=0)    # (Bc*n_head, L, 1)

        scores = jnp.einsum("gqd,gkd->gqk", qh, kh,
                            preferred_element_type=jnp.float32) * inv_scale
        # exactly-zero scores (pad keys) -> -1e20, then softmax over keys (single pass)
        masked = jnp.where(scores == 0.0, NEG_INF, scores)
        mx = jnp.max(masked, axis=-1, keepdims=True)
        e = jnp.exp(masked - mx)
        # Exact divide (not the EUP approximate reciprocal) to match the reference bit-closely.
        p = e / jnp.sum(e, axis=-1, keepdims=True)
        # torch only scatters the softmaxed rows back for valid query positions;
        # pad query rows keep the raw (un-normalized) scores.
        attn = jnp.where(mq > 0.0, p, scores)
        ctx = jnp.einsum("gqk,gkd->gqd", attn, vh,
                         preferred_element_type=jnp.float32)        # (Bc*n_head, L, d)

        # merge heads back to (N, H)
        v_out = jnp.concatenate(
            [jnp.concatenate([ctx[b * n_head + h] for h in range(n_head)], axis=-1)
             for b in range(Bc)], axis=0)
        v_out = _leaky(v_out)

        x1 = v_out + residual
        if after_norm:
            x1 = _layer_norm(x1, g1, be1)

        # ---- FFN ----
        h1 = _leaky(jnp.dot(x1, w1_ref[...], preferred_element_type=jnp.float32) + b1)
        x2 = jnp.dot(h1, w2_ref[...], preferred_element_type=jnp.float32) + b2 + x1
        if after_norm:
            x2 = _layer_norm(x2, g2, be2)

        # final: x - stop_grad(x with valid rows zeroed)  ==  zero out pad rows
        x2 = x2 * m_flat

        if lane_dense:
            # vreg-level flatten of (N, H) -> (N*H//128, 128) so the HBM store is a
            # full-width (unmasked) vst instead of 32-of-128-lane masked stores.
            pieces = 128 // H
            rows = (N * H) // 128
            dense = jnp.concatenate(
                [jnp.concatenate(
                    [x2[r * pieces + j:r * pieces + j + 1, :] for j in range(pieces)],
                    axis=-1)
                 for r in range(rows)],
                axis=0)                                             # (rows, 128)
            o_ref[0] = dense
        else:
            o_ref[...] = x2

    return kernel


def transformer_layer(x, valid_mask, params, *, n_head, after_norm, attn_scale):
    """x: (B, L, H) f32; valid_mask: (B, L) bool (True = non-pad)."""
    B, L, H = x.shape
    Hhid = params["w1"].shape[0]
    scale = math.sqrt(H // n_head) if attn_scale else 1.0
    inv_scale = 1.0 / scale

    # At most two "parallel" grid steps: batch split in halves (keeps both v7x TCs busy,
    # negligible step overhead on single-TC v5e/v6e). Everything in a step is fully batched.
    G = 2 if (B >= 2 and B % 2 == 0) else 1
    Bc = B // G

    mask_f = valid_mask.astype(jnp.float32).reshape(B, L, 1)

    # torch Linear stores (out, in): pre-transpose to (in, out) and pre-split kv_w into its
    # four (H, H) blocks so k and v are computed directly (no lane slice at offset H).
    qwT = params["qw"].T                        # (H, H)
    kvwT = params["kvw"].T                      # (2H, 2H)  (in, out)
    wxk, wrk = kvwT[:H, :H], kvwT[H:, :H]
    wxv, wrv = kvwT[:H, H:], kvwT[H:, H:]
    proj_w = jnp.stack([qwT, wxk, wrk, wxv, wrv], axis=0)           # (5, H, H)

    w1T = params["w1"].T                        # (H, Hhid)
    w2T = params["w2"].T                        # (Hhid, H)

    # Pack the six small vectors (b1, b2, g1, be1, g2, be2) into a single operand.
    Hmax = max(H, Hhid)
    pad = lambda v: jnp.pad(v, (0, Hmax - v.shape[0]))
    vecs = jnp.stack([pad(params["b1"]), pad(params["b2"]),
                      pad(params["g1"]), pad(params["be1"]),
                      pad(params["g2"]), pad(params["be2"])], axis=0)  # (6, Hmax)

    lane_dense = ((Bc * L * H) % 128 == 0) and (128 % H == 0)
    if lane_dense:
        rows_chunk = (Bc * L * H) // 128
        out_shape = jax.ShapeDtypeStruct((G, rows_chunk, 128), jnp.float32)
        out_spec = pl.BlockSpec((1, rows_chunk, 128), lambda g: (g, 0, 0))
    else:
        out_shape = jax.ShapeDtypeStruct((B * L, H), jnp.float32)
        out_spec = pl.BlockSpec((Bc * L, H), lambda g: (g, 0))

    kernel = _make_kernel(n_head, after_norm, inv_scale, lane_dense)

    out = pl.pallas_call(
        kernel,
        out_shape=out_shape,
        grid_spec=pltpu.PrefetchScalarGridSpec(
            num_scalar_prefetch=0,
            grid=(G,),
            in_specs=[
                pl.BlockSpec((Bc, L, H), lambda g: (g, 0, 0)),   # x (per batch chunk)
                pl.BlockSpec((Bc, L, 1), lambda g: (g, 0, 0)),   # valid-token mask
                pl.BlockSpec((5, H, H), lambda g: (0, 0, 0)),    # packed projection weights
                pl.BlockSpec((H, Hhid), lambda g: (0, 0)),       # ffn w1^T
                pl.BlockSpec((Hhid, H), lambda g: (0, 0)),       # ffn w2^T
                pl.BlockSpec((6, Hmax), lambda g: (0, 0)),       # packed bias / LN vectors
            ],
            out_specs=out_spec,
        ),
        compiler_params=pltpu.CompilerParams(
            dimension_semantics=("parallel",),
            vmem_limit_bytes=32 * 1024 * 1024,
        ),
    )(x, mask_f, proj_w, w1T, w2T, vecs)

    return out.reshape(B, L, H)


def reference(x, valid_mask, params, *, n_head, after_norm, attn_scale):
    """Pure-JAX mirror of the PyTorch forward (eval mode) for verification."""
    B, L, H = x.shape
    d = H // n_head
    scale = math.sqrt(H // n_head) if attn_scale else 1.0
    m = valid_mask.astype(jnp.float32)[..., None]                   # (B, L, 1)

    residual = x
    xa = x if after_norm else _layer_norm(x, params["g1"], params["be1"])

    root = m * xa[:, 0:1, :]
    q = xa @ params["qw"].T
    kv = jnp.concatenate([xa, root], axis=-1) @ params["kvw"].T
    k, v = kv[..., :H], kv[..., H:]
    q = q.reshape(B, L, n_head, d).transpose(0, 2, 1, 3)
    k = k.reshape(B, L, n_head, d).transpose(0, 2, 1, 3)
    v = v.reshape(B, L, n_head, d).transpose(0, 2, 1, 3)
    attn = jnp.einsum("bhqd,bhkd->bhqk", q, k) / scale
    masked = jnp.where(attn == 0.0, NEG_INF, attn)
    p = jax.nn.softmax(masked, axis=-1)
    attn = jnp.where(m[:, None, :, :] > 0, p, attn)
    vo = jnp.einsum("bhqk,bhkd->bhqd", attn, v).transpose(0, 2, 1, 3).reshape(B, L, H)
    vo = _leaky(vo)

    x1 = vo + residual
    if after_norm:
        x1 = _layer_norm(x1, params["g1"], params["be1"])
    h1 = _leaky(x1 @ params["w1"].T + params["b1"])
    x2 = h1 @ params["w2"].T + params["b2"] + x1
    if after_norm:
        x2 = _layer_norm(x2, params["g2"], params["be2"])
    return x2 * m


if __name__ == "__main__":
    # Module config
    n_head, H, Hhid = 4, 32, 64
    after_norm, attn_scale, root_enhance = True, False, True
    B, L = 2, 8

    key = jax.random.PRNGKey(0)
    ks = jax.random.split(key, 12)

    params = {
        "qw":  jax.random.normal(ks[0], (H, H), jnp.float32) * 0.1,          # q_linear.weight (out, in)
        "kvw": jax.random.normal(ks[1], (2 * H, 2 * H), jnp.float32) * 0.1,  # kv_linear.weight
        "w1":  jax.random.normal(ks[2], (Hhid, H), jnp.float32) * 0.1,       # ffn[0].weight
        "b1":  jax.random.normal(ks[3], (Hhid,), jnp.float32) * 0.1,         # ffn[0].bias
        "w2":  jax.random.normal(ks[4], (H, Hhid), jnp.float32) * 0.1,       # ffn[3].weight
        "b2":  jax.random.normal(ks[5], (H,), jnp.float32) * 0.1,            # ffn[3].bias
        "g1":  1.0 + 0.1 * jax.random.normal(ks[6], (H,), jnp.float32),      # norm1.weight
        "be1": 0.05 * jax.random.normal(ks[7], (H,), jnp.float32),           # norm1.bias
        "g2":  1.0 + 0.1 * jax.random.normal(ks[8], (H,), jnp.float32),      # norm2.weight
        "be2": 0.05 * jax.random.normal(ks[9], (H,), jnp.float32),           # norm2.bias
    }

    # Valid-token mask (True = non-pad); equivalent to torch's mask_nonzero index pair.
    lengths = jnp.array([8, 5])
    valid_mask = (jnp.arange(L)[None, :] < lengths[:, None])                  # (B, L) bool

    x = jax.random.normal(ks[10], (B, L, H), jnp.float32)
    x = x * valid_mask[..., None].astype(jnp.float32)                        # zero pad positions

    run = functools.partial(transformer_layer, n_head=n_head,
                            after_norm=after_norm, attn_scale=attn_scale)
    out = jax.block_until_ready(run(x, valid_mask, params))

    ref = reference(x, valid_mask, params, n_head=n_head,
                    after_norm=after_norm, attn_scale=attn_scale)
    np.testing.assert_allclose(np.asarray(out), np.asarray(ref), rtol=2e-3, atol=2e-3)

    print("KERNEL_OK")
</pallas_src>

<mosaic_0001>
module attributes {stable_mosaic.version = 11 : i64} {
  func.func @kernel(%arg0: i32, %arg1: memref<1x8x32xf32, #tpu.memory_space<vmem>>, %arg2: memref<1x8x1xf32, #tpu.memory_space<vmem>>, %arg3: memref<5x32x32xf32, #tpu.memory_space<vmem>>, %arg4: memref<32x64xf32, #tpu.memory_space<vmem>>, %arg5: memref<64x32xf32, #tpu.memory_space<vmem>>, %arg6: memref<6x64xf32, #tpu.memory_space<vmem>>, %arg7: memref<1x2x128xf32, #tpu.memory_space<vmem>>) attributes {dimension_semantics = [#tpu.dimension_semantics<parallel>], iteration_bounds = array<i64: 2>, scalar_prefetch = 0 : i64, scratch_operands = 0 : i64, tpu.core_type = #tpu.core_type<tc>, window_params = [{transform_indices = @transform_0, window_bounds = array<i64: 1, 8, 32>}, {transform_indices = @transform_1, window_bounds = array<i64: 1, 8, 1>}, {pipeline_mode = #tpu.pipeline_mode<synchronous>, transform_indices = @transform_2, window_bounds = array<i64: 5, 32, 32>}, {pipeline_mode = #tpu.pipeline_mode<synchronous>, transform_indices = @transform_3, window_bounds = array<i64: 32, 64>}, {pipeline_mode = #tpu.pipeline_mode<synchronous>, transform_indices = @transform_4, window_bounds = array<i64: 64, 32>}, {pipeline_mode = #tpu.pipeline_mode<synchronous>, transform_indices = @transform_5, window_bounds = array<i64: 6, 64>}, {transform_indices = @transform_6, window_bounds = array<i64: 1, 2, 128>}]} {
    %c0 = arith.constant 0 : index
    %c0_0 = arith.constant 0 : index
    %c0_1 = arith.constant 0 : index
    %0 = vector.load %arg1[%c0, %c0_0, %c0_1] : memref<1x8x32xf32, #tpu.memory_space<vmem>>, vector<1x8x32xf32>
    %1 = vector.shape_cast %0 : vector<1x8x32xf32> to vector<8x32xf32>
    %c0_2 = arith.constant 0 : index
    %c0_3 = arith.constant 0 : index
    %c0_4 = arith.constant 0 : index
    %2 = vector.load %arg2[%c0_2, %c0_3, %c0_4] : memref<1x8x1xf32, #tpu.memory_space<vmem>>, vector<1x8x1xf32>
    %3 = vector.shape_cast %2 : vector<1x8x1xf32> to vector<8x1xf32>
    %c0_5 = arith.constant 0 : index
    %c0_6 = arith.constant 0 : index
    %4 = vector.load %arg6[%c0_5, %c0_6] : memref<6x64xf32, #tpu.memory_space<vmem>>, vector<1x64xf32>
    %c1 = arith.constant 1 : index
    %c0_7 = arith.constant 0 : index
    %5 = vector.load %arg6[%c1, %c0_7] : memref<6x64xf32, #tpu.memory_space<vmem>>, vector<1x32xf32>
    %c2 = arith.constant 2 : index
    %c0_8 = arith.constant 0 : index
    %6 = vector.load %arg6[%c2, %c0_8] : memref<6x64xf32, #tpu.memory_space<vmem>>, vector<1x32xf32>
    %c3 = arith.constant 3 : index
    %c0_9 = arith.constant 0 : index
    %7 = vector.load %arg6[%c3, %c0_9] : memref<6x64xf32, #tpu.memory_space<vmem>>, vector<1x32xf32>
    %c4 = arith.constant 4 : index
    %c0_10 = arith.constant 0 : index
    %8 = vector.load %arg6[%c4, %c0_10] : memref<6x64xf32, #tpu.memory_space<vmem>>, vector<1x32xf32>
    %c5 = arith.constant 5 : index
    %c0_11 = arith.constant 0 : index
    %9 = vector.load %arg6[%c5, %c0_11] : memref<6x64xf32, #tpu.memory_space<vmem>>, vector<1x32xf32>
    %10 = vector.extract_strided_slice %1 {offsets = [0, 0], sizes = [1, 32], strides = [1, 1]} : vector<8x32xf32> to vector<1x32xf32>
    %11 = vector.shape_cast %10 : vector<1x32xf32> to vector<1x32xf32>
    %12 = vector.broadcast %11 : vector<1x32xf32> to vector<8x32xf32>
    %13 = vector.broadcast %3 : vector<8x1xf32> to vector<8x32xf32>
    %14 = arith.mulf %12, %13 : vector<8x32xf32>
    %c0_12 = arith.constant 0 : index
    %c0_13 = arith.constant 0 : index
    %c0_14 = arith.constant 0 : index
    %15 = vector.load %arg3[%c0_12, %c0_13, %c0_14] : memref<5x32x32xf32, #tpu.memory_space<vmem>>, vector<1x32x32xf32>
    %16 = vector.shape_cast %15 : vector<1x32x32xf32> to vector<32x32xf32>
    %c1_15 = arith.constant 1 : index
    %c0_16 = arith.constant 0 : index
    %c0_17 = arith.constant 0 : index
    %17 = vector.load %arg3[%c1_15, %c0_16, %c0_17] : memref<5x32x32xf32, #tpu.memory_space<vmem>>, vector<1x32x32xf32>
    %18 = vector.shape_cast %17 : vector<1x32x32xf32> to vector<32x32xf32>
    %c2_18 = arith.constant 2 : index
    %c0_19 = arith.constant 0 : index
    %c0_20 = arith.constant 0 : index
    %19 = vector.load %arg3[%c2_18, %c0_19, %c0_20] : memref<5x32x32xf32, #tpu.memory_space<vmem>>, vector<1x32x32xf32>
    %20 = vector.shape_cast %19 : vector<1x32x32xf32> to vector<32x32xf32>
    %c3_21 = arith.constant 3 : index
    %c0_22 = arith.constant 0 : index
    %c0_23 = arith.constant 0 : index
    %21 = vector.load %arg3[%c3_21, %c0_22, %c0_23] : memref<5x32x32xf32, #tpu.memory_space<vmem>>, vector<1x32x32xf32>
    %22 = vector.shape_cast %21 : vector<1x32x32xf32> to vector<32x32xf32>
    %c4_24 = arith.constant 4 : index
    %c0_25 = arith.constant 0 : index
    %c0_26 = arith.constant 0 : index
    %23 = vector.load %arg3[%c4_24, %c0_25, %c0_26] : memref<5x32x32xf32, #tpu.memory_space<vmem>>, vector<1x32x32xf32>
    %24 = vector.shape_cast %23 : vector<1x32x32xf32> to vector<32x32xf32>
    %cst = arith.constant dense<0.000000e+00> : vector<8x32xf32>
    %25 = tpu.matmul %1, %16, %cst {dimension_numbers = #tpu.dot_dimension_numbers<[1], [0], [0], [1], [0, 0, 1, 1], [], []>, precision = #tpu.contract_precision<fp32>} : vector<8x32xf32>, vector<32x32xf32>, vector<8x32xf32> -> vector<8x32xf32>
    %cst_27 = arith.constant dense<0.000000e+00> : vector<8x32xf32>
    %26 = tpu.matmul %1, %18, %cst_27 {dimension_numbers = #tpu.dot_dimension_numbers<[1], [0], [0], [1], [0, 0, 1, 1], [], []>, precision = #tpu.contract_precision<fp32>} : vector<8x32xf32>, vector<32x32xf32>, vector<8x32xf32> -> vector<8x32xf32>
    %cst_28 = arith.constant dense<0.000000e+00> : vector<8x32xf32>
    %27 = tpu.matmul %14, %20, %cst_28 {dimension_numbers = #tpu.dot_dimension_numbers<[1], [0], [0], [1], [0, 0, 1, 1], [], []>, precision = #tpu.contract_precision<fp32>} : vector<8x32xf32>, vector<32x32xf32>, vector<8x32xf32> -> vector<8x32xf32>
    %28 = arith.addf %26, %27 : vector<8x32xf32>
    %cst_29 = arith.constant dense<0.000000e+00> : vector<8x32xf32>
    %29 = tpu.matmul %1, %22, %cst_29 {dimension_numbers = #tpu.dot_dimension_numbers<[1], [0], [0], [1], [0, 0, 1, 1], [], []>, precision = #tpu.contract_precision<fp32>} : vector<8x32xf32>, vector<32x32xf32>, vector<8x32xf32> -> vector<8x32xf32>
    %cst_30 = arith.constant dense<0.000000e+00> : vector<8x32xf32>
    %30 = tpu.matmul %14, %24, %cst_30 {dimension_numbers = #tpu.dot_dimension_numbers<[1], [0], [0], [1], [0, 0, 1, 1], [], []>, precision = #tpu.contract_precision<fp32>} : vector<8x32xf32>, vector<32x32xf32>, vector<8x32xf32> -> vector<8x32xf32>
    %31 = arith.addf %29, %30 : vector<8x32xf32>
    %32 = vector.extract_strided_slice %25 {offsets = [0, 0], sizes = [8, 8], strides = [1, 1]} : vector<8x32xf32> to vector<8x8xf32>
    %33 = vector.shape_cast %32 : vector<8x8xf32> to vector<1x8x8xf32>
    %34 = vector.extract_strided_slice %25 {offsets = [0, 8], sizes = [8, 8], strides = [1, 1]} : vector<8x32xf32> to vector<8x8xf32>
    %35 = vector.shape_cast %34 : vector<8x8xf32> to vector<1x8x8xf32>
    %36 = vector.extract_strided_slice %25 {offsets = [0, 16], sizes = [8, 8], strides = [1, 1]} : vector<8x32xf32> to vector<8x8xf32>
    %37 = vector.shape_cast %36 : vector<8x8xf32> to vector<1x8x8xf32>
    %38 = vector.extract_strided_slice %25 {offsets = [0, 24], sizes = [8, 8], strides = [1, 1]} : vector<8x32xf32> to vector<8x8xf32>
    %39 = vector.shape_cast %38 : vector<8x8xf32> to vector<1x8x8xf32>
    %40 = tpu.concatenate %33, %35, %37, %39 in 0 : vector<1x8x8xf32>, vector<1x8x8xf32>, vector<1x8x8xf32>, vector<1x8x8xf32> -> vector<4x8x8xf32>
    %41 = vector.extract_strided_slice %28 {offsets = [0, 0], sizes = [8, 8], strides = [1, 1]} : vector<8x32xf32> to vector<8x8xf32>
    %42 = vector.shape_cast %41 : vector<8x8xf32> to vector<1x8x8xf32>
    %43 = vector.extract_strided_slice %28 {offsets = [0, 8], sizes = [8, 8], strides = [1, 1]} : vector<8x32xf32> to vector<8x8xf32>
    %44 = vector.shape_cast %43 : vector<8x8xf32> to vector<1x8x8xf32>
    %45 = vector.extract_strided_slice %28 {offsets = [0, 16], sizes = [8, 8], strides = [1, 1]} : vector<8x32xf32> to vector<8x8xf32>
    %46 = vector.shape_cast %45 : vector<8x8xf32> to vector<1x8x8xf32>
    %47 = vector.extract_strided_slice %28 {offsets = [0, 24], sizes = [8, 8], strides = [1, 1]} : vector<8x32xf32> to vector<8x8xf32>
    %48 = vector.shape_cast %47 : vector<8x8xf32> to vector<1x8x8xf32>
    %49 = tpu.concatenate %42, %44, %46, %48 in 0 : vector<1x8x8xf32>, vector<1x8x8xf32>, vector<1x8x8xf32>, vector<1x8x8xf32> -> vector<4x8x8xf32>
    %50 = vector.extract_strided_slice %31 {offsets = [0, 0], sizes = [8, 8], strides = [1, 1]} : vector<8x32xf32> to vector<8x8xf32>
    %51 = vector.shape_cast %50 : vector<8x8xf32> to vector<1x8x8xf32>
    %52 = vector.extract_strided_slice %31 {offsets = [0, 8], sizes = [8, 8], strides = [1, 1]} : vector<8x32xf32> to vector<8x8xf32>
    %53 = vector.shape_cast %52 : vector<8x8xf32> to vector<1x8x8xf32>
    %54 = vector.extract_strided_slice %31 {offsets = [0, 16], sizes = [8, 8], strides = [1, 1]} : vector<8x32xf32> to vector<8x8xf32>
    %55 = vector.shape_cast %54 : vector<8x8xf32> to vector<1x8x8xf32>
    %56 = vector.extract_strided_slice %31 {offsets = [0, 24], sizes = [8, 8], strides = [1, 1]} : vector<8x32xf32> to vector<8x8xf32>
    %57 = vector.shape_cast %56 : vector<8x8xf32> to vector<1x8x8xf32>
    %58 = tpu.concatenate %51, %53, %55, %57 in 0 : vector<1x8x8xf32>, vector<1x8x8xf32>, vector<1x8x8xf32>, vector<1x8x8xf32> -> vector<4x8x8xf32>
    %59 = vector.shape_cast %3 : vector<8x1xf32> to vector<1x8x1xf32>
    %60 = vector.shape_cast %3 : vector<8x1xf32> to vector<1x8x1xf32>
    %61 = vector.shape_cast %3 : vector<8x1xf32> to vector<1x8x1xf32>
    %62 = vector.shape_cast %3 : vector<8x1xf32> to vector<1x8x1xf32>
    %63 = tpu.concatenate %59, %60, %61, %62 in 0 : vector<1x8x1xf32>, vector<1x8x1xf32>, vector<1x8x1xf32>, vector<1x8x1xf32> -> vector<4x8x1xf32>
    "tpu.trace_start"() <{level = 10 : i32, message = "gqd,gkd->gqk"}> : () -> ()
    %cst_31 = arith.constant dense<0.000000e+00> : vector<4x8x8xf32>
    %64 = tpu.matmul %40, %49, %cst_31 {dimension_numbers = #tpu.dot_dimension_numbers<[2], [2], [1], [1], [0, 0, 0, 1, 1, 1], [0], [0]>, precision = #tpu.contract_precision<fp32>} : vector<4x8x8xf32>, vector<4x8x8xf32>, vector<4x8x8xf32> -> vector<4x8x8xf32>
    "tpu.trace_stop"() : () -> ()
    %cst_32 = arith.constant 1.000000e+00 : f32
    %65 = vector.broadcast %cst_32 : f32 to vector<4x8x8xf32>
    %66 = arith.mulf %64, %65 : vector<4x8x8xf32>
    %cst_33 = arith.constant 0.000000e+00 : f32
    %67 = vector.broadcast %cst_33 : f32 to vector<4x8x8xf32>
    %68 = arith.cmpf oeq, %66, %67 : vector<4x8x8xf32>
    %cst_34 = arith.constant -1.000000e+20 : f32
    %69 = vector.broadcast %cst_34 : f32 to vector<4x8x8xf32>
    %70 = arith.select %68, %69, %66 : vector<4x8x8xi1>, vector<4x8x8xf32>
    %cst_35 = arith.constant dense<0xFF800000> : vector<4x8xf32>
    %71 = vector.multi_reduction <maximumf>, %70, %cst_35 [2] : vector<4x8x8xf32> to vector<4x8xf32>
    %72 = vector.shape_cast %71 : vector<4x8xf32> to vector<4x8x1xf32>
    %73 = vector.broadcast %72 : vector<4x8x1xf32> to vector<4x8x8xf32>
    %74 = arith.subf %70, %73 : vector<4x8x8xf32>
    %75 = math.exp %74 : vector<4x8x8xf32>
    %cst_36 = arith.constant dense<0.000000e+00> : vector<4x8xf32>
    %76 = vector.multi_reduction <add>, %75, %cst_36 [2] : vector<4x8x8xf32> to vector<4x8xf32>
    %77 = vector.shape_cast %76 : vector<4x8xf32> to vector<4x8x1xf32>
    %78 = vector.broadcast %77 : vector<4x8x1xf32> to vector<4x8x8xf32>
    %79 = arith.divf %75, %78 : vector<4x8x8xf32>
    %cst_37 = arith.constant 0.000000e+00 : f32
    %80 = vector.broadcast %cst_37 : f32 to vector<4x8x1xf32>
    %81 = arith.cmpf ogt, %63, %80 : vector<4x8x1xf32>
    %82 = vector.shape_cast %81 : vector<4x8x1xi1> to vector<4x8x1xi1>
    %83 = vector.broadcast %82 : vector<4x8x1xi1> to vector<4x8x8xi1>
    %84 = arith.select %83, %79, %66 : vector<4x8x8xi1>, vector<4x8x8xf32>
    "tpu.trace_start"() <{level = 10 : i32, message = "gqk,gkd->gqd"}> : () -> ()
    %cst_38 = arith.constant dense<0.000000e+00> : vector<4x8x8xf32>
    %85 = tpu.matmul %84, %58, %cst_38 {dimension_numbers = #tpu.dot_dimension_numbers<[2], [1], [1], [2], [0, 0, 0, 1, 1, 2], [0], [0]>, precision = #tpu.contract_precision<fp32>} : vector<4x8x8xf32>, vector<4x8x8xf32>, vector<4x8x8xf32> -> vector<4x8x8xf32>
    "tpu.trace_stop"() : () -> ()
    %86 = vector.extract_strided_slice %85 {offsets = [0, 0, 0], sizes = [1, 8, 8], strides = [1, 1, 1]} : vector<4x8x8xf32> to vector<1x8x8xf32>
    %87 = vector.shape_cast %86 : vector<1x8x8xf32> to vector<8x8xf32>
    %88 = vector.extract_strided_slice %85 {offsets = [1, 0, 0], sizes = [1, 8, 8], strides = [1, 1, 1]} : vector<4x8x8xf32> to vector<1x8x8xf32>
    %89 = vector.shape_cast %88 : vector<1x8x8xf32> to vector<8x8xf32>
    %90 = vector.extract_strided_slice %85 {offsets = [2, 0, 0], sizes = [1, 8, 8], strides = [1, 1, 1]} : vector<4x8x8xf32> to vector<1x8x8xf32>
    %91 = vector.shape_cast %90 : vector<1x8x8xf32> to vector<8x8xf32>
    %92 = vector.extract_strided_slice %85 {offsets = [3, 0, 0], sizes = [1, 8, 8], strides = [1, 1, 1]} : vector<4x8x8xf32> to vector<1x8x8xf32>
    %93 = vector.shape_cast %92 : vector<1x8x8xf32> to vector<8x8xf32>
    %94 = tpu.concatenate %87, %89, %91, %93 in 1 : vector<8x8xf32>, vector<8x8xf32>, vector<8x8xf32>, vector<8x8xf32> -> vector<8x32xf32>
    %cst_39 = arith.constant 0.000000e+00 : f32
    %95 = vector.broadcast %cst_39 : f32 to vector<8x32xf32>
    %96 = arith.cmpf oge, %94, %95 : vector<8x32xf32>
    %cst_40 = arith.constant 0.00999999977 : f32
    %97 = vector.broadcast %cst_40 : f32 to vector<8x32xf32>
    %98 = arith.mulf %97, %94 : vector<8x32xf32>
    %99 = arith.select %96, %94, %98 : vector<8x32xi1>, vector<8x32xf32>
    %100 = arith.addf %99, %1 : vector<8x32xf32>
    %cst_41 = arith.constant dense<0.000000e+00> : vector<8xf32>
    %101 = vector.multi_reduction <add>, %100, %cst_41 [1] : vector<8x32xf32> to vector<8xf32>
    %102 = vector.shape_cast %101 : vector<8xf32> to vector<8x1xf32>
    %cst_42 = arith.constant 3.200000e+01 : f32
    %103 = vector.broadcast %cst_42 : f32 to vector<8x1xf32>
    %104 = arith.divf %102, %103 : vector<8x1xf32>
    %105 = vector.broadcast %104 : vector<8x1xf32> to vector<8x32xf32>
    %106 = arith.subf %100, %105 : vector<8x32xf32>
    %107 = arith.mulf %106, %106 : vector<8x32xf32>
    %cst_43 = arith.constant dense<0.000000e+00> : vector<8xf32>
    %108 = vector.multi_reduction <add>, %107, %cst_43 [1] : vector<8x32xf32> to vector<8xf32>
    %109 = vector.shape_cast %108 : vector<8xf32> to vector<8x1xf32>
    %cst_44 = arith.constant 3.200000e+01 : f32
    %110 = vector.broadcast %cst_44 : f32 to vector<8x1xf32>
    %111 = arith.divf %109, %110 : vector<8x1xf32>
    %112 = vector.broadcast %104 : vector<8x1xf32> to vector<8x32xf32>
    %113 = arith.subf %100, %112 : vector<8x32xf32>
    %cst_45 = arith.constant 9.99999974E-6 : f32
    %114 = vector.broadcast %cst_45 : f32 to vector<8x1xf32>
    %115 = arith.addf %111, %114 : vector<8x1xf32>
    %116 = math.rsqrt %115 : vector<8x1xf32>
    %117 = vector.broadcast %116 : vector<8x1xf32> to vector<8x32xf32>
    %118 = arith.mulf %113, %117 : vector<8x32xf32>
    %119 = vector.broadcast %6 : vector<1x32xf32> to vector<8x32xf32>
    %120 = arith.mulf %118, %119 : vector<8x32xf32>
    %121 = vector.broadcast %7 : vector<1x32xf32> to vector<8x32xf32>
    %122 = arith.addf %120, %121 : vector<8x32xf32>
    %c0_46 = arith.constant 0 : index
    %c0_47 = arith.constant 0 : index
    %123 = vector.load %arg4[%c0_46, %c0_47] : memref<32x64xf32, #tpu.memory_space<vmem>>, vector<32x64xf32>
    %cst_48 = arith.constant dense<0.000000e+00> : vector<8x64xf32>
    %124 = tpu.matmul %122, %123, %cst_48 {dimension_numbers = #tpu.dot_dimension_numbers<[1], [0], [0], [1], [0, 0, 1, 1], [], []>, precision = #tpu.contract_precision<fp32>} : vector<8x32xf32>, vector<32x64xf32>, vector<8x64xf32> -> vector<8x64xf32>
    %125 = vector.broadcast %4 : vector<1x64xf32> to vector<8x64xf32>
    %126 = arith.addf %124, %125 : vector<8x64xf32>
    %cst_49 = arith.constant 0.000000e+00 : f32
    %127 = vector.broadcast %cst_49 : f32 to vector<8x64xf32>
    %128 = arith.cmpf oge, %126, %127 : vector<8x64xf32>
    %cst_50 = arith.constant 0.00999999977 : f32
    %129 = vector.broadcast %cst_50 : f32 to vector<8x64xf32>
    %130 = arith.mulf %129, %126 : vector<8x64xf32>
    %131 = arith.select %128, %126, %130 : vector<8x64xi1>, vector<8x64xf32>
    %c0_51 = arith.constant 0 : index
    %c0_52 = arith.constant 0 : index
    %132 = vector.load %arg5[%c0_51, %c0_52] : memref<64x32xf32, #tpu.memory_space<vmem>>, vector<64x32xf32>
    %cst_53 = arith.constant dense<0.000000e+00> : vector<8x32xf32>
    %133 = tpu.matmul %131, %132, %cst_53 {dimension_numbers = #tpu.dot_dimension_numbers<[1], [0], [0], [1], [0, 0, 1, 1], [], []>, precision = #tpu.contract_precision<fp32>} : vector<8x64xf32>, vector<64x32xf32>, vector<8x32xf32> -> vector<8x32xf32>
    %134 = vector.broadcast %5 : vector<1x32xf32> to vector<8x32xf32>
    %135 = arith.addf %133, %134 : vector<8x32xf32>
    %136 = arith.addf %135, %122 : vector<8x32xf32>
    %cst_54 = arith.constant dense<0.000000e+00> : vector<8xf32>
    %137 = vector.multi_reduction <add>, %136, %cst_54 [1] : vector<8x32xf32> to vector<8xf32>
    %138 = vector.shape_cast %137 : vector<8xf32> to vector<8x1xf32>
    %cst_55 = arith.constant 3.200000e+01 : f32
    %139 = vector.broadcast %cst_55 : f32 to vector<8x1xf32>
    %140 = arith.divf %138, %139 : vector<8x1xf32>
    %141 = vector.broadcast %140 : vector<8x1xf32> to vector<8x32xf32>
    %142 = arith.subf %136, %141 : vector<8x32xf32>
    %143 = arith.mulf %142, %142 : vector<8x32xf32>
    %cst_56 = arith.constant dense<0.000000e+00> : vector<8xf32>
    %144 = vector.multi_reduction <add>, %143, %cst_56 [1] : vector<8x32xf32> to vector<8xf32>
    %145 = vector.shape_cast %144 : vector<8xf32> to vector<8x1xf32>
    %cst_57 = arith.constant 3.200000e+01 : f32
    %146 = vector.broadcast %cst_57 : f32 to vector<8x1xf32>
    %147 = arith.divf %145, %146 : vector<8x1xf32>
    %148 = vector.broadcast %140 : vector<8x1xf32> to vector<8x32xf32>
    %149 = arith.subf %136, %148 : vector<8x32xf32>
    %cst_58 = arith.constant 9.99999974E-6 : f32
    %150 = vector.broadcast %cst_58 : f32 to vector<8x1xf32>
    %151 = arith.addf %147, %150 : vector<8x1xf32>
    %152 = math.rsqrt %151 : vector<8x1xf32>
    %153 = vector.broadcast %152 : vector<8x1xf32> to vector<8x32xf32>
    %154 = arith.mulf %149, %153 : vector<8x32xf32>
    %155 = vector.broadcast %8 : vector<1x32xf32> to vector<8x32xf32>
    %156 = arith.mulf %154, %155 : vector<8x32xf32>
    %157 = vector.broadcast %9 : vector<1x32xf32> to vector<8x32xf32>
    %158 = arith.addf %156, %157 : vector<8x32xf32>
    %159 = vector.broadcast %3 : vector<8x1xf32> to vector<8x32xf32>
    %160 = arith.mulf %158, %159 : vector<8x32xf32>
    %161 = vector.extract_strided_slice %160 {offsets = [0, 0], sizes = [1, 32], strides = [1, 1]} : vector<8x32xf32> to vector<1x32xf32>
    %162 = vector.extract_strided_slice %160 {offsets = [1, 0], sizes = [1, 32], strides = [1, 1]} : vector<8x32xf32> to vector<1x32xf32>
    %163 = vector.extract_strided_slice %160 {offsets = [2, 0], sizes = [1, 32], strides = [1, 1]} : vector<8x32xf32> to vector<1x32xf32>
    %164 = vector.extract_strided_slice %160 {offsets = [3, 0], sizes = [1, 32], strides = [1, 1]} : vector<8x32xf32> to vector<1x32xf32>
    %165 = tpu.concatenate %161, %162, %163, %164 in 1 : vector<1x32xf32>, vector<1x32xf32>, vector<1x32xf32>, vector<1x32xf32> -> vector<1x128xf32>
    %166 = vector.extract_strided_slice %160 {offsets = [4, 0], sizes = [1, 32], strides = [1, 1]} : vector<8x32xf32> to vector<1x32xf32>
    %167 = vector.extract_strided_slice %160 {offsets = [5, 0], sizes = [1, 32], strides = [1, 1]} : vector<8x32xf32> to vector<1x32xf32>
    %168 = vector.extract_strided_slice %160 {offsets = [6, 0], sizes = [1, 32], strides = [1, 1]} : vector<8x32xf32> to vector<1x32xf32>
    %169 = vector.extract_strided_slice %160 {offsets = [7, 0], sizes = [1, 32], strides = [1, 1]} : vector<8x32xf32> to vector<1x32xf32>
    %170 = tpu.concatenate %166, %167, %168, %169 in 1 : vector<1x32xf32>, vector<1x32xf32>, vector<1x32xf32>, vector<1x32xf32> -> vector<1x128xf32>
    %171 = tpu.concatenate %165, %170 in 0 : vector<1x128xf32>, vector<1x128xf32> -> vector<2x128xf32>
    %c0_59 = arith.constant 0 : index
    %c0_60 = arith.constant 0 : index
    %c0_61 = arith.constant 0 : index
    %172 = vector.load %arg7[%c0_59, %c0_60, %c0_61] : memref<1x2x128xf32, #tpu.memory_space<vmem>>, vector<1x2x128xf32>
    %173 = vector.shape_cast %172 : vector<1x2x128xf32> to vector<2x128xf32>
    %174 = vector.shape_cast %171 : vector<2x128xf32> to vector<1x2x128xf32>
    tpu.vector_store %arg7[%c0_59, %c0_60, %c0_61], %174 {strides = array<i32>} : memref<1x2x128xf32, #tpu.memory_space<vmem>>, vector<1x2x128xf32>,
    return
  }
  func.func @transform_0(%arg0: i32) -> (i32, i32, i32) {
    %c0_i32 = arith.constant 0 : i32
    %c0_i32_0 = arith.constant 0 : i32
    %c0_i32_1 = arith.constant 0 : i32
    return %arg0, %c0_i32, %c0_i32_0 : i32, i32, i32
  }
  func.func @transform_1(%arg0: i32) -> (i32, i32, i32) {
    %c0_i32 = arith.constant 0 : i32
    %c0_i32_0 = arith.constant 0 : i32
    %c0_i32_1 = arith.constant 0 : i32
    return %arg0, %c0_i32, %c0_i32_0 : i32, i32, i32
  }
  func.func @transform_2(%arg0: i32) -> (i32, i32, i32) {
    %c0_i32 = arith.constant 0 : i32
    %c0_i32_0 = arith.constant 0 : i32
    %c0_i32_1 = arith.constant 0 : i32
    %c0_i32_2 = arith.constant 0 : i32
    return %c0_i32, %c0_i32_0, %c0_i32_1 : i32, i32, i32
  }
  func.func @transform_3(%arg0: i32) -> (i32, i32) {
    %c0_i32 = arith.constant 0 : i32
    %c0_i32_0 = arith.constant 0 : i32
    %c0_i32_1 = arith.constant 0 : i32
    return %c0_i32, %c0_i32_0 : i32, i32
  }
  func.func @transform_4(%arg0: i32) -> (i32, i32) {
    %c0_i32 = arith.constant 0 : i32
    %c0_i32_0 = arith.constant 0 : i32
    %c0_i32_1 = arith.constant 0 : i32
    return %c0_i32, %c0_i32_0 : i32, i32
  }
  func.func @transform_5(%arg0: i32) -> (i32, i32) {
    %c0_i32 = arith.constant 0 : i32
    %c0_i32_0 = arith.constant 0 : i32
    %c0_i32_1 = arith.constant 0 : i32
    return %c0_i32, %c0_i32_0 : i32, i32
  }
  func.func @transform_6(%arg0: i32) -> (i32, i32, i32) {
    %c0_i32 = arith.constant 0 : i32
    %c0_i32_0 = arith.constant 0 : i32
    %c0_i32_1 = arith.constant 0 : i32
    return %arg0, %c0_i32, %c0_i32_0 : i32, i32, i32
  }
}

</mosaic_0001>

<llo_original>
// kernel: tpu_custom_call.1
$region0: #{tpu_custom_call.1}
  #allocation0 [shape = 'u32[]', space=smem, size = 0x4, offset = 0x4, fixed_abs, tag = 'smem constant byte address 0x4 - core index']
  #allocation1 [shape = 'u32[144,128]{1,0:T(1,128)}', space=vmem, size = 0x12000, scoped, tag = 'internal scratch']
  %s0 = inlined_call_operand.vmem [shape: f32[2,8,32], index: 0, kind: input, shape index: {}]
  %s1 = inlined_call_operand.vmem [shape: f32[2,8,1], index: 1, kind: input, shape index: {}]
  %s2 = inlined_call_operand.hbm [shape: f32[5,32,32], index: 2, kind: input, shape index: {}]
  %s3 = inlined_call_operand.vmem [shape: f32[32,64], index: 3, kind: input, shape index: {}]
  %s4 = inlined_call_operand.vmem [shape: f32[64,32], index: 4, kind: input, shape index: {}]
  %s5 = inlined_call_operand.vmem [shape: f32[6,64], index: 5, kind: input, shape index: {}]
  %s6 = inlined_call_operand.hbm [shape: f32[2,2,128], index: 6, kind: output, shape index: {}]
  %s7 = sld [smem:[#allocation0]]
  $region61: #{tpu_custom_call.1} parent=0
    _
  %s9 = ssub.s32 1, %s7
  %s10 = scalar_select 0, %s9, %s7
  $region1: #{tpu_custom_call.1} parent=0
    #allocation2 [shape = 'u8[81920]{0}', space=vmem, size = 0x14000, scoped, tag = 'input window, operand 2, single buffered']
    #allocation3 [shape = 's32[2]{0}', space=sflag, size = 0x8, scoped, tag = 'scoped memory for tpu_custom_call.1']
    #allocation4 [shape = 's32[2]{0}', space=sflag, size = 0x8, scoped, tag = 'scoped memory for tpu_custom_call.1']
    #allocation5 [shape = 'u8[2048]{0}', space=vmem, size = 0x800, scoped, tag = 'output window, operand 0']
    %11 = vsyncpa [#allocation3], 0
    %12 = vsyncpa [#allocation4], 0
    %s13 = scalar_lea.sflag [#allocation4], 1
    %14 = vsyncpa %s13, 0
    loop: start=0, step=1, limit=4
    $region2: #{tpu_custom_call.1} parent=1 // loop_pre_header
      _
    $region3: #{tpu_custom_call.1} parent=1 // loop_header
      %s16 = sphi 0, %s20
      %p17 = scmp.ge.s32.totalorder %s16, 4
      %s26 = sphi 0, %s28
      %s29 = sphi 0, %s26
      %s30 = sphi 0, %s29
      %s46 = sphi 0, %s30
      %s52 = sphi 0, %s54
      %s55 = sphi 0, %s52
      %s56 = sphi 0, %s55
      %s72 = sphi 0, %s56
      %s76 = sphi 0, %s76
      %s78 = sphi 0, %s76
      %s79 = sphi 0, %s78
      %s93 = sphi 0, %s79
      %s97 = sphi 0, %s97
      %s99 = sphi 0, %s97
      %s100 = sphi 0, %s99
      %s114 = sphi 0, %s100
      %s118 = sphi 0, %s118
      %s120 = sphi 0, %s118
      %s121 = sphi 0, %s120
      %s135 = sphi 0, %s121
      %s139 = sphi 0, %s139
      %s141 = sphi 0, %s139
      %s142 = sphi 0, %s141
      %s156 = sphi 0, %s142
      %s162 = sphi 0, %s164
      %s165 = sphi 0, %s162
      %s166 = sphi 0, %s165
      %s182 = sphi 0, %s166
    $region4: #{tpu_custom_call.1} parent=1 // loop_header_branch
      %19 = sbr.rel (%p17) target = $region8
    $region5: #{tpu_custom_call.1} parent=1 // loop_body
      %s21 = ssub.s32 %s16, 1
      %s22 = ssub.s32 %s16, 2
      %s23 = sadd.s32 %s16, 1
      %s24 = ssub.s32 %s16, %s23
      %p25 = scmp.eq.s32.totalorder %s24, 0
      %s27 = sadd.s32 %s26, 1
      %s28 = scalar_select %p25, %s26, %s27
      %p31 = pneg %p25
      %p32 = scmp.eq.s32.totalorder %s16, 1
      %p33 = por %p31, %p32
      %p34 = scmp.ne.s32.totalorder %s26, %s29
      %p35 = scmp.eq.s32.totalorder %s16, 0
      %p36 = por %p34, %p35
      %p37 = scmp.ne.s32.totalorder %s26, %s29
      %p38 = scmp.eq.s32.totalorder %s21, 1
      %p39 = por %p37, %p38
      %p40 = scmp.ne.s32.totalorder %s29, %s30
      %p41 = scmp.eq.s32.totalorder %s21, 0
      %p42 = por %p40, %p41
      %p43 = scmp.ne.s32.totalorder %s29, %s30
      %p44 = scmp.eq.s32.totalorder %s22, 1
      %p45 = por %p43, %p44
      %p47 = scmp.ne.s32.totalorder %s30, %s46
      %p48 = scmp.eq.s32.totalorder %s22, 0
      %p49 = por %p47, %p48
      %s50 = ssub.s32 %s16, %s23
      %p51 = scmp.eq.s32.totalorder %s50, 0
      %s53 = sadd.s32 %s52, 1
      %s54 = scalar_select %p51, %s52, %s53
      %p57 = pneg %p51
      %p58 = scmp.eq.s32.totalorder %s16, 1
      %p59 = por %p57, %p58
      %p60 = scmp.ne.s32.totalorder %s52, %s55
      %p61 = scmp.eq.s32.totalorder %s16, 0
      %p62 = por %p60, %p61
      %p63 = scmp.ne.s32.totalorder %s52, %s55
      %p64 = scmp.eq.s32.totalorder %s21, 1
      %p65 = por %p63, %p64
      %p66 = scmp.ne.s32.totalorder %s55, %s56
      %p67 = scmp.eq.s32.totalorder %s21, 0
      %p68 = por %p66, %p67
      %p69 = scmp.ne.s32.totalorder %s55, %s56
      %p70 = scmp.eq.s32.totalorder %s22, 1
      %p71 = por %p69, %p70
      %p73 = scmp.ne.s32.totalorder %s56, %s72
      %p74 = scmp.eq.s32.totalorder %s22, 0
      %p75 = por %p73, %p74
      %s77 = sadd.s32 %s76, 1
      %p80 = scmp.eq.s32.totalorder %s16, 1
      %p81 = scmp.ne.s32.totalorder %s76, %s78
      %p82 = scmp.eq.s32.totalorder %s16, 0
      %p83 = por %p81, %p82
      %p84 = scmp.ne.s32.totalorder %s76, %s78
      %p85 = scmp.eq.s32.totalorder %s21, 1
      %p86 = por %p84, %p85
      %p87 = scmp.ne.s32.totalorder %s78, %s79
      %p88 = scmp.eq.s32.totalorder %s21, 0
      %p89 = por %p87, %p88
      %p90 = scmp.ne.s32.totalorder %s78, %s79
      %p91 = scmp.eq.s32.totalorder %s22, 1
      %p92 = por %p90, %p91
      %p94 = scmp.ne.s32.totalorder %s79, %s93
      %p95 = scmp.eq.s32.totalorder %s22, 0
      %p96 = por %p94, %p95
      %s98 = sadd.s32 %s97, 1
      %p101 = scmp.eq.s32.totalorder %s16, 1
      %p102 = scmp.ne.s32.totalorder %s97, %s99
      %p103 = scmp.eq.s32.totalorder %s16, 0
      %p104 = por %p102, %p103
      %p105 = scmp.ne.s32.totalorder %s97, %s99
      %p106 = scmp.eq.s32.totalorder %s21, 1
      %p107 = por %p105, %p106
      %p108 = scmp.ne.s32.totalorder %s99, %s100
      %p109 = scmp.eq.s32.totalorder %s21, 0
      %p110 = por %p108, %p109
      %p111 = scmp.ne.s32.totalorder %s99, %s100
      %p112 = scmp.eq.s32.totalorder %s22, 1
      %p113 = por %p111, %p112
      %p115 = scmp.ne.s32.totalorder %s100, %s114
      %p116 = scmp.eq.s32.totalorder %s22, 0
      %p117 = por %p115, %p116
      %s119 = sadd.s32 %s118, 1
      %p122 = scmp.eq.s32.totalorder %s16, 1
      %p123 = scmp.ne.s32.totalorder %s118, %s120
      %p124 = scmp.eq.s32.totalorder %s16, 0
      %p125 = por %p123, %p124
      %p126 = scmp.ne.s32.totalorder %s118, %s120
      %p127 = scmp.eq.s32.totalorder %s21, 1
      %p128 = por %p126, %p127
      %p129 = scmp.ne.s32.totalorder %s120, %s121
      %p130 = scmp.eq.s32.totalorder %s21, 0
      %p131 = por %p129, %p130
      %p132 = scmp.ne.s32.totalorder %s120, %s121
      %p133 = scmp.eq.s32.totalorder %s22, 1
      %p134 = por %p132, %p133
      %p136 = scmp.ne.s32.totalorder %s121, %s135
      %p137 = scmp.eq.s32.totalorder %s22, 0
      %p138 = por %p136, %p137
      %s140 = sadd.s32 %s139, 1
      %p143 = scmp.eq.s32.totalorder %s16, 1
      %p144 = scmp.ne.s32.totalorder %s139, %s141
      %p145 = scmp.eq.s32.totalorder %s16, 0
      %p146 = por %p144, %p145
      %p147 = scmp.ne.s32.totalorder %s139, %s141
      %p148 = scmp.eq.s32.totalorder %s21, 1
      %p149 = por %p147, %p148
      %p150 = scmp.ne.s32.totalorder %s141, %s142
      %p151 = scmp.eq.s32.totalorder %s21, 0
      %p152 = por %p150, %p151
      %p153 = scmp.ne.s32.totalorder %s141, %s142
      %p154 = scmp.eq.s32.totalorder %s22, 1
      %p155 = por %p153, %p154
      %p157 = scmp.ne.s32.totalorder %s142, %s156
      %p158 = scmp.eq.s32.totalorder %s22, 0
      %p159 = por %p157, %p158
      %s160 = ssub.s32 %s16, %s23
      %p161 = scmp.eq.s32.totalorder %s160, 0
      %s163 = sadd.s32 %s162, 1
      %s164 = scalar_select %p161, %s162, %s163
      %p167 = pneg %p161
      %p168 = scmp.eq.s32.totalorder %s16, 1
      %p169 = por %p167, %p168
      %p170 = scmp.ne.s32.totalorder %s162, %s165
      %p171 = scmp.eq.s32.totalorder %s16, 0
      %p172 = por %p170, %p171
      %p173 = scmp.ne.s32.totalorder %s162, %s165
      %p174 = scmp.eq.s32.totalorder %s21, 1
      %p175 = por %p173, %p174
      %p176 = scmp.ne.s32.totalorder %s165, %s166
      %p177 = scmp.eq.s32.totalorder %s21, 0
      %p178 = por %p176, %p177
      %p179 = scmp.ne.s32.totalorder %s165, %s166
      %p180 = scmp.eq.s32.totalorder %s22, 1
      %p181 = por %p179, %p180
      %p183 = scmp.ne.s32.totalorder %s166, %s182
      %p184 = scmp.eq.s32.totalorder %s22, 0
      %p185 = por %p183, %p184
      %p186 = scmp.le.s32.totalorder 1, %s16
      %p187 = scmp.lt.s32.totalorder %s16, 3
      %p188 = pnand %p186, %p187
      %p189 = pneg %p188
      // Predicated region
      $region9: #{tpu_custom_call.1} parent=5 // pred_check
        _
      $region10: #{tpu_custom_call.1} parent=5 // pred_check_branch
        %191 = sbr.rel (%p188) target = $region12
      $region11: #{tpu_custom_call.1} parent=5 // pred_region
        %s192 = ssub.s32 %s16, 1
        // Predicated region
        $region13: #{tpu_custom_call.1} parent=11 // pred_check
          %p193 = pneg %p89
        $region14: #{tpu_custom_call.1} parent=11 // pred_check_branch
          %195 = sbr.rel (%p193) target = $region16
        $region15: #{tpu_custom_call.1} parent=11 // pred_region
          %s197 = ssub.s32 2560, 2560
          %198 = vsyncadd [#allocation3], %s197
          %s199 = sshll.u32 [#allocation2], 4
          %s200 = int_to_ptr.vmem [resolvable:$true] %s199
          %205 = dma.hbm_to_vmem [thread:$0]  %s2, 2560, %s200, [#allocation3], 128, 128, 8
        $region16: #{tpu_custom_call.1} parent=11 // pred_fallthru
          _
        // Predicated region
        $region17: #{tpu_custom_call.1} parent=11 // pred_check
          %p206 = pneg %p110
        $region18: #{tpu_custom_call.1} parent=11 // pred_check_branch
          %208 = sbr.rel (%p206) target = $region20
        $region19: #{tpu_custom_call.1} parent=11 // pred_region
          _
        $region20: #{tpu_custom_call.1} parent=11 // pred_fallthru
          _
        // Predicated region
        $region21: #{tpu_custom_call.1} parent=11 // pred_check
          %p209 = pneg %p131
        $region22: #{tpu_custom_call.1} parent=11 // pred_check_branch
          %211 = sbr.rel (%p209) target = $region24
        $region23: #{tpu_custom_call.1} parent=11 // pred_region
          _
        $region24: #{tpu_custom_call.1} parent=11 // pred_fallthru
          _
        // Predicated region
        $region25: #{tpu_custom_call.1} parent=11 // pred_check
          %p212 = pneg %p152
        $region26: #{tpu_custom_call.1} parent=11 // pred_check_branch
          %214 = sbr.rel (%p212) target = $region28
        $region27: #{tpu_custom_call.1} parent=11 // pred_region
          _
        $region28: #{tpu_custom_call.1} parent=11 // pred_fallthru
          _
      $region12: #{tpu_custom_call.1} parent=5 // pred_fallthru
        _
      %p215 = scmp.lt.s32.totalorder %s16, 2
      // Predicated region
      $region29: #{tpu_custom_call.1} parent=5 // pred_check
        %p216 = pneg %p215
      $region30: #{tpu_custom_call.1} parent=5 // pred_check_branch
        %218 = sbr.rel (%p216) target = $region32
      $region31: #{tpu_custom_call.1} parent=5 // pred_region
        // Predicated region
        $region33: #{tpu_custom_call.1} parent=31 // pred_check
          %p219 = pneg %p36
        $region34: #{tpu_custom_call.1} parent=31 // pred_check_branch
          %221 = sbr.rel (%p219) target = $region36
        $region35: #{tpu_custom_call.1} parent=31 // pred_region
          %p222 = scmp.lt.s32.totalorder %s16, 1
          %s223 = scalar_select %p222, %s16, 1
          %s224 = smul.addr %s223, 8
          %s225 = scalar_lea.vmem %s0, %s224
        $region36: #{tpu_custom_call.1} parent=31 // pred_fallthru
          _
        // Predicated region
        $region37: #{tpu_custom_call.1} parent=31 // pred_check
          %p226 = pneg %p62
        $region38: #{tpu_custom_call.1} parent=31 // pred_check_branch
          %228 = sbr.rel (%p226) target = $region40
        $region39: #{tpu_custom_call.1} parent=31 // pred_region
          %p229 = scmp.lt.s32.totalorder %s16, 1
          %s230 = scalar_select %p229, %s16, 1
          %s231 = smul.addr %s230, 8
          %s232 = scalar_lea.vmem %s1, %s231
        $region40: #{tpu_custom_call.1} parent=31 // pred_fallthru
          _
      $region32: #{tpu_custom_call.1} parent=5 // pred_fallthru
        _
      %p233 = scmp.le.s32.totalorder 1, %s16
      %p234 = scmp.lt.s32.totalorder %s16, 3
      %p235 = pnand %p233, %p234
      %p236 = pneg %p235
      // Predicated region
      $region41: #{tpu_custom_call.1} parent=5 // pred_check
        _
      $region42: #{tpu_custom_call.1} parent=5 // pred_check_branch
        %238 = sbr.rel (%p235) target = $region44
      $region43: #{tpu_custom_call.1} parent=5 // pred_region
        %s239 = ssub.s32 %s16, 1
        // Predicated region
        $region45: #{tpu_custom_call.1} parent=43 // pred_check
          %p240 = pneg %p89
        $region46: #{tpu_custom_call.1} parent=43 // pred_check_branch
          %242 = sbr.rel (%p240) target = $region48
        $region47: #{tpu_custom_call.1} parent=43 // pred_region
          %243 = dma.done [#allocation3], 2560
        $region48: #{tpu_custom_call.1} parent=43 // pred_fallthru
          _
        %p244 = scmp.lt.s32.totalorder %s21, 1
        %s245 = scalar_select %p244, %s21, 1
        %s246 = smul.addr %s245, 8
        %s247 = scalar_lea.vmem %s0, %s246
        %p248 = pneg %p42
        %p249 = pneg %p39
        %p250 = scmp.lt.s32.totalorder %s21, 1
        %s251 = scalar_select %p250, %s21, 1
        %s252 = smul.addr %s251, 8
        %s253 = scalar_lea.vmem %s1, %s252
        %p254 = pneg %p68
        %p255 = pneg %p65
        %p256 = pneg %p89
        %p257 = pneg %p86
        %p258 = pneg %p110
        %p259 = pneg %p107
        %p260 = pneg %p131
        %p261 = pneg %p128
        %p262 = pneg %p152
        %p263 = pneg %p149
        %p264 = pneg %p178
        %p265 = pneg %p175
        %s266 = sand.u32 %s165, 1
        %s267 = scalar_lea.sflag [#allocation4], %s266
        %s268 = sand.u32 %s165, 1
        %s269 = smul.addr %s268, 2
        %s270 = scalar_lea.vmem [#allocation5], %s269
        %p271 = scmp.lt.s32.totalorder %s21, 1
        %s272 = scalar_select %p271, %s21, 1
        %s273 = smul.addr %s272, 8
        %s274 = scalar_lea.vmem %s0, %s273
        %p275 = scmp.lt.s32.totalorder %s21, 1
        %s276 = scalar_select %p275, %s21, 1
        %s277 = smul.addr %s276, 8
        %s278 = scalar_lea.vmem %s1, %s277
        %v279 = vld [vmem:[%s274] sm:$0xff]
        %v280 = vld [vmem:[%s278] sm:$0xff]
        %v281 = vld [vmem:[%s5] sm:$0x1]
        %v282 = vld [vmem:[%s5 + $0x1] sm:$0x1]
        %v283 = vld [vmem:[%s5 + $0x2] sm:$0x1]
        %v284 = vld [vmem:[%s5 + $0x3] sm:$0x1]
        %v285 = vld [vmem:[%s5 + $0x4] sm:$0x1]
        %v286 = vld [vmem:[%s5 + $0x5] sm:$0x1]
        %v287 = vlaneseq
        %v288 = vshrl.u32 %v287, 7
        %v289 = vsub.s32 0, %v288
        %v290 = vrot.slane %v279, %v289
        %292 = vset.pattern.permute.xlu0 0
        %293 = vperm.xlu0 %292, %v280
        %v294 = vpop.permute.xlu0 %293
        %v296 = vmul.f32 %v290, %v294
        %v297 = vld [vmem:[#allocation2] sm:$0xff]
        %v298 = vld [vmem:[#allocation2 + $0x8] sm:$0xff]
        %v299 = vld [vmem:[#allocation2 + $0x10] sm:$0xff]
        %v300 = vld [vmem:[#allocation2 + $0x18] sm:$0xff]
        %s301 = scalar_lea.vmem [#allocation2], 32
        %v302 = vld [vmem:[%s301] sm:$0xff]
        %v303 = vld [vmem:[%s301 + $0x8] sm:$0xff]
        %v304 = vld [vmem:[%s301 + $0x10] sm:$0xff]
        %v305 = vld [vmem:[%s301 + $0x18] sm:$0xff]
        %s306 = scalar_lea.vmem [#allocation2], 64
        %v307 = vld [vmem:[%s306] sm:$0xff]
        %v308 = vld [vmem:[%s306 + $0x8] sm:$0xff]
        %v309 = vld [vmem:[%s306 + $0x10] sm:$0xff]
        %v310 = vld [vmem:[%s306 + $0x18] sm:$0xff]
        %s311 = scalar_lea.vmem [#allocation2], 96
        %v312 = vld [vmem:[%s311] sm:$0xff]
        %v313 = vld [vmem:[%s311 + $0x8] sm:$0xff]
        %v314 = vld [vmem:[%s311 + $0x10] sm:$0xff]
        %v315 = vld [vmem:[%s311 + $0x18] sm:$0xff]
        %s316 = scalar_lea.vmem [#allocation2], 128
        %v317 = vld [vmem:[%s316] sm:$0xff]
        %v318 = vld [vmem:[%s316 + $0x8] sm:$0xff]
        %v319 = vld [vmem:[%s316 + $0x10] sm:$0xff]
        %v320 = vld [vmem:[%s316 + $0x18] sm:$0xff]
        %vm321 = vcmask 261120
        %v323 = vsel %vm321, %v279, 0
        %325 = vmatprep.subr.mxu0 0.0
        %v326 = vand.u32 %v297, 4294901760
        %327 = vmatpush1.msra.mxu0 %v326
        %328 = vmatprep.subr.mxu0 0.0
        %v329 = vand.u32 %v298, 4294901760
        %330 = vmatpush1.msra.mxu0 %v329
        %331 = vmatprep.subr.mxu0 0.0
        %v332 = vand.u32 %v299, 4294901760
        %333 = vmatpush1.msra.mxu0 %v332
        %334 = vmatprep.subr.mxu0 0.0
        %v335 = vand.u32 %v300, 4294901760
        %336 = vmatpush1.msra.mxu0 %v335
        %337 = vmatprep.subr.mxu0 0.0
        %338 = vmatpush1.msra.mxu0 0.0
        %339 = vmatprep.subr.mxu0 0.0
        %340 = vmatpush1.msra.mxu0 0.0
        %341 = vmatprep.subr.mxu0 0.0
        %342 = vmatpush1.msra.mxu0 0.0
        %343 = vmatprep.subr.mxu0 0.0
        %344 = vmatpush1.msra.mxu0 0.0
        %345 = vmatprep.subr.mxu0 0.0
        %346 = vmatpush1.msra.mxu0 0.0
        %347 = vmatprep.subr.mxu0 0.0
        %348 = vmatpush1.msra.mxu0 0.0
        %349 = vmatprep.subr.mxu0 0.0
        %350 = vmatpush1.msra.mxu0 0.0
        %351 = vmatprep.subr.mxu0 0.0
        %352 = vmatpush1.msra.mxu0 0.0
        %353 = vmatprep.subr.mxu0 0.0
        %354 = vmatpush1.msra.mxu0 0.0
        %355 = vmatprep.subr.mxu0 0.0
        %356 = vmatpush1.msra.mxu0 0.0
        %357 = vmatprep.subr.mxu0 0.0
        %358 = vmatpush1.msra.mxu0 0.0
        %359 = vmatprep.subr.mxu0 0.0
        %360 = vmatpush1.msra.mxu0 0.0
        %361 = vmatprep.subr.mxu0 0.0
        %362 = vmatpush1.msra.mxu0 0.0
        %363 = vmatprep.subr.mxu0 0.0
        %364 = vmatpush1.msra.mxu0 0.0
        %365 = vmatprep.subr.mxu0 0.0
        %366 = vmatpush1.msra.mxu0 0.0
        %367 = vmatprep.subr.mxu0 0.0
        %368 = vmatpush1.msra.mxu0 0.0
        %369 = vmatprep.subr.mxu0 0.0
        %370 = vmatpush1.msra.mxu0 0.0
        %371 = vmatprep.subr.mxu0 0.0
        %372 = vmatpush1.msra.mxu0 0.0
        %373 = vmatprep.subr.mxu0 0.0
        %374 = vmatpush1.msra.mxu0 0.0
        %375 = vmatprep.subr.mxu0 0.0
        %376 = vmatpush1.msra.mxu0 0.0
        %377 = vmatprep.subr.mxu0 0.0
        %378 = vmatpush1.msra.mxu0 0.0
        %379 = vmatprep.subr.mxu0 0.0
        %380 = vmatpush1.msra.mxu0 0.0
        %381 = vmatprep.subr.mxu0 0.0
        %382 = vmatpush1.msra.mxu0 0.0
        %383 = vmatprep.subr.mxu0 0.0
        %384 = vmatpush1.msra.mxu0 0.0
        %385 = vmatprep.subr.mxu0 0.0
        %386 = vmatpush1.msra.mxu0 0.0
        %387 = vmatprep.subr.mxu0 0.0
        %388 = vmatpush1.msra.mxu0 0.0
        %389 = vmatprep.subr.mxu0 0.0
        %390 = vmatpush1.msra.mxu0 0.0
        %391 = vmatprep.subr.mxu0 0.0
        %392 = vmatpush1.msra.mxu0 0.0
        %393 = vmatprep.mubr.f32.mxu0 0.0
        %v394 = vand.u32 %v323, 4294901760
        %v395 = vsub.f32 %v323, %v394
        %v396 = vand.u32 %v395, 4294901760
        %v397 = vsub.f32 %v395, %v396
        %v398 = vand.u32 %v397, 4294901760
        %399 = vmatmul.mubr.f32.gmra.mrb[0].mxu0 %v398
        %v400 = vpop.f32.mrb[0].mxu0
        %v401 = vadd.f32 0.0, %v400
        %v402 = vpop.f32.mrb[0].mxu0
        %403 = vdwg.mxu0
        %404 = vmatprep.subr.mxu0 0.0
        %v405 = vand.u32 %v297, 4294901760
        %v406 = vsub.f32 %v297, %v405
        %v407 = vand.u32 %v406, 4294901760
        %v408 = vsub.f32 %v406, %v407
        %v409 = vand.u32 %v408, 4294901760
        %410 = vmatpush1.msra.mxu0 %v409
        %411 = vmatprep.subr.mxu0 0.0
        %v412 = vand.u32 %v298, 4294901760
        %v413 = vsub.f32 %v298, %v412
        %v414 = vand.u32 %v413, 4294901760
        %v415 = vsub.f32 %v413, %v414
        %v416 = vand.u32 %v415, 4294901760
        %417 = vmatpush1.msra.mxu0 %v416
        %418 = vmatprep.subr.mxu0 0.0
        %v419 = vand.u32 %v299, 4294901760
        %v420 = vsub.f32 %v299, %v419
        %v421 = vand.u32 %v420, 4294901760
        %v422 = vsub.f32 %v420, %v421
        %v423 = vand.u32 %v422, 4294901760
        %424 = vmatpush1.msra.mxu0 %v423
        %425 = vmatprep.subr.mxu0 0.0
        %v426 = vand.u32 %v300, 4294901760
        %v427 = vsub.f32 %v300, %v426
        %v428 = vand.u32 %v427, 4294901760
        %v429 = vsub.f32 %v427, %v428
        %v430 = vand.u32 %v429, 4294901760
        %431 = vmatpush1.msra.mxu0 %v430
        %432 = vmatprep.subr.mxu0 0.0
        %433 = vmatpush1.msra.mxu0 0.0
        %434 = vmatprep.subr.mxu0 0.0
        %435 = vmatpush1.msra.mxu0 0.0
        %436 = vmatprep.subr.mxu0 0.0
        %437 = vmatpush1.msra.mxu0 0.0
        %438 = vmatprep.subr.mxu0 0.0
        %439 = vmatpush1.msra.mxu0 0.0
        %440 = vmatprep.subr.mxu0 0.0
        %441 = vmatpush1.msra.mxu0 0.0
        %442 = vmatprep.subr.mxu0 0.0
        %443 = vmatpush1.msra.mxu0 0.0
        %444 = vmatprep.subr.mxu0 0.0
        %445 = vmatpush1.msra.mxu0 0.0
        %446 = vmatprep.subr.mxu0 0.0
        %447 = vmatpush1.msra.mxu0 0.0
        %448 = vmatprep.subr.mxu0 0.0
        %449 = vmatpush1.msra.mxu0 0.0
        %450 = vmatprep.subr.mxu0 0.0
        %451 = vmatpush1.msra.mxu0 0.0
        %452 = vmatprep.subr.mxu0 0.0
        %453 = vmatpush1.msra.mxu0 0.0
        %454 = vmatprep.subr.mxu0 0.0
        %455 = vmatpush1.msra.mxu0 0.0
        %456 = vmatprep.subr.mxu0 0.0
        %457 = vmatpush1.msra.mxu0 0.0
        %458 = vmatprep.subr.mxu0 0.0
        %459 = vmatpush1.msra.mxu0 0.0
        %460 = vmatprep.subr.mxu0 0.0
        %461 = vmatpush1.msra.mxu0 0.0
        %462 = vmatprep.subr.mxu0 0.0
        %463 = vmatpush1.msra.mxu0 0.0
        %464 = vmatprep.subr.mxu0 0.0
        %465 = vmatpush1.msra.mxu0 0.0
        %466 = vmatprep.subr.mxu0 0.0
        %467 = vmatpush1.msra.mxu0 0.0
        %468 = vmatprep.subr.mxu0 0.0
        %469 = vmatpush1.msra.mxu0 0.0
        %470 = vmatprep.subr.mxu0 0.0
        %471 = vmatpush1.msra.mxu0 0.0
        %472 = vmatprep.subr.mxu0 0.0
        %473 = vmatpush1.msra.mxu0 0.0
        %474 = vmatprep.subr.mxu0 0.0
        %475 = vmatpush1.msra.mxu0 0.0
        %476 = vmatprep.subr.mxu0 0.0
        %477 = vmatpush1.msra.mxu0 0.0
        %478 = vmatprep.subr.mxu0 0.0
        %479 = vmatpush1.msra.mxu0 0.0
        %480 = vmatprep.subr.mxu0 0.0
        %481 = vmatpush1.msra.mxu0 0.0
        %482 = vmatprep.subr.mxu0 0.0
        %483 = vmatpush1.msra.mxu0 0.0
        %484 = vmatprep.subr.mxu0 0.0
        %485 = vmatpush1.msra.mxu0 0.0
        %486 = vmatprep.subr.mxu0 0.0
        %487 = vmatpush1.msra.mxu0 0.0
        %488 = vmatprep.mubr.f32.mxu0 0.0
        %v489 = vand.u32 %v323, 4294901760
        %490 = vmatmul.mubr.f32.gmra.mrb[0].mxu0 %v489
        %v491 = vpop.f32.mrb[0].mxu0
        %v492 = vadd.f32 %v401, %v491
        %v493 = vpop.f32.mrb[0].mxu0
        %494 = vdwg.mxu0
        %495 = vmatprep.subr.mxu0 0.0
        %v496 = vand.u32 %v297, 4294901760
        %v497 = vsub.f32 %v297, %v496
        %498 = vmatpush1.msra.mxu0 %v497
        %499 = vmatprep.subr.mxu0 0.0
        %v500 = vand.u32 %v298, 4294901760
        %v501 = vsub.f32 %v298, %v500
        %502 = vmatpush1.msra.mxu0 %v501
        %503 = vmatprep.subr.mxu0 0.0
        %v504 = vand.u32 %v299, 4294901760
        %v505 = vsub.f32 %v299, %v504
        %506 = vmatpush1.msra.mxu0 %v505
        %507 = vmatprep.subr.mxu0 0.0
        %v508 = vand.u32 %v300, 4294901760
        %v509 = vsub.f32 %v300, %v508
        %510 = vmatpush1.msra.mxu0 %v509
        %511 = vmatprep.subr.mxu0 0.0
        %512 = vmatpush1.msra.mxu0 0.0
        %513 = vmatprep.subr.mxu0 0.0
        %514 = vmatpush1.msra.mxu0 0.0
        %515 = vmatprep.subr.mxu0 0.0
        %516 = vmatpush1.msra.mxu0 0.0
        %517 = vmatprep.subr.mxu0 0.0
        %518 = vmatpush1.msra.mxu0 0.0
        %519 = vmatprep.subr.mxu0 0.0
        %520 = vmatpush1.msra.mxu0 0.0
        %521 = vmatprep.subr.mxu0 0.0
        %522 = vmatpush1.msra.mxu0 0.0
        %523 = vmatprep.subr.mxu0 0.0
        %524 = vmatpush1.msra.mxu0 0.0
        %525 = vmatprep.subr.mxu0 0.0
        %526 = vmatpush1.msra.mxu0 0.0
        %527 = vmatprep.subr.mxu0 0.0
        %528 = vmatpush1.msra.mxu0 0.0
        %529 = vmatprep.subr.mxu0 0.0
        %530 = vmatpush1.msra.mxu0 0.0
        %531 = vmatprep.subr.mxu0 0.0
        %532 = vmatpush1.msra.mxu0 0.0
        %533 = vmatprep.subr.mxu0 0.0
        %534 = vmatpush1.msra.mxu0 0.0
        %535 = vmatprep.subr.mxu0 0.0
        %536 = vmatpush1.msra.mxu0 0.0
        %537 = vmatprep.subr.mxu0 0.0
        %538 = vmatpush1.msra.mxu0 0.0
        %539 = vmatprep.subr.mxu0 0.0
        %540 = vmatpush1.msra.mxu0 0.0
        %541 = vmatprep.subr.mxu0 0.0
        %542 = vmatpush1.msra.mxu0 0.0
        %543 = vmatprep.subr.mxu0 0.0
        %544 = vmatpush1.msra.mxu0 0.0
        %545 = vmatprep.subr.mxu0 0.0
        %546 = vmatpush1.msra.mxu0 0.0
        %547 = vmatprep.subr.mxu0 0.0
        %548 = vmatpush1.msra.mxu0 0.0
        %549 = vmatprep.subr.mxu0 0.0
        %550 = vmatpush1.msra.mxu0 0.0
        %551 = vmatprep.subr.mxu0 0.0
        %552 = vmatpush1.msra.mxu0 0.0
        %553 = vmatprep.subr.mxu0 0.0
        %554 = vmatpush1.msra.mxu0 0.0
        %555 = vmatprep.subr.mxu0 0.0
        %556 = vmatpush1.msra.mxu0 0.0
        %557 = vmatprep.subr.mxu0 0.0
        %558 = vmatpush1.msra.mxu0 0.0
        %559 = vmatprep.subr.mxu0 0.0
        %560 = vmatpush1.msra.mxu0 0.0
        %561 = vmatprep.subr.mxu0 0.0
        %562 = vmatpush1.msra.mxu0 0.0
        %563 = vmatprep.subr.mxu0 0.0
        %564 = vmatpush1.msra.mxu0 0.0
        %565 = vmatprep.subr.mxu0 0.0
        %566 = vmatpush1.msra.mxu0 0.0
        %567 = vmatprep.mubr.f32.mxu0 0.0
        %v568 = vand.u32 %v323, 4294901760
        %v569 = vsub.f32 %v323, %v568
        %570 = vmatmul.mubr.f32.gmra.mrb[0].mxu0 %v569
        %v571 = vpop.f32.mrb[0].mxu0
        %v572 = vadd.f32 %v492, %v571
        %v573 = vpop.f32.mrb[0].mxu0
        %574 = vdwg.mxu0
        %575 = vmatprep.subr.mxu0 0.0
        %v576 = vand.u32 %v297, 4294901760
        %577 = vmatpush1.msra.mxu0 %v576
        %578 = vmatprep.subr.mxu0 0.0
        %v579 = vand.u32 %v298, 4294901760
        %580 = vmatpush1.msra.mxu0 %v579
        %581 = vmatprep.subr.mxu0 0.0
        %v582 = vand.u32 %v299, 4294901760
        %583 = vmatpush1.msra.mxu0 %v582
        %584 = vmatprep.subr.mxu0 0.0
        %v585 = vand.u32 %v300, 4294901760
        %586 = vmatpush1.msra.mxu0 %v585
        %587 = vmatprep.subr.mxu0 0.0
        %588 = vmatpush1.msra.mxu0 0.0
        %589 = vmatprep.subr.mxu0 0.0
        %590 = vmatpush1.msra.mxu0 0.0
        %591 = vmatprep.subr.mxu0 0.0
        %592 = vmatpush1.msra.mxu0 0.0
        %593 = vmatprep.subr.mxu0 0.0
        %594 = vmatpush1.msra.mxu0 0.0
        %595 = vmatprep.subr.mxu0 0.0
        %596 = vmatpush1.msra.mxu0 0.0
        %597 = vmatprep.subr.mxu0 0.0
        %598 = vmatpush1.msra.mxu0 0.0
        %599 = vmatprep.subr.mxu0 0.0
        %600 = vmatpush1.msra.mxu0 0.0
        %601 = vmatprep.subr.mxu0 0.0
        %602 = vmatpush1.msra.mxu0 0.0
        %603 = vmatprep.subr.mxu0 0.0
        %604 = vmatpush1.msra.mxu0 0.0
        %605 = vmatprep.subr.mxu0 0.0
        %606 = vmatpush1.msra.mxu0 0.0
        %607 = vmatprep.subr.mxu0 0.0
        %608 = vmatpush1.msra.mxu0 0.0
        %609 = vmatprep.subr.mxu0 0.0
        %610 = vmatpush1.msra.mxu0 0.0
        %611 = vmatprep.subr.mxu0 0.0
        %612 = vmatpush1.msra.mxu0 0.0
        %613 = vmatprep.subr.mxu0 0.0
        %614 = vmatpush1.msra.mxu0 0.0
        %615 = vmatprep.subr.mxu0 0.0
        %616 = vmatpush1.msra.mxu0 0.0
        %617 = vmatprep.subr.mxu0 0.0
        %618 = vmatpush1.msra.mxu0 0.0
        %619 = vmatprep.subr.mxu0 0.0
        %620 = vmatpush1.msra.mxu0 0.0
        %621 = vmatprep.subr.mxu0 0.0
        %622 = vmatpush1.msra.mxu0 0.0
        %623 = vmatprep.subr.mxu0 0.0
        %624 = vmatpush1.msra.mxu0 0.0
        %625 = vmatprep.subr.mxu0 0.0
        %626 = vmatpush1.msra.mxu0 0.0
        %627 = vmatprep.subr.mxu0 0.0
        %628 = vmatpush1.msra.mxu0 0.0
        %629 = vmatprep.subr.mxu0 0.0
        %630 = vmatpush1.msra.mxu0 0.0
        %631 = vmatprep.subr.mxu0 0.0
        %632 = vmatpush1.msra.mxu0 0.0
        %633 = vmatprep.subr.mxu0 0.0
        %634 = vmatpush1.msra.mxu0 0.0
        %635 = vmatprep.subr.mxu0 0.0
        %636 = vmatpush1.msra.mxu0 0.0
        %637 = vmatprep.subr.mxu0 0.0
        %638 = vmatpush1.msra.mxu0 0.0
        %639 = vmatprep.subr.mxu0 0.0
        %640 = vmatpush1.msra.mxu0 0.0
        %641 = vmatprep.subr.mxu0 0.0
        %642 = vmatpush1.msra.mxu0 0.0
        %643 = vmatprep.mubr.f32.mxu0 0.0
        %v644 = vand.u32 %v323, 4294901760
        %v645 = vsub.f32 %v323, %v644
        %v646 = vand.u32 %v645, 4294901760
        %647 = vmatmul.mubr.f32.gmra.mrb[0].mxu0 %v646
        %v648 = vpop.f32.mrb[0].mxu0
        %v649 = vadd.f32 %v572, %v648
        %v650 = vpop.f32.mrb[0].mxu0
        %651 = vdwg.mxu0
        %652 = vmatprep.subr.mxu0 0.0
        %v653 = vand.u32 %v297, 4294901760
        %v654 = vsub.f32 %v297, %v653
        %v655 = vand.u32 %v654, 4294901760
        %656 = vmatpush1.msra.mxu0 %v655
        %657 = vmatprep.subr.mxu0 0.0
        %v658 = vand.u32 %v298, 4294901760
        %v659 = vsub.f32 %v298, %v658
        %v660 = vand.u32 %v659, 4294901760
        %661 = vmatpush1.msra.mxu0 %v660
        %662 = vmatprep.subr.mxu0 0.0
        %v663 = vand.u32 %v299, 4294901760
        %v664 = vsub.f32 %v299, %v663
        %v665 = vand.u32 %v664, 4294901760
        %666 = vmatpush1.msra.mxu0 %v665
        %667 = vmatprep.subr.mxu0 0.0
        %v668 = vand.u32 %v300, 4294901760
        %v669 = vsub.f32 %v300, %v668
        %v670 = vand.u32 %v669, 4294901760
        %671 = vmatpush1.msra.mxu0 %v670
        %672 = vmatprep.subr.mxu0 0.0
        %673 = vmatpush1.msra.mxu0 0.0
        %674 = vmatprep.subr.mxu0 0.0
        %675 = vmatpush1.msra.mxu0 0.0
        %676 = vmatprep.subr.mxu0 0.0
        %677 = vmatpush1.msra.mxu0 0.0
        %678 = vmatprep.subr.mxu0 0.0
        %679 = vmatpush1.msra.mxu0 0.0
        %680 = vmatprep.subr.mxu0 0.0
        %681 = vmatpush1.msra.mxu0 0.0
        %682 = vmatprep.subr.mxu0 0.0
        %683 = vmatpush1.msra.mxu0 0.0
        %684 = vmatprep.subr.mxu0 0.0
        %685 = vmatpush1.msra.mxu0 0.0
        %686 = vmatprep.subr.mxu0 0.0
        %687 = vmatpush1.msra.mxu0 0.0
        %688 = vmatprep.subr.mxu0 0.0
        %689 = vmatpush1.msra.mxu0 0.0
        %690 = vmatprep.subr.mxu0 0.0
        %691 = vmatpush1.msra.mxu0 0.0
        %692 = vmatprep.subr.mxu0 0.0
        %693 = vmatpush1.msra.mxu0 0.0
        %694 = vmatprep.subr.mxu0 0.0
        %695 = vmatpush1.msra.mxu0 0.0
        %696 = vmatprep.subr.mxu0 0.0
        %697 = vmatpush1.msra.mxu0 0.0
        %698 = vmatprep.subr.mxu0 0.0
        %699 = vmatpush1.msra.mxu0 0.0
        %700 = vmatprep.subr.mxu0 0.0
        %701 = vmatpush1.msra.mxu0 0.0
        %702 = vmatprep.subr.mxu0 0.0
        %703 = vmatpush1.msra.mxu0 0.0
        %704 = vmatprep.subr.mxu0 0.0
        %705 = vmatpush1.msra.mxu0 0.0
        %706 = vmatprep.subr.mxu0 0.0
        %707 = vmatpush1.msra.mxu0 0.0
        %708 = vmatprep.subr.mxu0 0.0
        %709 = vmatpush1.msra.mxu0 0.0
        %710 = vmatprep.subr.mxu0 0.0
        %711 = vmatpush1.msra.mxu0 0.0
        %712 = vmatprep.subr.mxu0 0.0
        %713 = vmatpush1.msra.mxu0 0.0
        %714 = vmatprep.subr.mxu0 0.0
        %715 = vmatpush1.msra.mxu0 0.0
        %716 = vmatprep.subr.mxu0 0.0
        %717 = vmatpush1.msra.mxu0 0.0
        %718 = vmatprep.subr.mxu0 0.0
        %719 = vmatpush1.msra.mxu0 0.0
        %720 = vmatprep.subr.mxu0 0.0
        %721 = vmatpush1.msra.mxu0 0.0
        %722 = vmatprep.subr.mxu0 0.0
        %723 = vmatpush1.msra.mxu0 0.0
        %724 = vmatprep.subr.mxu0 0.0
        %725 = vmatpush1.msra.mxu0 0.0
        %726 = vmatprep.subr.mxu0 0.0
        %727 = vmatpush1.msra.mxu0 0.0
        %728 = vmatprep.mubr.f32.mxu0 0.0
        %v729 = vand.u32 %v323, 4294901760
        %730 = vmatmul.mubr.f32.gmra.mrb[0].mxu0 %v729
        %v731 = vpop.f32.mrb[0].mxu0
        %v732 = vadd.f32 %v649, %v731
        %v733 = vpop.f32.mrb[0].mxu0
        %734 = vdwg.mxu0
        %735 = vmatprep.subr.mxu0 0.0
        %v736 = vand.u32 %v297, 4294901760
        %737 = vmatpush1.msra.mxu0 %v736
        %738 = vmatprep.subr.mxu0 0.0
        %v739 = vand.u32 %v298, 4294901760
        %740 = vmatpush1.msra.mxu0 %v739
        %741 = vmatprep.subr.mxu0 0.0
        %v742 = vand.u32 %v299, 4294901760
        %743 = vmatpush1.msra.mxu0 %v742
        %744 = vmatprep.subr.mxu0 0.0
        %v745 = vand.u32 %v300, 4294901760
        %746 = vmatpush1.msra.mxu0 %v745
        %747 = vmatprep.subr.mxu0 0.0
        %748 = vmatpush1.msra.mxu0 0.0
        %749 = vmatprep.subr.mxu0 0.0
        %750 = vmatpush1.msra.mxu0 0.0
        %751 = vmatprep.subr.mxu0 0.0
        %752 = vmatpush1.msra.mxu0 0.0
        %753 = vmatprep.subr.mxu0 0.0
        %754 = vmatpush1.msra.mxu0 0.0
        %755 = vmatprep.subr.mxu0 0.0
        %756 = vmatpush1.msra.mxu0 0.0
        %757 = vmatprep.subr.mxu0 0.0
        %758 = vmatpush1.msra.mxu0 0.0
        %759 = vmatprep.subr.mxu0 0.0
        %760 = vmatpush1.msra.mxu0 0.0
        %761 = vmatprep.subr.mxu0 0.0
        %762 = vmatpush1.msra.mxu0 0.0
        %763 = vmatprep.subr.mxu0 0.0
        %764 = vmatpush1.msra.mxu0 0.0
        %765 = vmatprep.subr.mxu0 0.0
        %766 = vmatpush1.msra.mxu0 0.0
        %767 = vmatprep.subr.mxu0 0.0
        %768 = vmatpush1.msra.mxu0 0.0
        %769 = vmatprep.subr.mxu0 0.0
        %770 = vmatpush1.msra.mxu0 0.0
        %771 = vmatprep.subr.mxu0 0.0
        %772 = vmatpush1.msra.mxu0 0.0
        %773 = vmatprep.subr.mxu0 0.0
        %774 = vmatpush1.msra.mxu0 0.0
        %775 = vmatprep.subr.mxu0 0.0
        %776 = vmatpush1.msra.mxu0 0.0
        %777 = vmatprep.subr.mxu0 0.0
        %778 = vmatpush1.msra.mxu0 0.0
        %779 = vmatprep.subr.mxu0 0.0
        %780 = vmatpush1.msra.mxu0 0.0
        %781 = vmatprep.subr.mxu0 0.0
        %782 = vmatpush1.msra.mxu0 0.0
        %783 = vmatprep.subr.mxu0 0.0
        %784 = vmatpush1.msra.mxu0 0.0
        %785 = vmatprep.subr.mxu0 0.0
        %786 = vmatpush1.msra.mxu0 0.0
        %787 = vmatprep.subr.mxu0 0.0
        %788 = vmatpush1.msra.mxu0 0.0
        %789 = vmatprep.subr.mxu0 0.0
        %790 = vmatpush1.msra.mxu0 0.0
        %791 = vmatprep.subr.mxu0 0.0
        %792 = vmatpush1.msra.mxu0 0.0
        %793 = vmatprep.subr.mxu0 0.0
        %794 = vmatpush1.msra.mxu0 0.0
        %795 = vmatprep.subr.mxu0 0.0
        %796 = vmatpush1.msra.mxu0 0.0
        %797 = vmatprep.subr.mxu0 0.0
        %798 = vmatpush1.msra.mxu0 0.0
        %799 = vmatprep.subr.mxu0 0.0
        %800 = vmatpush1.msra.mxu0 0.0
        %801 = vmatprep.subr.mxu0 0.0
        %802 = vmatpush1.msra.mxu0 0.0
        %803 = vmatprep.mubr.f32.mxu0 0.0
        %v804 = vand.u32 %v323, 4294901760
        %805 = vmatmul.mubr.f32.gmra.mrb[0].mxu0 %v804
        %v806 = vpop.f32.mrb[0].mxu0
        %v807 = vadd.f32 %v732, %v806
        %v808 = vpop.f32.mrb[0].mxu0
        %809 = vdwg.mxu0
        %v811 = vsel %vm321, %v296, 0
        %813 = vmatprep.subr.mxu0 0.0
        %v814 = vand.u32 %v307, 4294901760
        %815 = vmatpush1.msra.mxu0 %v814
        %816 = vmatprep.subr.mxu0 0.0
        %v817 = vand.u32 %v308, 4294901760
        %818 = vmatpush1.msra.mxu0 %v817
        %819 = vmatprep.subr.mxu0 0.0
        %v820 = vand.u32 %v309, 4294901760
        %821 = vmatpush1.msra.mxu0 %v820
        %822 = vmatprep.subr.mxu0 0.0
        %v823 = vand.u32 %v310, 4294901760
        %824 = vmatpush1.msra.mxu0 %v823
        %825 = vmatprep.subr.mxu0 0.0
        %826 = vmatpush1.msra.mxu0 0.0
        %827 = vmatprep.subr.mxu0 0.0
        %828 = vmatpush1.msra.mxu0 0.0
        %829 = vmatprep.subr.mxu0 0.0
        %830 = vmatpush1.msra.mxu0 0.0
        %831 = vmatprep.subr.mxu0 0.0
        %832 = vmatpush1.msra.mxu0 0.0
        %833 = vmatprep.subr.mxu0 0.0
        %834 = vmatpush1.msra.mxu0 0.0
        %835 = vmatprep.subr.mxu0 0.0
        %836 = vmatpush1.msra.mxu0 0.0
        %837 = vmatprep.subr.mxu0 0.0
        %838 = vmatpush1.msra.mxu0 0.0
        %839 = vmatprep.subr.mxu0 0.0
        %840 = vmatpush1.msra.mxu0 0.0
        %841 = vmatprep.subr.mxu0 0.0
        %842 = vmatpush1.msra.mxu0 0.0
        %843 = vmatprep.subr.mxu0 0.0
        %844 = vmatpush1.msra.mxu0 0.0
        %845 = vmatprep.subr.mxu0 0.0
        %846 = vmatpush1.msra.mxu0 0.0
        %847 = vmatprep.subr.mxu0 0.0
        %848 = vmatpush1.msra.mxu0 0.0
        %849 = vmatprep.subr.mxu0 0.0
        %850 = vmatpush1.msra.mxu0 0.0
        %851 = vmatprep.subr.mxu0 0.0
        %852 = vmatpush1.msra.mxu0 0.0
        %853 = vmatprep.subr.mxu0 0.0
        %854 = vmatpush1.msra.mxu0 0.0
        %855 = vmatprep.subr.mxu0 0.0
        %856 = vmatpush1.msra.mxu0 0.0
        %857 = vmatprep.subr.mxu0 0.0
        %858 = vmatpush1.msra.mxu0 0.0
        %859 = vmatprep.subr.mxu0 0.0
        %860 = vmatpush1.msra.mxu0 0.0
        %861 = vmatprep.subr.mxu0 0.0
        %862 = vmatpush1.msra.mxu0 0.0
        %863 = vmatprep.subr.mxu0 0.0
        %864 = vmatpush1.msra.mxu0 0.0
        %865 = vmatprep.subr.mxu0 0.0
        %866 = vmatpush1.msra.mxu0 0.0
        %867 = vmatprep.subr.mxu0 0.0
        %868 = vmatpush1.msra.mxu0 0.0
        %869 = vmatprep.subr.mxu0 0.0
        %870 = vmatpush1.msra.mxu0 0.0
        %871 = vmatprep.subr.mxu0 0.0
        %872 = vmatpush1.msra.mxu0 0.0
        %873 = vmatprep.subr.mxu0 0.0
        %874 = vmatpush1.msra.mxu0 0.0
        %875 = vmatprep.subr.mxu0 0.0
        %876 = vmatpush1.msra.mxu0 0.0
        %877 = vmatprep.subr.mxu0 0.0
        %878 = vmatpush1.msra.mxu0 0.0
        %879 = vmatprep.subr.mxu0 0.0
        %880 = vmatpush1.msra.mxu0 0.0
        %881 = vmatprep.mubr.f32.mxu0 0.0
        %v882 = vand.u32 %v811, 4294901760
        %v883 = vsub.f32 %v811, %v882
        %v884 = vand.u32 %v883, 4294901760
        %v885 = vsub.f32 %v883, %v884
        %v886 = vand.u32 %v885, 4294901760
        %887 = vmatmul.mubr.f32.gmra.mrb[0].mxu0 %v886
        %v888 = vpop.f32.mrb[0].mxu0
        %v889 = vadd.f32 0.0, %v888
        %v890 = vpop.f32.mrb[0].mxu0
        %891 = vdwg.mxu0
        %892 = vmatprep.subr.mxu0 0.0
        %v893 = vand.u32 %v307, 4294901760
        %v894 = vsub.f32 %v307, %v893
        %v895 = vand.u32 %v894, 4294901760
        %v896 = vsub.f32 %v894, %v895
        %v897 = vand.u32 %v896, 4294901760
        %898 = vmatpush1.msra.mxu0 %v897
        %899 = vmatprep.subr.mxu0 0.0
        %v900 = vand.u32 %v308, 4294901760
        %v901 = vsub.f32 %v308, %v900
        %v902 = vand.u32 %v901, 4294901760
        %v903 = vsub.f32 %v901, %v902
        %v904 = vand.u32 %v903, 4294901760
        %905 = vmatpush1.msra.mxu0 %v904
        %906 = vmatprep.subr.mxu0 0.0
        %v907 = vand.u32 %v309, 4294901760
        %v908 = vsub.f32 %v309, %v907
        %v909 = vand.u32 %v908, 4294901760
        %v910 = vsub.f32 %v908, %v909
        %v911 = vand.u32 %v910, 4294901760
        %912 = vmatpush1.msra.mxu0 %v911
        %913 = vmatprep.subr.mxu0 0.0
        %v914 = vand.u32 %v310, 4294901760
        %v915 = vsub.f32 %v310, %v914
        %v916 = vand.u32 %v915, 4294901760
        %v917 = vsub.f32 %v915, %v916
        %v918 = vand.u32 %v917, 4294901760
        %919 = vmatpush1.msra.mxu0 %v918
        %920 = vmatprep.subr.mxu0 0.0
        %921 = vmatpush1.msra.mxu0 0.0
        %922 = vmatprep.subr.mxu0 0.0
        %923 = vmatpush1.msra.mxu0 0.0
        %924 = vmatprep.subr.mxu0 0.0
        %925 = vmatpush1.msra.mxu0 0.0
        %926 = vmatprep.subr.mxu0 0.0
        %927 = vmatpush1.msra.mxu0 0.0
        %928 = vmatprep.subr.mxu0 0.0
        %929 = vmatpush1.msra.mxu0 0.0
        %930 = vmatprep.subr.mxu0 0.0
        %931 = vmatpush1.msra.mxu0 0.0
        %932 = vmatprep.subr.mxu0 0.0
        %933 = vmatpush1.msra.mxu0 0.0
        %934 = vmatprep.subr.mxu0 0.0
        %935 = vmatpush1.msra.mxu0 0.0
        %936 = vmatprep.subr.mxu0 0.0
        %937 = vmatpush1.msra.mxu0 0.0
        %938 = vmatprep.subr.mxu0 0.0
        %939 = vmatpush1.msra.mxu0 0.0
        %940 = vmatprep.subr.mxu0 0.0
        %941 = vmatpush1.msra.mxu0 0.0
        %942 = vmatprep.subr.mxu0 0.0
        %943 = vmatpush1.msra.mxu0 0.0
        %944 = vmatprep.subr.mxu0 0.0
        %945 = vmatpush1.msra.mxu0 0.0
        %946 = vmatprep.subr.mxu0 0.0
        %947 = vmatpush1.msra.mxu0 0.0
        %948 = vmatprep.subr.mxu0 0.0
        %949 = vmatpush1.msra.mxu0 0.0
        %950 = vmatprep.subr.mxu0 0.0
        %951 = vmatpush1.msra.mxu0 0.0
        %952 = vmatprep.subr.mxu0 0.0
        %953 = vmatpush1.msra.mxu0 0.0
        %954 = vmatprep.subr.mxu0 0.0
        %955 = vmatpush1.msra.mxu0 0.0
        %956 = vmatprep.subr.mxu0 0.0
        %957 = vmatpush1.msra.mxu0 0.0
        %958 = vmatprep.subr.mxu0 0.0
        %959 = vmatpush1.msra.mxu0 0.0
        %960 = vmatprep.subr.mxu0 0.0
        %961 = vmatpush1.msra.mxu0 0.0
        %962 = vmatprep.subr.mxu0 0.0
        %963 = vmatpush1.msra.mxu0 0.0
        %964 = vmatprep.subr.mxu0 0.0
        %965 = vmatpush1.msra.mxu0 0.0
        %966 = vmatprep.subr.mxu0 0.0
        %967 = vmatpush1.msra.mxu0 0.0
        %968 = vmatprep.subr.mxu0 0.0
        %969 = vmatpush1.msra.mxu0 0.0
        %970 = vmatprep.subr.mxu0 0.0
        %971 = vmatpush1.msra.mxu0 0.0
        %972 = vmatprep.subr.mxu0 0.0
        %973 = vmatpush1.msra.mxu0 0.0
        %974 = vmatprep.subr.mxu0 0.0
        %975 = vmatpush1.msra.mxu0 0.0
        %976 = vmatprep.mubr.f32.mxu0 0.0
        %v977 = vand.u32 %v811, 4294901760
        %978 = vmatmul.mubr.f32.gmra.mrb[0].mxu0 %v977
        %v979 = vpop.f32.mrb[0].mxu0
        %v980 = vadd.f32 %v889, %v979
        %v981 = vpop.f32.mrb[0].mxu0
        %982 = vdwg.mxu0
        %983 = vmatprep.subr.mxu0 0.0
        %v984 = vand.u32 %v307, 4294901760
        %v985 = vsub.f32 %v307, %v984
        %986 = vmatpush1.msra.mxu0 %v985
        %987 = vmatprep.subr.mxu0 0.0
        %v988 = vand.u32 %v308, 4294901760
        %v989 = vsub.f32 %v308, %v988
        %990 = vmatpush1.msra.mxu0 %v989
        %991 = vmatprep.subr.mxu0 0.0
        %v992 = vand.u32 %v309, 4294901760
        %v993 = vsub.f32 %v309, %v992
        %994 = vmatpush1.msra.mxu0 %v993
        %995 = vmatprep.subr.mxu0 0.0
        %v996 = vand.u32 %v310, 4294901760
        %v997 = vsub.f32 %v310, %v996
        %998 = vmatpush1.msra.mxu0 %v997
        %999 = vmatprep.subr.mxu0 0.0
        %1000 = vmatpush1.msra.mxu0 0.0
        %1001 = vmatprep.subr.mxu0 0.0
        %1002 = vmatpush1.msra.mxu0 0.0
        %1003 = vmatprep.subr.mxu0 0.0
        %1004 = vmatpush1.msra.mxu0 0.0
        %1005 = vmatprep.subr.mxu0 0.0
        %1006 = vmatpush1.msra.mxu0 0.0
        %1007 = vmatprep.subr.mxu0 0.0
        %1008 = vmatpush1.msra.mxu0 0.0
        %1009 = vmatprep.subr.mxu0 0.0
        %1010 = vmatpush1.msra.mxu0 0.0
        %1011 = vmatprep.subr.mxu0 0.0
        %1012 = vmatpush1.msra.mxu0 0.0
        %1013 = vmatprep.subr.mxu0 0.0
        %1014 = vmatpush1.msra.mxu0 0.0
        %1015 = vmatprep.subr.mxu0 0.0
        %1016 = vmatpush1.msra.mxu0 0.0
        %1017 = vmatprep.subr.mxu0 0.0
        %1018 = vmatpush1.msra.mxu0 0.0
        %1019 = vmatprep.subr.mxu0 0.0
        %1020 = vmatpush1.msra.mxu0 0.0
        %1021 = vmatprep.subr.mxu0 0.0
        %1022 = vmatpush1.msra.mxu0 0.0
        %1023 = vmatprep.subr.mxu0 0.0
        %1024 = vmatpush1.msra.mxu0 0.0
        %1025 = vmatprep.subr.mxu0 0.0
        %1026 = vmatpush1.msra.mxu0 0.0
        %1027 = vmatprep.subr.mxu0 0.0
        %1028 = vmatpush1.msra.mxu0 0.0
        %1029 = vmatprep.subr.mxu0 0.0
        %1030 = vmatpush1.msra.mxu0 0.0
        %1031 = vmatprep.subr.mxu0 0.0
        %1032 = vmatpush1.msra.mxu0 0.0
        %1033 = vmatprep.subr.mxu0 0.0
        %1034 = vmatpush1.msra.mxu0 0.0
        %1035 = vmatprep.subr.mxu0 0.0
        %1036 = vmatpush1.msra.mxu0 0.0
        %1037 = vmatprep.subr.mxu0 0.0
        %1038 = vmatpush1.msra.mxu0 0.0
        %1039 = vmatprep.subr.mxu0 0.0
        %1040 = vmatpush1.msra.mxu0 0.0
        %1041 = vmatprep.subr.mxu0 0.0
        %1042 = vmatpush1.msra.mxu0 0.0
        %1043 = vmatprep.subr.mxu0 0.0
        %1044 = vmatpush1.msra.mxu0 0.0
        %1045 = vmatprep.subr.mxu0 0.0
        %1046 = vmatpush1.msra.mxu0 0.0
        %1047 = vmatprep.subr.mxu0 0.0
        %1048 = vmatpush1.msra.mxu0 0.0
        %1049 = vmatprep.subr.mxu0 0.0
        %1050 = vmatpush1.msra.mxu0 0.0
        %1051 = vmatprep.subr.mxu0 0.0
        %1052 = vmatpush1.msra.mxu0 0.0
        %1053 = vmatprep.subr.mxu0 0.0
        %1054 = vmatpush1.msra.mxu0 0.0
        %1055 = vmatprep.mubr.f32.mxu0 0.0
        %v1056 = vand.u32 %v811, 4294901760
        %v1057 = vsub.f32 %v811, %v1056
        %1058 = vmatmul.mubr.f32.gmra.mrb[0].mxu0 %v1057
        %v1059 = vpop.f32.mrb[0].mxu0
        %v1060 = vadd.f32 %v980, %v1059
        %v1061 = vpop.f32.mrb[0].mxu0
        %1062 = vdwg.mxu0
        %1063 = vmatprep.subr.mxu0 0.0
        %v1064 = vand.u32 %v307, 4294901760
        %1065 = vmatpush1.msra.mxu0 %v1064
        %1066 = vmatprep.subr.mxu0 0.0
        %v1067 = vand.u32 %v308, 4294901760
        %1068 = vmatpush1.msra.mxu0 %v1067
        %1069 = vmatprep.subr.mxu0 0.0
        %v1070 = vand.u32 %v309, 4294901760
        %1071 = vmatpush1.msra.mxu0 %v1070
        %1072 = vmatprep.subr.mxu0 0.0
        %v1073 = vand.u32 %v310, 4294901760
        %1074 = vmatpush1.msra.mxu0 %v1073
        %1075 = vmatprep.subr.mxu0 0.0
        %1076 = vmatpush1.msra.mxu0 0.0
        %1077 = vmatprep.subr.mxu0 0.0
        %1078 = vmatpush1.msra.mxu0 0.0
        %1079 = vmatprep.subr.mxu0 0.0
        %1080 = vmatpush1.msra.mxu0 0.0
        %1081 = vmatprep.subr.mxu0 0.0
        %1082 = vmatpush1.msra.mxu0 0.0
        %1083 = vmatprep.subr.mxu0 0.0
        %1084 = vmatpush1.msra.mxu0 0.0
        %1085 = vmatprep.subr.mxu0 0.0
        %1086 = vmatpush1.msra.mxu0 0.0
        %1087 = vmatprep.subr.mxu0 0.0
        %1088 = vmatpush1.msra.mxu0 0.0
        %1089 = vmatprep.subr.mxu0 0.0
        %1090 = vmatpush1.msra.mxu0 0.0
        %1091 = vmatprep.subr.mxu0 0.0
        %1092 = vmatpush1.msra.mxu0 0.0
        %1093 = vmatprep.subr.mxu0 0.0
        %1094 = vmatpush1.msra.mxu0 0.0
        %1095 = vmatprep.subr.mxu0 0.0
        %1096 = vmatpush1.msra.mxu0 0.0
        %1097 = vmatprep.subr.mxu0 0.0
        %1098 = vmatpush1.msra.mxu0 0.0
        %1099 = vmatprep.subr.mxu0 0.0
        %1100 = vmatpush1.msra.mxu0 0.0
        %1101 = vmatprep.subr.mxu0 0.0
        %1102 = vmatpush1.msra.mxu0 0.0
        %1103 = vmatprep.subr.mxu0 0.0
        %1104 = vmatpush1.msra.mxu0 0.0
        %1105 = vmatprep.subr.mxu0 0.0
        %1106 = vmatpush1.msra.mxu0 0.0
        %1107 = vmatprep.subr.mxu0 0.0
        %1108 = vmatpush1.msra.mxu0 0.0
        %1109 = vmatprep.subr.mxu0 0.0
        %1110 = vmatpush1.msra.mxu0 0.0
        %1111 = vmatprep.subr.mxu0 0.0
        %1112 = vmatpush1.msra.mxu0 0.0
        %1113 = vmatprep.subr.mxu0 0.0
        %1114 = vmatpush1.msra.mxu0 0.0
        %1115 = vmatprep.subr.mxu0 0.0
        %1116 = vmatpush1.msra.mxu0 0.0
        %1117 = vmatprep.subr.mxu0 0.0
        %1118 = vmatpush1.msra.mxu0 0.0
        %1119 = vmatprep.subr.mxu0 0.0
        %1120 = vmatpush1.msra.mxu0 0.0
        %1121 = vmatprep.subr.mxu0 0.0
        %1122 = vmatpush1.msra.mxu0 0.0
        %1123 = vmatprep.subr.mxu0 0.0
        %1124 = vmatpush1.msra.mxu0 0.0
        %1125 = vmatprep.subr.mxu0 0.0
        %1126 = vmatpush1.msra.mxu0 0.0
        %1127 = vmatprep.subr.mxu0 0.0
        %1128 = vmatpush1.msra.mxu0 0.0
        %1129 = vmatprep.subr.mxu0 0.0
        %1130 = vmatpush1.msra.mxu0 0.0
        %1131 = vmatprep.mubr.f32.mxu0 0.0
        %v1132 = vand.u32 %v811, 4294901760
        %v1133 = vsub.f32 %v811, %v1132
        %v1134 = vand.u32 %v1133, 4294901760
        %1135 = vmatmul.mubr.f32.gmra.mrb[0].mxu0 %v1134
        %v1136 = vpop.f32.mrb[0].mxu0
        %v1137 = vadd.f32 %v1060, %v1136
        %v1138 = vpop.f32.mrb[0].mxu0
        %1139 = vdwg.mxu0
        %1140 = vmatprep.subr.mxu0 0.0
        %v1141 = vand.u32 %v307, 4294901760
        %v1142 = vsub.f32 %v307, %v1141
        %v1143 = vand.u32 %v1142, 4294901760
        %1144 = vmatpush1.msra.mxu0 %v1143
        %1145 = vmatprep.subr.mxu0 0.0
        %v1146 = vand.u32 %v308, 4294901760
        %v1147 = vsub.f32 %v308, %v1146
        %v1148 = vand.u32 %v1147, 4294901760
        %1149 = vmatpush1.msra.mxu0 %v1148
        %1150 = vmatprep.subr.mxu0 0.0
        %v1151 = vand.u32 %v309, 4294901760
        %v1152 = vsub.f32 %v309, %v1151
        %v1153 = vand.u32 %v1152, 4294901760
        %1154 = vmatpush1.msra.mxu0 %v1153
        %1155 = vmatprep.subr.mxu0 0.0
        %v1156 = vand.u32 %v310, 4294901760
        %v1157 = vsub.f32 %v310, %v1156
        %v1158 = vand.u32 %v1157, 4294901760
        %1159 = vmatpush1.msra.mxu0 %v1158
        %1160 = vmatprep.subr.mxu0 0.0
        %1161 = vmatpush1.msra.mxu0 0.0
        %1162 = vmatprep.subr.mxu0 0.0
        %1163 = vmatpush1.msra.mxu0 0.0
        %1164 = vmatprep.subr.mxu0 0.0
        %1165 = vmatpush1.msra.mxu0 0.0
        %1166 = vmatprep.subr.mxu0 0.0
        %1167 = vmatpush1.msra.mxu0 0.0
        %1168 = vmatprep.subr.mxu0 0.0
        %1169 = vmatpush1.msra.mxu0 0.0
        %1170 = vmatprep.subr.mxu0 0.0
        %1171 = vmatpush1.msra.mxu0 0.0
        %1172 = vmatprep.subr.mxu0 0.0
        %1173 = vmatpush1.msra.mxu0 0.0
        %1174 = vmatprep.subr.mxu0 0.0
        %1175 = vmatpush1.msra.mxu0 0.0
        %1176 = vmatprep.subr.mxu0 0.0
        %1177 = vmatpush1.msra.mxu0 0.0
        %1178 = vmatprep.subr.mxu0 0.0
        %1179 = vmatpush1.msra.mxu0 0.0
        %1180 = vmatprep.subr.mxu0 0.0
        %1181 = vmatpush1.msra.mxu0 0.0
        %1182 = vmatprep.subr.mxu0 0.0
        %1183 = vmatpush1.msra.mxu0 0.0
        %1184 = vmatprep.subr.mxu0 0.0
        %1185 = vmatpush1.msra.mxu0 0.0
        %1186 = vmatprep.subr.mxu0 0.0
        %1187 = vmatpush1.msra.mxu0 0.0
        %1188 = vmatprep.subr.mxu0 0.0
        %1189 = vmatpush1.msra.mxu0 0.0
        %1190 = vmatprep.subr.mxu0 0.0
        %1191 = vmatpush1.msra.mxu0 0.0
        %1192 = vmatprep.subr.mxu0 0.0
        %1193 = vmatpush1.msra.mxu0 0.0
        %1194 = vmatprep.subr.mxu0 0.0
        %1195 = vmatpush1.msra.mxu0 0.0
        %1196 = vmatprep.subr.mxu0 0.0
        %1197 = vmatpush1.msra.mxu0 0.0
        %1198 = vmatprep.subr.mxu0 0.0
        %1199 = vmatpush1.msra.mxu0 0.0
        %1200 = vmatprep.subr.mxu0 0.0
        %1201 = vmatpush1.msra.mxu0 0.0
        %1202 = vmatprep.subr.mxu0 0.0
        %1203 = vmatpush1.msra.mxu0 0.0
        %1204 = vmatprep.subr.mxu0 0.0
        %1205 = vmatpush1.msra.mxu0 0.0
        %1206 = vmatprep.subr.mxu0 0.0
        %1207 = vmatpush1.msra.mxu0 0.0
        %1208 = vmatprep.subr.mxu0 0.0
        %1209 = vmatpush1.msra.mxu0 0.0
        %1210 = vmatprep.subr.mxu0 0.0
        %1211 = vmatpush1.msra.mxu0 0.0
        %1212 = vmatprep.subr.mxu0 0.0
        %1213 = vmatpush1.msra.mxu0 0.0
        %1214 = vmatprep.subr.mxu0 0.0
        %1215 = vmatpush1.msra.mxu0 0.0
        %1216 = vmatprep.mubr.f32.mxu0 0.0
        %v1217 = vand.u32 %v811, 4294901760
        %1218 = vmatmul.mubr.f32.gmra.mrb[0].mxu0 %v1217
        %v1219 = vpop.f32.mrb[0].mxu0
        %v1220 = vadd.f32 %v1137, %v1219
        %v1221 = vpop.f32.mrb[0].mxu0
        %1222 = vdwg.mxu0
        %1223 = vmatprep.subr.mxu0 0.0
        %v1224 = vand.u32 %v307, 4294901760
        %1225 = vmatpush1.msra.mxu0 %v1224
        %1226 = vmatprep.subr.mxu0 0.0
        %v1227 = vand.u32 %v308, 4294901760
        %1228 = vmatpush1.msra.mxu0 %v1227
        %1229 = vmatprep.subr.mxu0 0.0
        %v1230 = vand.u32 %v309, 4294901760
        %1231 = vmatpush1.msra.mxu0 %v1230
        %1232 = vmatprep.subr.mxu0 0.0
        %v1233 = vand.u32 %v310, 4294901760
        %1234 = vmatpush1.msra.mxu0 %v1233
        %1235 = vmatprep.subr.mxu0 0.0
        %1236 = vmatpush1.msra.mxu0 0.0
        %1237 = vmatprep.subr.mxu0 0.0
        %1238 = vmatpush1.msra.mxu0 0.0
        %1239 = vmatprep.subr.mxu0 0.0
        %1240 = vmatpush1.msra.mxu0 0.0
        %1241 = vmatprep.subr.mxu0 0.0
        %1242 = vmatpush1.msra.mxu0 0.0
        %1243 = vmatprep.subr.mxu0 0.0
        %1244 = vmatpush1.msra.mxu0 0.0
        %1245 = vmatprep.subr.mxu0 0.0
        %1246 = vmatpush1.msra.mxu0 0.0
        %1247 = vmatprep.subr.mxu0 0.0
        %1248 = vmatpush1.msra.mxu0 0.0
        %1249 = vmatprep.subr.mxu0 0.0
        %1250 = vmatpush1.msra.mxu0 0.0
        %1251 = vmatprep.subr.mxu0 0.0
        %1252 = vmatpush1.msra.mxu0 0.0
        %1253 = vmatprep.subr.mxu0 0.0
        %1254 = vmatpush1.msra.mxu0 0.0
        %1255 = vmatprep.subr.mxu0 0.0
        %1256 = vmatpush1.msra.mxu0 0.0
        %1257 = vmatprep.subr.mxu0 0.0
        %1258 = vmatpush1.msra.mxu0 0.0
        %1259 = vmatprep.subr.mxu0 0.0
        %1260 = vmatpush1.msra.mxu0 0.0
        %1261 = vmatprep.subr.mxu0 0.0
        %1262 = vmatpush1.msra.mxu0 0.0
        %1263 = vmatprep.subr.mxu0 0.0
        %1264 = vmatpush1.msra.mxu0 0.0
        %1265 = vmatprep.subr.mxu0 0.0
        %1266 = vmatpush1.msra.mxu0 0.0
        %1267 = vmatprep.subr.mxu0 0.0
        %1268 = vmatpush1.msra.mxu0 0.0
        %1269 = vmatprep.subr.mxu0 0.0
        %1270 = vmatpush1.msra.mxu0 0.0
        %1271 = vmatprep.subr.mxu0 0.0
        %1272 = vmatpush1.msra.mxu0 0.0
        %1273 = vmatprep.subr.mxu0 0.0
        %1274 = vmatpush1.msra.mxu0 0.0
        %1275 = vmatprep.subr.mxu0 0.0
        %1276 = vmatpush1.msra.mxu0 0.0
        %1277 = vmatprep.subr.mxu0 0.0
        %1278 = vmatpush1.msra.mxu0 0.0
        %1279 = vmatprep.subr.mxu0 0.0
        %1280 = vmatpush1.msra.mxu0 0.0
        %1281 = vmatprep.subr.mxu0 0.0
        %1282 = vmatpush1.msra.mxu0 0.0
        %1283 = vmatprep.subr.mxu0 0.0
        %1284 = vmatpush1.msra.mxu0 0.0
        %1285 = vmatprep.subr.mxu0 0.0
        %1286 = vmatpush1.msra.mxu0 0.0
        %1287 = vmatprep.subr.mxu0 0.0
        %1288 = vmatpush1.msra.mxu0 0.0
        %1289 = vmatprep.subr.mxu0 0.0
        %1290 = vmatpush1.msra.mxu0 0.0
        %1291 = vmatprep.mubr.f32.mxu0 0.0
        %v1292 = vand.u32 %v811, 4294901760
        %1293 = vmatmul.mubr.f32.gmra.mrb[0].mxu0 %v1292
        %v1294 = vpop.f32.mrb[0].mxu0
        %v1295 = vadd.f32 %v1220, %v1294
        %v1296 = vpop.f32.mrb[0].mxu0
        %1297 = vdwg.mxu0
        %1298 = vmatprep.subr.mxu0 0.0
        %v1299 = vand.u32 %v302, 4294901760
        %1300 = vmatpush1.msra.mxu0 %v1299
        %1301 = vmatprep.subr.mxu0 0.0
        %v1302 = vand.u32 %v303, 4294901760
        %1303 = vmatpush1.msra.mxu0 %v1302
        %1304 = vmatprep.subr.mxu0 0.0
        %v1305 = vand.u32 %v304, 4294901760
        %1306 = vmatpush1.msra.mxu0 %v1305
        %1307 = vmatprep.subr.mxu0 0.0
        %v1308 = vand.u32 %v305, 4294901760
        %1309 = vmatpush1.msra.mxu0 %v1308
        %1310 = vmatprep.subr.mxu0 0.0
        %1311 = vmatpush1.msra.mxu0 0.0
        %1312 = vmatprep.subr.mxu0 0.0
        %1313 = vmatpush1.msra.mxu0 0.0
        %1314 = vmatprep.subr.mxu0 0.0
        %1315 = vmatpush1.msra.mxu0 0.0
        %1316 = vmatprep.subr.mxu0 0.0
        %1317 = vmatpush1.msra.mxu0 0.0
        %1318 = vmatprep.subr.mxu0 0.0
        %1319 = vmatpush1.msra.mxu0 0.0
        %1320 = vmatprep.subr.mxu0 0.0
        %1321 = vmatpush1.msra.mxu0 0.0
        %1322 = vmatprep.subr.mxu0 0.0
        %1323 = vmatpush1.msra.mxu0 0.0
        %1324 = vmatprep.subr.mxu0 0.0
        %1325 = vmatpush1.msra.mxu0 0.0
        %1326 = vmatprep.subr.mxu0 0.0
        %1327 = vmatpush1.msra.mxu0 0.0
        %1328 = vmatprep.subr.mxu0 0.0
        %1329 = vmatpush1.msra.mxu0 0.0
        %1330 = vmatprep.subr.mxu0 0.0
        %1331 = vmatpush1.msra.mxu0 0.0
        %1332 = vmatprep.subr.mxu0 0.0
        %1333 = vmatpush1.msra.mxu0 0.0
        %1334 = vmatprep.subr.mxu0 0.0
        %1335 = vmatpush1.msra.mxu0 0.0
        %1336 = vmatprep.subr.mxu0 0.0
        %1337 = vmatpush1.msra.mxu0 0.0
        %1338 = vmatprep.subr.mxu0 0.0
        %1339 = vmatpush1.msra.mxu0 0.0
        %1340 = vmatprep.subr.mxu0 0.0
        %1341 = vmatpush1.msra.mxu0 0.0
        %1342 = vmatprep.subr.mxu0 0.0
        %1343 = vmatpush1.msra.mxu0 0.0
        %1344 = vmatprep.subr.mxu0 0.0
        %1345 = vmatpush1.msra.mxu0 0.0
        %1346 = vmatprep.subr.mxu0 0.0
        %1347 = vmatpush1.msra.mxu0 0.0
        %1348 = vmatprep.subr.mxu0 0.0
        %1349 = vmatpush1.msra.mxu0 0.0
        %1350 = vmatprep.subr.mxu0 0.0
        %1351 = vmatpush1.msra.mxu0 0.0
        %1352 = vmatprep.subr.mxu0 0.0
        %1353 = vmatpush1.msra.mxu0 0.0
        %1354 = vmatprep.subr.mxu0 0.0
        %1355 = vmatpush1.msra.mxu0 0.0
        %1356 = vmatprep.subr.mxu0 0.0
        %1357 = vmatpush1.msra.mxu0 0.0
        %1358 = vmatprep.subr.mxu0 0.0
        %1359 = vmatpush1.msra.mxu0 0.0
        %1360 = vmatprep.subr.mxu0 0.0
        %1361 = vmatpush1.msra.mxu0 0.0
        %1362 = vmatprep.subr.mxu0 0.0
        %1363 = vmatpush1.msra.mxu0 0.0
        %1364 = vmatprep.subr.mxu0 0.0
        %1365 = vmatpush1.msra.mxu0 0.0
        %1366 = vmatprep.mubr.f32.mxu0 0.0
        %v1367 = vand.u32 %v323, 4294901760
        %v1368 = vsub.f32 %v323, %v1367
        %v1369 = vand.u32 %v1368, 4294901760
        %v1370 = vsub.f32 %v1368, %v1369
        %v1371 = vand.u32 %v1370, 4294901760
        %1372 = vmatmul.mubr.f32.gmra.mrb[0].mxu0 %v1371
        %v1373 = vpop.f32.mrb[0].mxu0
        %v1374 = vadd.f32 %v1295, %v1373
        %v1375 = vpop.f32.mrb[0].mxu0
        %1376 = vdwg.mxu0
        %1377 = vmatprep.subr.mxu0 0.0
        %v1378 = vand.u32 %v302, 4294901760
        %v1379 = vsub.f32 %v302, %v1378
        %v1380 = vand.u32 %v1379, 4294901760
        %v1381 = vsub.f32 %v1379, %v1380
        %v1382 = vand.u32 %v1381, 4294901760
        %1383 = vmatpush1.msra.mxu0 %v1382
        %1384 = vmatprep.subr.mxu0 0.0
        %v1385 = vand.u32 %v303, 4294901760
        %v1386 = vsub.f32 %v303, %v1385
        %v1387 = vand.u32 %v1386, 4294901760
        %v1388 = vsub.f32 %v1386, %v1387
        %v1389 = vand.u32 %v1388, 4294901760
        %1390 = vmatpush1.msra.mxu0 %v1389
        %1391 = vmatprep.subr.mxu0 0.0
        %v1392 = vand.u32 %v304, 4294901760
        %v1393 = vsub.f32 %v304, %v1392
        %v1394 = vand.u32 %v1393, 4294901760
        %v1395 = vsub.f32 %v1393, %v1394
        %v1396 = vand.u32 %v1395, 4294901760
        %1397 = vmatpush1.msra.mxu0 %v1396
        %1398 = vmatprep.subr.mxu0 0.0
        %v1399 = vand.u32 %v305, 4294901760
        %v1400 = vsub.f32 %v305, %v1399
        %v1401 = vand.u32 %v1400, 4294901760
        %v1402 = vsub.f32 %v1400, %v1401
        %v1403 = vand.u32 %v1402, 4294901760
        %1404 = vmatpush1.msra.mxu0 %v1403
        %1405 = vmatprep.subr.mxu0 0.0
        %1406 = vmatpush1.msra.mxu0 0.0
        %1407 = vmatprep.subr.mxu0 0.0
        %1408 = vmatpush1.msra.mxu0 0.0
        %1409 = vmatprep.subr.mxu0 0.0
        %1410 = vmatpush1.msra.mxu0 0.0
        %1411 = vmatprep.subr.mxu0 0.0
        %1412 = vmatpush1.msra.mxu0 0.0
        %1413 = vmatprep.subr.mxu0 0.0
        %1414 = vmatpush1.msra.mxu0 0.0
        %1415 = vmatprep.subr.mxu0 0.0
        %1416 = vmatpush1.msra.mxu0 0.0
        %1417 = vmatprep.subr.mxu0 0.0
        %1418 = vmatpush1.msra.mxu0 0.0
        %1419 = vmatprep.subr.mxu0 0.0
        %1420 = vmatpush1.msra.mxu0 0.0
        %1421 = vmatprep.subr.mxu0 0.0
        %1422 = vmatpush1.msra.mxu0 0.0
        %1423 = vmatprep.subr.mxu0 0.0
        %1424 = vmatpush1.msra.mxu0 0.0
        %1425 = vmatprep.subr.mxu0 0.0
        %1426 = vmatpush1.msra.mxu0 0.0
        %1427 = vmatprep.subr.mxu0 0.0
        %1428 = vmatpush1.msra.mxu0 0.0
        %1429 = vmatprep.subr.mxu0 0.0
        %1430 = vmatpush1.msra.mxu0 0.0
        %1431 = vmatprep.subr.mxu0 0.0
        %1432 = vmatpush1.msra.mxu0 0.0
        %1433 = vmatprep.subr.mxu0 0.0
        %1434 = vmatpush1.msra.mxu0 0.0
        %1435 = vmatprep.subr.mxu0 0.0
        %1436 = vmatpush1.msra.mxu0 0.0
        %1437 = vmatprep.subr.mxu0 0.0
        %1438 = vmatpush1.msra.mxu0 0.0
        %1439 = vmatprep.subr.mxu0 0.0
        %1440 = vmatpush1.msra.mxu0 0.0
        %1441 = vmatprep.subr.mxu0 0.0
        %1442 = vmatpush1.msra.mxu0 0.0
        %1443 = vmatprep.subr.mxu0 0.0
        %1444 = vmatpush1.msra.mxu0 0.0
        %1445 = vmatprep.subr.mxu0 0.0
        %1446 = vmatpush1.msra.mxu0 0.0
        %1447 = vmatprep.subr.mxu0 0.0
        %1448 = vmatpush1.msra.mxu0 0.0
        %1449 = vmatprep.subr.mxu0 0.0
        %1450 = vmatpush1.msra.mxu0 0.0
        %1451 = vmatprep.subr.mxu0 0.0
        %1452 = vmatpush1.msra.mxu0 0.0
        %1453 = vmatprep.subr.mxu0 0.0
        %1454 = vmatpush1.msra.mxu0 0.0
        %1455 = vmatprep.subr.mxu0 0.0
        %1456 = vmatpush1.msra.mxu0 0.0
        %1457 = vmatprep.subr.mxu0 0.0
        %1458 = vmatpush1.msra.mxu0 0.0
        %1459 = vmatprep.subr.mxu0 0.0
        %1460 = vmatpush1.msra.mxu0 0.0
        %1461 = vmatprep.mubr.f32.mxu0 0.0
        %v1462 = vand.u32 %v323, 4294901760
        %1463 = vmatmul.mubr.f32.gmra.mrb[0].mxu0 %v1462
        %v1464 = vpop.f32.mrb[0].mxu0
        %v1465 = vadd.f32 %v1374, %v1464
        %v1466 = vpop.f32.mrb[0].mxu0
        %1467 = vdwg.mxu0
        %1468 = vmatprep.subr.mxu0 0.0
        %v1469 = vand.u32 %v302, 4294901760
        %v1470 = vsub.f32 %v302, %v1469
        %1471 = vmatpush1.msra.mxu0 %v1470
        %1472 = vmatprep.subr.mxu0 0.0
        %v1473 = vand.u32 %v303, 4294901760
        %v1474 = vsub.f32 %v303, %v1473
        %1475 = vmatpush1.msra.mxu0 %v1474
        %1476 = vmatprep.subr.mxu0 0.0
        %v1477 = vand.u32 %v304, 4294901760
        %v1478 = vsub.f32 %v304, %v1477
        %1479 = vmatpush1.msra.mxu0 %v1478
        %1480 = vmatprep.subr.mxu0 0.0
        %v1481 = vand.u32 %v305, 4294901760
        %v1482 = vsub.f32 %v305, %v1481
        %1483 = vmatpush1.msra.mxu0 %v1482
        %1484 = vmatprep.subr.mxu0 0.0
        %1485 = vmatpush1.msra.mxu0 0.0
        %1486 = vmatprep.subr.mxu0 0.0
        %1487 = vmatpush1.msra.mxu0 0.0
        %1488 = vmatprep.subr.mxu0 0.0
        %1489 = vmatpush1.msra.mxu0 0.0
        %1490 = vmatprep.subr.mxu0 0.0
        %1491 = vmatpush1.msra.mxu0 0.0
        %1492 = vmatprep.subr.mxu0 0.0
        %1493 = vmatpush1.msra.mxu0 0.0
        %1494 = vmatprep.subr.mxu0 0.0
        %1495 = vmatpush1.msra.mxu0 0.0
        %1496 = vmatprep.subr.mxu0 0.0
        %1497 = vmatpush1.msra.mxu0 0.0
        %1498 = vmatprep.subr.mxu0 0.0
        %1499 = vmatpush1.msra.mxu0 0.0
        %1500 = vmatprep.subr.mxu0 0.0
        %1501 = vmatpush1.msra.mxu0 0.0
        %1502 = vmatprep.subr.mxu0 0.0
        %1503 = vmatpush1.msra.mxu0 0.0
        %1504 = vmatprep.subr.mxu0 0.0
        %1505 = vmatpush1.msra.mxu0 0.0
        %1506 = vmatprep.subr.mxu0 0.0
        %1507 = vmatpush1.msra.mxu0 0.0
        %1508 = vmatprep.subr.mxu0 0.0
        %1509 = vmatpush1.msra.mxu0 0.0
        %1510 = vmatprep.subr.mxu0 0.0
        %1511 = vmatpush1.msra.mxu0 0.0
        %1512 = vmatprep.subr.mxu0 0.0
        %1513 = vmatpush1.msra.mxu0 0.0
        %1514 = vmatprep.subr.mxu0 0.0
        %1515 = vmatpush1.msra.mxu0 0.0
        %1516 = vmatprep.subr.mxu0 0.0
        %1517 = vmatpush1.msra.mxu0 0.0
        %1518 = vmatprep.subr.mxu0 0.0
        %1519 = vmatpush1.msra.mxu0 0.0
        %1520 = vmatprep.subr.mxu0 0.0
        %1521 = vmatpush1.msra.mxu0 0.0
        %1522 = vmatprep.subr.mxu0 0.0
        %1523 = vmatpush1.msra.mxu0 0.0
        %1524 = vmatprep.subr.mxu0 0.0
        %1525 = vmatpush1.msra.mxu0 0.0
        %1526 = vmatprep.subr.mxu0 0.0
        %1527 = vmatpush1.msra.mxu0 0.0
        %1528 = vmatprep.subr.mxu0 0.0
        %1529 = vmatpush1.msra.mxu0 0.0
        %1530 = vmatprep.subr.mxu0 0.0
        %1531 = vmatpush1.msra.mxu0 0.0
        %1532 = vmatprep.subr.mxu0 0.0
        %1533 = vmatpush1.msra.mxu0 0.0
        %1534 = vmatprep.subr.mxu0 0.0
        %1535 = vmatpush1.msra.mxu0 0.0
        %1536 = vmatprep.subr.mxu0 0.0
        %1537 = vmatpush1.msra.mxu0 0.0
        %1538 = vmatprep.subr.mxu0 0.0
        %1539 = vmatpush1.msra.mxu0 0.0
        %1540 = vmatprep.mubr.f32.mxu0 0.0
        %v1541 = vand.u32 %v323, 4294901760
        %v1542 = vsub.f32 %v323, %v1541
        %1543 = vmatmul.mubr.f32.gmra.mrb[0].mxu0 %v1542
        %v1544 = vpop.f32.mrb[0].mxu0
        %v1545 = vadd.f32 %v1465, %v1544
        %v1546 = vpop.f32.mrb[0].mxu0
        %1547 = vdwg.mxu0
        %1548 = vmatprep.subr.mxu0 0.0
        %v1549 = vand.u32 %v302, 4294901760
        %1550 = vmatpush1.msra.mxu0 %v1549
        %1551 = vmatprep.subr.mxu0 0.0
        %v1552 = vand.u32 %v303, 4294901760
        %1553 = vmatpush1.msra.mxu0 %v1552
        %1554 = vmatprep.subr.mxu0 0.0
        %v1555 = vand.u32 %v304, 4294901760
        %1556 = vmatpush1.msra.mxu0 %v1555
        %1557 = vmatprep.subr.mxu0 0.0
        %v1558 = vand.u32 %v305, 4294901760
        %1559 = vmatpush1.msra.mxu0 %v1558
        %1560 = vmatprep.subr.mxu0 0.0
        %1561 = vmatpush1.msra.mxu0 0.0
        %1562 = vmatprep.subr.mxu0 0.0
        %1563 = vmatpush1.msra.mxu0 0.0
        %1564 = vmatprep.subr.mxu0 0.0
        %1565 = vmatpush1.msra.mxu0 0.0
        %1566 = vmatprep.subr.mxu0 0.0
        %1567 = vmatpush1.msra.mxu0 0.0
        %1568 = vmatprep.subr.mxu0 0.0
        %1569 = vmatpush1.msra.mxu0 0.0
        %1570 = vmatprep.subr.mxu0 0.0
        %1571 = vmatpush1.msra.mxu0 0.0
        %1572 = vmatprep.subr.mxu0 0.0
        %1573 = vmatpush1.msra.mxu0 0.0
        %1574 = vmatprep.subr.mxu0 0.0
        %1575 = vmatpush1.msra.mxu0 0.0
        %1576 = vmatprep.subr.mxu0 0.0
        %1577 = vmatpush1.msra.mxu0 0.0
        %1578 = vmatprep.subr.mxu0 0.0
        %1579 = vmatpush1.msra.mxu0 0.0
        %1580 = vmatprep.subr.mxu0 0.0
        %1581 = vmatpush1.msra.mxu0 0.0
        %1582 = vmatprep.subr.mxu0 0.0
        %1583 = vmatpush1.msra.mxu0 0.0
        %1584 = vmatprep.subr.mxu0 0.0
        %1585 = vmatpush1.msra.mxu0 0.0
        %1586 = vmatprep.subr.mxu0 0.0
        %1587 = vmatpush1.msra.mxu0 0.0
        %1588 = vmatprep.subr.mxu0 0.0
        %1589 = vmatpush1.msra.mxu0 0.0
        %1590 = vmatprep.subr.mxu0 0.0
        %1591 = vmatpush1.msra.mxu0 0.0
        %1592 = vmatprep.subr.mxu0 0.0
        %1593 = vmatpush1.msra.mxu0 0.0
        %1594 = vmatprep.subr.mxu0 0.0
        %1595 = vmatpush1.msra.mxu0 0.0
        %1596 = vmatprep.subr.mxu0 0.0
        %1597 = vmatpush1.msra.mxu0 0.0
        %1598 = vmatprep.subr.mxu0 0.0
        %1599 = vmatpush1.msra.mxu0 0.0
        %1600 = vmatprep.subr.mxu0 0.0
        %1601 = vmatpush1.msra.mxu0 0.0
        %1602 = vmatprep.subr.mxu0 0.0
        %1603 = vmatpush1.msra.mxu0 0.0
        %1604 = vmatprep.subr.mxu0 0.0
        %1605 = vmatpush1.msra.mxu0 0.0
        %1606 = vmatprep.subr.mxu0 0.0
        %1607 = vmatpush1.msra.mxu0 0.0
        %1608 = vmatprep.subr.mxu0 0.0
        %1609 = vmatpush1.msra.mxu0 0.0
        %1610 = vmatprep.subr.mxu0 0.0
        %1611 = vmatpush1.msra.mxu0 0.0
        %1612 = vmatprep.subr.mxu0 0.0
        %1613 = vmatpush1.msra.mxu0 0.0
        %1614 = vmatprep.subr.mxu0 0.0
        %1615 = vmatpush1.msra.mxu0 0.0
        %1616 = vmatprep.mubr.f32.mxu0 0.0
        %v1617 = vand.u32 %v323, 4294901760
        %v1618 = vsub.f32 %v323, %v1617
        %v1619 = vand.u32 %v1618, 4294901760
        %1620 = vmatmul.mubr.f32.gmra.mrb[0].mxu0 %v1619
        %v1621 = vpop.f32.mrb[0].mxu0
        %v1622 = vadd.f32 %v1545, %v1621
        %v1623 = vpop.f32.mrb[0].mxu0
        %1624 = vdwg.mxu0
        %1625 = vmatprep.subr.mxu0 0.0
        %v1626 = vand.u32 %v302, 4294901760
        %v1627 = vsub.f32 %v302, %v1626
        %v1628 = vand.u32 %v1627, 4294901760
        %1629 = vmatpush1.msra.mxu0 %v1628
        %1630 = vmatprep.subr.mxu0 0.0
        %v1631 = vand.u32 %v303, 4294901760
        %v1632 = vsub.f32 %v303, %v1631
        %v1633 = vand.u32 %v1632, 4294901760
        %1634 = vmatpush1.msra.mxu0 %v1633
        %1635 = vmatprep.subr.mxu0 0.0
        %v1636 = vand.u32 %v304, 4294901760
        %v1637 = vsub.f32 %v304, %v1636
        %v1638 = vand.u32 %v1637, 4294901760
        %1639 = vmatpush1.msra.mxu0 %v1638
        %1640 = vmatprep.subr.mxu0 0.0
        %v1641 = vand.u32 %v305, 4294901760
        %v1642 = vsub.f32 %v305, %v1641
        %v1643 = vand.u32 %v1642, 4294901760
        %1644 = vmatpush1.msra.mxu0 %v1643
        %1645 = vmatprep.subr.mxu0 0.0
        %1646 = vmatpush1.msra.mxu0 0.0
        %1647 = vmatprep.subr.mxu0 0.0
        %1648 = vmatpush1.msra.mxu0 0.0
        %1649 = vmatprep.subr.mxu0 0.0
        %1650 = vmatpush1.msra.mxu0 0.0
        %1651 = vmatprep.subr.mxu0 0.0
        %1652 = vmatpush1.msra.mxu0 0.0
        %1653 = vmatprep.subr.mxu0 0.0
        %1654 = vmatpush1.msra.mxu0 0.0
        %1655 = vmatprep.subr.mxu0 0.0
        %1656 = vmatpush1.msra.mxu0 0.0
        %1657 = vmatprep.subr.mxu0 0.0
        %1658 = vmatpush1.msra.mxu0 0.0
        %1659 = vmatprep.subr.mxu0 0.0
        %1660 = vmatpush1.msra.mxu0 0.0
        %1661 = vmatprep.subr.mxu0 0.0
        %1662 = vmatpush1.msra.mxu0 0.0
        %1663 = vmatprep.subr.mxu0 0.0
        %1664 = vmatpush1.msra.mxu0 0.0
        %1665 = vmatprep.subr.mxu0 0.0
        %1666 = vmatpush1.msra.mxu0 0.0
        %1667 = vmatprep.subr.mxu0 0.0
        %1668 = vmatpush1.msra.mxu0 0.0
        %1669 = vmatprep.subr.mxu0 0.0
        %1670 = vmatpush1.msra.mxu0 0.0
        %1671 = vmatprep.subr.mxu0 0.0
        %1672 = vmatpush1.msra.mxu0 0.0
        %1673 = vmatprep.subr.mxu0 0.0
        %1674 = vmatpush1.msra.mxu0 0.0
        %1675 = vmatprep.subr.mxu0 0.0
        %1676 = vmatpush1.msra.mxu0 0.0
        %1677 = vmatprep.subr.mxu0 0.0
        %1678 = vmatpush1.msra.mxu0 0.0
        %1679 = vmatprep.subr.mxu0 0.0
        %1680 = vmatpush1.msra.mxu0 0.0
        %1681 = vmatprep.subr.mxu0 0.0
        %1682 = vmatpush1.msra.mxu0 0.0
        %1683 = vmatprep.subr.mxu0 0.0
        %1684 = vmatpush1.msra.mxu0 0.0
        %1685 = vmatprep.subr.mxu0 0.0
        %1686 = vmatpush1.msra.mxu0 0.0
        %1687 = vmatprep.subr.mxu0 0.0
        %1688 = vmatpush1.msra.mxu0 0.0
        %1689 = vmatprep.subr.mxu0 0.0
        %1690 = vmatpush1.msra.mxu0 0.0
        %1691 = vmatprep.subr.mxu0 0.0
        %1692 = vmatpush1.msra.mxu0 0.0
        %1693 = vmatprep.subr.mxu0 0.0
        %1694 = vmatpush1.msra.mxu0 0.0
        %1695 = vmatprep.subr.mxu0 0.0
        %1696 = vmatpush1.msra.mxu0 0.0
        %1697 = vmatprep.subr.mxu0 0.0
        %1698 = vmatpush1.msra.mxu0 0.0
        %1699 = vmatprep.subr.mxu0 0.0
        %1700 = vmatpush1.msra.mxu0 0.0
        %1701 = vmatprep.mubr.f32.mxu0 0.0
        %v1702 = vand.u32 %v323, 4294901760
        %1703 = vmatmul.mubr.f32.gmra.mrb[0].mxu0 %v1702
        %v1704 = vpop.f32.mrb[0].mxu0
        %v1705 = vadd.f32 %v1622, %v1704
        %v1706 = vpop.f32.mrb[0].mxu0
        %1707 = vdwg.mxu0
        %1708 = vmatprep.subr.mxu0 0.0
        %v1709 = vand.u32 %v302, 4294901760
        %1710 = vmatpush1.msra.mxu0 %v1709
        %1711 = vmatprep.subr.mxu0 0.0
        %v1712 = vand.u32 %v303, 4294901760
        %1713 = vmatpush1.msra.mxu0 %v1712
        %1714 = vmatprep.subr.mxu0 0.0
        %v1715 = vand.u32 %v304, 4294901760
        %1716 = vmatpush1.msra.mxu0 %v1715
        %1717 = vmatprep.subr.mxu0 0.0
        %v1718 = vand.u32 %v305, 4294901760
        %1719 = vmatpush1.msra.mxu0 %v1718
        %1720 = vmatprep.subr.mxu0 0.0
        %1721 = vmatpush1.msra.mxu0 0.0
        %1722 = vmatprep.subr.mxu0 0.0
        %1723 = vmatpush1.msra.mxu0 0.0
        %1724 = vmatprep.subr.mxu0 0.0
        %1725 = vmatpush1.msra.mxu0 0.0
        %1726 = vmatprep.subr.mxu0 0.0
        %1727 = vmatpush1.msra.mxu0 0.0
        %1728 = vmatprep.subr.mxu0 0.0
        %1729 = vmatpush1.msra.mxu0 0.0
        %1730 = vmatprep.subr.mxu0 0.0
        %1731 = vmatpush1.msra.mxu0 0.0
        %1732 = vmatprep.subr.mxu0 0.0
        %1733 = vmatpush1.msra.mxu0 0.0
        %1734 = vmatprep.subr.mxu0 0.0
        %1735 = vmatpush1.msra.mxu0 0.0
        %1736 = vmatprep.subr.mxu0 0.0
        %1737 = vmatpush1.msra.mxu0 0.0
        %1738 = vmatprep.subr.mxu0 0.0
        %1739 = vmatpush1.msra.mxu0 0.0
        %1740 = vmatprep.subr.mxu0 0.0
        %1741 = vmatpush1.msra.mxu0 0.0
        %1742 = vmatprep.subr.mxu0 0.0
        %1743 = vmatpush1.msra.mxu0 0.0
        %1744 = vmatprep.subr.mxu0 0.0
        %1745 = vmatpush1.msra.mxu0 0.0
        %1746 = vmatprep.subr.mxu0 0.0
        %1747 = vmatpush1.msra.mxu0 0.0
        %1748 = vmatprep.subr.mxu0 0.0
        %1749 = vmatpush1.msra.mxu0 0.0
        %1750 = vmatprep.subr.mxu0 0.0
        %1751 = vmatpush1.msra.mxu0 0.0
        %1752 = vmatprep.subr.mxu0 0.0
        %1753 = vmatpush1.msra.mxu0 0.0
        %1754 = vmatprep.subr.mxu0 0.0
        %1755 = vmatpush1.msra.mxu0 0.0
        %1756 = vmatprep.subr.mxu0 0.0
        %1757 = vmatpush1.msra.mxu0 0.0
        %1758 = vmatprep.subr.mxu0 0.0
        %1759 = vmatpush1.msra.mxu0 0.0
        %1760 = vmatprep.subr.mxu0 0.0
        %1761 = vmatpush1.msra.mxu0 0.0
        %1762 = vmatprep.subr.mxu0 0.0
        %1763 = vmatpush1.msra.mxu0 0.0
        %1764 = vmatprep.subr.mxu0 0.0
        %1765 = vmatpush1.msra.mxu0 0.0
        %1766 = vmatprep.subr.mxu0 0.0
        %1767 = vmatpush1.msra.mxu0 0.0
        %1768 = vmatprep.subr.mxu0 0.0
        %1769 = vmatpush1.msra.mxu0 0.0
        %1770 = vmatprep.subr.mxu0 0.0
        %1771 = vmatpush1.msra.mxu0 0.0
        %1772 = vmatprep.subr.mxu0 0.0
        %1773 = vmatpush1.msra.mxu0 0.0
        %1774 = vmatprep.subr.mxu0 0.0
        %1775 = vmatpush1.msra.mxu0 0.0
        %1776 = vmatprep.mubr.f32.mxu0 0.0
        %v1777 = vand.u32 %v323, 4294901760
        %1778 = vmatmul.mubr.f32.gmra.mrb[0].mxu0 %v1777
        %v1779 = vpop.f32.mrb[0].mxu0
        %v1780 = vadd.f32 %v1705, %v1779
        %v1781 = vpop.f32.mrb[0].mxu0
        %1782 = vdwg.mxu0
        %1783 = vmatprep.subr.mxu0 0.0
        %v1784 = vand.u32 %v317, 4294901760
        %1785 = vmatpush1.msra.mxu0 %v1784
        %1786 = vmatprep.subr.mxu0 0.0
        %v1787 = vand.u32 %v318, 4294901760
        %1788 = vmatpush1.msra.mxu0 %v1787
        %1789 = vmatprep.subr.mxu0 0.0
        %v1790 = vand.u32 %v319, 4294901760
        %1791 = vmatpush1.msra.mxu0 %v1790
        %1792 = vmatprep.subr.mxu0 0.0
        %v1793 = vand.u32 %v320, 4294901760
        %1794 = vmatpush1.msra.mxu0 %v1793
        %1795 = vmatprep.subr.mxu0 0.0
        %1796 = vmatpush1.msra.mxu0 0.0
        %1797 = vmatprep.subr.mxu0 0.0
        %1798 = vmatpush1.msra.mxu0 0.0
        %1799 = vmatprep.subr.mxu0 0.0
        %1800 = vmatpush1.msra.mxu0 0.0
        %1801 = vmatprep.subr.mxu0 0.0
        %1802 = vmatpush1.msra.mxu0 0.0
        %1803 = vmatprep.subr.mxu0 0.0
        %1804 = vmatpush1.msra.mxu0 0.0
        %1805 = vmatprep.subr.mxu0 0.0
        %1806 = vmatpush1.msra.mxu0 0.0
        %1807 = vmatprep.subr.mxu0 0.0
        %1808 = vmatpush1.msra.mxu0 0.0
        %1809 = vmatprep.subr.mxu0 0.0
        %1810 = vmatpush1.msra.mxu0 0.0
        %1811 = vmatprep.subr.mxu0 0.0
        %1812 = vmatpush1.msra.mxu0 0.0
        %1813 = vmatprep.subr.mxu0 0.0
        %1814 = vmatpush1.msra.mxu0 0.0
        %1815 = vmatprep.subr.mxu0 0.0
        %1816 = vmatpush1.msra.mxu0 0.0
        %1817 = vmatprep.subr.mxu0 0.0
        %1818 = vmatpush1.msra.mxu0 0.0
        %1819 = vmatprep.subr.mxu0 0.0
        %1820 = vmatpush1.msra.mxu0 0.0
        %1821 = vmatprep.subr.mxu0 0.0
        %1822 = vmatpush1.msra.mxu0 0.0
        %1823 = vmatprep.subr.mxu0 0.0
        %1824 = vmatpush1.msra.mxu0 0.0
        %1825 = vmatprep.subr.mxu0 0.0
        %1826 = vmatpush1.msra.mxu0 0.0
        %1827 = vmatprep.subr.mxu0 0.0
        %1828 = vmatpush1.msra.mxu0 0.0
        %1829 = vmatprep.subr.mxu0 0.0
        %1830 = vmatpush1.msra.mxu0 0.0
        %1831 = vmatprep.subr.mxu0 0.0
        %1832 = vmatpush1.msra.mxu0 0.0
        %1833 = vmatprep.subr.mxu0 0.0
        %1834 = vmatpush1.msra.mxu0 0.0
        %1835 = vmatprep.subr.mxu0 0.0
        %1836 = vmatpush1.msra.mxu0 0.0
        %1837 = vmatprep.subr.mxu0 0.0
        %1838 = vmatpush1.msra.mxu0 0.0
        %1839 = vmatprep.subr.mxu0 0.0
        %1840 = vmatpush1.msra.mxu0 0.0
        %1841 = vmatprep.subr.mxu0 0.0
        %1842 = vmatpush1.msra.mxu0 0.0
        %1843 = vmatprep.subr.mxu0 0.0
        %1844 = vmatpush1.msra.mxu0 0.0
        %1845 = vmatprep.subr.mxu0 0.0
        %1846 = vmatpush1.msra.mxu0 0.0
        %1847 = vmatprep.subr.mxu0 0.0
        %1848 = vmatpush1.msra.mxu0 0.0
        %1849 = vmatprep.subr.mxu0 0.0
        %1850 = vmatpush1.msra.mxu0 0.0
        %1851 = vmatprep.mubr.f32.mxu0 0.0
        %v1852 = vand.u32 %v811, 4294901760
        %v1853 = vsub.f32 %v811, %v1852
        %v1854 = vand.u32 %v1853, 4294901760
        %v1855 = vsub.f32 %v1853, %v1854
        %v1856 = vand.u32 %v1855, 4294901760
        %1857 = vmatmul.mubr.f32.gmra.mrb[0].mxu0 %v1856
        %v1858 = vpop.f32.mrb[0].mxu0
        %v1859 = vadd.f32 0.0, %v1858
        %v1860 = vpop.f32.mrb[0].mxu0
        %1861 = vdwg.mxu0
        %1862 = vmatprep.subr.mxu0 0.0
        %v1863 = vand.u32 %v317, 4294901760
        %v1864 = vsub.f32 %v317, %v1863
        %v1865 = vand.u32 %v1864, 4294901760
        %v1866 = vsub.f32 %v1864, %v1865
        %v1867 = vand.u32 %v1866, 4294901760
        %1868 = vmatpush1.msra.mxu0 %v1867
        %1869 = vmatprep.subr.mxu0 0.0
        %v1870 = vand.u32 %v318, 4294901760
        %v1871 = vsub.f32 %v318, %v1870
        %v1872 = vand.u32 %v1871, 4294901760
        %v1873 = vsub.f32 %v1871, %v1872
        %v1874 = vand.u32 %v1873, 4294901760
        %1875 = vmatpush1.msra.mxu0 %v1874
        %1876 = vmatprep.subr.mxu0 0.0
        %v1877 = vand.u32 %v319, 4294901760
        %v1878 = vsub.f32 %v319, %v1877
        %v1879 = vand.u32 %v1878, 4294901760
        %v1880 = vsub.f32 %v1878, %v1879
        %v1881 = vand.u32 %v1880, 4294901760
        %1882 = vmatpush1.msra.mxu0 %v1881
        %1883 = vmatprep.subr.mxu0 0.0
        %v1884 = vand.u32 %v320, 4294901760
        %v1885 = vsub.f32 %v320, %v1884
        %v1886 = vand.u32 %v1885, 4294901760
        %v1887 = vsub.f32 %v1885, %v1886
        %v1888 = vand.u32 %v1887, 4294901760
        %1889 = vmatpush1.msra.mxu0 %v1888
        %1890 = vmatprep.subr.mxu0 0.0
        %1891 = vmatpush1.msra.mxu0 0.0
        %1892 = vmatprep.subr.mxu0 0.0
        %1893 = vmatpush1.msra.mxu0 0.0
        %1894 = vmatprep.subr.mxu0 0.0
        %1895 = vmatpush1.msra.mxu0 0.0
        %1896 = vmatprep.subr.mxu0 0.0
        %1897 = vmatpush1.msra.mxu0 0.0
        %1898 = vmatprep.subr.mxu0 0.0
        %1899 = vmatpush1.msra.mxu0 0.0
        %1900 = vmatprep.subr.mxu0 0.0
        %1901 = vmatpush1.msra.mxu0 0.0
        %1902 = vmatprep.subr.mxu0 0.0
        %1903 = vmatpush1.msra.mxu0 0.0
        %1904 = vmatprep.subr.mxu0 0.0
        %1905 = vmatpush1.msra.mxu0 0.0
        %1906 = vmatprep.subr.mxu0 0.0
        %1907 = vmatpush1.msra.mxu0 0.0
        %1908 = vmatprep.subr.mxu0 0.0
        %1909 = vmatpush1.msra.mxu0 0.0
        %1910 = vmatprep.subr.mxu0 0.0
        %1911 = vmatpush1.msra.mxu0 0.0
        %1912 = vmatprep.subr.mxu0 0.0
        %1913 = vmatpush1.msra.mxu0 0.0
        %1914 = vmatprep.subr.mxu0 0.0
        %1915 = vmatpush1.msra.mxu0 0.0
        %1916 = vmatprep.subr.mxu0 0.0
        %1917 = vmatpush1.msra.mxu0 0.0
        %1918 = vmatprep.subr.mxu0 0.0
        %1919 = vmatpush1.msra.mxu0 0.0
        %1920 = vmatprep.subr.mxu0 0.0
        %1921 = vmatpush1.msra.mxu0 0.0
        %1922 = vmatprep.subr.mxu0 0.0
        %1923 = vmatpush1.msra.mxu0 0.0
        %1924 = vmatprep.subr.mxu0 0.0
        %1925 = vmatpush1.msra.mxu0 0.0
        %1926 = vmatprep.subr.mxu0 0.0
        %1927 = vmatpush1.msra.mxu0 0.0
        %1928 = vmatprep.subr.mxu0 0.0
        %1929 = vmatpush1.msra.mxu0 0.0
        %1930 = vmatprep.subr.mxu0 0.0
        %1931 = vmatpush1.msra.mxu0 0.0
        %1932 = vmatprep.subr.mxu0 0.0
        %1933 = vmatpush1.msra.mxu0 0.0
        %1934 = vmatprep.subr.mxu0 0.0
        %1935 = vmatpush1.msra.mxu0 0.0
        %1936 = vmatprep.subr.mxu0 0.0
        %1937 = vmatpush1.msra.mxu0 0.0
        %1938 = vmatprep.subr.mxu0 0.0
        %1939 = vmatpush1.msra.mxu0 0.0
        %1940 = vmatprep.subr.mxu0 0.0
        %1941 = vmatpush1.msra.mxu0 0.0
        %1942 = vmatprep.subr.mxu0 0.0
        %1943 = vmatpush1.msra.mxu0 0.0
        %1944 = vmatprep.subr.mxu0 0.0
        %1945 = vmatpush1.msra.mxu0 0.0
        %1946 = vmatprep.mubr.f32.mxu0 0.0
        %v1947 = vand.u32 %v811, 4294901760
        %1948 = vmatmul.mubr.f32.gmra.mrb[0].mxu0 %v1947
        %v1949 = vpop.f32.mrb[0].mxu0
        %v1950 = vadd.f32 %v1859, %v1949
        %v1951 = vpop.f32.mrb[0].mxu0
        %1952 = vdwg.mxu0
        %1953 = vmatprep.subr.mxu0 0.0
        %v1954 = vand.u32 %v317, 4294901760
        %v1955 = vsub.f32 %v317, %v1954
        %1956 = vmatpush1.msra.mxu0 %v1955
        %1957 = vmatprep.subr.mxu0 0.0
        %v1958 = vand.u32 %v318, 4294901760
        %v1959 = vsub.f32 %v318, %v1958
        %1960 = vmatpush1.msra.mxu0 %v1959
        %1961 = vmatprep.subr.mxu0 0.0
        %v1962 = vand.u32 %v319, 4294901760
        %v1963 = vsub.f32 %v319, %v1962
        %1964 = vmatpush1.msra.mxu0 %v1963
        %1965 = vmatprep.subr.mxu0 0.0
        %v1966 = vand.u32 %v320, 4294901760
        %v1967 = vsub.f32 %v320, %v1966
        %1968 = vmatpush1.msra.mxu0 %v1967
        %1969 = vmatprep.subr.mxu0 0.0
        %1970 = vmatpush1.msra.mxu0 0.0
        %1971 = vmatprep.subr.mxu0 0.0
        %1972 = vmatpush1.msra.mxu0 0.0
        %1973 = vmatprep.subr.mxu0 0.0
        %1974 = vmatpush1.msra.mxu0 0.0
        %1975 = vmatprep.subr.mxu0 0.0
        %1976 = vmatpush1.msra.mxu0 0.0
        %1977 = vmatprep.subr.mxu0 0.0
        %1978 = vmatpush1.msra.mxu0 0.0
        %1979 = vmatprep.subr.mxu0 0.0
        %1980 = vmatpush1.msra.mxu0 0.0
        %1981 = vmatprep.subr.mxu0 0.0
        %1982 = vmatpush1.msra.mxu0 0.0
        %1983 = vmatprep.subr.mxu0 0.0
        %1984 = vmatpush1.msra.mxu0 0.0
        %1985 = vmatprep.subr.mxu0 0.0
        %1986 = vmatpush1.msra.mxu0 0.0
        %1987 = vmatprep.subr.mxu0 0.0
        %1988 = vmatpush1.msra.mxu0 0.0
        %1989 = vmatprep.subr.mxu0 0.0
        %1990 = vmatpush1.msra.mxu0 0.0
        %1991 = vmatprep.subr.mxu0 0.0
        %1992 = vmatpush1.msra.mxu0 0.0
        %1993 = vmatprep.subr.mxu0 0.0
        %1994 = vmatpush1.msra.mxu0 0.0
        %1995 = vmatprep.subr.mxu0 0.0
        %1996 = vmatpush1.msra.mxu0 0.0
        %1997 = vmatprep.subr.mxu0 0.0
        %1998 = vmatpush1.msra.mxu0 0.0
        %1999 = vmatprep.subr.mxu0 0.0
        %2000 = vmatpush1.msra.mxu0 0.0
        %2001 = vmatprep.subr.mxu0 0.0
        %2002 = vmatpush1.msra.mxu0 0.0
        %2003 = vmatprep.subr.mxu0 0.0
        %2004 = vmatpush1.msra.mxu0 0.0
        %2005 = vmatprep.subr.mxu0 0.0
        %2006 = vmatpush1.msra.mxu0 0.0
        %2007 = vmatprep.subr.mxu0 0.0
        %2008 = vmatpush1.msra.mxu0 0.0
        %2009 = vmatprep.subr.mxu0 0.0
        %2010 = vmatpush1.msra.mxu0 0.0
        %2011 = vmatprep.subr.mxu0 0.0
        %2012 = vmatpush1.msra.mxu0 0.0
        %2013 = vmatprep.subr.mxu0 0.0
        %2014 = vmatpush1.msra.mxu0 0.0
        %2015 = vmatprep.subr.mxu0 0.0
        %2016 = vmatpush1.msra.mxu0 0.0
        %2017 = vmatprep.subr.mxu0 0.0
        %2018 = vmatpush1.msra.mxu0 0.0
        %2019 = vmatprep.subr.mxu0 0.0
        %2020 = vmatpush1.msra.mxu0 0.0
        %2021 = vmatprep.subr.mxu0 0.0
        %2022 = vmatpush1.msra.mxu0 0.0
        %2023 = vmatprep.subr.mxu0 0.0
        %2024 = vmatpush1.msra.mxu0 0.0
        %2025 = vmatprep.mubr.f32.mxu0 0.0
        %v2026 = vand.u32 %v811, 4294901760
        %v2027 = vsub.f32 %v811, %v2026
        %2028 = vmatmul.mubr.f32.gmra.mrb[0].mxu0 %v2027
        %v2029 = vpop.f32.mrb[0].mxu0
        %v2030 = vadd.f32 %v1950, %v2029
        %v2031 = vpop.f32.mrb[0].mxu0
        %2032 = vdwg.mxu0
        %2033 = vmatprep.subr.mxu0 0.0
        %v2034 = vand.u32 %v317, 4294901760
        %2035 = vmatpush1.msra.mxu0 %v2034
        %2036 = vmatprep.subr.mxu0 0.0
        %v2037 = vand.u32 %v318, 4294901760
        %2038 = vmatpush1.msra.mxu0 %v2037
        %2039 = vmatprep.subr.mxu0 0.0
        %v2040 = vand.u32 %v319, 4294901760
        %2041 = vmatpush1.msra.mxu0 %v2040
        %2042 = vmatprep.subr.mxu0 0.0
        %v2043 = vand.u32 %v320, 4294901760
        %2044 = vmatpush1.msra.mxu0 %v2043
        %2045 = vmatprep.subr.mxu0 0.0
        %2046 = vmatpush1.msra.mxu0 0.0
        %2047 = vmatprep.subr.mxu0 0.0
        %2048 = vmatpush1.msra.mxu0 0.0
        %2049 = vmatprep.subr.mxu0 0.0
        %2050 = vmatpush1.msra.mxu0 0.0
        %2051 = vmatprep.subr.mxu0 0.0
        %2052 = vmatpush1.msra.mxu0 0.0
        %2053 = vmatprep.subr.mxu0 0.0
        %2054 = vmatpush1.msra.mxu0 0.0
        %2055 = vmatprep.subr.mxu0 0.0
        %2056 = vmatpush1.msra.mxu0 0.0
        %2057 = vmatprep.subr.mxu0 0.0
        %2058 = vmatpush1.msra.mxu0 0.0
        %2059 = vmatprep.subr.mxu0 0.0
        %2060 = vmatpush1.msra.mxu0 0.0
        %2061 = vmatprep.subr.mxu0 0.0
        %2062 = vmatpush1.msra.mxu0 0.0
        %2063 = vmatprep.subr.mxu0 0.0
        %2064 = vmatpush1.msra.mxu0 0.0
        %2065 = vmatprep.subr.mxu0 0.0
        %2066 = vmatpush1.msra.mxu0 0.0
        %2067 = vmatprep.subr.mxu0 0.0
        %2068 = vmatpush1.msra.mxu0 0.0
        %2069 = vmatprep.subr.mxu0 0.0
        %2070 = vmatpush1.msra.mxu0 0.0
        %2071 = vmatprep.subr.mxu0 0.0
        %2072 = vmatpush1.msra.mxu0 0.0
        %2073 = vmatprep.subr.mxu0 0.0
        %2074 = vmatpush1.msra.mxu0 0.0
        %2075 = vmatprep.subr.mxu0 0.0
        %2076 = vmatpush1.msra.mxu0 0.0
        %2077 = vmatprep.subr.mxu0 0.0
        %2078 = vmatpush1.msra.mxu0 0.0
        %2079 = vmatprep.subr.mxu0 0.0
        %2080 = vmatpush1.msra.mxu0 0.0
        %2081 = vmatprep.subr.mxu0 0.0
        %2082 = vmatpush1.msra.mxu0 0.0
        %2083 = vmatprep.subr.mxu0 0.0
        %2084 = vmatpush1.msra.mxu0 0.0
        %2085 = vmatprep.subr.mxu0 0.0
        %2086 = vmatpush1.msra.mxu0 0.0
        %2087 = vmatprep.subr.mxu0 0.0
        %2088 = vmatpush1.msra.mxu0 0.0
        %2089 = vmatprep.subr.mxu0 0.0
        %2090 = vmatpush1.msra.mxu0 0.0
        %2091 = vmatprep.subr.mxu0 0.0
        %2092 = vmatpush1.msra.mxu0 0.0
        %2093 = vmatprep.subr.mxu0 0.0
        %2094 = vmatpush1.msra.mxu0 0.0
        %2095 = vmatprep.subr.mxu0 0.0
        %2096 = vmatpush1.msra.mxu0 0.0
        %2097 = vmatprep.subr.mxu0 0.0
        %2098 = vmatpush1.msra.mxu0 0.0
        %2099 = vmatprep.subr.mxu0 0.0
        %2100 = vmatpush1.msra.mxu0 0.0
        %2101 = vmatprep.mubr.f32.mxu0 0.0
        %v2102 = vand.u32 %v811, 4294901760
        %v2103 = vsub.f32 %v811, %v2102
        %v2104 = vand.u32 %v2103, 4294901760
        %2105 = vmatmul.mubr.f32.gmra.mrb[0].mxu0 %v2104
        %v2106 = vpop.f32.mrb[0].mxu0
        %v2107 = vadd.f32 %v2030, %v2106
        %v2108 = vpop.f32.mrb[0].mxu0
        %2109 = vdwg.mxu0
        %2110 = vmatprep.subr.mxu0 0.0
        %v2111 = vand.u32 %v317, 4294901760
        %v2112 = vsub.f32 %v317, %v2111
        %v2113 = vand.u32 %v2112, 4294901760
        %2114 = vmatpush1.msra.mxu0 %v2113
        %2115 = vmatprep.subr.mxu0 0.0
        %v2116 = vand.u32 %v318, 4294901760
        %v2117 = vsub.f32 %v318, %v2116
        %v2118 = vand.u32 %v2117, 4294901760
        %2119 = vmatpush1.msra.mxu0 %v2118
        %2120 = vmatprep.subr.mxu0 0.0
        %v2121 = vand.u32 %v319, 4294901760
        %v2122 = vsub.f32 %v319, %v2121
        %v2123 = vand.u32 %v2122, 4294901760
        %2124 = vmatpush1.msra.mxu0 %v2123
        %2125 = vmatprep.subr.mxu0 0.0
        %v2126 = vand.u32 %v320, 4294901760
        %v2127 = vsub.f32 %v320, %v2126
        %v2128 = vand.u32 %v2127, 4294901760
        %2129 = vmatpush1.msra.mxu0 %v2128
        %2130 = vmatprep.subr.mxu0 0.0
        %2131 = vmatpush1.msra.mxu0 0.0
        %2132 = vmatprep.subr.mxu0 0.0
        %2133 = vmatpush1.msra.mxu0 0.0
        %2134 = vmatprep.subr.mxu0 0.0
        %2135 = vmatpush1.msra.mxu0 0.0
        %2136 = vmatprep.subr.mxu0 0.0
        %2137 = vmatpush1.msra.mxu0 0.0
        %2138 = vmatprep.subr.mxu0 0.0
        %2139 = vmatpush1.msra.mxu0 0.0
        %2140 = vmatprep.subr.mxu0 0.0
        %2141 = vmatpush1.msra.mxu0 0.0
        %2142 = vmatprep.subr.mxu0 0.0
        %2143 = vmatpush1.msra.mxu0 0.0
        %2144 = vmatprep.subr.mxu0 0.0
        %2145 = vmatpush1.msra.mxu0 0.0
        %2146 = vmatprep.subr.mxu0 0.0
        %2147 = vmatpush1.msra.mxu0 0.0
        %2148 = vmatprep.subr.mxu0 0.0
        %2149 = vmatpush1.msra.mxu0 0.0
        %2150 = vmatprep.subr.mxu0 0.0
        %2151 = vmatpush1.msra.mxu0 0.0
        %2152 = vmatprep.subr.mxu0 0.0
        %2153 = vmatpush1.msra.mxu0 0.0
        %2154 = vmatprep.subr.mxu0 0.0
        %2155 = vmatpush1.msra.mxu0 0.0
        %2156 = vmatprep.subr.mxu0 0.0
        %2157 = vmatpush1.msra.mxu0 0.0
        %2158 = vmatprep.subr.mxu0 0.0
        %2159 = vmatpush1.msra.mxu0 0.0
        %2160 = vmatprep.subr.mxu0 0.0
        %2161 = vmatpush1.msra.mxu0 0.0
        %2162 = vmatprep.subr.mxu0 0.0
        %2163 = vmatpush1.msra.mxu0 0.0
        %2164 = vmatprep.subr.mxu0 0.0
        %2165 = vmatpush1.msra.mxu0 0.0
        %2166 = vmatprep.subr.mxu0 0.0
        %2167 = vmatpush1.msra.mxu0 0.0
        %2168 = vmatprep.subr.mxu0 0.0
        %2169 = vmatpush1.msra.mxu0 0.0
        %2170 = vmatprep.subr.mxu0 0.0
        %2171 = vmatpush1.msra.mxu0 0.0
        %2172 = vmatprep.subr.mxu0 0.0
        %2173 = vmatpush1.msra.mxu0 0.0
        %2174 = vmatprep.subr.mxu0 0.0
        %2175 = vmatpush1.msra.mxu0 0.0
        %2176 = vmatprep.subr.mxu0 0.0
        %2177 = vmatpush1.msra.mxu0 0.0
        %2178 = vmatprep.subr.mxu0 0.0
        %2179 = vmatpush1.msra.mxu0 0.0
        %2180 = vmatprep.subr.mxu0 0.0
        %2181 = vmatpush1.msra.mxu0 0.0
        %2182 = vmatprep.subr.mxu0 0.0
        %2183 = vmatpush1.msra.mxu0 0.0
        %2184 = vmatprep.subr.mxu0 0.0
        %2185 = vmatpush1.msra.mxu0 0.0
        %2186 = vmatprep.mubr.f32.mxu0 0.0
        %v2187 = vand.u32 %v811, 4294901760
        %2188 = vmatmul.mubr.f32.gmra.mrb[0].mxu0 %v2187
        %v2189 = vpop.f32.mrb[0].mxu0
        %v2190 = vadd.f32 %v2107, %v2189
        %v2191 = vpop.f32.mrb[0].mxu0
        %2192 = vdwg.mxu0
        %2193 = vmatprep.subr.mxu0 0.0
        %v2194 = vand.u32 %v317, 4294901760
        %2195 = vmatpush1.msra.mxu0 %v2194
        %2196 = vmatprep.subr.mxu0 0.0
        %v2197 = vand.u32 %v318, 4294901760
        %2198 = vmatpush1.msra.mxu0 %v2197
        %2199 = vmatprep.subr.mxu0 0.0
        %v2200 = vand.u32 %v319, 4294901760
        %2201 = vmatpush1.msra.mxu0 %v2200
        %2202 = vmatprep.subr.mxu0 0.0
        %v2203 = vand.u32 %v320, 4294901760
        %2204 = vmatpush1.msra.mxu0 %v2203
        %2205 = vmatprep.subr.mxu0 0.0
        %2206 = vmatpush1.msra.mxu0 0.0
        %2207 = vmatprep.subr.mxu0 0.0
        %2208 = vmatpush1.msra.mxu0 0.0
        %2209 = vmatprep.subr.mxu0 0.0
        %2210 = vmatpush1.msra.mxu0 0.0
        %2211 = vmatprep.subr.mxu0 0.0
        %2212 = vmatpush1.msra.mxu0 0.0
        %2213 = vmatprep.subr.mxu0 0.0
        %2214 = vmatpush1.msra.mxu0 0.0
        %2215 = vmatprep.subr.mxu0 0.0
        %2216 = vmatpush1.msra.mxu0 0.0
        %2217 = vmatprep.subr.mxu0 0.0
        %2218 = vmatpush1.msra.mxu0 0.0
        %2219 = vmatprep.subr.mxu0 0.0
        %2220 = vmatpush1.msra.mxu0 0.0
        %2221 = vmatprep.subr.mxu0 0.0
        %2222 = vmatpush1.msra.mxu0 0.0
        %2223 = vmatprep.subr.mxu0 0.0
        %2224 = vmatpush1.msra.mxu0 0.0
        %2225 = vmatprep.subr.mxu0 0.0
        %2226 = vmatpush1.msra.mxu0 0.0
        %2227 = vmatprep.subr.mxu0 0.0
        %2228 = vmatpush1.msra.mxu0 0.0
        %2229 = vmatprep.subr.mxu0 0.0
        %2230 = vmatpush1.msra.mxu0 0.0
        %2231 = vmatprep.subr.mxu0 0.0
        %2232 = vmatpush1.msra.mxu0 0.0
        %2233 = vmatprep.subr.mxu0 0.0
        %2234 = vmatpush1.msra.mxu0 0.0
        %2235 = vmatprep.subr.mxu0 0.0
        %2236 = vmatpush1.msra.mxu0 0.0
        %2237 = vmatprep.subr.mxu0 0.0
        %2238 = vmatpush1.msra.mxu0 0.0
        %2239 = vmatprep.subr.mxu0 0.0
        %2240 = vmatpush1.msra.mxu0 0.0
        %2241 = vmatprep.subr.mxu0 0.0
        %2242 = vmatpush1.msra.mxu0 0.0
        %2243 = vmatprep.subr.mxu0 0.0
        %2244 = vmatpush1.msra.mxu0 0.0
        %2245 = vmatprep.subr.mxu0 0.0
        %2246 = vmatpush1.msra.mxu0 0.0
        %2247 = vmatprep.subr.mxu0 0.0
        %2248 = vmatpush1.msra.mxu0 0.0
        %2249 = vmatprep.subr.mxu0 0.0
        %2250 = vmatpush1.msra.mxu0 0.0
        %2251 = vmatprep.subr.mxu0 0.0
        %2252 = vmatpush1.msra.mxu0 0.0
        %2253 = vmatprep.subr.mxu0 0.0
        %2254 = vmatpush1.msra.mxu0 0.0
        %2255 = vmatprep.subr.mxu0 0.0
        %2256 = vmatpush1.msra.mxu0 0.0
        %2257 = vmatprep.subr.mxu0 0.0
        %2258 = vmatpush1.msra.mxu0 0.0
        %2259 = vmatprep.subr.mxu0 0.0
        %2260 = vmatpush1.msra.mxu0 0.0
        %2261 = vmatprep.mubr.f32.mxu0 0.0
        %v2262 = vand.u32 %v811, 4294901760
        %2263 = vmatmul.mubr.f32.gmra.mrb[0].mxu0 %v2262
        %v2264 = vpop.f32.mrb[0].mxu0
        %v2265 = vadd.f32 %v2190, %v2264
        %v2266 = vpop.f32.mrb[0].mxu0
        %2267 = vdwg.mxu0
        %2268 = vmatprep.subr.mxu0 0.0
        %v2269 = vand.u32 %v312, 4294901760
        %2270 = vmatpush1.msra.mxu0 %v2269
        %2271 = vmatprep.subr.mxu0 0.0
        %v2272 = vand.u32 %v313, 4294901760
        %2273 = vmatpush1.msra.mxu0 %v2272
        %2274 = vmatprep.subr.mxu0 0.0
        %v2275 = vand.u32 %v314, 4294901760
        %2276 = vmatpush1.msra.mxu0 %v2275
        %2277 = vmatprep.subr.mxu0 0.0
        %v2278 = vand.u32 %v315, 4294901760
        %2279 = vmatpush1.msra.mxu0 %v2278
        %2280 = vmatprep.subr.mxu0 0.0
        %2281 = vmatpush1.msra.mxu0 0.0
        %2282 = vmatprep.subr.mxu0 0.0
        %2283 = vmatpush1.msra.mxu0 0.0
        %2284 = vmatprep.subr.mxu0 0.0
        %2285 = vmatpush1.msra.mxu0 0.0
        %2286 = vmatprep.subr.mxu0 0.0
        %2287 = vmatpush1.msra.mxu0 0.0
        %2288 = vmatprep.subr.mxu0 0.0
        %2289 = vmatpush1.msra.mxu0 0.0
        %2290 = vmatprep.subr.mxu0 0.0
        %2291 = vmatpush1.msra.mxu0 0.0
        %2292 = vmatprep.subr.mxu0 0.0
        %2293 = vmatpush1.msra.mxu0 0.0
        %2294 = vmatprep.subr.mxu0 0.0
        %2295 = vmatpush1.msra.mxu0 0.0
        %2296 = vmatprep.subr.mxu0 0.0
        %2297 = vmatpush1.msra.mxu0 0.0
        %2298 = vmatprep.subr.mxu0 0.0
        %2299 = vmatpush1.msra.mxu0 0.0
        %2300 = vmatprep.subr.mxu0 0.0
        %2301 = vmatpush1.msra.mxu0 0.0
        %2302 = vmatprep.subr.mxu0 0.0
        %2303 = vmatpush1.msra.mxu0 0.0
        %2304 = vmatprep.subr.mxu0 0.0
        %2305 = vmatpush1.msra.mxu0 0.0
        %2306 = vmatprep.subr.mxu0 0.0
        %2307 = vmatpush1.msra.mxu0 0.0
        %2308 = vmatprep.subr.mxu0 0.0
        %2309 = vmatpush1.msra.mxu0 0.0
        %2310 = vmatprep.subr.mxu0 0.0
        %2311 = vmatpush1.msra.mxu0 0.0
        %2312 = vmatprep.subr.mxu0 0.0
        %2313 = vmatpush1.msra.mxu0 0.0
        %2314 = vmatprep.subr.mxu0 0.0
        %2315 = vmatpush1.msra.mxu0 0.0
        %2316 = vmatprep.subr.mxu0 0.0
        %2317 = vmatpush1.msra.mxu0 0.0
        %2318 = vmatprep.subr.mxu0 0.0
        %2319 = vmatpush1.msra.mxu0 0.0
        %2320 = vmatprep.subr.mxu0 0.0
        %2321 = vmatpush1.msra.mxu0 0.0
        %2322 = vmatprep.subr.mxu0 0.0
        %2323 = vmatpush1.msra.mxu0 0.0
        %2324 = vmatprep.subr.mxu0 0.0
        %2325 = vmatpush1.msra.mxu0 0.0
        %2326 = vmatprep.subr.mxu0 0.0
        %2327 = vmatpush1.msra.mxu0 0.0
        %2328 = vmatprep.subr.mxu0 0.0
        %2329 = vmatpush1.msra.mxu0 0.0
        %2330 = vmatprep.subr.mxu0 0.0
        %2331 = vmatpush1.msra.mxu0 0.0
        %2332 = vmatprep.subr.mxu0 0.0
        %2333 = vmatpush1.msra.mxu0 0.0
        %2334 = vmatprep.subr.mxu0 0.0
        %2335 = vmatpush1.msra.mxu0 0.0
        %2336 = vmatprep.mubr.f32.mxu0 0.0
        %v2337 = vand.u32 %v323, 4294901760
        %v2338 = vsub.f32 %v323, %v2337
        %v2339 = vand.u32 %v2338, 4294901760
        %v2340 = vsub.f32 %v2338, %v2339
        %v2341 = vand.u32 %v2340, 4294901760
        %2342 = vmatmul.mubr.f32.gmra.mrb[0].mxu0 %v2341
        %v2343 = vpop.f32.mrb[0].mxu0
        %v2344 = vadd.f32 %v2265, %v2343
        %v2345 = vpop.f32.mrb[0].mxu0
        %2346 = vdwg.mxu0
        %2347 = vmatprep.subr.mxu0 0.0
        %v2348 = vand.u32 %v312, 4294901760
        %v2349 = vsub.f32 %v312, %v2348
        %v2350 = vand.u32 %v2349, 4294901760
        %v2351 = vsub.f32 %v2349, %v2350
        %v2352 = vand.u32 %v2351, 4294901760
        %2353 = vmatpush1.msra.mxu0 %v2352
        %2354 = vmatprep.subr.mxu0 0.0
        %v2355 = vand.u32 %v313, 4294901760
        %v2356 = vsub.f32 %v313, %v2355
        %v2357 = vand.u32 %v2356, 4294901760
        %v2358 = vsub.f32 %v2356, %v2357
        %v2359 = vand.u32 %v2358, 4294901760
        %2360 = vmatpush1.msra.mxu0 %v2359
        %2361 = vmatprep.subr.mxu0 0.0
        %v2362 = vand.u32 %v314, 4294901760
        %v2363 = vsub.f32 %v314, %v2362
        %v2364 = vand.u32 %v2363, 4294901760
        %v2365 = vsub.f32 %v2363, %v2364
        %v2366 = vand.u32 %v2365, 4294901760
        %2367 = vmatpush1.msra.mxu0 %v2366
        %2368 = vmatprep.subr.mxu0 0.0
        %v2369 = vand.u32 %v315, 4294901760
        %v2370 = vsub.f32 %v315, %v2369
        %v2371 = vand.u32 %v2370, 4294901760
        %v2372 = vsub.f32 %v2370, %v2371
        %v2373 = vand.u32 %v2372, 4294901760
        %2374 = vmatpush1.msra.mxu0 %v2373
        %2375 = vmatprep.subr.mxu0 0.0
        %2376 = vmatpush1.msra.mxu0 0.0
        %2377 = vmatprep.subr.mxu0 0.0
        %2378 = vmatpush1.msra.mxu0 0.0
        %2379 = vmatprep.subr.mxu0 0.0
        %2380 = vmatpush1.msra.mxu0 0.0
        %2381 = vmatprep.subr.mxu0 0.0
        %2382 = vmatpush1.msra.mxu0 0.0
        %2383 = vmatprep.subr.mxu0 0.0
        %2384 = vmatpush1.msra.mxu0 0.0
        %2385 = vmatprep.subr.mxu0 0.0
        %2386 = vmatpush1.msra.mxu0 0.0
        %2387 = vmatprep.subr.mxu0 0.0
        %2388 = vmatpush1.msra.mxu0 0.0
        %2389 = vmatprep.subr.mxu0 0.0
        %2390 = vmatpush1.msra.mxu0 0.0
        %2391 = vmatprep.subr.mxu0 0.0
        %2392 = vmatpush1.msra.mxu0 0.0
        %2393 = vmatprep.subr.mxu0 0.0
        %2394 = vmatpush1.msra.mxu0 0.0
        %2395 = vmatprep.subr.mxu0 0.0
        %2396 = vmatpush1.msra.mxu0 0.0
        %2397 = vmatprep.subr.mxu0 0.0
        %2398 = vmatpush1.msra.mxu0 0.0
        %2399 = vmatprep.subr.mxu0 0.0
        %2400 = vmatpush1.msra.mxu0 0.0
        %2401 = vmatprep.subr.mxu0 0.0
        %2402 = vmatpush1.msra.mxu0 0.0
        %2403 = vmatprep.subr.mxu0 0.0
        %2404 = vmatpush1.msra.mxu0 0.0
        %2405 = vmatprep.subr.mxu0 0.0
        %2406 = vmatpush1.msra.mxu0 0.0
        %2407 = vmatprep.subr.mxu0 0.0
        %2408 = vmatpush1.msra.mxu0 0.0
        %2409 = vmatprep.subr.mxu0 0.0
        %2410 = vmatpush1.msra.mxu0 0.0
        %2411 = vmatprep.subr.mxu0 0.0
        %2412 = vmatpush1.msra.mxu0 0.0
        %2413 = vmatprep.subr.mxu0 0.0
        %2414 = vmatpush1.msra.mxu0 0.0
        %2415 = vmatprep.subr.mxu0 0.0
        %2416 = vmatpush1.msra.mxu0 0.0
        %2417 = vmatprep.subr.mxu0 0.0
        %2418 = vmatpush1.msra.mxu0 0.0
        %2419 = vmatprep.subr.mxu0 0.0
        %2420 = vmatpush1.msra.mxu0 0.0
        %2421 = vmatprep.subr.mxu0 0.0
        %2422 = vmatpush1.msra.mxu0 0.0
        %2423 = vmatprep.subr.mxu0 0.0
        %2424 = vmatpush1.msra.mxu0 0.0
        %2425 = vmatprep.subr.mxu0 0.0
        %2426 = vmatpush1.msra.mxu0 0.0
        %2427 = vmatprep.subr.mxu0 0.0
        %2428 = vmatpush1.msra.mxu0 0.0
        %2429 = vmatprep.subr.mxu0 0.0
        %2430 = vmatpush1.msra.mxu0 0.0
        %2431 = vmatprep.mubr.f32.mxu0 0.0
        %v2432 = vand.u32 %v323, 4294901760
        %2433 = vmatmul.mubr.f32.gmra.mrb[0].mxu0 %v2432
        %v2434 = vpop.f32.mrb[0].mxu0
        %v2435 = vadd.f32 %v2344, %v2434
        %v2436 = vpop.f32.mrb[0].mxu0
        %2437 = vdwg.mxu0
        %2438 = vmatprep.subr.mxu0 0.0
        %v2439 = vand.u32 %v312, 4294901760
        %v2440 = vsub.f32 %v312, %v2439
        %2441 = vmatpush1.msra.mxu0 %v2440
        %2442 = vmatprep.subr.mxu0 0.0
        %v2443 = vand.u32 %v313, 4294901760
        %v2444 = vsub.f32 %v313, %v2443
        %2445 = vmatpush1.msra.mxu0 %v2444
        %2446 = vmatprep.subr.mxu0 0.0
        %v2447 = vand.u32 %v314, 4294901760
        %v2448 = vsub.f32 %v314, %v2447
        %2449 = vmatpush1.msra.mxu0 %v2448
        %2450 = vmatprep.subr.mxu0 0.0
        %v2451 = vand.u32 %v315, 4294901760
        %v2452 = vsub.f32 %v315, %v2451
        %2453 = vmatpush1.msra.mxu0 %v2452
        %2454 = vmatprep.subr.mxu0 0.0
        %2455 = vmatpush1.msra.mxu0 0.0
        %2456 = vmatprep.subr.mxu0 0.0
        %2457 = vmatpush1.msra.mxu0 0.0
        %2458 = vmatprep.subr.mxu0 0.0
        %2459 = vmatpush1.msra.mxu0 0.0
        %2460 = vmatprep.subr.mxu0 0.0
        %2461 = vmatpush1.msra.mxu0 0.0
        %2462 = vmatprep.subr.mxu0 0.0
        %2463 = vmatpush1.msra.mxu0 0.0
        %2464 = vmatprep.subr.mxu0 0.0
        %2465 = vmatpush1.msra.mxu0 0.0
        %2466 = vmatprep.subr.mxu0 0.0
        %2467 = vmatpush1.msra.mxu0 0.0
        %2468 = vmatprep.subr.mxu0 0.0
        %2469 = vmatpush1.msra.mxu0 0.0
        %2470 = vmatprep.subr.mxu0 0.0
        %2471 = vmatpush1.msra.mxu0 0.0
        %2472 = vmatprep.subr.mxu0 0.0
        %2473 = vmatpush1.msra.mxu0 0.0
        %2474 = vmatprep.subr.mxu0 0.0
        %2475 = vmatpush1.msra.mxu0 0.0
        %2476 = vmatprep.subr.mxu0 0.0
        %2477 = vmatpush1.msra.mxu0 0.0
        %2478 = vmatprep.subr.mxu0 0.0
        %2479 = vmatpush1.msra.mxu0 0.0
        %2480 = vmatprep.subr.mxu0 0.0
        %2481 = vmatpush1.msra.mxu0 0.0
        %2482 = vmatprep.subr.mxu0 0.0
        %2483 = vmatpush1.msra.mxu0 0.0
        %2484 = vmatprep.subr.mxu0 0.0
        %2485 = vmatpush1.msra.mxu0 0.0
        %2486 = vmatprep.subr.mxu0 0.0
        %2487 = vmatpush1.msra.mxu0 0.0
        %2488 = vmatprep.subr.mxu0 0.0
        %2489 = vmatpush1.msra.mxu0 0.0
        %2490 = vmatprep.subr.mxu0 0.0
        %2491 = vmatpush1.msra.mxu0 0.0
        %2492 = vmatprep.subr.mxu0 0.0
        %2493 = vmatpush1.msra.mxu0 0.0
        %2494 = vmatprep.subr.mxu0 0.0
        %2495 = vmatpush1.msra.mxu0 0.0
        %2496 = vmatprep.subr.mxu0 0.0
        %2497 = vmatpush1.msra.mxu0 0.0
        %2498 = vmatprep.subr.mxu0 0.0
        %2499 = vmatpush1.msra.mxu0 0.0
        %2500 = vmatprep.subr.mxu0 0.0
        %2501 = vmatpush1.msra.mxu0 0.0
        %2502 = vmatprep.subr.mxu0 0.0
        %2503 = vmatpush1.msra.mxu0 0.0
        %2504 = vmatprep.subr.mxu0 0.0
        %2505 = vmatpush1.msra.mxu0 0.0
        %2506 = vmatprep.subr.mxu0 0.0
        %2507 = vmatpush1.msra.mxu0 0.0
        %2508 = vmatprep.subr.mxu0 0.0
        %2509 = vmatpush1.msra.mxu0 0.0
        %2510 = vmatprep.mubr.f32.mxu0 0.0
        %v2511 = vand.u32 %v323, 4294901760
        %v2512 = vsub.f32 %v323, %v2511
        %2513 = vmatmul.mubr.f32.gmra.mrb[0].mxu0 %v2512
        %v2514 = vpop.f32.mrb[0].mxu0
        %v2515 = vadd.f32 %v2435, %v2514
        %v2516 = vpop.f32.mrb[0].mxu0
        %2517 = vdwg.mxu0
        %2518 = vmatprep.subr.mxu0 0.0
        %v2519 = vand.u32 %v312, 4294901760
        %2520 = vmatpush1.msra.mxu0 %v2519
        %2521 = vmatprep.subr.mxu0 0.0
        %v2522 = vand.u32 %v313, 4294901760
        %2523 = vmatpush1.msra.mxu0 %v2522
        %2524 = vmatprep.subr.mxu0 0.0
        %v2525 = vand.u32 %v314, 4294901760
        %2526 = vmatpush1.msra.mxu0 %v2525
        %2527 = vmatprep.subr.mxu0 0.0
        %v2528 = vand.u32 %v315, 4294901760
        %2529 = vmatpush1.msra.mxu0 %v2528
        %2530 = vmatprep.subr.mxu0 0.0
        %2531 = vmatpush1.msra.mxu0 0.0
        %2532 = vmatprep.subr.mxu0 0.0
        %2533 = vmatpush1.msra.mxu0 0.0
        %2534 = vmatprep.subr.mxu0 0.0
        %2535 = vmatpush1.msra.mxu0 0.0
        %2536 = vmatprep.subr.mxu0 0.0
        %2537 = vmatpush1.msra.mxu0 0.0
        %2538 = vmatprep.subr.mxu0 0.0
        %2539 = vmatpush1.msra.mxu0 0.0
        %2540 = vmatprep.subr.mxu0 0.0
        %2541 = vmatpush1.msra.mxu0 0.0
        %2542 = vmatprep.subr.mxu0 0.0
        %2543 = vmatpush1.msra.mxu0 0.0
        %2544 = vmatprep.subr.mxu0 0.0
        %2545 = vmatpush1.msra.mxu0 0.0
        %2546 = vmatprep.subr.mxu0 0.0
        %2547 = vmatpush1.msra.mxu0 0.0
        %2548 = vmatprep.subr.mxu0 0.0
        %2549 = vmatpush1.msra.mxu0 0.0
        %2550 = vmatprep.subr.mxu0 0.0
        %2551 = vmatpush1.msra.mxu0 0.0
        %2552 = vmatprep.subr.mxu0 0.0
        %2553 = vmatpush1.msra.mxu0 0.0
        %2554 = vmatprep.subr.mxu0 0.0
        %2555 = vmatpush1.msra.mxu0 0.0
        %2556 = vmatprep.subr.mxu0 0.0
        %2557 = vmatpush1.msra.mxu0 0.0
        %2558 = vmatprep.subr.mxu0 0.0
        %2559 = vmatpush1.msra.mxu0 0.0
        %2560 = vmatprep.subr.mxu0 0.0
        %2561 = vmatpush1.msra.mxu0 0.0
        %2562 = vmatprep.subr.mxu0 0.0
        %2563 = vmatpush1.msra.mxu0 0.0
        %2564 = vmatprep.subr.mxu0 0.0
        %2565 = vmatpush1.msra.mxu0 0.0
        %2566 = vmatprep.subr.mxu0 0.0
        %2567 = vmatpush1.msra.mxu0 0.0
        %2568 = vmatprep.subr.mxu0 0.0
        %2569 = vmatpush1.msra.mxu0 0.0
        %2570 = vmatprep.subr.mxu0 0.0
        %2571 = vmatpush1.msra.mxu0 0.0
        %2572 = vmatprep.subr.mxu0 0.0
        %2573 = vmatpush1.msra.mxu0 0.0
        %2574 = vmatprep.subr.mxu0 0.0
        %2575 = vmatpush1.msra.mxu0 0.0
        %2576 = vmatprep.subr.mxu0 0.0
        %2577 = vmatpush1.msra.mxu0 0.0
        %2578 = vmatprep.subr.mxu0 0.0
        %2579 = vmatpush1.msra.mxu0 0.0
        %2580 = vmatprep.subr.mxu0 0.0
        %2581 = vmatpush1.msra.mxu0 0.0
        %2582 = vmatprep.subr.mxu0 0.0
        %2583 = vmatpush1.msra.mxu0 0.0
        %2584 = vmatprep.subr.mxu0 0.0
        %2585 = vmatpush1.msra.mxu0 0.0
        %2586 = vmatprep.mubr.f32.mxu0 0.0
        %v2587 = vand.u32 %v323, 4294901760
        %v2588 = vsub.f32 %v323, %v2587
        %v2589 = vand.u32 %v2588, 4294901760
        %2590 = vmatmul.mubr.f32.gmra.mrb[0].mxu0 %v2589
        %v2591 = vpop.f32.mrb[0].mxu0
        %v2592 = vadd.f32 %v2515, %v2591
        %v2593 = vpop.f32.mrb[0].mxu0
        %2594 = vdwg.mxu0
        %2595 = vmatprep.subr.mxu0 0.0
        %v2596 = vand.u32 %v312, 4294901760
        %v2597 = vsub.f32 %v312, %v2596
        %v2598 = vand.u32 %v2597, 4294901760
        %2599 = vmatpush1.msra.mxu0 %v2598
        %2600 = vmatprep.subr.mxu0 0.0
        %v2601 = vand.u32 %v313, 4294901760
        %v2602 = vsub.f32 %v313, %v2601
        %v2603 = vand.u32 %v2602, 4294901760
        %2604 = vmatpush1.msra.mxu0 %v2603
        %2605 = vmatprep.subr.mxu0 0.0
        %v2606 = vand.u32 %v314, 4294901760
        %v2607 = vsub.f32 %v314, %v2606
        %v2608 = vand.u32 %v2607, 4294901760
        %2609 = vmatpush1.msra.mxu0 %v2608
        %2610 = vmatprep.subr.mxu0 0.0
        %v2611 = vand.u32 %v315, 4294901760
        %v2612 = vsub.f32 %v315, %v2611
        %v2613 = vand.u32 %v2612, 4294901760
        %2614 = vmatpush1.msra.mxu0 %v2613
        %2615 = vmatprep.subr.mxu0 0.0
        %2616 = vmatpush1.msra.mxu0 0.0
        %2617 = vmatprep.subr.mxu0 0.0
        %2618 = vmatpush1.msra.mxu0 0.0
        %2619 = vmatprep.subr.mxu0 0.0
        %2620 = vmatpush1.msra.mxu0 0.0
        %2621 = vmatprep.subr.mxu0 0.0
        %2622 = vmatpush1.msra.mxu0 0.0
        %2623 = vmatprep.subr.mxu0 0.0
        %2624 = vmatpush1.msra.mxu0 0.0
        %2625 = vmatprep.subr.mxu0 0.0
        %2626 = vmatpush1.msra.mxu0 0.0
        %2627 = vmatprep.subr.mxu0 0.0
        %2628 = vmatpush1.msra.mxu0 0.0
        %2629 = vmatprep.subr.mxu0 0.0
        %2630 = vmatpush1.msra.mxu0 0.0
        %2631 = vmatprep.subr.mxu0 0.0
        %2632 = vmatpush1.msra.mxu0 0.0
        %2633 = vmatprep.subr.mxu0 0.0
        %2634 = vmatpush1.msra.mxu0 0.0
        %2635 = vmatprep.subr.mxu0 0.0
        %2636 = vmatpush1.msra.mxu0 0.0
        %2637 = vmatprep.subr.mxu0 0.0
        %2638 = vmatpush1.msra.mxu0 0.0
        %2639 = vmatprep.subr.mxu0 0.0
        %2640 = vmatpush1.msra.mxu0 0.0
        %2641 = vmatprep.subr.mxu0 0.0
        %2642 = vmatpush1.msra.mxu0 0.0
        %2643 = vmatprep.subr.mxu0 0.0
        %2644 = vmatpush1.msra.mxu0 0.0
        %2645 = vmatprep.subr.mxu0 0.0
        %2646 = vmatpush1.msra.mxu0 0.0
        %2647 = vmatprep.subr.mxu0 0.0
        %2648 = vmatpush1.msra.mxu0 0.0
        %2649 = vmatprep.subr.mxu0 0.0
        %2650 = vmatpush1.msra.mxu0 0.0
        %2651 = vmatprep.subr.mxu0 0.0
        %2652 = vmatpush1.msra.mxu0 0.0
        %2653 = vmatprep.subr.mxu0 0.0
        %2654 = vmatpush1.msra.mxu0 0.0
        %2655 = vmatprep.subr.mxu0 0.0
        %2656 = vmatpush1.msra.mxu0 0.0
        %2657 = vmatprep.subr.mxu0 0.0
        %2658 = vmatpush1.msra.mxu0 0.0
        %2659 = vmatprep.subr.mxu0 0.0
        %2660 = vmatpush1.msra.mxu0 0.0
        %2661 = vmatprep.subr.mxu0 0.0
        %2662 = vmatpush1.msra.mxu0 0.0
        %2663 = vmatprep.subr.mxu0 0.0
        %2664 = vmatpush1.msra.mxu0 0.0
        %2665 = vmatprep.subr.mxu0 0.0
        %2666 = vmatpush1.msra.mxu0 0.0
        %2667 = vmatprep.subr.mxu0 0.0
        %2668 = vmatpush1.msra.mxu0 0.0
        %2669 = vmatprep.subr.mxu0 0.0
        %2670 = vmatpush1.msra.mxu0 0.0
        %2671 = vmatprep.mubr.f32.mxu0 0.0
        %v2672 = vand.u32 %v323, 4294901760
        %2673 = vmatmul.mubr.f32.gmra.mrb[0].mxu0 %v2672
        %v2674 = vpop.f32.mrb[0].mxu0
        %v2675 = vadd.f32 %v2592, %v2674
        %v2676 = vpop.f32.mrb[0].mxu0
        %2677 = vdwg.mxu0
        %2678 = vmatprep.subr.mxu0 0.0
        %v2679 = vand.u32 %v312, 4294901760
        %2680 = vmatpush1.msra.mxu0 %v2679
        %2681 = vmatprep.subr.mxu0 0.0
        %v2682 = vand.u32 %v313, 4294901760
        %2683 = vmatpush1.msra.mxu0 %v2682
        %2684 = vmatprep.subr.mxu0 0.0
        %v2685 = vand.u32 %v314, 4294901760
        %2686 = vmatpush1.msra.mxu0 %v2685
        %2687 = vmatprep.subr.mxu0 0.0
        %v2688 = vand.u32 %v315, 4294901760
        %2689 = vmatpush1.msra.mxu0 %v2688
        %2690 = vmatprep.subr.mxu0 0.0
        %2691 = vmatpush1.msra.mxu0 0.0
        %2692 = vmatprep.subr.mxu0 0.0
        %2693 = vmatpush1.msra.mxu0 0.0
        %2694 = vmatprep.subr.mxu0 0.0
        %2695 = vmatpush1.msra.mxu0 0.0
        %2696 = vmatprep.subr.mxu0 0.0
        %2697 = vmatpush1.msra.mxu0 0.0
        %2698 = vmatprep.subr.mxu0 0.0
        %2699 = vmatpush1.msra.mxu0 0.0
        %2700 = vmatprep.subr.mxu0 0.0
        %2701 = vmatpush1.msra.mxu0 0.0
        %2702 = vmatprep.subr.mxu0 0.0
        %2703 = vmatpush1.msra.mxu0 0.0
        %2704 = vmatprep.subr.mxu0 0.0
        %2705 = vmatpush1.msra.mxu0 0.0
        %2706 = vmatprep.subr.mxu0 0.0
        %2707 = vmatpush1.msra.mxu0 0.0
        %2708 = vmatprep.subr.mxu0 0.0
        %2709 = vmatpush1.msra.mxu0 0.0
        %2710 = vmatprep.subr.mxu0 0.0
        %2711 = vmatpush1.msra.mxu0 0.0
        %2712 = vmatprep.subr.mxu0 0.0
        %2713 = vmatpush1.msra.mxu0 0.0
        %2714 = vmatprep.subr.mxu0 0.0
        %2715 = vmatpush1.msra.mxu0 0.0
        %2716 = vmatprep.subr.mxu0 0.0
        %2717 = vmatpush1.msra.mxu0 0.0
        %2718 = vmatprep.subr.mxu0 0.0
        %2719 = vmatpush1.msra.mxu0 0.0
        %2720 = vmatprep.subr.mxu0 0.0
        %2721 = vmatpush1.msra.mxu0 0.0
        %2722 = vmatprep.subr.mxu0 0.0
        %2723 = vmatpush1.msra.mxu0 0.0
        %2724 = vmatprep.subr.mxu0 0.0
        %2725 = vmatpush1.msra.mxu0 0.0
        %2726 = vmatprep.subr.mxu0 0.0
        %2727 = vmatpush1.msra.mxu0 0.0
        %2728 = vmatprep.subr.mxu0 0.0
        %2729 = vmatpush1.msra.mxu0 0.0
        %2730 = vmatprep.subr.mxu0 0.0
        %2731 = vmatpush1.msra.mxu0 0.0
        %2732 = vmatprep.subr.mxu0 0.0
        %2733 = vmatpush1.msra.mxu0 0.0
        %2734 = vmatprep.subr.mxu0 0.0
        %2735 = vmatpush1.msra.mxu0 0.0
        %2736 = vmatprep.subr.mxu0 0.0
        %2737 = vmatpush1.msra.mxu0 0.0
        %2738 = vmatprep.subr.mxu0 0.0
        %2739 = vmatpush1.msra.mxu0 0.0
        %2740 = vmatprep.subr.mxu0 0.0
        %2741 = vmatpush1.msra.mxu0 0.0
        %2742 = vmatprep.subr.mxu0 0.0
        %2743 = vmatpush1.msra.mxu0 0.0
        %2744 = vmatprep.subr.mxu0 0.0
        %2745 = vmatpush1.msra.mxu0 0.0
        %2746 = vmatprep.mubr.f32.mxu0 0.0
        %v2747 = vand.u32 %v323, 4294901760
        %2748 = vmatmul.mubr.f32.gmra.mrb[0].mxu0 %v2747
        %v2749 = vpop.f32.mrb[0].mxu0
        %v2750 = vadd.f32 %v2675, %v2749
        %v2751 = vpop.f32.mrb[0].mxu0
        %2752 = vdwg.mxu0
        %2754 = vrot.lane.b32.xlu0 %v807, 120
        %v2755 = vpop.permute.xlu0 %2754
        %2756 = vrot.lane.b32.xlu0 %v807, 112
        %v2757 = vpop.permute.xlu0 %2756
        %2758 = vrot.lane.b32.xlu0 %v807, 104
        %v2759 = vpop.permute.xlu0 %2758
        %2761 = vrot.lane.b32.xlu0 %v1780, 120
        %v2762 = vpop.permute.xlu0 %2761
        %2763 = vrot.lane.b32.xlu0 %v1780, 112
        %v2764 = vpop.permute.xlu0 %2763
        %2765 = vrot.lane.b32.xlu0 %v1780, 104
        %v2766 = vpop.permute.xlu0 %2765
        %2768 = vrot.lane.b32.xlu0 %v2750, 120
        %v2769 = vpop.permute.xlu0 %2768
        %2771 = vrot.lane.b32.xlu0 %v2750, 112
        %v2772 = vpop.permute.xlu0 %2771
        %2774 = vrot.lane.b32.xlu0 %v2750, 104
        %v2775 = vpop.permute.xlu0 %2774
        %vm2777 = vcmask 64512
        %v2778 = vsel %vm2777, %v807, 0
        %v2780 = vsel %vm2777, %v1780, 0
        %2782 = vmatprep.subr.mxu0 0.0
        %v2783 = vand.u32 %v2780, 4294901760
        %2784 = vmatpush1.xpose.msra.mxu0 %v2783
        %2785 = vmatprep.subr.mxu0 0.0
        %2786 = vmatpush1.xpose.msra.mxu0 0.0
        %2787 = vmatprep.subr.mxu0 0.0
        %2788 = vmatpush1.xpose.msra.mxu0 0.0
        %2789 = vmatprep.subr.mxu0 0.0
        %2790 = vmatpush1.xpose.msra.mxu0 0.0
        %2791 = vmatprep.subr.mxu0 0.0
        %2792 = vmatpush1.xpose.msra.mxu0 0.0
        %2793 = vmatprep.subr.mxu0 0.0
        %2794 = vmatpush1.xpose.msra.mxu0 0.0
        %2795 = vmatprep.subr.mxu0 0.0
        %2796 = vmatpush1.xpose.msra.mxu0 0.0
        %2797 = vmatprep.subr.mxu0 0.0
        %2798 = vmatpush1.xpose.msra.mxu0 0.0
        %2799 = vmatprep.subr.mxu0 0.0
        %2800 = vmatpush1.xpose.msra.mxu0 0.0
        %2801 = vmatprep.subr.mxu0 0.0
        %2802 = vmatpush1.xpose.msra.mxu0 0.0
        %2803 = vmatprep.subr.mxu0 0.0
        %2804 = vmatpush1.xpose.msra.mxu0 0.0
        %2805 = vmatprep.subr.mxu0 0.0
        %2806 = vmatpush1.xpose.msra.mxu0 0.0
        %2807 = vmatprep.subr.mxu0 0.0
        %2808 = vmatpush1.xpose.msra.mxu0 0.0
        %2809 = vmatprep.subr.mxu0 0.0
        %2810 = vmatpush1.xpose.msra.mxu0 0.0
        %2811 = vmatprep.subr.mxu0 0.0
        %2812 = vmatpush1.xpose.msra.mxu0 0.0
        %2813 = vmatprep.subr.mxu0 0.0
        %2814 = vmatpush1.xpose.msra.mxu0 0.0
        %2815 = vmatprep.subr.mxu0 0.0
        %2816 = vmatpush1.xpose.msra.mxu0 0.0
        %2817 = vmatprep.subr.mxu0 0.0
        %2818 = vmatpush1.xpose.msra.mxu0 0.0
        %2819 = vmatprep.subr.mxu0 0.0
        %2820 = vmatpush1.xpose.msra.mxu0 0.0
        %2821 = vmatprep.subr.mxu0 0.0
        %2822 = vmatpush1.xpose.msra.mxu0 0.0
        %2823 = vmatprep.subr.mxu0 0.0
        %2824 = vmatpush1.xpose.msra.mxu0 0.0
        %2825 = vmatprep.subr.mxu0 0.0
        %2826 = vmatpush1.xpose.msra.mxu0 0.0
        %2827 = vmatprep.subr.mxu0 0.0
        %2828 = vmatpush1.xpose.msra.mxu0 0.0
        %2829 = vmatprep.subr.mxu0 0.0
        %2830 = vmatpush1.xpose.msra.mxu0 0.0
        %2831 = vmatprep.subr.mxu0 0.0
        %2832 = vmatpush1.xpose.msra.mxu0 0.0
        %2833 = vmatprep.subr.mxu0 0.0
        %2834 = vmatpush1.xpose.msra.mxu0 0.0
        %2835 = vmatprep.subr.mxu0 0.0
        %2836 = vmatpush1.xpose.msra.mxu0 0.0
        %2837 = vmatprep.subr.mxu0 0.0
        %2838 = vmatpush1.xpose.msra.mxu0 0.0
        %2839 = vmatprep.subr.mxu0 0.0
        %2840 = vmatpush1.xpose.msra.mxu0 0.0
        %2841 = vmatprep.subr.mxu0 0.0
        %2842 = vmatpush1.xpose.msra.mxu0 0.0
        %2843 = vmatprep.subr.mxu0 0.0
        %2844 = vmatpush1.xpose.msra.mxu0 0.0
        %2845 = vmatprep.subr.mxu0 0.0
        %2846 = vmatpush1.xpose.msra.mxu0 0.0
        %2847 = vmatprep.mubr.f32.mxu0 0.0
        %v2848 = vand.u32 %v2778, 4294901760
        %v2849 = vsub.f32 %v2778, %v2848
        %v2850 = vand.u32 %v2849, 4294901760
        %v2851 = vsub.f32 %v2849, %v2850
        %v2852 = vand.u32 %v2851, 4294901760
        %2853 = vmatmul.mubr.f32.gmra.mrb[0].mxu0 %v2852
        %v2854 = vpop.f32.mrb[0].mxu0
        %v2855 = vadd.f32 0.0, %v2854
        %v2856 = vpop.f32.mrb[0].mxu0
        %2857 = vdwg.mxu0
        %2858 = vmatprep.subr.mxu0 0.0
        %v2859 = vand.u32 %v2780, 4294901760
        %v2860 = vsub.f32 %v2780, %v2859
        %v2861 = vand.u32 %v2860, 4294901760
        %v2862 = vsub.f32 %v2860, %v2861
        %v2863 = vand.u32 %v2862, 4294901760
        %2864 = vmatpush1.xpose.msra.mxu0 %v2863
        %2865 = vmatprep.subr.mxu0 0.0
        %2866 = vmatpush1.xpose.msra.mxu0 0.0
        %2867 = vmatprep.subr.mxu0 0.0
        %2868 = vmatpush1.xpose.msra.mxu0 0.0
        %2869 = vmatprep.subr.mxu0 0.0
        %2870 = vmatpush1.xpose.msra.mxu0 0.0
        %2871 = vmatprep.subr.mxu0 0.0
        %2872 = vmatpush1.xpose.msra.mxu0 0.0
        %2873 = vmatprep.subr.mxu0 0.0
        %2874 = vmatpush1.xpose.msra.mxu0 0.0
        %2875 = vmatprep.subr.mxu0 0.0
        %2876 = vmatpush1.xpose.msra.mxu0 0.0
        %2877 = vmatprep.subr.mxu0 0.0
        %2878 = vmatpush1.xpose.msra.mxu0 0.0
        %2879 = vmatprep.subr.mxu0 0.0
        %2880 = vmatpush1.xpose.msra.mxu0 0.0
        %2881 = vmatprep.subr.mxu0 0.0
        %2882 = vmatpush1.xpose.msra.mxu0 0.0
        %2883 = vmatprep.subr.mxu0 0.0
        %2884 = vmatpush1.xpose.msra.mxu0 0.0
        %2885 = vmatprep.subr.mxu0 0.0
        %2886 = vmatpush1.xpose.msra.mxu0 0.0
        %2887 = vmatprep.subr.mxu0 0.0
        %2888 = vmatpush1.xpose.msra.mxu0 0.0
        %2889 = vmatprep.subr.mxu0 0.0
        %2890 = vmatpush1.xpose.msra.mxu0 0.0
        %2891 = vmatprep.subr.mxu0 0.0
        %2892 = vmatpush1.xpose.msra.mxu0 0.0
        %2893 = vmatprep.subr.mxu0 0.0
        %2894 = vmatpush1.xpose.msra.mxu0 0.0
        %2895 = vmatprep.subr.mxu0 0.0
        %2896 = vmatpush1.xpose.msra.mxu0 0.0
        %2897 = vmatprep.subr.mxu0 0.0
        %2898 = vmatpush1.xpose.msra.mxu0 0.0
        %2899 = vmatprep.subr.mxu0 0.0
        %2900 = vmatpush1.xpose.msra.mxu0 0.0
        %2901 = vmatprep.subr.mxu0 0.0
        %2902 = vmatpush1.xpose.msra.mxu0 0.0
        %2903 = vmatprep.subr.mxu0 0.0
        %2904 = vmatpush1.xpose.msra.mxu0 0.0
        %2905 = vmatprep.subr.mxu0 0.0
        %2906 = vmatpush1.xpose.msra.mxu0 0.0
        %2907 = vmatprep.subr.mxu0 0.0
        %2908 = vmatpush1.xpose.msra.mxu0 0.0
        %2909 = vmatprep.subr.mxu0 0.0
        %2910 = vmatpush1.xpose.msra.mxu0 0.0
        %2911 = vmatprep.subr.mxu0 0.0
        %2912 = vmatpush1.xpose.msra.mxu0 0.0
        %2913 = vmatprep.subr.mxu0 0.0
        %2914 = vmatpush1.xpose.msra.mxu0 0.0
        %2915 = vmatprep.subr.mxu0 0.0
        %2916 = vmatpush1.xpose.msra.mxu0 0.0
        %2917 = vmatprep.subr.mxu0 0.0
        %2918 = vmatpush1.xpose.msra.mxu0 0.0
        %2919 = vmatprep.subr.mxu0 0.0
        %2920 = vmatpush1.xpose.msra.mxu0 0.0
        %2921 = vmatprep.subr.mxu0 0.0
        %2922 = vmatpush1.xpose.msra.mxu0 0.0
        %2923 = vmatprep.subr.mxu0 0.0
        %2924 = vmatpush1.xpose.msra.mxu0 0.0
        %2925 = vmatprep.subr.mxu0 0.0
        %2926 = vmatpush1.xpose.msra.mxu0 0.0
        %2927 = vmatprep.mubr.f32.mxu0 0.0
        %v2928 = vand.u32 %v2778, 4294901760
        %2929 = vmatmul.mubr.f32.gmra.mrb[0].mxu0 %v2928
        %v2930 = vpop.f32.mrb[0].mxu0
        %v2931 = vadd.f32 %v2855, %v2930
        %v2932 = vpop.f32.mrb[0].mxu0
        %2933 = vdwg.mxu0
        %2934 = vmatprep.subr.mxu0 0.0
        %v2935 = vand.u32 %v2780, 4294901760
        %v2936 = vsub.f32 %v2780, %v2935
        %2937 = vmatpush1.xpose.msra.mxu0 %v2936
        %2938 = vmatprep.subr.mxu0 0.0
        %2939 = vmatpush1.xpose.msra.mxu0 0.0
        %2940 = vmatprep.subr.mxu0 0.0
        %2941 = vmatpush1.xpose.msra.mxu0 0.0
        %2942 = vmatprep.subr.mxu0 0.0
        %2943 = vmatpush1.xpose.msra.mxu0 0.0
        %2944 = vmatprep.subr.mxu0 0.0
        %2945 = vmatpush1.xpose.msra.mxu0 0.0
        %2946 = vmatprep.subr.mxu0 0.0
        %2947 = vmatpush1.xpose.msra.mxu0 0.0
        %2948 = vmatprep.subr.mxu0 0.0
        %2949 = vmatpush1.xpose.msra.mxu0 0.0
        %2950 = vmatprep.subr.mxu0 0.0
        %2951 = vmatpush1.xpose.msra.mxu0 0.0
        %2952 = vmatprep.subr.mxu0 0.0
        %2953 = vmatpush1.xpose.msra.mxu0 0.0
        %2954 = vmatprep.subr.mxu0 0.0
        %2955 = vmatpush1.xpose.msra.mxu0 0.0
        %2956 = vmatprep.subr.mxu0 0.0
        %2957 = vmatpush1.xpose.msra.mxu0 0.0
        %2958 = vmatprep.subr.mxu0 0.0
        %2959 = vmatpush1.xpose.msra.mxu0 0.0
        %2960 = vmatprep.subr.mxu0 0.0
        %2961 = vmatpush1.xpose.msra.mxu0 0.0
        %2962 = vmatprep.subr.mxu0 0.0
        %2963 = vmatpush1.xpose.msra.mxu0 0.0
        %2964 = vmatprep.subr.mxu0 0.0
        %2965 = vmatpush1.xpose.msra.mxu0 0.0
        %2966 = vmatprep.subr.mxu0 0.0
        %2967 = vmatpush1.xpose.msra.mxu0 0.0
        %2968 = vmatprep.subr.mxu0 0.0
        %2969 = vmatpush1.xpose.msra.mxu0 0.0
        %2970 = vmatprep.subr.mxu0 0.0
        %2971 = vmatpush1.xpose.msra.mxu0 0.0
        %2972 = vmatprep.subr.mxu0 0.0
        %2973 = vmatpush1.xpose.msra.mxu0 0.0
        %2974 = vmatprep.subr.mxu0 0.0
        %2975 = vmatpush1.xpose.msra.mxu0 0.0
        %2976 = vmatprep.subr.mxu0 0.0
        %2977 = vmatpush1.xpose.msra.mxu0 0.0
        %2978 = vmatprep.subr.mxu0 0.0
        %2979 = vmatpush1.xpose.msra.mxu0 0.0
        %2980 = vmatprep.subr.mxu0 0.0
        %2981 = vmatpush1.xpose.msra.mxu0 0.0
        %2982 = vmatprep.subr.mxu0 0.0
        %2983 = vmatpush1.xpose.msra.mxu0 0.0
        %2984 = vmatprep.subr.mxu0 0.0
        %2985 = vmatpush1.xpose.msra.mxu0 0.0
        %2986 = vmatprep.subr.mxu0 0.0
        %2987 = vmatpush1.xpose.msra.mxu0 0.0
        %2988 = vmatprep.subr.mxu0 0.0
        %2989 = vmatpush1.xpose.msra.mxu0 0.0
        %2990 = vmatprep.subr.mxu0 0.0
        %2991 = vmatpush1.xpose.msra.mxu0 0.0
        %2992 = vmatprep.subr.mxu0 0.0
        %2993 = vmatpush1.xpose.msra.mxu0 0.0
        %2994 = vmatprep.subr.mxu0 0.0
        %2995 = vmatpush1.xpose.msra.mxu0 0.0
        %2996 = vmatprep.subr.mxu0 0.0
        %2997 = vmatpush1.xpose.msra.mxu0 0.0
        %2998 = vmatprep.subr.mxu0 0.0
        %2999 = vmatpush1.xpose.msra.mxu0 0.0
        %3000 = vmatprep.mubr.f32.mxu0 0.0
        %v3001 = vand.u32 %v2778, 4294901760
        %v3002 = vsub.f32 %v2778, %v3001
        %3003 = vmatmul.mubr.f32.gmra.mrb[0].mxu0 %v3002
        %v3004 = vpop.f32.mrb[0].mxu0
        %v3005 = vadd.f32 %v2931, %v3004
        %v3006 = vpop.f32.mrb[0].mxu0
        %3007 = vdwg.mxu0
        %3008 = vmatprep.subr.mxu0 0.0
        %v3009 = vand.u32 %v2780, 4294901760
        %3010 = vmatpush1.xpose.msra.mxu0 %v3009
        %3011 = vmatprep.subr.mxu0 0.0
        %3012 = vmatpush1.xpose.msra.mxu0 0.0
        %3013 = vmatprep.subr.mxu0 0.0
        %3014 = vmatpush1.xpose.msra.mxu0 0.0
        %3015 = vmatprep.subr.mxu0 0.0
        %3016 = vmatpush1.xpose.msra.mxu0 0.0
        %3017 = vmatprep.subr.mxu0 0.0
        %3018 = vmatpush1.xpose.msra.mxu0 0.0
        %3019 = vmatprep.subr.mxu0 0.0
        %3020 = vmatpush1.xpose.msra.mxu0 0.0
        %3021 = vmatprep.subr.mxu0 0.0
        %3022 = vmatpush1.xpose.msra.mxu0 0.0
        %3023 = vmatprep.subr.mxu0 0.0
        %3024 = vmatpush1.xpose.msra.mxu0 0.0
        %3025 = vmatprep.subr.mxu0 0.0
        %3026 = vmatpush1.xpose.msra.mxu0 0.0
        %3027 = vmatprep.subr.mxu0 0.0
        %3028 = vmatpush1.xpose.msra.mxu0 0.0
        %3029 = vmatprep.subr.mxu0 0.0
        %3030 = vmatpush1.xpose.msra.mxu0 0.0
        %3031 = vmatprep.subr.mxu0 0.0
        %3032 = vmatpush1.xpose.msra.mxu0 0.0
        %3033 = vmatprep.subr.mxu0 0.0
        %3034 = vmatpush1.xpose.msra.mxu0 0.0
        %3035 = vmatprep.subr.mxu0 0.0
        %3036 = vmatpush1.xpose.msra.mxu0 0.0
        %3037 = vmatprep.subr.mxu0 0.0
        %3038 = vmatpush1.xpose.msra.mxu0 0.0
        %3039 = vmatprep.subr.mxu0 0.0
        %3040 = vmatpush1.xpose.msra.mxu0 0.0
        %3041 = vmatprep.subr.mxu0 0.0
        %3042 = vmatpush1.xpose.msra.mxu0 0.0
        %3043 = vmatprep.subr.mxu0 0.0
        %3044 = vmatpush1.xpose.msra.mxu0 0.0
        %3045 = vmatprep.subr.mxu0 0.0
        %3046 = vmatpush1.xpose.msra.mxu0 0.0
        %3047 = vmatprep.subr.mxu0 0.0
        %3048 = vmatpush1.xpose.msra.mxu0 0.0
        %3049 = vmatprep.subr.mxu0 0.0
        %3050 = vmatpush1.xpose.msra.mxu0 0.0
        %3051 = vmatprep.subr.mxu0 0.0
        %3052 = vmatpush1.xpose.msra.mxu0 0.0
        %3053 = vmatprep.subr.mxu0 0.0
        %3054 = vmatpush1.xpose.msra.mxu0 0.0
        %3055 = vmatprep.subr.mxu0 0.0
        %3056 = vmatpush1.xpose.msra.mxu0 0.0
        %3057 = vmatprep.subr.mxu0 0.0
        %3058 = vmatpush1.xpose.msra.mxu0 0.0
        %3059 = vmatprep.subr.mxu0 0.0
        %3060 = vmatpush1.xpose.msra.mxu0 0.0
        %3061 = vmatprep.subr.mxu0 0.0
        %3062 = vmatpush1.xpose.msra.mxu0 0.0
        %3063 = vmatprep.subr.mxu0 0.0
        %3064 = vmatpush1.xpose.msra.mxu0 0.0
        %3065 = vmatprep.subr.mxu0 0.0
        %3066 = vmatpush1.xpose.msra.mxu0 0.0
        %3067 = vmatprep.subr.mxu0 0.0
        %3068 = vmatpush1.xpose.msra.mxu0 0.0
        %3069 = vmatprep.subr.mxu0 0.0
        %3070 = vmatpush1.xpose.msra.mxu0 0.0
        %3071 = vmatprep.subr.mxu0 0.0
        %3072 = vmatpush1.xpose.msra.mxu0 0.0
        %3073 = vmatprep.mubr.f32.mxu0 0.0
        %v3074 = vand.u32 %v2778, 4294901760
        %v3075 = vsub.f32 %v2778, %v3074
        %v3076 = vand.u32 %v3075, 4294901760
        %3077 = vmatmul.mubr.f32.gmra.mrb[0].mxu0 %v3076
        %v3078 = vpop.f32.mrb[0].mxu0
        %v3079 = vadd.f32 %v3005, %v3078
        %v3080 = vpop.f32.mrb[0].mxu0
        %3081 = vdwg.mxu0
        %3082 = vmatprep.subr.mxu0 0.0
        %v3083 = vand.u32 %v2780, 4294901760
        %v3084 = vsub.f32 %v2780, %v3083
        %v3085 = vand.u32 %v3084, 4294901760
        %3086 = vmatpush1.xpose.msra.mxu0 %v3085
        %3087 = vmatprep.subr.mxu0 0.0
        %3088 = vmatpush1.xpose.msra.mxu0 0.0
        %3089 = vmatprep.subr.mxu0 0.0
        %3090 = vmatpush1.xpose.msra.mxu0 0.0
        %3091 = vmatprep.subr.mxu0 0.0
        %3092 = vmatpush1.xpose.msra.mxu0 0.0
        %3093 = vmatprep.subr.mxu0 0.0
        %3094 = vmatpush1.xpose.msra.mxu0 0.0
        %3095 = vmatprep.subr.mxu0 0.0
        %3096 = vmatpush1.xpose.msra.mxu0 0.0
        %3097 = vmatprep.subr.mxu0 0.0
        %3098 = vmatpush1.xpose.msra.mxu0 0.0
        %3099 = vmatprep.subr.mxu0 0.0
        %3100 = vmatpush1.xpose.msra.mxu0 0.0
        %3101 = vmatprep.subr.mxu0 0.0
        %3102 = vmatpush1.xpose.msra.mxu0 0.0
        %3103 = vmatprep.subr.mxu0 0.0
        %3104 = vmatpush1.xpose.msra.mxu0 0.0
        %3105 = vmatprep.subr.mxu0 0.0
        %3106 = vmatpush1.xpose.msra.mxu0 0.0
        %3107 = vmatprep.subr.mxu0 0.0
        %3108 = vmatpush1.xpose.msra.mxu0 0.0
        %3109 = vmatprep.subr.mxu0 0.0
        %3110 = vmatpush1.xpose.msra.mxu0 0.0
        %3111 = vmatprep.subr.mxu0 0.0
        %3112 = vmatpush1.xpose.msra.mxu0 0.0
        %3113 = vmatprep.subr.mxu0 0.0
        %3114 = vmatpush1.xpose.msra.mxu0 0.0
        %3115 = vmatprep.subr.mxu0 0.0
        %3116 = vmatpush1.xpose.msra.mxu0 0.0
        %3117 = vmatprep.subr.mxu0 0.0
        %3118 = vmatpush1.xpose.msra.mxu0 0.0
        %3119 = vmatprep.subr.mxu0 0.0
        %3120 = vmatpush1.xpose.msra.mxu0 0.0
        %3121 = vmatprep.subr.mxu0 0.0
        %3122 = vmatpush1.xpose.msra.mxu0 0.0
        %3123 = vmatprep.subr.mxu0 0.0
        %3124 = vmatpush1.xpose.msra.mxu0 0.0
        %3125 = vmatprep.subr.mxu0 0.0
        %3126 = vmatpush1.xpose.msra.mxu0 0.0
        %3127 = vmatprep.subr.mxu0 0.0
        %3128 = vmatpush1.xpose.msra.mxu0 0.0
        %3129 = vmatprep.subr.mxu0 0.0
        %3130 = vmatpush1.xpose.msra.mxu0 0.0
        %3131 = vmatprep.subr.mxu0 0.0
        %3132 = vmatpush1.xpose.msra.mxu0 0.0
        %3133 = vmatprep.subr.mxu0 0.0
        %3134 = vmatpush1.xpose.msra.mxu0 0.0
        %3135 = vmatprep.subr.mxu0 0.0
        %3136 = vmatpush1.xpose.msra.mxu0 0.0
        %3137 = vmatprep.subr.mxu0 0.0
        %3138 = vmatpush1.xpose.msra.mxu0 0.0
        %3139 = vmatprep.subr.mxu0 0.0
        %3140 = vmatpush1.xpose.msra.mxu0 0.0
        %3141 = vmatprep.subr.mxu0 0.0
        %3142 = vmatpush1.xpose.msra.mxu0 0.0
        %3143 = vmatprep.subr.mxu0 0.0
        %3144 = vmatpush1.xpose.msra.mxu0 0.0
        %3145 = vmatprep.subr.mxu0 0.0
        %3146 = vmatpush1.xpose.msra.mxu0 0.0
        %3147 = vmatprep.subr.mxu0 0.0
        %3148 = vmatpush1.xpose.msra.mxu0 0.0
        %3149 = vmatprep.mubr.f32.mxu0 0.0
        %v3150 = vand.u32 %v2778, 4294901760
        %3151 = vmatmul.mubr.f32.gmra.mrb[0].mxu0 %v3150
        %v3152 = vpop.f32.mrb[0].mxu0
        %v3153 = vadd.f32 %v3079, %v3152
        %v3154 = vpop.f32.mrb[0].mxu0
        %3155 = vdwg.mxu0
        %3156 = vmatprep.subr.mxu0 0.0
        %v3157 = vand.u32 %v2780, 4294901760
        %3158 = vmatpush1.xpose.msra.mxu0 %v3157
        %3159 = vmatprep.subr.mxu0 0.0
        %3160 = vmatpush1.xpose.msra.mxu0 0.0
        %3161 = vmatprep.subr.mxu0 0.0
        %3162 = vmatpush1.xpose.msra.mxu0 0.0
        %3163 = vmatprep.subr.mxu0 0.0
        %3164 = vmatpush1.xpose.msra.mxu0 0.0
        %3165 = vmatprep.subr.mxu0 0.0
        %3166 = vmatpush1.xpose.msra.mxu0 0.0
        %3167 = vmatprep.subr.mxu0 0.0
        %3168 = vmatpush1.xpose.msra.mxu0 0.0
        %3169 = vmatprep.subr.mxu0 0.0
        %3170 = vmatpush1.xpose.msra.mxu0 0.0
        %3171 = vmatprep.subr.mxu0 0.0
        %3172 = vmatpush1.xpose.msra.mxu0 0.0
        %3173 = vmatprep.subr.mxu0 0.0
        %3174 = vmatpush1.xpose.msra.mxu0 0.0
        %3175 = vmatprep.subr.mxu0 0.0
        %3176 = vmatpush1.xpose.msra.mxu0 0.0
        %3177 = vmatprep.subr.mxu0 0.0
        %3178 = vmatpush1.xpose.msra.mxu0 0.0
        %3179 = vmatprep.subr.mxu0 0.0
        %3180 = vmatpush1.xpose.msra.mxu0 0.0
        %3181 = vmatprep.subr.mxu0 0.0
        %3182 = vmatpush1.xpose.msra.mxu0 0.0
        %3183 = vmatprep.subr.mxu0 0.0
        %3184 = vmatpush1.xpose.msra.mxu0 0.0
        %3185 = vmatprep.subr.mxu0 0.0
        %3186 = vmatpush1.xpose.msra.mxu0 0.0
        %3187 = vmatprep.subr.mxu0 0.0
        %3188 = vmatpush1.xpose.msra.mxu0 0.0
        %3189 = vmatprep.subr.mxu0 0.0
        %3190 = vmatpush1.xpose.msra.mxu0 0.0
        %3191 = vmatprep.subr.mxu0 0.0
        %3192 = vmatpush1.xpose.msra.mxu0 0.0
        %3193 = vmatprep.subr.mxu0 0.0
        %3194 = vmatpush1.xpose.msra.mxu0 0.0
        %3195 = vmatprep.subr.mxu0 0.0
        %3196 = vmatpush1.xpose.msra.mxu0 0.0
        %3197 = vmatprep.subr.mxu0 0.0
        %3198 = vmatpush1.xpose.msra.mxu0 0.0
        %3199 = vmatprep.subr.mxu0 0.0
        %3200 = vmatpush1.xpose.msra.mxu0 0.0
        %3201 = vmatprep.subr.mxu0 0.0
        %3202 = vmatpush1.xpose.msra.mxu0 0.0
        %3203 = vmatprep.subr.mxu0 0.0
        %3204 = vmatpush1.xpose.msra.mxu0 0.0
        %3205 = vmatprep.subr.mxu0 0.0
        %3206 = vmatpush1.xpose.msra.mxu0 0.0
        %3207 = vmatprep.subr.mxu0 0.0
        %3208 = vmatpush1.xpose.msra.mxu0 0.0
        %3209 = vmatprep.subr.mxu0 0.0
        %3210 = vmatpush1.xpose.msra.mxu0 0.0
        %3211 = vmatprep.subr.mxu0 0.0
        %3212 = vmatpush1.xpose.msra.mxu0 0.0
        %3213 = vmatprep.subr.mxu0 0.0
        %3214 = vmatpush1.xpose.msra.mxu0 0.0
        %3215 = vmatprep.subr.mxu0 0.0
        %3216 = vmatpush1.xpose.msra.mxu0 0.0
        %3217 = vmatprep.subr.mxu0 0.0
        %3218 = vmatpush1.xpose.msra.mxu0 0.0
        %3219 = vmatprep.subr.mxu0 0.0
        %3220 = vmatpush1.xpose.msra.mxu0 0.0
        %3221 = vmatprep.mubr.f32.mxu0 0.0
        %v3222 = vand.u32 %v2778, 4294901760
        %3223 = vmatmul.mubr.f32.gmra.mrb[0].mxu0 %v3222
        %v3224 = vpop.f32.mrb[0].mxu0
        %v3225 = vadd.f32 %v3153, %v3224
        %v3226 = vpop.f32.mrb[0].mxu0
        %3227 = vdwg.mxu0
        %v3228 = vsel %vm2777, %v2755, 0
        %v3230 = vsel %vm2777, %v2762, 0
        %3232 = vmatprep.subr.mxu0 0.0
        %v3233 = vand.u32 %v3230, 4294901760
        %3234 = vmatpush1.xpose.msra.mxu0 %v3233
        %3235 = vmatprep.subr.mxu0 0.0
        %3236 = vmatpush1.xpose.msra.mxu0 0.0
        %3237 = vmatprep.subr.mxu0 0.0
        %3238 = vmatpush1.xpose.msra.mxu0 0.0
        %3239 = vmatprep.subr.mxu0 0.0
        %3240 = vmatpush1.xpose.msra.mxu0 0.0
        %3241 = vmatprep.subr.mxu0 0.0
        %3242 = vmatpush1.xpose.msra.mxu0 0.0
        %3243 = vmatprep.subr.mxu0 0.0
        %3244 = vmatpush1.xpose.msra.mxu0 0.0
        %3245 = vmatprep.subr.mxu0 0.0
        %3246 = vmatpush1.xpose.msra.mxu0 0.0
        %3247 = vmatprep.subr.mxu0 0.0
        %3248 = vmatpush1.xpose.msra.mxu0 0.0
        %3249 = vmatprep.subr.mxu0 0.0
        %3250 = vmatpush1.xpose.msra.mxu0 0.0
        %3251 = vmatprep.subr.mxu0 0.0
        %3252 = vmatpush1.xpose.msra.mxu0 0.0
        %3253 = vmatprep.subr.mxu0 0.0
        %3254 = vmatpush1.xpose.msra.mxu0 0.0
        %3255 = vmatprep.subr.mxu0 0.0
        %3256 = vmatpush1.xpose.msra.mxu0 0.0
        %3257 = vmatprep.subr.mxu0 0.0
        %3258 = vmatpush1.xpose.msra.mxu0 0.0
        %3259 = vmatprep.subr.mxu0 0.0
        %3260 = vmatpush1.xpose.msra.mxu0 0.0
        %3261 = vmatprep.subr.mxu0 0.0
        %3262 = vmatpush1.xpose.msra.mxu0 0.0
        %3263 = vmatprep.subr.mxu0 0.0
        %3264 = vmatpush1.xpose.msra.mxu0 0.0
        %3265 = vmatprep.subr.mxu0 0.0
        %3266 = vmatpush1.xpose.msra.mxu0 0.0
        %3267 = vmatprep.subr.mxu0 0.0
        %3268 = vmatpush1.xpose.msra.mxu0 0.0
        %3269 = vmatprep.subr.mxu0 0.0
        %3270 = vmatpush1.xpose.msra.mxu0 0.0
        %3271 = vmatprep.subr.mxu0 0.0
        %3272 = vmatpush1.xpose.msra.mxu0 0.0
        %3273 = vmatprep.subr.mxu0 0.0
        %3274 = vmatpush1.xpose.msra.mxu0 0.0
        %3275 = vmatprep.subr.mxu0 0.0
        %3276 = vmatpush1.xpose.msra.mxu0 0.0
        %3277 = vmatprep.subr.mxu0 0.0
        %3278 = vmatpush1.xpose.msra.mxu0 0.0
        %3279 = vmatprep.subr.mxu0 0.0
        %3280 = vmatpush1.xpose.msra.mxu0 0.0
        %3281 = vmatprep.subr.mxu0 0.0
        %3282 = vmatpush1.xpose.msra.mxu0 0.0
        %3283 = vmatprep.subr.mxu0 0.0
        %3284 = vmatpush1.xpose.msra.mxu0 0.0
        %3285 = vmatprep.subr.mxu0 0.0
        %3286 = vmatpush1.xpose.msra.mxu0 0.0
        %3287 = vmatprep.subr.mxu0 0.0
        %3288 = vmatpush1.xpose.msra.mxu0 0.0
        %3289 = vmatprep.subr.mxu0 0.0
        %3290 = vmatpush1.xpose.msra.mxu0 0.0
        %3291 = vmatprep.subr.mxu0 0.0
        %3292 = vmatpush1.xpose.msra.mxu0 0.0
        %3293 = vmatprep.subr.mxu0 0.0
        %3294 = vmatpush1.xpose.msra.mxu0 0.0
        %3295 = vmatprep.subr.mxu0 0.0
        %3296 = vmatpush1.xpose.msra.mxu0 0.0
        %3297 = vmatprep.mubr.f32.mxu0 0.0
        %v3298 = vand.u32 %v3228, 4294901760
        %v3299 = vsub.f32 %v3228, %v3298
        %v3300 = vand.u32 %v3299, 4294901760
        %v3301 = vsub.f32 %v3299, %v3300
        %v3302 = vand.u32 %v3301, 4294901760
        %3303 = vmatmul.mubr.f32.gmra.mrb[0].mxu0 %v3302
        %v3304 = vpop.f32.mrb[0].mxu0
        %v3305 = vadd.f32 0.0, %v3304
        %v3306 = vpop.f32.mrb[0].mxu0
        %3307 = vdwg.mxu0
        %3308 = vmatprep.subr.mxu0 0.0
        %v3309 = vand.u32 %v3230, 4294901760
        %v3310 = vsub.f32 %v3230, %v3309
        %v3311 = vand.u32 %v3310, 4294901760
        %v3312 = vsub.f32 %v3310, %v3311
        %v3313 = vand.u32 %v3312, 4294901760
        %3314 = vmatpush1.xpose.msra.mxu0 %v3313
        %3315 = vmatprep.subr.mxu0 0.0
        %3316 = vmatpush1.xpose.msra.mxu0 0.0
        %3317 = vmatprep.subr.mxu0 0.0
        %3318 = vmatpush1.xpose.msra.mxu0 0.0
        %3319 = vmatprep.subr.mxu0 0.0
        %3320 = vmatpush1.xpose.msra.mxu0 0.0
        %3321 = vmatprep.subr.mxu0 0.0
        %3322 = vmatpush1.xpose.msra.mxu0 0.0
        %3323 = vmatprep.subr.mxu0 0.0
        %3324 = vmatpush1.xpose.msra.mxu0 0.0
        %3325 = vmatprep.subr.mxu0 0.0
        %3326 = vmatpush1.xpose.msra.mxu0 0.0
        %3327 = vmatprep.subr.mxu0 0.0
        %3328 = vmatpush1.xpose.msra.mxu0 0.0
        %3329 = vmatprep.subr.mxu0 0.0
        %3330 = vmatpush1.xpose.msra.mxu0 0.0
        %3331 = vmatprep.subr.mxu0 0.0
        %3332 = vmatpush1.xpose.msra.mxu0 0.0
        %3333 = vmatprep.subr.mxu0 0.0
        %3334 = vmatpush1.xpose.msra.mxu0 0.0
        %3335 = vmatprep.subr.mxu0 0.0
        %3336 = vmatpush1.xpose.msra.mxu0 0.0
        %3337 = vmatprep.subr.mxu0 0.0
        %3338 = vmatpush1.xpose.msra.mxu0 0.0
        %3339 = vmatprep.subr.mxu0 0.0
        %3340 = vmatpush1.xpose.msra.mxu0 0.0
        %3341 = vmatprep.subr.mxu0 0.0
        %3342 = vmatpush1.xpose.msra.mxu0 0.0
        %3343 = vmatprep.subr.mxu0 0.0
        %3344 = vmatpush1.xpose.msra.mxu0 0.0
        %3345 = vmatprep.subr.mxu0 0.0
        %3346 = vmatpush1.xpose.msra.mxu0 0.0
        %3347 = vmatprep.subr.mxu0 0.0
        %3348 = vmatpush1.xpose.msra.mxu0 0.0
        %3349 = vmatprep.subr.mxu0 0.0
        %3350 = vmatpush1.xpose.msra.mxu0 0.0
        %3351 = vmatprep.subr.mxu0 0.0
        %3352 = vmatpush1.xpose.msra.mxu0 0.0
        %3353 = vmatprep.subr.mxu0 0.0
        %3354 = vmatpush1.xpose.msra.mxu0 0.0
        %3355 = vmatprep.subr.mxu0 0.0
        %3356 = vmatpush1.xpose.msra.mxu0 0.0
        %3357 = vmatprep.subr.mxu0 0.0
        %3358 = vmatpush1.xpose.msra.mxu0 0.0
        %3359 = vmatprep.subr.mxu0 0.0
        %3360 = vmatpush1.xpose.msra.mxu0 0.0
        %3361 = vmatprep.subr.mxu0 0.0
        %3362 = vmatpush1.xpose.msra.mxu0 0.0
        %3363 = vmatprep.subr.mxu0 0.0
        %3364 = vmatpush1.xpose.msra.mxu0 0.0
        %3365 = vmatprep.subr.mxu0 0.0
        %3366 = vmatpush1.xpose.msra.mxu0 0.0
        %3367 = vmatprep.subr.mxu0 0.0
        %3368 = vmatpush1.xpose.msra.mxu0 0.0
        %3369 = vmatprep.subr.mxu0 0.0
        %3370 = vmatpush1.xpose.msra.mxu0 0.0
        %3371 = vmatprep.subr.mxu0 0.0
        %3372 = vmatpush1.xpose.msra.mxu0 0.0
        %3373 = vmatprep.subr.mxu0 0.0
        %3374 = vmatpush1.xpose.msra.mxu0 0.0
        %3375 = vmatprep.subr.mxu0 0.0
        %3376 = vmatpush1.xpose.msra.mxu0 0.0
        %3377 = vmatprep.mubr.f32.mxu0 0.0
        %v3378 = vand.u32 %v3228, 4294901760
        %3379 = vmatmul.mubr.f32.gmra.mrb[0].mxu0 %v3378
        %v3380 = vpop.f32.mrb[0].mxu0
        %v3381 = vadd.f32 %v3305, %v3380
        %v3382 = vpop.f32.mrb[0].mxu0
        %3383 = vdwg.mxu0
        %3384 = vmatprep.subr.mxu0 0.0
        %v3385 = vand.u32 %v3230, 4294901760
        %v3386 = vsub.f32 %v3230, %v3385
        %3387 = vmatpush1.xpose.msra.mxu0 %v3386
        %3388 = vmatprep.subr.mxu0 0.0
        %3389 = vmatpush1.xpose.msra.mxu0 0.0
        %3390 = vmatprep.subr.mxu0 0.0
        %3391 = vmatpush1.xpose.msra.mxu0 0.0
        %3392 = vmatprep.subr.mxu0 0.0
        %3393 = vmatpush1.xpose.msra.mxu0 0.0
        %3394 = vmatprep.subr.mxu0 0.0
        %3395 = vmatpush1.xpose.msra.mxu0 0.0
        %3396 = vmatprep.subr.mxu0 0.0
        %3397 = vmatpush1.xpose.msra.mxu0 0.0
        %3398 = vmatprep.subr.mxu0 0.0
        %3399 = vmatpush1.xpose.msra.mxu0 0.0
        %3400 = vmatprep.subr.mxu0 0.0
        %3401 = vmatpush1.xpose.msra.mxu0 0.0
        %3402 = vmatprep.subr.mxu0 0.0
        %3403 = vmatpush1.xpose.msra.mxu0 0.0
        %3404 = vmatprep.subr.mxu0 0.0
        %3405 = vmatpush1.xpose.msra.mxu0 0.0
        %3406 = vmatprep.subr.mxu0 0.0
        %3407 = vmatpush1.xpose.msra.mxu0 0.0
        %3408 = vmatprep.subr.mxu0 0.0
        %3409 = vmatpush1.xpose.msra.mxu0 0.0
        %3410 = vmatprep.subr.mxu0 0.0
        %3411 = vmatpush1.xpose.msra.mxu0 0.0
        %3412 = vmatprep.subr.mxu0 0.0
        %3413 = vmatpush1.xpose.msra.mxu0 0.0
        %3414 = vmatprep.subr.mxu0 0.0
        %3415 = vmatpush1.xpose.msra.mxu0 0.0
        %3416 = vmatprep.subr.mxu0 0.0
        %3417 = vmatpush1.xpose.msra.mxu0 0.0
        %3418 = vmatprep.subr.mxu0 0.0
        %3419 = vmatpush1.xpose.msra.mxu0 0.0
        %3420 = vmatprep.subr.mxu0 0.0
        %3421 = vmatpush1.xpose.msra.mxu0 0.0
        %3422 = vmatprep.subr.mxu0 0.0
        %3423 = vmatpush1.xpose.msra.mxu0 0.0
        %3424 = vmatprep.subr.mxu0 0.0
        %3425 = vmatpush1.xpose.msra.mxu0 0.0
        %3426 = vmatprep.subr.mxu0 0.0
        %3427 = vmatpush1.xpose.msra.mxu0 0.0
        %3428 = vmatprep.subr.mxu0 0.0
        %3429 = vmatpush1.xpose.msra.mxu0 0.0
        %3430 = vmatprep.subr.mxu0 0.0
        %3431 = vmatpush1.xpose.msra.mxu0 0.0
        %3432 = vmatprep.subr.mxu0 0.0
        %3433 = vmatpush1.xpose.msra.mxu0 0.0
        %3434 = vmatprep.subr.mxu0 0.0
        %3435 = vmatpush1.xpose.msra.mxu0 0.0
        %3436 = vmatprep.subr.mxu0 0.0
        %3437 = vmatpush1.xpose.msra.mxu0 0.0
        %3438 = vmatprep.subr.mxu0 0.0
        %3439 = vmatpush1.xpose.msra.mxu0 0.0
        %3440 = vmatprep.subr.mxu0 0.0
        %3441 = vmatpush1.xpose.msra.mxu0 0.0
        %3442 = vmatprep.subr.mxu0 0.0
        %3443 = vmatpush1.xpose.msra.mxu0 0.0
        %3444 = vmatprep.subr.mxu0 0.0
        %3445 = vmatpush1.xpose.msra.mxu0 0.0
        %3446 = vmatprep.subr.mxu0 0.0
        %3447 = vmatpush1.xpose.msra.mxu0 0.0
        %3448 = vmatprep.subr.mxu0 0.0
        %3449 = vmatpush1.xpose.msra.mxu0 0.0
        %3450 = vmatprep.mubr.f32.mxu0 0.0
        %v3451 = vand.u32 %v3228, 4294901760
        %v3452 = vsub.f32 %v3228, %v3451
        %3453 = vmatmul.mubr.f32.gmra.mrb[0].mxu0 %v3452
        %v3454 = vpop.f32.mrb[0].mxu0
        %v3455 = vadd.f32 %v3381, %v3454
        %v3456 = vpop.f32.mrb[0].mxu0
        %3457 = vdwg.mxu0
        %3458 = vmatprep.subr.mxu0 0.0
        %v3459 = vand.u32 %v3230, 4294901760
        %3460 = vmatpush1.xpose.msra.mxu0 %v3459
        %3461 = vmatprep.subr.mxu0 0.0
        %3462 = vmatpush1.xpose.msra.mxu0 0.0
        %3463 = vmatprep.subr.mxu0 0.0
        %3464 = vmatpush1.xpose.msra.mxu0 0.0
        %3465 = vmatprep.subr.mxu0 0.0
        %3466 = vmatpush1.xpose.msra.mxu0 0.0
        %3467 = vmatprep.subr.mxu0 0.0
        %3468 = vmatpush1.xpose.msra.mxu0 0.0
        %3469 = vmatprep.subr.mxu0 0.0
        %3470 = vmatpush1.xpose.msra.mxu0 0.0
        %3471 = vmatprep.subr.mxu0 0.0
        %3472 = vmatpush1.xpose.msra.mxu0 0.0
        %3473 = vmatprep.subr.mxu0 0.0
        %3474 = vmatpush1.xpose.msra.mxu0 0.0
        %3475 = vmatprep.subr.mxu0 0.0
        %3476 = vmatpush1.xpose.msra.mxu0 0.0
        %3477 = vmatprep.subr.mxu0 0.0
        %3478 = vmatpush1.xpose.msra.mxu0 0.0
        %3479 = vmatprep.subr.mxu0 0.0
        %3480 = vmatpush1.xpose.msra.mxu0 0.0
        %3481 = vmatprep.subr.mxu0 0.0
        %3482 = vmatpush1.xpose.msra.mxu0 0.0
        %3483 = vmatprep.subr.mxu0 0.0
        %3484 = vmatpush1.xpose.msra.mxu0 0.0
        %3485 = vmatprep.subr.mxu0 0.0
        %3486 = vmatpush1.xpose.msra.mxu0 0.0
        %3487 = vmatprep.subr.mxu0 0.0
        %3488 = vmatpush1.xpose.msra.mxu0 0.0
        %3489 = vmatprep.subr.mxu0 0.0
        %3490 = vmatpush1.xpose.msra.mxu0 0.0
        %3491 = vmatprep.subr.mxu0 0.0
        %3492 = vmatpush1.xpose.msra.mxu0 0.0
        %3493 = vmatprep.subr.mxu0 0.0
        %3494 = vmatpush1.xpose.msra.mxu0 0.0
        %3495 = vmatprep.subr.mxu0 0.0
        %3496 = vmatpush1.xpose.msra.mxu0 0.0
        %3497 = vmatprep.subr.mxu0 0.0
        %3498 = vmatpush1.xpose.msra.mxu0 0.0
        %3499 = vmatprep.subr.mxu0 0.0
        %3500 = vmatpush1.xpose.msra.mxu0 0.0
        %3501 = vmatprep.subr.mxu0 0.0
        %3502 = vmatpush1.xpose.msra.mxu0 0.0
        %3503 = vmatprep.subr.mxu0 0.0
        %3504 = vmatpush1.xpose.msra.mxu0 0.0
        %3505 = vmatprep.subr.mxu0 0.0
        %3506 = vmatpush1.xpose.msra.mxu0 0.0
        %3507 = vmatprep.subr.mxu0 0.0
        %3508 = vmatpush1.xpose.msra.mxu0 0.0
        %3509 = vmatprep.subr.mxu0 0.0
        %3510 = vmatpush1.xpose.msra.mxu0 0.0
        %3511 = vmatprep.subr.mxu0 0.0
        %3512 = vmatpush1.xpose.msra.mxu0 0.0
        %3513 = vmatprep.subr.mxu0 0.0
        %3514 = vmatpush1.xpose.msra.mxu0 0.0
        %3515 = vmatprep.subr.mxu0 0.0
        %3516 = vmatpush1.xpose.msra.mxu0 0.0
        %3517 = vmatprep.subr.mxu0 0.0
        %3518 = vmatpush1.xpose.msra.mxu0 0.0
        %3519 = vmatprep.subr.mxu0 0.0
        %3520 = vmatpush1.xpose.msra.mxu0 0.0
        %3521 = vmatprep.subr.mxu0 0.0
        %3522 = vmatpush1.xpose.msra.mxu0 0.0
        %3523 = vmatprep.mubr.f32.mxu0 0.0
        %v3524 = vand.u32 %v3228, 4294901760
        %v3525 = vsub.f32 %v3228, %v3524
        %v3526 = vand.u32 %v3525, 4294901760
        %3527 = vmatmul.mubr.f32.gmra.mrb[0].mxu0 %v3526
        %v3528 = vpop.f32.mrb[0].mxu0
        %v3529 = vadd.f32 %v3455, %v3528
        %v3530 = vpop.f32.mrb[0].mxu0
        %3531 = vdwg.mxu0
        %3532 = vmatprep.subr.mxu0 0.0
        %v3533 = vand.u32 %v3230, 4294901760
        %v3534 = vsub.f32 %v3230, %v3533
        %v3535 = vand.u32 %v3534, 4294901760
        %3536 = vmatpush1.xpose.msra.mxu0 %v3535
        %3537 = vmatprep.subr.mxu0 0.0
        %3538 = vmatpush1.xpose.msra.mxu0 0.0
        %3539 = vmatprep.subr.mxu0 0.0
        %3540 = vmatpush1.xpose.msra.mxu0 0.0
        %3541 = vmatprep.subr.mxu0 0.0
        %3542 = vmatpush1.xpose.msra.mxu0 0.0
        %3543 = vmatprep.subr.mxu0 0.0
        %3544 = vmatpush1.xpose.msra.mxu0 0.0
        %3545 = vmatprep.subr.mxu0 0.0
        %3546 = vmatpush1.xpose.msra.mxu0 0.0
        %3547 = vmatprep.subr.mxu0 0.0
        %3548 = vmatpush1.xpose.msra.mxu0 0.0
        %3549 = vmatprep.subr.mxu0 0.0
        %3550 = vmatpush1.xpose.msra.mxu0 0.0
        %3551 = vmatprep.subr.mxu0 0.0
        %3552 = vmatpush1.xpose.msra.mxu0 0.0
        %3553 = vmatprep.subr.mxu0 0.0
        %3554 = vmatpush1.xpose.msra.mxu0 0.0
        %3555 = vmatprep.subr.mxu0 0.0
        %3556 = vmatpush1.xpose.msra.mxu0 0.0
        %3557 = vmatprep.subr.mxu0 0.0
        %3558 = vmatpush1.xpose.msra.mxu0 0.0
        %3559 = vmatprep.subr.mxu0 0.0
        %3560 = vmatpush1.xpose.msra.mxu0 0.0
        %3561 = vmatprep.subr.mxu0 0.0
        %3562 = vmatpush1.xpose.msra.mxu0 0.0
        %3563 = vmatprep.subr.mxu0 0.0
        %3564 = vmatpush1.xpose.msra.mxu0 0.0
        %3565 = vmatprep.subr.mxu0 0.0
        %3566 = vmatpush1.xpose.msra.mxu0 0.0
        %3567 = vmatprep.subr.mxu0 0.0
        %3568 = vmatpush1.xpose.msra.mxu0 0.0
        %3569 = vmatprep.subr.mxu0 0.0
        %3570 = vmatpush1.xpose.msra.mxu0 0.0
        %3571 = vmatprep.subr.mxu0 0.0
        %3572 = vmatpush1.xpose.msra.mxu0 0.0
        %3573 = vmatprep.subr.mxu0 0.0
        %3574 = vmatpush1.xpose.msra.mxu0 0.0
        %3575 = vmatprep.subr.mxu0 0.0
        %3576 = vmatpush1.xpose.msra.mxu0 0.0
        %3577 = vmatprep.subr.mxu0 0.0
        %3578 = vmatpush1.xpose.msra.mxu0 0.0
        %3579 = vmatprep.subr.mxu0 0.0
        %3580 = vmatpush1.xpose.msra.mxu0 0.0
        %3581 = vmatprep.subr.mxu0 0.0
        %3582 = vmatpush1.xpose.msra.mxu0 0.0
        %3583 = vmatprep.subr.mxu0 0.0
        %3584 = vmatpush1.xpose.msra.mxu0 0.0
        %3585 = vmatprep.subr.mxu0 0.0
        %3586 = vmatpush1.xpose.msra.mxu0 0.0
        %3587 = vmatprep.subr.mxu0 0.0
        %3588 = vmatpush1.xpose.msra.mxu0 0.0
        %3589 = vmatprep.subr.mxu0 0.0
        %3590 = vmatpush1.xpose.msra.mxu0 0.0
        %3591 = vmatprep.subr.mxu0 0.0
        %3592 = vmatpush1.xpose.msra.mxu0 0.0
        %3593 = vmatprep.subr.mxu0 0.0
        %3594 = vmatpush1.xpose.msra.mxu0 0.0
        %3595 = vmatprep.subr.mxu0 0.0
        %3596 = vmatpush1.xpose.msra.mxu0 0.0
        %3597 = vmatprep.subr.mxu0 0.0
        %3598 = vmatpush1.xpose.msra.mxu0 0.0
        %3599 = vmatprep.mubr.f32.mxu0 0.0
        %v3600 = vand.u32 %v3228, 4294901760
        %3601 = vmatmul.mubr.f32.gmra.mrb[0].mxu0 %v3600
        %v3602 = vpop.f32.mrb[0].mxu0
        %v3603 = vadd.f32 %v3529, %v3602
        %v3604 = vpop.f32.mrb[0].mxu0
        %3605 = vdwg.mxu0
        %3606 = vmatprep.subr.mxu0 0.0
        %v3607 = vand.u32 %v3230, 4294901760
        %3608 = vmatpush1.xpose.msra.mxu0 %v3607
        %3609 = vmatprep.subr.mxu0 0.0
        %3610 = vmatpush1.xpose.msra.mxu0 0.0
        %3611 = vmatprep.subr.mxu0 0.0
        %3612 = vmatpush1.xpose.msra.mxu0 0.0
        %3613 = vmatprep.subr.mxu0 0.0
        %3614 = vmatpush1.xpose.msra.mxu0 0.0
        %3615 = vmatprep.subr.mxu0 0.0
        %3616 = vmatpush1.xpose.msra.mxu0 0.0
        %3617 = vmatprep.subr.mxu0 0.0
        %3618 = vmatpush1.xpose.msra.mxu0 0.0
        %3619 = vmatprep.subr.mxu0 0.0
        %3620 = vmatpush1.xpose.msra.mxu0 0.0
        %3621 = vmatprep.subr.mxu0 0.0
        %3622 = vmatpush1.xpose.msra.mxu0 0.0
        %3623 = vmatprep.subr.mxu0 0.0
        %3624 = vmatpush1.xpose.msra.mxu0 0.0
        %3625 = vmatprep.subr.mxu0 0.0
        %3626 = vmatpush1.xpose.msra.mxu0 0.0
        %3627 = vmatprep.subr.mxu0 0.0
        %3628 = vmatpush1.xpose.msra.mxu0 0.0
        %3629 = vmatprep.subr.mxu0 0.0
        %3630 = vmatpush1.xpose.msra.mxu0 0.0
        %3631 = vmatprep.subr.mxu0 0.0
        %3632 = vmatpush1.xpose.msra.mxu0 0.0
        %3633 = vmatprep.subr.mxu0 0.0
        %3634 = vmatpush1.xpose.msra.mxu0 0.0
        %3635 = vmatprep.subr.mxu0 0.0
        %3636 = vmatpush1.xpose.msra.mxu0 0.0
        %3637 = vmatprep.subr.mxu0 0.0
        %3638 = vmatpush1.xpose.msra.mxu0 0.0
        %3639 = vmatprep.subr.mxu0 0.0
        %3640 = vmatpush1.xpose.msra.mxu0 0.0
        %3641 = vmatprep.subr.mxu0 0.0
        %3642 = vmatpush1.xpose.msra.mxu0 0.0
        %3643 = vmatprep.subr.mxu0 0.0
        %3644 = vmatpush1.xpose.msra.mxu0 0.0
        %3645 = vmatprep.subr.mxu0 0.0
        %3646 = vmatpush1.xpose.msra.mxu0 0.0
        %3647 = vmatprep.subr.mxu0 0.0
        %3648 = vmatpush1.xpose.msra.mxu0 0.0
        %3649 = vmatprep.subr.mxu0 0.0
        %3650 = vmatpush1.xpose.msra.mxu0 0.0
        %3651 = vmatprep.subr.mxu0 0.0
        %3652 = vmatpush1.xpose.msra.mxu0 0.0
        %3653 = vmatprep.subr.mxu0 0.0
        %3654 = vmatpush1.xpose.msra.mxu0 0.0
        %3655 = vmatprep.subr.mxu0 0.0
        %3656 = vmatpush1.xpose.msra.mxu0 0.0
        %3657 = vmatprep.subr.mxu0 0.0
        %3658 = vmatpush1.xpose.msra.mxu0 0.0
        %3659 = vmatprep.subr.mxu0 0.0
        %3660 = vmatpush1.xpose.msra.mxu0 0.0
        %3661 = vmatprep.subr.mxu0 0.0
        %3662 = vmatpush1.xpose.msra.mxu0 0.0
        %3663 = vmatprep.subr.mxu0 0.0
        %3664 = vmatpush1.xpose.msra.mxu0 0.0
        %3665 = vmatprep.subr.mxu0 0.0
        %3666 = vmatpush1.xpose.msra.mxu0 0.0
        %3667 = vmatprep.subr.mxu0 0.0
        %3668 = vmatpush1.xpose.msra.mxu0 0.0
        %3669 = vmatprep.subr.mxu0 0.0
        %3670 = vmatpush1.xpose.msra.mxu0 0.0
        %3671 = vmatprep.mubr.f32.mxu0 0.0
        %v3672 = vand.u32 %v3228, 4294901760
        %3673 = vmatmul.mubr.f32.gmra.mrb[0].mxu0 %v3672
        %v3674 = vpop.f32.mrb[0].mxu0
        %v3675 = vadd.f32 %v3603, %v3674
        %v3676 = vpop.f32.mrb[0].mxu0
        %3677 = vdwg.mxu0
        %v3678 = vsel %vm2777, %v2757, 0
        %v3680 = vsel %vm2777, %v2764, 0
        %3682 = vmatprep.subr.mxu0 0.0
        %v3683 = vand.u32 %v3680, 4294901760
        %3684 = vmatpush1.xpose.msra.mxu0 %v3683
        %3685 = vmatprep.subr.mxu0 0.0
        %3686 = vmatpush1.xpose.msra.mxu0 0.0
        %3687 = vmatprep.subr.mxu0 0.0
        %3688 = vmatpush1.xpose.msra.mxu0 0.0
        %3689 = vmatprep.subr.mxu0 0.0
        %3690 = vmatpush1.xpose.msra.mxu0 0.0
        %3691 = vmatprep.subr.mxu0 0.0
        %3692 = vmatpush1.xpose.msra.mxu0 0.0
        %3693 = vmatprep.subr.mxu0 0.0
        %3694 = vmatpush1.xpose.msra.mxu0 0.0
        %3695 = vmatprep.subr.mxu0 0.0
        %3696 = vmatpush1.xpose.msra.mxu0 0.0
        %3697 = vmatprep.subr.mxu0 0.0
        %3698 = vmatpush1.xpose.msra.mxu0 0.0
        %3699 = vmatprep.subr.mxu0 0.0
        %3700 = vmatpush1.xpose.msra.mxu0 0.0
        %3701 = vmatprep.subr.mxu0 0.0
        %3702 = vmatpush1.xpose.msra.mxu0 0.0
        %3703 = vmatprep.subr.mxu0 0.0
        %3704 = vmatpush1.xpose.msra.mxu0 0.0
        %3705 = vmatprep.subr.mxu0 0.0
        %3706 = vmatpush1.xpose.msra.mxu0 0.0
        %3707 = vmatprep.subr.mxu0 0.0
        %3708 = vmatpush1.xpose.msra.mxu0 0.0
        %3709 = vmatprep.subr.mxu0 0.0
        %3710 = vmatpush1.xpose.msra.mxu0 0.0
        %3711 = vmatprep.subr.mxu0 0.0
        %3712 = vmatpush1.xpose.msra.mxu0 0.0
        %3713 = vmatprep.subr.mxu0 0.0
        %3714 = vmatpush1.xpose.msra.mxu0 0.0
        %3715 = vmatprep.subr.mxu0 0.0
        %3716 = vmatpush1.xpose.msra.mxu0 0.0
        %3717 = vmatprep.subr.mxu0 0.0
        %3718 = vmatpush1.xpose.msra.mxu0 0.0
        %3719 = vmatprep.subr.mxu0 0.0
        %3720 = vmatpush1.xpose.msra.mxu0 0.0
        %3721 = vmatprep.subr.mxu0 0.0
        %3722 = vmatpush1.xpose.msra.mxu0 0.0
        %3723 = vmatprep.subr.mxu0 0.0
        %3724 = vmatpush1.xpose.msra.mxu0 0.0
        %3725 = vmatprep.subr.mxu0 0.0
        %3726 = vmatpush1.xpose.msra.mxu0 0.0
        %3727 = vmatprep.subr.mxu0 0.0
        %3728 = vmatpush1.xpose.msra.mxu0 0.0
        %3729 = vmatprep.subr.mxu0 0.0
        %3730 = vmatpush1.xpose.msra.mxu0 0.0
        %3731 = vmatprep.subr.mxu0 0.0
        %3732 = vmatpush1.xpose.msra.mxu0 0.0
        %3733 = vmatprep.subr.mxu0 0.0
        %3734 = vmatpush1.xpose.msra.mxu0 0.0
        %3735 = vmatprep.subr.mxu0 0.0
        %3736 = vmatpush1.xpose.msra.mxu0 0.0
        %3737 = vmatprep.subr.mxu0 0.0
        %3738 = vmatpush1.xpose.msra.mxu0 0.0
        %3739 = vmatprep.subr.mxu0 0.0
        %3740 = vmatpush1.xpose.msra.mxu0 0.0
        %3741 = vmatprep.subr.mxu0 0.0
        %3742 = vmatpush1.xpose.msra.mxu0 0.0
        %3743 = vmatprep.subr.mxu0 0.0
        %3744 = vmatpush1.xpose.msra.mxu0 0.0
        %3745 = vmatprep.subr.mxu0 0.0
        %3746 = vmatpush1.xpose.msra.mxu0 0.0
        %3747 = vmatprep.mubr.f32.mxu0 0.0
        %v3748 = vand.u32 %v3678, 4294901760
        %v3749 = vsub.f32 %v3678, %v3748
        %v3750 = vand.u32 %v3749, 4294901760
        %v3751 = vsub.f32 %v3749, %v3750
        %v3752 = vand.u32 %v3751, 4294901760
        %3753 = vmatmul.mubr.f32.gmra.mrb[0].mxu0 %v3752
        %v3754 = vpop.f32.mrb[0].mxu0
        %v3755 = vadd.f32 0.0, %v3754
        %v3756 = vpop.f32.mrb[0].mxu0
        %3757 = vdwg.mxu0
        %3758 = vmatprep.subr.mxu0 0.0
        %v3759 = vand.u32 %v3680, 4294901760
        %v3760 = vsub.f32 %v3680, %v3759
        %v3761 = vand.u32 %v3760, 4294901760
        %v3762 = vsub.f32 %v3760, %v3761
        %v3763 = vand.u32 %v3762, 4294901760
        %3764 = vmatpush1.xpose.msra.mxu0 %v3763
        %3765 = vmatprep.subr.mxu0 0.0
        %3766 = vmatpush1.xpose.msra.mxu0 0.0
        %3767 = vmatprep.subr.mxu0 0.0
        %3768 = vmatpush1.xpose.msra.mxu0 0.0
        %3769 = vmatprep.subr.mxu0 0.0
        %3770 = vmatpush1.xpose.msra.mxu0 0.0
        %3771 = vmatprep.subr.mxu0 0.0
        %3772 = vmatpush1.xpose.msra.mxu0 0.0
        %3773 = vmatprep.subr.mxu0 0.0
        %3774 = vmatpush1.xpose.msra.mxu0 0.0
        %3775 = vmatprep.subr.mxu0 0.0
        %3776 = vmatpush1.xpose.msra.mxu0 0.0
        %3777 = vmatprep.subr.mxu0 0.0
        %3778 = vmatpush1.xpose.msra.mxu0 0.0
        %3779 = vmatprep.subr.mxu0 0.0
        %3780 = vmatpush1.xpose.msra.mxu0 0.0
        %3781 = vmatprep.subr.mxu0 0.0
        %3782 = vmatpush1.xpose.msra.mxu0 0.0
        %3783 = vmatprep.subr.mxu0 0.0
        %3784 = vmatpush1.xpose.msra.mxu0 0.0
        %3785 = vmatprep.subr.mxu0 0.0
        %3786 = vmatpush1.xpose.msra.mxu0 0.0
        %3787 = vmatprep.subr.mxu0 0.0
        %3788 = vmatpush1.xpose.msra.mxu0 0.0
        %3789 = vmatprep.subr.mxu0 0.0
        %3790 = vmatpush1.xpose.msra.mxu0 0.0
        %3791 = vmatprep.subr.mxu0 0.0
        %3792 = vmatpush1.xpose.msra.mxu0 0.0
        %3793 = vmatprep.subr.mxu0 0.0
        %3794 = vmatpush1.xpose.msra.mxu0 0.0
        %3795 = vmatprep.subr.mxu0 0.0
        %3796 = vmatpush1.xpose.msra.mxu0 0.0
        %3797 = vmatprep.subr.mxu0 0.0
        %3798 = vmatpush1.xpose.msra.mxu0 0.0
        %3799 = vmatprep.subr.mxu0 0.0
        %3800 = vmatpush1.xpose.msra.mxu0 0.0
        %3801 = vmatprep.subr.mxu0 0.0
        %3802 = vmatpush1.xpose.msra.mxu0 0.0
        %3803 = vmatprep.subr.mxu0 0.0
        %3804 = vmatpush1.xpose.msra.mxu0 0.0
        %3805 = vmatprep.subr.mxu0 0.0
        %3806 = vmatpush1.xpose.msra.mxu0 0.0
        %3807 = vmatprep.subr.mxu0 0.0
        %3808 = vmatpush1.xpose.msra.mxu0 0.0
        %3809 = vmatprep.subr.mxu0 0.0
        %3810 = vmatpush1.xpose.msra.mxu0 0.0
        %3811 = vmatprep.subr.mxu0 0.0
        %3812 = vmatpush1.xpose.msra.mxu0 0.0
        %3813 = vmatprep.subr.mxu0 0.0
        %3814 = vmatpush1.xpose.msra.mxu0 0.0
        %3815 = vmatprep.subr.mxu0 0.0
        %3816 = vmatpush1.xpose.msra.mxu0 0.0
        %3817 = vmatprep.subr.mxu0 0.0
        %3818 = vmatpush1.xpose.msra.mxu0 0.0
        %3819 = vmatprep.subr.mxu0 0.0
        %3820 = vmatpush1.xpose.msra.mxu0 0.0
        %3821 = vmatprep.subr.mxu0 0.0
        %3822 = vmatpush1.xpose.msra.mxu0 0.0
        %3823 = vmatprep.subr.mxu0 0.0
        %3824 = vmatpush1.xpose.msra.mxu0 0.0
        %3825 = vmatprep.subr.mxu0 0.0
        %3826 = vmatpush1.xpose.msra.mxu0 0.0
        %3827 = vmatprep.mubr.f32.mxu0 0.0
        %v3828 = vand.u32 %v3678, 4294901760
        %3829 = vmatmul.mubr.f32.gmra.mrb[0].mxu0 %v3828
        %v3830 = vpop.f32.mrb[0].mxu0
        %v3831 = vadd.f32 %v3755, %v3830
        %v3832 = vpop.f32.mrb[0].mxu0
        %3833 = vdwg.mxu0
        %3834 = vmatprep.subr.mxu0 0.0
        %v3835 = vand.u32 %v3680, 4294901760
        %v3836 = vsub.f32 %v3680, %v3835
        %3837 = vmatpush1.xpose.msra.mxu0 %v3836
        %3838 = vmatprep.subr.mxu0 0.0
        %3839 = vmatpush1.xpose.msra.mxu0 0.0
        %3840 = vmatprep.subr.mxu0 0.0
        %3841 = vmatpush1.xpose.msra.mxu0 0.0
        %3842 = vmatprep.subr.mxu0 0.0
        %3843 = vmatpush1.xpose.msra.mxu0 0.0
        %3844 = vmatprep.subr.mxu0 0.0
        %3845 = vmatpush1.xpose.msra.mxu0 0.0
        %3846 = vmatprep.subr.mxu0 0.0
        %3847 = vmatpush1.xpose.msra.mxu0 0.0
        %3848 = vmatprep.subr.mxu0 0.0
        %3849 = vmatpush1.xpose.msra.mxu0 0.0
        %3850 = vmatprep.subr.mxu0 0.0
        %3851 = vmatpush1.xpose.msra.mxu0 0.0
        %3852 = vmatprep.subr.mxu0 0.0
        %3853 = vmatpush1.xpose.msra.mxu0 0.0
        %3854 = vmatprep.subr.mxu0 0.0
        %3855 = vmatpush1.xpose.msra.mxu0 0.0
        %3856 = vmatprep.subr.mxu0 0.0
        %3857 = vmatpush1.xpose.msra.mxu0 0.0
        %3858 = vmatprep.subr.mxu0 0.0
        %3859 = vmatpush1.xpose.msra.mxu0 0.0
        %3860 = vmatprep.subr.mxu0 0.0
        %3861 = vmatpush1.xpose.msra.mxu0 0.0
        %3862 = vmatprep.subr.mxu0 0.0
        %3863 = vmatpush1.xpose.msra.mxu0 0.0
        %3864 = vmatprep.subr.mxu0 0.0
        %3865 = vmatpush1.xpose.msra.mxu0 0.0
        %3866 = vmatprep.subr.mxu0 0.0
        %3867 = vmatpush1.xpose.msra.mxu0 0.0
        %3868 = vmatprep.subr.mxu0 0.0
        %3869 = vmatpush1.xpose.msra.mxu0 0.0
        %3870 = vmatprep.subr.mxu0 0.0
        %3871 = vmatpush1.xpose.msra.mxu0 0.0
        %3872 = vmatprep.subr.mxu0 0.0
        %3873 = vmatpush1.xpose.msra.mxu0 0.0
        %3874 = vmatprep.subr.mxu0 0.0
        %3875 = vmatpush1.xpose.msra.mxu0 0.0
        %3876 = vmatprep.subr.mxu0 0.0
        %3877 = vmatpush1.xpose.msra.mxu0 0.0
        %3878 = vmatprep.subr.mxu0 0.0
        %3879 = vmatpush1.xpose.msra.mxu0 0.0
        %3880 = vmatprep.subr.mxu0 0.0
        %3881 = vmatpush1.xpose.msra.mxu0 0.0
        %3882 = vmatprep.subr.mxu0 0.0
        %3883 = vmatpush1.xpose.msra.mxu0 0.0
        %3884 = vmatprep.subr.mxu0 0.0
        %3885 = vmatpush1.xpose.msra.mxu0 0.0
        %3886 = vmatprep.subr.mxu0 0.0
        %3887 = vmatpush1.xpose.msra.mxu0 0.0
        %3888 = vmatprep.subr.mxu0 0.0
        %3889 = vmatpush1.xpose.msra.mxu0 0.0
        %3890 = vmatprep.subr.mxu0 0.0
        %3891 = vmatpush1.xpose.msra.mxu0 0.0
        %3892 = vmatprep.subr.mxu0 0.0
        %3893 = vmatpush1.xpose.msra.mxu0 0.0
        %3894 = vmatprep.subr.mxu0 0.0
        %3895 = vmatpush1.xpose.msra.mxu0 0.0
        %3896 = vmatprep.subr.mxu0 0.0
        %3897 = vmatpush1.xpose.msra.mxu0 0.0
        %3898 = vmatprep.subr.mxu0 0.0
        %3899 = vmatpush1.xpose.msra.mxu0 0.0
        %3900 = vmatprep.mubr.f32.mxu0 0.0
        %v3901 = vand.u32 %v3678, 4294901760
        %v3902 = vsub.f32 %v3678, %v3901
        %3903 = vmatmul.mubr.f32.gmra.mrb[0].mxu0 %v3902
        %v3904 = vpop.f32.mrb[0].mxu0
        %v3905 = vadd.f32 %v3831, %v3904
        %v3906 = vpop.f32.mrb[0].mxu0
        %3907 = vdwg.mxu0
        %3908 = vmatprep.subr.mxu0 0.0
        %v3909 = vand.u32 %v3680, 4294901760
        %3910 = vmatpush1.xpose.msra.mxu0 %v3909
        %3911 = vmatprep.subr.mxu0 0.0
        %3912 = vmatpush1.xpose.msra.mxu0 0.0
        %3913 = vmatprep.subr.mxu0 0.0
        %3914 = vmatpush1.xpose.msra.mxu0 0.0
        %3915 = vmatprep.subr.mxu0 0.0
        %3916 = vmatpush1.xpose.msra.mxu0 0.0
        %3917 = vmatprep.subr.mxu0 0.0
        %3918 = vmatpush1.xpose.msra.mxu0 0.0
        %3919 = vmatprep.subr.mxu0 0.0
        %3920 = vmatpush1.xpose.msra.mxu0 0.0
        %3921 = vmatprep.subr.mxu0 0.0
        %3922 = vmatpush1.xpose.msra.mxu0 0.0
        %3923 = vmatprep.subr.mxu0 0.0
        %3924 = vmatpush1.xpose.msra.mxu0 0.0
        %3925 = vmatprep.subr.mxu0 0.0
        %3926 = vmatpush1.xpose.msra.mxu0 0.0
        %3927 = vmatprep.subr.mxu0 0.0
        %3928 = vmatpush1.xpose.msra.mxu0 0.0
        %3929 = vmatprep.subr.mxu0 0.0
        %3930 = vmatpush1.xpose.msra.mxu0 0.0
        %3931 = vmatprep.subr.mxu0 0.0
        %3932 = vmatpush1.xpose.msra.mxu0 0.0
        %3933 = vmatprep.subr.mxu0 0.0
        %3934 = vmatpush1.xpose.msra.mxu0 0.0
        %3935 = vmatprep.subr.mxu0 0.0
        %3936 = vmatpush1.xpose.msra.mxu0 0.0
        %3937 = vmatprep.subr.mxu0 0.0
        %3938 = vmatpush1.xpose.msra.mxu0 0.0
        %3939 = vmatprep.subr.mxu0 0.0
        %3940 = vmatpush1.xpose.msra.mxu0 0.0
        %3941 = vmatprep.subr.mxu0 0.0
        %3942 = vmatpush1.xpose.msra.mxu0 0.0
        %3943 = vmatprep.subr.mxu0 0.0
        %3944 = vmatpush1.xpose.msra.mxu0 0.0
        %3945 = vmatprep.subr.mxu0 0.0
        %3946 = vmatpush1.xpose.msra.mxu0 0.0
        %3947 = vmatprep.subr.mxu0 0.0
        %3948 = vmatpush1.xpose.msra.mxu0 0.0
        %3949 = vmatprep.subr.mxu0 0.0
        %3950 = vmatpush1.xpose.msra.mxu0 0.0
        %3951 = vmatprep.subr.mxu0 0.0
        %3952 = vmatpush1.xpose.msra.mxu0 0.0
        %3953 = vmatprep.subr.mxu0 0.0
        %3954 = vmatpush1.xpose.msra.mxu0 0.0
        %3955 = vmatprep.subr.mxu0 0.0
        %3956 = vmatpush1.xpose.msra.mxu0 0.0
        %3957 = vmatprep.subr.mxu0 0.0
        %3958 = vmatpush1.xpose.msra.mxu0 0.0
        %3959 = vmatprep.subr.mxu0 0.0
        %3960 = vmatpush1.xpose.msra.mxu0 0.0
        %3961 = vmatprep.subr.mxu0 0.0
        %3962 = vmatpush1.xpose.msra.mxu0 0.0
        %3963 = vmatprep.subr.mxu0 0.0
        %3964 = vmatpush1.xpose.msra.mxu0 0.0
        %3965 = vmatprep.subr.mxu0 0.0
        %3966 = vmatpush1.xpose.msra.mxu0 0.0
        %3967 = vmatprep.subr.mxu0 0.0
        %3968 = vmatpush1.xpose.msra.mxu0 0.0
        %3969 = vmatprep.subr.mxu0 0.0
        %3970 = vmatpush1.xpose.msra.mxu0 0.0
        %3971 = vmatprep.subr.mxu0 0.0
        %3972 = vmatpush1.xpose.msra.mxu0 0.0
        %3973 = vmatprep.mubr.f32.mxu0 0.0
        %v3974 = vand.u32 %v3678, 4294901760
        %v3975 = vsub.f32 %v3678, %v3974
        %v3976 = vand.u32 %v3975, 4294901760
        %3977 = vmatmul.mubr.f32.gmra.mrb[0].mxu0 %v3976
        %v3978 = vpop.f32.mrb[0].mxu0
        %v3979 = vadd.f32 %v3905, %v3978
        %v3980 = vpop.f32.mrb[0].mxu0
        %3981 = vdwg.mxu0
        %3982 = vmatprep.subr.mxu0 0.0
        %v3983 = vand.u32 %v3680, 4294901760
        %v3984 = vsub.f32 %v3680, %v3983
        %v3985 = vand.u32 %v3984, 4294901760
        %3986 = vmatpush1.xpose.msra.mxu0 %v3985
        %3987 = vmatprep.subr.mxu0 0.0
        %3988 = vmatpush1.xpose.msra.mxu0 0.0
        %3989 = vmatprep.subr.mxu0 0.0
        %3990 = vmatpush1.xpose.msra.mxu0 0.0
        %3991 = vmatprep.subr.mxu0 0.0
        %3992 = vmatpush1.xpose.msra.mxu0 0.0
        %3993 = vmatprep.subr.mxu0 0.0
        %3994 = vmatpush1.xpose.msra.mxu0 0.0
        %3995 = vmatprep.subr.mxu0 0.0
        %3996 = vmatpush1.xpose.msra.mxu0 0.0
        %3997 = vmatprep.subr.mxu0 0.0
        %3998 = vmatpush1.xpose.msra.mxu0 0.0
        %3999 = vmatprep.subr.mxu0 0.0
        %4000 = vmatpush1.xpose.msra.mxu0 0.0
        %4001 = vmatprep.subr.mxu0 0.0
        %4002 = vmatpush1.xpose.msra.mxu0 0.0
        %4003 = vmatprep.subr.mxu0 0.0
        %4004 = vmatpush1.xpose.msra.mxu0 0.0
        %4005 = vmatprep.subr.mxu0 0.0
        %4006 = vmatpush1.xpose.msra.mxu0 0.0
        %4007 = vmatprep.subr.mxu0 0.0
        %4008 = vmatpush1.xpose.msra.mxu0 0.0
        %4009 = vmatprep.subr.mxu0 0.0
        %4010 = vmatpush1.xpose.msra.mxu0 0.0
        %4011 = vmatprep.subr.mxu0 0.0
        %4012 = vmatpush1.xpose.msra.mxu0 0.0
        %4013 = vmatprep.subr.mxu0 0.0
        %4014 = vmatpush1.xpose.msra.mxu0 0.0
        %4015 = vmatprep.subr.mxu0 0.0
        %4016 = vmatpush1.xpose.msra.mxu0 0.0
        %4017 = vmatprep.subr.mxu0 0.0
        %4018 = vmatpush1.xpose.msra.mxu0 0.0
        %4019 = vmatprep.subr.mxu0 0.0
        %4020 = vmatpush1.xpose.msra.mxu0 0.0
        %4021 = vmatprep.subr.mxu0 0.0
        %4022 = vmatpush1.xpose.msra.mxu0 0.0
        %4023 = vmatprep.subr.mxu0 0.0
        %4024 = vmatpush1.xpose.msra.mxu0 0.0
        %4025 = vmatprep.subr.mxu0 0.0
        %4026 = vmatpush1.xpose.msra.mxu0 0.0
        %4027 = vmatprep.subr.mxu0 0.0
        %4028 = vmatpush1.xpose.msra.mxu0 0.0
        %4029 = vmatprep.subr.mxu0 0.0
        %4030 = vmatpush1.xpose.msra.mxu0 0.0
        %4031 = vmatprep.subr.mxu0 0.0
        %4032 = vmatpush1.xpose.msra.mxu0 0.0
        %4033 = vmatprep.subr.mxu0 0.0
        %4034 = vmatpush1.xpose.msra.mxu0 0.0
        %4035 = vmatprep.subr.mxu0 0.0
        %4036 = vmatpush1.xpose.msra.mxu0 0.0
        %4037 = vmatprep.subr.mxu0 0.0
        %4038 = vmatpush1.xpose.msra.mxu0 0.0
        %4039 = vmatprep.subr.mxu0 0.0
        %4040 = vmatpush1.xpose.msra.mxu0 0.0
        %4041 = vmatprep.subr.mxu0 0.0
        %4042 = vmatpush1.xpose.msra.mxu0 0.0
        %4043 = vmatprep.subr.mxu0 0.0
        %4044 = vmatpush1.xpose.msra.mxu0 0.0
        %4045 = vmatprep.subr.mxu0 0.0
        %4046 = vmatpush1.xpose.msra.mxu0 0.0
        %4047 = vmatprep.subr.mxu0 0.0
        %4048 = vmatpush1.xpose.msra.mxu0 0.0
        %4049 = vmatprep.mubr.f32.mxu0 0.0
        %v4050 = vand.u32 %v3678, 4294901760
        %4051 = vmatmul.mubr.f32.gmra.mrb[0].mxu0 %v4050
        %v4052 = vpop.f32.mrb[0].mxu0
        %v4053 = vadd.f32 %v3979, %v4052
        %v4054 = vpop.f32.mrb[0].mxu0
        %4055 = vdwg.mxu0
        %4056 = vmatprep.subr.mxu0 0.0
        %v4057 = vand.u32 %v3680, 4294901760
        %4058 = vmatpush1.xpose.msra.mxu0 %v4057
        %4059 = vmatprep.subr.mxu0 0.0
        %4060 = vmatpush1.xpose.msra.mxu0 0.0
        %4061 = vmatprep.subr.mxu0 0.0
        %4062 = vmatpush1.xpose.msra.mxu0 0.0
        %4063 = vmatprep.subr.mxu0 0.0
        %4064 = vmatpush1.xpose.msra.mxu0 0.0
        %4065 = vmatprep.subr.mxu0 0.0
        %4066 = vmatpush1.xpose.msra.mxu0 0.0
        %4067 = vmatprep.subr.mxu0 0.0
        %4068 = vmatpush1.xpose.msra.mxu0 0.0
        %4069 = vmatprep.subr.mxu0 0.0
        %4070 = vmatpush1.xpose.msra.mxu0 0.0
        %4071 = vmatprep.subr.mxu0 0.0
        %4072 = vmatpush1.xpose.msra.mxu0 0.0
        %4073 = vmatprep.subr.mxu0 0.0
        %4074 = vmatpush1.xpose.msra.mxu0 0.0
        %4075 = vmatprep.subr.mxu0 0.0
        %4076 = vmatpush1.xpose.msra.mxu0 0.0
        %4077 = vmatprep.subr.mxu0 0.0
        %4078 = vmatpush1.xpose.msra.mxu0 0.0
        %4079 = vmatprep.subr.mxu0 0.0
        %4080 = vmatpush1.xpose.msra.mxu0 0.0
        %4081 = vmatprep.subr.mxu0 0.0
        %4082 = vmatpush1.xpose.msra.mxu0 0.0
        %4083 = vmatprep.subr.mxu0 0.0
        %4084 = vmatpush1.xpose.msra.mxu0 0.0
        %4085 = vmatprep.subr.mxu0 0.0
        %4086 = vmatpush1.xpose.msra.mxu0 0.0
        %4087 = vmatprep.subr.mxu0 0.0
        %4088 = vmatpush1.xpose.msra.mxu0 0.0
        %4089 = vmatprep.subr.mxu0 0.0
        %4090 = vmatpush1.xpose.msra.mxu0 0.0
        %4091 = vmatprep.subr.mxu0 0.0
        %4092 = vmatpush1.xpose.msra.mxu0 0.0
        %4093 = vmatprep.subr.mxu0 0.0
        %4094 = vmatpush1.xpose.msra.mxu0 0.0
        %4095 = vmatprep.subr.mxu0 0.0
        %4096 = vmatpush1.xpose.msra.mxu0 0.0
        %4097 = vmatprep.subr.mxu0 0.0
        %4098 = vmatpush1.xpose.msra.mxu0 0.0
        %4099 = vmatprep.subr.mxu0 0.0
        %4100 = vmatpush1.xpose.msra.mxu0 0.0
        %4101 = vmatprep.subr.mxu0 0.0
        %4102 = vmatpush1.xpose.msra.mxu0 0.0
        %4103 = vmatprep.subr.mxu0 0.0
        %4104 = vmatpush1.xpose.msra.mxu0 0.0
        %4105 = vmatprep.subr.mxu0 0.0
        %4106 = vmatpush1.xpose.msra.mxu0 0.0
        %4107 = vmatprep.subr.mxu0 0.0
        %4108 = vmatpush1.xpose.msra.mxu0 0.0
        %4109 = vmatprep.subr.mxu0 0.0
        %4110 = vmatpush1.xpose.msra.mxu0 0.0
        %4111 = vmatprep.subr.mxu0 0.0
        %4112 = vmatpush1.xpose.msra.mxu0 0.0
        %4113 = vmatprep.subr.mxu0 0.0
        %4114 = vmatpush1.xpose.msra.mxu0 0.0
        %4115 = vmatprep.subr.mxu0 0.0
        %4116 = vmatpush1.xpose.msra.mxu0 0.0
        %4117 = vmatprep.subr.mxu0 0.0
        %4118 = vmatpush1.xpose.msra.mxu0 0.0
        %4119 = vmatprep.subr.mxu0 0.0
        %4120 = vmatpush1.xpose.msra.mxu0 0.0
        %4121 = vmatprep.mubr.f32.mxu0 0.0
        %v4122 = vand.u32 %v3678, 4294901760
        %4123 = vmatmul.mubr.f32.gmra.mrb[0].mxu0 %v4122
        %v4124 = vpop.f32.mrb[0].mxu0
        %v4125 = vadd.f32 %v4053, %v4124
        %v4126 = vpop.f32.mrb[0].mxu0
        %4127 = vdwg.mxu0
        %v4128 = vsel %vm2777, %v2759, 0
        %v4130 = vsel %vm2777, %v2766, 0
        %4132 = vmatprep.subr.mxu0 0.0
        %v4133 = vand.u32 %v4130, 4294901760
        %4134 = vmatpush1.xpose.msra.mxu0 %v4133
        %4135 = vmatprep.subr.mxu0 0.0
        %4136 = vmatpush1.xpose.msra.mxu0 0.0
        %4137 = vmatprep.subr.mxu0 0.0
        %4138 = vmatpush1.xpose.msra.mxu0 0.0
        %4139 = vmatprep.subr.mxu0 0.0
        %4140 = vmatpush1.xpose.msra.mxu0 0.0
        %4141 = vmatprep.subr.mxu0 0.0
        %4142 = vmatpush1.xpose.msra.mxu0 0.0
        %4143 = vmatprep.subr.mxu0 0.0
        %4144 = vmatpush1.xpose.msra.mxu0 0.0
        %4145 = vmatprep.subr.mxu0 0.0
        %4146 = vmatpush1.xpose.msra.mxu0 0.0
        %4147 = vmatprep.subr.mxu0 0.0
        %4148 = vmatpush1.xpose.msra.mxu0 0.0
        %4149 = vmatprep.subr.mxu0 0.0
        %4150 = vmatpush1.xpose.msra.mxu0 0.0
        %4151 = vmatprep.subr.mxu0 0.0
        %4152 = vmatpush1.xpose.msra.mxu0 0.0
        %4153 = vmatprep.subr.mxu0 0.0
        %4154 = vmatpush1.xpose.msra.mxu0 0.0
        %4155 = vmatprep.subr.mxu0 0.0
        %4156 = vmatpush1.xpose.msra.mxu0 0.0
        %4157 = vmatprep.subr.mxu0 0.0
        %4158 = vmatpush1.xpose.msra.mxu0 0.0
        %4159 = vmatprep.subr.mxu0 0.0
        %4160 = vmatpush1.xpose.msra.mxu0 0.0
        %4161 = vmatprep.subr.mxu0 0.0
        %4162 = vmatpush1.xpose.msra.mxu0 0.0
        %4163 = vmatprep.subr.mxu0 0.0
        %4164 = vmatpush1.xpose.msra.mxu0 0.0
        %4165 = vmatprep.subr.mxu0 0.0
        %4166 = vmatpush1.xpose.msra.mxu0 0.0
        %4167 = vmatprep.subr.mxu0 0.0
        %4168 = vmatpush1.xpose.msra.mxu0 0.0
        %4169 = vmatprep.subr.mxu0 0.0
        %4170 = vmatpush1.xpose.msra.mxu0 0.0
        %4171 = vmatprep.subr.mxu0 0.0
        %4172 = vmatpush1.xpose.msra.mxu0 0.0
        %4173 = vmatprep.subr.mxu0 0.0
        %4174 = vmatpush1.xpose.msra.mxu0 0.0
        %4175 = vmatprep.subr.mxu0 0.0
        %4176 = vmatpush1.xpose.msra.mxu0 0.0
        %4177 = vmatprep.subr.mxu0 0.0
        %4178 = vmatpush1.xpose.msra.mxu0 0.0
        %4179 = vmatprep.subr.mxu0 0.0
        %4180 = vmatpush1.xpose.msra.mxu0 0.0
        %4181 = vmatprep.subr.mxu0 0.0
        %4182 = vmatpush1.xpose.msra.mxu0 0.0
        %4183 = vmatprep.subr.mxu0 0.0
        %4184 = vmatpush1.xpose.msra.mxu0 0.0
        %4185 = vmatprep.subr.mxu0 0.0
        %4186 = vmatpush1.xpose.msra.mxu0 0.0
        %4187 = vmatprep.subr.mxu0 0.0
        %4188 = vmatpush1.xpose.msra.mxu0 0.0
        %4189 = vmatprep.subr.mxu0 0.0
        %4190 = vmatpush1.xpose.msra.mxu0 0.0
        %4191 = vmatprep.subr.mxu0 0.0
        %4192 = vmatpush1.xpose.msra.mxu0 0.0
        %4193 = vmatprep.subr.mxu0 0.0
        %4194 = vmatpush1.xpose.msra.mxu0 0.0
        %4195 = vmatprep.subr.mxu0 0.0
        %4196 = vmatpush1.xpose.msra.mxu0 0.0
        %4197 = vmatprep.mubr.f32.mxu0 0.0
        %v4198 = vand.u32 %v4128, 4294901760
        %v4199 = vsub.f32 %v4128, %v4198
        %v4200 = vand.u32 %v4199, 4294901760
        %v4201 = vsub.f32 %v4199, %v4200
        %v4202 = vand.u32 %v4201, 4294901760
        %4203 = vmatmul.mubr.f32.gmra.mrb[0].mxu0 %v4202
        %v4204 = vpop.f32.mrb[0].mxu0
        %v4205 = vadd.f32 0.0, %v4204
        %v4206 = vpop.f32.mrb[0].mxu0
        %4207 = vdwg.mxu0
        %4208 = vmatprep.subr.mxu0 0.0
        %v4209 = vand.u32 %v4130, 4294901760
        %v4210 = vsub.f32 %v4130, %v4209
        %v4211 = vand.u32 %v4210, 4294901760
        %v4212 = vsub.f32 %v4210, %v4211
        %v4213 = vand.u32 %v4212, 4294901760
        %4214 = vmatpush1.xpose.msra.mxu0 %v4213
        %4215 = vmatprep.subr.mxu0 0.0
        %4216 = vmatpush1.xpose.msra.mxu0 0.0
        %4217 = vmatprep.subr.mxu0 0.0
        %4218 = vmatpush1.xpose.msra.mxu0 0.0
        %4219 = vmatprep.subr.mxu0 0.0
        %4220 = vmatpush1.xpose.msra.mxu0 0.0
        %4221 = vmatprep.subr.mxu0 0.0
        %4222 = vmatpush1.xpose.msra.mxu0 0.0
        %4223 = vmatprep.subr.mxu0 0.0
        %4224 = vmatpush1.xpose.msra.mxu0 0.0
        %4225 = vmatprep.subr.mxu0 0.0
        %4226 = vmatpush1.xpose.msra.mxu0 0.0
        %4227 = vmatprep.subr.mxu0 0.0
        %4228 = vmatpush1.xpose.msra.mxu0 0.0
        %4229 = vmatprep.subr.mxu0 0.0
        %4230 = vmatpush1.xpose.msra.mxu0 0.0
        %4231 = vmatprep.subr.mxu0 0.0
        %4232 = vmatpush1.xpose.msra.mxu0 0.0
        %4233 = vmatprep.subr.mxu0 0.0
        %4234 = vmatpush1.xpose.msra.mxu0 0.0
        %4235 = vmatprep.subr.mxu0 0.0
        %4236 = vmatpush1.xpose.msra.mxu0 0.0
        %4237 = vmatprep.subr.mxu0 0.0
        %4238 = vmatpush1.xpose.msra.mxu0 0.0
        %4239 = vmatprep.subr.mxu0 0.0
        %4240 = vmatpush1.xpose.msra.mxu0 0.0
        %4241 = vmatprep.subr.mxu0 0.0
        %4242 = vmatpush1.xpose.msra.mxu0 0.0
        %4243 = vmatprep.subr.mxu0 0.0
        %4244 = vmatpush1.xpose.msra.mxu0 0.0
        %4245 = vmatprep.subr.mxu0 0.0
        %4246 = vmatpush1.xpose.msra.mxu0 0.0
        %4247 = vmatprep.subr.mxu0 0.0
        %4248 = vmatpush1.xpose.msra.mxu0 0.0
        %4249 = vmatprep.subr.mxu0 0.0
        %4250 = vmatpush1.xpose.msra.mxu0 0.0
        %4251 = vmatprep.subr.mxu0 0.0
        %4252 = vmatpush1.xpose.msra.mxu0 0.0
        %4253 = vmatprep.subr.mxu0 0.0
        %4254 = vmatpush1.xpose.msra.mxu0 0.0
        %4255 = vmatprep.subr.mxu0 0.0
        %4256 = vmatpush1.xpose.msra.mxu0 0.0
        %4257 = vmatprep.subr.mxu0 0.0
        %4258 = vmatpush1.xpose.msra.mxu0 0.0
        %4259 = vmatprep.subr.mxu0 0.0
        %4260 = vmatpush1.xpose.msra.mxu0 0.0
        %4261 = vmatprep.subr.mxu0 0.0
        %4262 = vmatpush1.xpose.msra.mxu0 0.0
        %4263 = vmatprep.subr.mxu0 0.0
        %4264 = vmatpush1.xpose.msra.mxu0 0.0
        %4265 = vmatprep.subr.mxu0 0.0
        %4266 = vmatpush1.xpose.msra.mxu0 0.0
        %4267 = vmatprep.subr.mxu0 0.0
        %4268 = vmatpush1.xpose.msra.mxu0 0.0
        %4269 = vmatprep.subr.mxu0 0.0
        %4270 = vmatpush1.xpose.msra.mxu0 0.0
        %4271 = vmatprep.subr.mxu0 0.0
        %4272 = vmatpush1.xpose.msra.mxu0 0.0
        %4273 = vmatprep.subr.mxu0 0.0
        %4274 = vmatpush1.xpose.msra.mxu0 0.0
        %4275 = vmatprep.subr.mxu0 0.0
        %4276 = vmatpush1.xpose.msra.mxu0 0.0
        %4277 = vmatprep.mubr.f32.mxu0 0.0
        %v4278 = vand.u32 %v4128, 4294901760
        %4279 = vmatmul.mubr.f32.gmra.mrb[0].mxu0 %v4278
        %v4280 = vpop.f32.mrb[0].mxu0
        %v4281 = vadd.f32 %v4205, %v4280
        %v4282 = vpop.f32.mrb[0].mxu0
        %4283 = vdwg.mxu0
        %4284 = vmatprep.subr.mxu0 0.0
        %v4285 = vand.u32 %v4130, 4294901760
        %v4286 = vsub.f32 %v4130, %v4285
        %4287 = vmatpush1.xpose.msra.mxu0 %v4286
        %4288 = vmatprep.subr.mxu0 0.0
        %4289 = vmatpush1.xpose.msra.mxu0 0.0
        %4290 = vmatprep.subr.mxu0 0.0
        %4291 = vmatpush1.xpose.msra.mxu0 0.0
        %4292 = vmatprep.subr.mxu0 0.0
        %4293 = vmatpush1.xpose.msra.mxu0 0.0
        %4294 = vmatprep.subr.mxu0 0.0
        %4295 = vmatpush1.xpose.msra.mxu0 0.0
        %4296 = vmatprep.subr.mxu0 0.0
        %4297 = vmatpush1.xpose.msra.mxu0 0.0
        %4298 = vmatprep.subr.mxu0 0.0
        %4299 = vmatpush1.xpose.msra.mxu0 0.0
        %4300 = vmatprep.subr.mxu0 0.0
        %4301 = vmatpush1.xpose.msra.mxu0 0.0
        %4302 = vmatprep.subr.mxu0 0.0
        %4303 = vmatpush1.xpose.msra.mxu0 0.0
        %4304 = vmatprep.subr.mxu0 0.0
        %4305 = vmatpush1.xpose.msra.mxu0 0.0
        %4306 = vmatprep.subr.mxu0 0.0
        %4307 = vmatpush1.xpose.msra.mxu0 0.0
        %4308 = vmatprep.subr.mxu0 0.0
        %4309 = vmatpush1.xpose.msra.mxu0 0.0
        %4310 = vmatprep.subr.mxu0 0.0
        %4311 = vmatpush1.xpose.msra.mxu0 0.0
        %4312 = vmatprep.subr.mxu0 0.0
        %4313 = vmatpush1.xpose.msra.mxu0 0.0
        %4314 = vmatprep.subr.mxu0 0.0
        %4315 = vmatpush1.xpose.msra.mxu0 0.0
        %4316 = vmatprep.subr.mxu0 0.0
        %4317 = vmatpush1.xpose.msra.mxu0 0.0
        %4318 = vmatprep.subr.mxu0 0.0
        %4319 = vmatpush1.xpose.msra.mxu0 0.0
        %4320 = vmatprep.subr.mxu0 0.0
        %4321 = vmatpush1.xpose.msra.mxu0 0.0
        %4322 = vmatprep.subr.mxu0 0.0
        %4323 = vmatpush1.xpose.msra.mxu0 0.0
        %4324 = vmatprep.subr.mxu0 0.0
        %4325 = vmatpush1.xpose.msra.mxu0 0.0
        %4326 = vmatprep.subr.mxu0 0.0
        %4327 = vmatpush1.xpose.msra.mxu0 0.0
        %4328 = vmatprep.subr.mxu0 0.0
        %4329 = vmatpush1.xpose.msra.mxu0 0.0
        %4330 = vmatprep.subr.mxu0 0.0
        %4331 = vmatpush1.xpose.msra.mxu0 0.0
        %4332 = vmatprep.subr.mxu0 0.0
        %4333 = vmatpush1.xpose.msra.mxu0 0.0
        %4334 = vmatprep.subr.mxu0 0.0
        %4335 = vmatpush1.xpose.msra.mxu0 0.0
        %4336 = vmatprep.subr.mxu0 0.0
        %4337 = vmatpush1.xpose.msra.mxu0 0.0
        %4338 = vmatprep.subr.mxu0 0.0
        %4339 = vmatpush1.xpose.msra.mxu0 0.0
        %4340 = vmatprep.subr.mxu0 0.0
        %4341 = vmatpush1.xpose.msra.mxu0 0.0
        %4342 = vmatprep.subr.mxu0 0.0
        %4343 = vmatpush1.xpose.msra.mxu0 0.0
        %4344 = vmatprep.subr.mxu0 0.0
        %4345 = vmatpush1.xpose.msra.mxu0 0.0
        %4346 = vmatprep.subr.mxu0 0.0
        %4347 = vmatpush1.xpose.msra.mxu0 0.0
        %4348 = vmatprep.subr.mxu0 0.0
        %4349 = vmatpush1.xpose.msra.mxu0 0.0
        %4350 = vmatprep.mubr.f32.mxu0 0.0
        %v4351 = vand.u32 %v4128, 4294901760
        %v4352 = vsub.f32 %v4128, %v4351
        %4353 = vmatmul.mubr.f32.gmra.mrb[0].mxu0 %v4352
        %v4354 = vpop.f32.mrb[0].mxu0
        %v4355 = vadd.f32 %v4281, %v4354
        %v4356 = vpop.f32.mrb[0].mxu0
        %4357 = vdwg.mxu0
        %4358 = vmatprep.subr.mxu0 0.0
        %v4359 = vand.u32 %v4130, 4294901760
        %4360 = vmatpush1.xpose.msra.mxu0 %v4359
        %4361 = vmatprep.subr.mxu0 0.0
        %4362 = vmatpush1.xpose.msra.mxu0 0.0
        %4363 = vmatprep.subr.mxu0 0.0
        %4364 = vmatpush1.xpose.msra.mxu0 0.0
        %4365 = vmatprep.subr.mxu0 0.0
        %4366 = vmatpush1.xpose.msra.mxu0 0.0
        %4367 = vmatprep.subr.mxu0 0.0
        %4368 = vmatpush1.xpose.msra.mxu0 0.0
        %4369 = vmatprep.subr.mxu0 0.0
        %4370 = vmatpush1.xpose.msra.mxu0 0.0
        %4371 = vmatprep.subr.mxu0 0.0
        %4372 = vmatpush1.xpose.msra.mxu0 0.0
        %4373 = vmatprep.subr.mxu0 0.0
        %4374 = vmatpush1.xpose.msra.mxu0 0.0
        %4375 = vmatprep.subr.mxu0 0.0
        %4376 = vmatpush1.xpose.msra.mxu0 0.0
        %4377 = vmatprep.subr.mxu0 0.0
        %4378 = vmatpush1.xpose.msra.mxu0 0.0
        %4379 = vmatprep.subr.mxu0 0.0
        %4380 = vmatpush1.xpose.msra.mxu0 0.0
        %4381 = vmatprep.subr.mxu0 0.0
        %4382 = vmatpush1.xpose.msra.mxu0 0.0
        %4383 = vmatprep.subr.mxu0 0.0
        %4384 = vmatpush1.xpose.msra.mxu0 0.0
        %4385 = vmatprep.subr.mxu0 0.0
        %4386 = vmatpush1.xpose.msra.mxu0 0.0
        %4387 = vmatprep.subr.mxu0 0.0
        %4388 = vmatpush1.xpose.msra.mxu0 0.0
        %4389 = vmatprep.subr.mxu0 0.0
        %4390 = vmatpush1.xpose.msra.mxu0 0.0
        %4391 = vmatprep.subr.mxu0 0.0
        %4392 = vmatpush1.xpose.msra.mxu0 0.0
        %4393 = vmatprep.subr.mxu0 0.0
        %4394 = vmatpush1.xpose.msra.mxu0 0.0
        %4395 = vmatprep.subr.mxu0 0.0
        %4396 = vmatpush1.xpose.msra.mxu0 0.0
        %4397 = vmatprep.subr.mxu0 0.0
        %4398 = vmatpush1.xpose.msra.mxu0 0.0
        %4399 = vmatprep.subr.mxu0 0.0
        %4400 = vmatpush1.xpose.msra.mxu0 0.0
        %4401 = vmatprep.subr.mxu0 0.0
        %4402 = vmatpush1.xpose.msra.mxu0 0.0
        %4403 = vmatprep.subr.mxu0 0.0
        %4404 = vmatpush1.xpose.msra.mxu0 0.0
        %4405 = vmatprep.subr.mxu0 0.0
        %4406 = vmatpush1.xpose.msra.mxu0 0.0
        %4407 = vmatprep.subr.mxu0 0.0
        %4408 = vmatpush1.xpose.msra.mxu0 0.0
        %4409 = vmatprep.subr.mxu0 0.0
        %4410 = vmatpush1.xpose.msra.mxu0 0.0
        %4411 = vmatprep.subr.mxu0 0.0
        %4412 = vmatpush1.xpose.msra.mxu0 0.0
        %4413 = vmatprep.subr.mxu0 0.0
        %4414 = vmatpush1.xpose.msra.mxu0 0.0
        %4415 = vmatprep.subr.mxu0 0.0
        %4416 = vmatpush1.xpose.msra.mxu0 0.0
        %4417 = vmatprep.subr.mxu0 0.0
        %4418 = vmatpush1.xpose.msra.mxu0 0.0
        %4419 = vmatprep.subr.mxu0 0.0
        %4420 = vmatpush1.xpose.msra.mxu0 0.0
        %4421 = vmatprep.subr.mxu0 0.0
        %4422 = vmatpush1.xpose.msra.mxu0 0.0
        %4423 = vmatprep.mubr.f32.mxu0 0.0
        %v4424 = vand.u32 %v4128, 4294901760
        %v4425 = vsub.f32 %v4128, %v4424
        %v4426 = vand.u32 %v4425, 4294901760
        %4427 = vmatmul.mubr.f32.gmra.mrb[0].mxu0 %v4426
        %v4428 = vpop.f32.mrb[0].mxu0
        %v4429 = vadd.f32 %v4355, %v4428
        %v4430 = vpop.f32.mrb[0].mxu0
        %4431 = vdwg.mxu0
        %4432 = vmatprep.subr.mxu0 0.0
        %v4433 = vand.u32 %v4130, 4294901760
        %v4434 = vsub.f32 %v4130, %v4433
        %v4435 = vand.u32 %v4434, 4294901760
        %4436 = vmatpush1.xpose.msra.mxu0 %v4435
        %4437 = vmatprep.subr.mxu0 0.0
        %4438 = vmatpush1.xpose.msra.mxu0 0.0
        %4439 = vmatprep.subr.mxu0 0.0
        %4440 = vmatpush1.xpose.msra.mxu0 0.0
        %4441 = vmatprep.subr.mxu0 0.0
        %4442 = vmatpush1.xpose.msra.mxu0 0.0
        %4443 = vmatprep.subr.mxu0 0.0
        %4444 = vmatpush1.xpose.msra.mxu0 0.0
        %4445 = vmatprep.subr.mxu0 0.0
        %4446 = vmatpush1.xpose.msra.mxu0 0.0
        %4447 = vmatprep.subr.mxu0 0.0
        %4448 = vmatpush1.xpose.msra.mxu0 0.0
        %4449 = vmatprep.subr.mxu0 0.0
        %4450 = vmatpush1.xpose.msra.mxu0 0.0
        %4451 = vmatprep.subr.mxu0 0.0
        %4452 = vmatpush1.xpose.msra.mxu0 0.0
        %4453 = vmatprep.subr.mxu0 0.0
        %4454 = vmatpush1.xpose.msra.mxu0 0.0
        %4455 = vmatprep.subr.mxu0 0.0
        %4456 = vmatpush1.xpose.msra.mxu0 0.0
        %4457 = vmatprep.subr.mxu0 0.0
        %4458 = vmatpush1.xpose.msra.mxu0 0.0
        %4459 = vmatprep.subr.mxu0 0.0
        %4460 = vmatpush1.xpose.msra.mxu0 0.0
        %4461 = vmatprep.subr.mxu0 0.0
        %4462 = vmatpush1.xpose.msra.mxu0 0.0
        %4463 = vmatprep.subr.mxu0 0.0
        %4464 = vmatpush1.xpose.msra.mxu0 0.0
        %4465 = vmatprep.subr.mxu0 0.0
        %4466 = vmatpush1.xpose.msra.mxu0 0.0
        %4467 = vmatprep.subr.mxu0 0.0
        %4468 = vmatpush1.xpose.msra.mxu0 0.0
        %4469 = vmatprep.subr.mxu0 0.0
        %4470 = vmatpush1.xpose.msra.mxu0 0.0
        %4471 = vmatprep.subr.mxu0 0.0
        %4472 = vmatpush1.xpose.msra.mxu0 0.0
        %4473 = vmatprep.subr.mxu0 0.0
        %4474 = vmatpush1.xpose.msra.mxu0 0.0
        %4475 = vmatprep.subr.mxu0 0.0
        %4476 = vmatpush1.xpose.msra.mxu0 0.0
        %4477 = vmatprep.subr.mxu0 0.0
        %4478 = vmatpush1.xpose.msra.mxu0 0.0
        %4479 = vmatprep.subr.mxu0 0.0
        %4480 = vmatpush1.xpose.msra.mxu0 0.0
        %4481 = vmatprep.subr.mxu0 0.0
        %4482 = vmatpush1.xpose.msra.mxu0 0.0
        %4483 = vmatprep.subr.mxu0 0.0
        %4484 = vmatpush1.xpose.msra.mxu0 0.0
        %4485 = vmatprep.subr.mxu0 0.0
        %4486 = vmatpush1.xpose.msra.mxu0 0.0
        %4487 = vmatprep.subr.mxu0 0.0
        %4488 = vmatpush1.xpose.msra.mxu0 0.0
        %4489 = vmatprep.subr.mxu0 0.0
        %4490 = vmatpush1.xpose.msra.mxu0 0.0
        %4491 = vmatprep.subr.mxu0 0.0
        %4492 = vmatpush1.xpose.msra.mxu0 0.0
        %4493 = vmatprep.subr.mxu0 0.0
        %4494 = vmatpush1.xpose.msra.mxu0 0.0
        %4495 = vmatprep.subr.mxu0 0.0
        %4496 = vmatpush1.xpose.msra.mxu0 0.0
        %4497 = vmatprep.subr.mxu0 0.0
        %4498 = vmatpush1.xpose.msra.mxu0 0.0
        %4499 = vmatprep.mubr.f32.mxu0 0.0
        %v4500 = vand.u32 %v4128, 4294901760
        %4501 = vmatmul.mubr.f32.gmra.mrb[0].mxu0 %v4500
        %v4502 = vpop.f32.mrb[0].mxu0
        %v4503 = vadd.f32 %v4429, %v4502
        %v4504 = vpop.f32.mrb[0].mxu0
        %4505 = vdwg.mxu0
        %4506 = vmatprep.subr.mxu0 0.0
        %v4507 = vand.u32 %v4130, 4294901760
        %4508 = vmatpush1.xpose.msra.mxu0 %v4507
        %4509 = vmatprep.subr.mxu0 0.0
        %4510 = vmatpush1.xpose.msra.mxu0 0.0
        %4511 = vmatprep.subr.mxu0 0.0
        %4512 = vmatpush1.xpose.msra.mxu0 0.0
        %4513 = vmatprep.subr.mxu0 0.0
        %4514 = vmatpush1.xpose.msra.mxu0 0.0
        %4515 = vmatprep.subr.mxu0 0.0
        %4516 = vmatpush1.xpose.msra.mxu0 0.0
        %4517 = vmatprep.subr.mxu0 0.0
        %4518 = vmatpush1.xpose.msra.mxu0 0.0
        %4519 = vmatprep.subr.mxu0 0.0
        %4520 = vmatpush1.xpose.msra.mxu0 0.0
        %4521 = vmatprep.subr.mxu0 0.0
        %4522 = vmatpush1.xpose.msra.mxu0 0.0
        %4523 = vmatprep.subr.mxu0 0.0
        %4524 = vmatpush1.xpose.msra.mxu0 0.0
        %4525 = vmatprep.subr.mxu0 0.0
        %4526 = vmatpush1.xpose.msra.mxu0 0.0
        %4527 = vmatprep.subr.mxu0 0.0
        %4528 = vmatpush1.xpose.msra.mxu0 0.0
        %4529 = vmatprep.subr.mxu0 0.0
        %4530 = vmatpush1.xpose.msra.mxu0 0.0
        %4531 = vmatprep.subr.mxu0 0.0
        %4532 = vmatpush1.xpose.msra.mxu0 0.0
        %4533 = vmatprep.subr.mxu0 0.0
        %4534 = vmatpush1.xpose.msra.mxu0 0.0
        %4535 = vmatprep.subr.mxu0 0.0
        %4536 = vmatpush1.xpose.msra.mxu0 0.0
        %4537 = vmatprep.subr.mxu0 0.0
        %4538 = vmatpush1.xpose.msra.mxu0 0.0
        %4539 = vmatprep.subr.mxu0 0.0
        %4540 = vmatpush1.xpose.msra.mxu0 0.0
        %4541 = vmatprep.subr.mxu0 0.0
        %4542 = vmatpush1.xpose.msra.mxu0 0.0
        %4543 = vmatprep.subr.mxu0 0.0
        %4544 = vmatpush1.xpose.msra.mxu0 0.0
        %4545 = vmatprep.subr.mxu0 0.0
        %4546 = vmatpush1.xpose.msra.mxu0 0.0
        %4547 = vmatprep.subr.mxu0 0.0
        %4548 = vmatpush1.xpose.msra.mxu0 0.0
        %4549 = vmatprep.subr.mxu0 0.0
        %4550 = vmatpush1.xpose.msra.mxu0 0.0
        %4551 = vmatprep.subr.mxu0 0.0
        %4552 = vmatpush1.xpose.msra.mxu0 0.0
        %4553 = vmatprep.subr.mxu0 0.0
        %4554 = vmatpush1.xpose.msra.mxu0 0.0
        %4555 = vmatprep.subr.mxu0 0.0
        %4556 = vmatpush1.xpose.msra.mxu0 0.0
        %4557 = vmatprep.subr.mxu0 0.0
        %4558 = vmatpush1.xpose.msra.mxu0 0.0
        %4559 = vmatprep.subr.mxu0 0.0
        %4560 = vmatpush1.xpose.msra.mxu0 0.0
        %4561 = vmatprep.subr.mxu0 0.0
        %4562 = vmatpush1.xpose.msra.mxu0 0.0
        %4563 = vmatprep.subr.mxu0 0.0
        %4564 = vmatpush1.xpose.msra.mxu0 0.0
        %4565 = vmatprep.subr.mxu0 0.0
        %4566 = vmatpush1.xpose.msra.mxu0 0.0
        %4567 = vmatprep.subr.mxu0 0.0
        %4568 = vmatpush1.xpose.msra.mxu0 0.0
        %4569 = vmatprep.subr.mxu0 0.0
        %4570 = vmatpush1.xpose.msra.mxu0 0.0
        %4571 = vmatprep.mubr.f32.mxu0 0.0
        %v4572 = vand.u32 %v4128, 4294901760
        %4573 = vmatmul.mubr.f32.gmra.mrb[0].mxu0 %v4572
        %v4574 = vpop.f32.mrb[0].mxu0
        %v4575 = vadd.f32 %v4503, %v4574
        %v4576 = vpop.f32.mrb[0].mxu0
        %4577 = vdwg.mxu0
        %vm4578 = vcmp.eq.f32.partialorder %v3225, 0.0
        %vm4579 = vcmp.eq.f32.partialorder %v3675, 0.0
        %vm4580 = vcmp.eq.f32.partialorder %v4125, 0.0
        %vm4581 = vcmp.eq.f32.partialorder %v4575, 0.0
        %v4582 = vsel %vm4578, -1e+20, %v3225
        %v4583 = vsel %vm4579, -1e+20, %v3675
        %v4584 = vsel %vm4580, -1e+20, %v4125
        %v4585 = vsel %vm4581, -1e+20, %v4575
        %v4586 = vsel %vm2777, %v4582, -inf
        %4587 = vmax.xlane.f32.xlu0 %v4586
        %v4588 = vpop.xlane.xlu0 %4587
        %v4589 = vsel %vm2777, %v4583, -inf
        %4590 = vmax.xlane.f32.xlu0 %v4589
        %v4591 = vpop.xlane.xlu0 %4590
        %v4592 = vsel %vm2777, %v4584, -inf
        %4593 = vmax.xlane.f32.xlu0 %v4592
        %v4594 = vpop.xlane.xlu0 %4593
        %v4595 = vsel %vm2777, %v4585, -inf
        %4596 = vmax.xlane.f32.xlu0 %v4595
        %v4597 = vpop.xlane.xlu0 %4596
        %v4598 = vsub.f32 %v4582, %v4588
        %v4599 = vsub.f32 %v4583, %v4591
        %v4600 = vsub.f32 %v4584, %v4594
        %v4601 = vsub.f32 %v4585, %v4597
        %v4602 = vmul.f32 %v4598, 1.442695
        %v4603 = vpow.pop %v4602
        %v4604 = vmul.f32 %v4599, 1.442695
        %v4605 = vpow.pop %v4604
        %v4606 = vmul.f32 %v4600, 1.442695
        %v4607 = vpow.pop %v4606
        %v4608 = vmul.f32 %v4601, 1.442695
        %v4609 = vpow.pop %v4608
        %v4610 = vsel %vm2777, %v4603, 0.0
        %4611 = vadd.xlane.f32.xlu0 %v4610
        %v4612 = vpop.xlane.xlu0 %4611
        %v4613 = vsel %vm2777, %v4605, 0.0
        %4614 = vadd.xlane.f32.xlu0 %v4613
        %v4615 = vpop.xlane.xlu0 %4614
        %v4616 = vsel %vm2777, %v4607, 0.0
        %4617 = vadd.xlane.f32.xlu0 %v4616
        %v4618 = vpop.xlane.xlu0 %4617
        %v4619 = vsel %vm2777, %v4609, 0.0
        %4620 = vadd.xlane.f32.xlu0 %v4619
        %v4621 = vpop.xlane.xlu0 %4620
        %v4622 = vrcp.pop %v4612
        %v4623 = vmul.f32 %v4603, %v4622
        %v4624 = vrcp.pop %v4615
        %v4625 = vmul.f32 %v4605, %v4624
        %v4626 = vrcp.pop %v4618
        %v4627 = vmul.f32 %v4607, %v4626
        %v4628 = vrcp.pop %v4621
        %v4629 = vmul.f32 %v4609, %v4628
        %vm4630 = vcmp.gt.f32.partialorder %v280, 0.0
        %v4631 = vsel %vm4630, 1, 0
        %4632 = vset.pattern.permute.xlu0 0
        %4633 = vperm.xlu0 %4632, %v4631
        %v4634 = vpop.permute.xlu0 %4633
        %vm4635 = vcmp.eq.s32.totalorder %v4634, 1
        %v4636 = vsel %vm4635, %v4623, %v3225
        %v4637 = vsel %vm4635, %v4625, %v3675
        %v4638 = vsel %vm4635, %v4627, %v4125
        %v4639 = vsel %vm4635, %v4629, %v4575
        %v4641 = vsel %vm2777, %v4636, 0
        %4643 = vmatprep.subr.mxu0 0.0
        %v4644 = vand.u32 %v2750, 4294901760
        %4645 = vmatpush1.msra.mxu0 %v4644
        %4646 = vmatprep.subr.mxu0 0.0
        %4647 = vmatpush1.msra.mxu0 0.0
        %4648 = vmatprep.subr.mxu0 0.0
        %4649 = vmatpush1.msra.mxu0 0.0
        %4650 = vmatprep.subr.mxu0 0.0
        %4651 = vmatpush1.msra.mxu0 0.0
        %4652 = vmatprep.subr.mxu0 0.0
        %4653 = vmatpush1.msra.mxu0 0.0
        %4654 = vmatprep.subr.mxu0 0.0
        %4655 = vmatpush1.msra.mxu0 0.0
        %4656 = vmatprep.subr.mxu0 0.0
        %4657 = vmatpush1.msra.mxu0 0.0
        %4658 = vmatprep.subr.mxu0 0.0
        %4659 = vmatpush1.msra.mxu0 0.0
        %4660 = vmatprep.subr.mxu0 0.0
        %4661 = vmatpush1.msra.mxu0 0.0
        %4662 = vmatprep.subr.mxu0 0.0
        %4663 = vmatpush1.msra.mxu0 0.0
        %4664 = vmatprep.subr.mxu0 0.0
        %4665 = vmatpush1.msra.mxu0 0.0
        %4666 = vmatprep.subr.mxu0 0.0
        %4667 = vmatpush1.msra.mxu0 0.0
        %4668 = vmatprep.subr.mxu0 0.0
        %4669 = vmatpush1.msra.mxu0 0.0
        %4670 = vmatprep.subr.mxu0 0.0
        %4671 = vmatpush1.msra.mxu0 0.0
        %4672 = vmatprep.subr.mxu0 0.0
        %4673 = vmatpush1.msra.mxu0 0.0
        %4674 = vmatprep.subr.mxu0 0.0
        %4675 = vmatpush1.msra.mxu0 0.0
        %4676 = vmatprep.subr.mxu0 0.0
        %4677 = vmatpush1.msra.mxu0 0.0
        %4678 = vmatprep.subr.mxu0 0.0
        %4679 = vmatpush1.msra.mxu0 0.0
        %4680 = vmatprep.subr.mxu0 0.0
        %4681 = vmatpush1.msra.mxu0 0.0
        %4682 = vmatprep.subr.mxu0 0.0
        %4683 = vmatpush1.msra.mxu0 0.0
        %4684 = vmatprep.subr.mxu0 0.0
        %4685 = vmatpush1.msra.mxu0 0.0
        %4686 = vmatprep.subr.mxu0 0.0
        %4687 = vmatpush1.msra.mxu0 0.0
        %4688 = vmatprep.subr.mxu0 0.0
        %4689 = vmatpush1.msra.mxu0 0.0
        %4690 = vmatprep.subr.mxu0 0.0
        %4691 = vmatpush1.msra.mxu0 0.0
        %4692 = vmatprep.subr.mxu0 0.0
        %4693 = vmatpush1.msra.mxu0 0.0
        %4694 = vmatprep.subr.mxu0 0.0
        %4695 = vmatpush1.msra.mxu0 0.0
        %4696 = vmatprep.subr.mxu0 0.0
        %4697 = vmatpush1.msra.mxu0 0.0
        %4698 = vmatprep.subr.mxu0 0.0
        %4699 = vmatpush1.msra.mxu0 0.0
        %4700 = vmatprep.subr.mxu0 0.0
        %4701 = vmatpush1.msra.mxu0 0.0
        %4702 = vmatprep.subr.mxu0 0.0
        %4703 = vmatpush1.msra.mxu0 0.0
        %4704 = vmatprep.subr.mxu0 0.0
        %4705 = vmatpush1.msra.mxu0 0.0
        %4706 = vmatprep.subr.mxu0 0.0
        %4707 = vmatpush1.msra.mxu0 0.0
        %4708 = vmatprep.mubr.f32.mxu0 0.0
        %v4709 = vand.u32 %v4641, 4294901760
        %v4710 = vsub.f32 %v4641, %v4709
        %v4711 = vand.u32 %v4710, 4294901760
        %v4712 = vsub.f32 %v4710, %v4711
        %v4713 = vand.u32 %v4712, 4294901760
        %4714 = vmatmul.mubr.f32.gmra.mrb[0].mxu0 %v4713
        %v4715 = vpop.f32.mrb[0].mxu0
        %v4716 = vadd.f32 0.0, %v4715
        %v4717 = vpop.f32.mrb[0].mxu0
        %4718 = vdwg.mxu0
        %4719 = vmatprep.subr.mxu0 0.0
        %v4720 = vand.u32 %v2750, 4294901760
        %v4721 = vsub.f32 %v2750, %v4720
        %v4722 = vand.u32 %v4721, 4294901760
        %v4723 = vsub.f32 %v4721, %v4722
        %v4724 = vand.u32 %v4723, 4294901760
        %4725 = vmatpush1.msra.mxu0 %v4724
        %4726 = vmatprep.subr.mxu0 0.0
        %4727 = vmatpush1.msra.mxu0 0.0
        %4728 = vmatprep.subr.mxu0 0.0
        %4729 = vmatpush1.msra.mxu0 0.0
        %4730 = vmatprep.subr.mxu0 0.0
        %4731 = vmatpush1.msra.mxu0 0.0
        %4732 = vmatprep.subr.mxu0 0.0
        %4733 = vmatpush1.msra.mxu0 0.0
        %4734 = vmatprep.subr.mxu0 0.0
        %4735 = vmatpush1.msra.mxu0 0.0
        %4736 = vmatprep.subr.mxu0 0.0
        %4737 = vmatpush1.msra.mxu0 0.0
        %4738 = vmatprep.subr.mxu0 0.0
        %4739 = vmatpush1.msra.mxu0 0.0
        %4740 = vmatprep.subr.mxu0 0.0
        %4741 = vmatpush1.msra.mxu0 0.0
        %4742 = vmatprep.subr.mxu0 0.0
        %4743 = vmatpush1.msra.mxu0 0.0
        %4744 = vmatprep.subr.mxu0 0.0
        %4745 = vmatpush1.msra.mxu0 0.0
        %4746 = vmatprep.subr.mxu0 0.0
        %4747 = vmatpush1.msra.mxu0 0.0
        %4748 = vmatprep.subr.mxu0 0.0
        %4749 = vmatpush1.msra.mxu0 0.0
        %4750 = vmatprep.subr.mxu0 0.0
        %4751 = vmatpush1.msra.mxu0 0.0
        %4752 = vmatprep.subr.mxu0 0.0
        %4753 = vmatpush1.msra.mxu0 0.0
        %4754 = vmatprep.subr.mxu0 0.0
        %4755 = vmatpush1.msra.mxu0 0.0
        %4756 = vmatprep.subr.mxu0 0.0
        %4757 = vmatpush1.msra.mxu0 0.0
        %4758 = vmatprep.subr.mxu0 0.0
        %4759 = vmatpush1.msra.mxu0 0.0
        %4760 = vmatprep.subr.mxu0 0.0
        %4761 = vmatpush1.msra.mxu0 0.0
        %4762 = vmatprep.subr.mxu0 0.0
        %4763 = vmatpush1.msra.mxu0 0.0
        %4764 = vmatprep.subr.mxu0 0.0
        %4765 = vmatpush1.msra.mxu0 0.0
        %4766 = vmatprep.subr.mxu0 0.0
        %4767 = vmatpush1.msra.mxu0 0.0
        %4768 = vmatprep.subr.mxu0 0.0
        %4769 = vmatpush1.msra.mxu0 0.0
        %4770 = vmatprep.subr.mxu0 0.0
        %4771 = vmatpush1.msra.mxu0 0.0
        %4772 = vmatprep.subr.mxu0 0.0
        %4773 = vmatpush1.msra.mxu0 0.0
        %4774 = vmatprep.subr.mxu0 0.0
        %4775 = vmatpush1.msra.mxu0 0.0
        %4776 = vmatprep.subr.mxu0 0.0
        %4777 = vmatpush1.msra.mxu0 0.0
        %4778 = vmatprep.subr.mxu0 0.0
        %4779 = vmatpush1.msra.mxu0 0.0
        %4780 = vmatprep.subr.mxu0 0.0
        %4781 = vmatpush1.msra.mxu0 0.0
        %4782 = vmatprep.subr.mxu0 0.0
        %4783 = vmatpush1.msra.mxu0 0.0
        %4784 = vmatprep.subr.mxu0 0.0
        %4785 = vmatpush1.msra.mxu0 0.0
        %4786 = vmatprep.subr.mxu0 0.0
        %4787 = vmatpush1.msra.mxu0 0.0
        %4788 = vmatprep.mubr.f32.mxu0 0.0
        %v4789 = vand.u32 %v4641, 4294901760
        %4790 = vmatmul.mubr.f32.gmra.mrb[0].mxu0 %v4789
        %v4791 = vpop.f32.mrb[0].mxu0
        %v4792 = vadd.f32 %v4716, %v4791
        %v4793 = vpop.f32.mrb[0].mxu0
        %4794 = vdwg.mxu0
        %4795 = vmatprep.subr.mxu0 0.0
        %v4796 = vand.u32 %v2750, 4294901760
        %v4797 = vsub.f32 %v2750, %v4796
        %4798 = vmatpush1.msra.mxu0 %v4797
        %4799 = vmatprep.subr.mxu0 0.0
        %4800 = vmatpush1.msra.mxu0 0.0
        %4801 = vmatprep.subr.mxu0 0.0
        %4802 = vmatpush1.msra.mxu0 0.0
        %4803 = vmatprep.subr.mxu0 0.0
        %4804 = vmatpush1.msra.mxu0 0.0
        %4805 = vmatprep.subr.mxu0 0.0
        %4806 = vmatpush1.msra.mxu0 0.0
        %4807 = vmatprep.subr.mxu0 0.0
        %4808 = vmatpush1.msra.mxu0 0.0
        %4809 = vmatprep.subr.mxu0 0.0
        %4810 = vmatpush1.msra.mxu0 0.0
        %4811 = vmatprep.subr.mxu0 0.0
        %4812 = vmatpush1.msra.mxu0 0.0
        %4813 = vmatprep.subr.mxu0 0.0
        %4814 = vmatpush1.msra.mxu0 0.0
        %4815 = vmatprep.subr.mxu0 0.0
        %4816 = vmatpush1.msra.mxu0 0.0
        %4817 = vmatprep.subr.mxu0 0.0
        %4818 = vmatpush1.msra.mxu0 0.0
        %4819 = vmatprep.subr.mxu0 0.0
        %4820 = vmatpush1.msra.mxu0 0.0
        %4821 = vmatprep.subr.mxu0 0.0
        %4822 = vmatpush1.msra.mxu0 0.0
        %4823 = vmatprep.subr.mxu0 0.0
        %4824 = vmatpush1.msra.mxu0 0.0
        %4825 = vmatprep.subr.mxu0 0.0
        %4826 = vmatpush1.msra.mxu0 0.0
        %4827 = vmatprep.subr.mxu0 0.0
        %4828 = vmatpush1.msra.mxu0 0.0
        %4829 = vmatprep.subr.mxu0 0.0
        %4830 = vmatpush1.msra.mxu0 0.0
        %4831 = vmatprep.subr.mxu0 0.0
        %4832 = vmatpush1.msra.mxu0 0.0
        %4833 = vmatprep.subr.mxu0 0.0
        %4834 = vmatpush1.msra.mxu0 0.0
        %4835 = vmatprep.subr.mxu0 0.0
        %4836 = vmatpush1.msra.mxu0 0.0
        %4837 = vmatprep.subr.mxu0 0.0
        %4838 = vmatpush1.msra.mxu0 0.0
        %4839 = vmatprep.subr.mxu0 0.0
        %4840 = vmatpush1.msra.mxu0 0.0
        %4841 = vmatprep.subr.mxu0 0.0
        %4842 = vmatpush1.msra.mxu0 0.0
        %4843 = vmatprep.subr.mxu0 0.0
        %4844 = vmatpush1.msra.mxu0 0.0
        %4845 = vmatprep.subr.mxu0 0.0
        %4846 = vmatpush1.msra.mxu0 0.0
        %4847 = vmatprep.subr.mxu0 0.0
        %4848 = vmatpush1.msra.mxu0 0.0
        %4849 = vmatprep.subr.mxu0 0.0
        %4850 = vmatpush1.msra.mxu0 0.0
        %4851 = vmatprep.subr.mxu0 0.0
        %4852 = vmatpush1.msra.mxu0 0.0
        %4853 = vmatprep.subr.mxu0 0.0
        %4854 = vmatpush1.msra.mxu0 0.0
        %4855 = vmatprep.subr.mxu0 0.0
        %4856 = vmatpush1.msra.mxu0 0.0
        %4857 = vmatprep.subr.mxu0 0.0
        %4858 = vmatpush1.msra.mxu0 0.0
        %4859 = vmatprep.subr.mxu0 0.0
        %4860 = vmatpush1.msra.mxu0 0.0
        %4861 = vmatprep.mubr.f32.mxu0 0.0
        %v4862 = vand.u32 %v4641, 4294901760
        %v4863 = vsub.f32 %v4641, %v4862
        %4864 = vmatmul.mubr.f32.gmra.mrb[0].mxu0 %v4863
        %v4865 = vpop.f32.mrb[0].mxu0
        %v4866 = vadd.f32 %v4792, %v4865
        %v4867 = vpop.f32.mrb[0].mxu0
        %4868 = vdwg.mxu0
        %4869 = vmatprep.subr.mxu0 0.0
        %v4870 = vand.u32 %v2750, 4294901760
        %4871 = vmatpush1.msra.mxu0 %v4870
        %4872 = vmatprep.subr.mxu0 0.0
        %4873 = vmatpush1.msra.mxu0 0.0
        %4874 = vmatprep.subr.mxu0 0.0
        %4875 = vmatpush1.msra.mxu0 0.0
        %4876 = vmatprep.subr.mxu0 0.0
        %4877 = vmatpush1.msra.mxu0 0.0
        %4878 = vmatprep.subr.mxu0 0.0
        %4879 = vmatpush1.msra.mxu0 0.0
        %4880 = vmatprep.subr.mxu0 0.0
        %4881 = vmatpush1.msra.mxu0 0.0
        %4882 = vmatprep.subr.mxu0 0.0
        %4883 = vmatpush1.msra.mxu0 0.0
        %4884 = vmatprep.subr.mxu0 0.0
        %4885 = vmatpush1.msra.mxu0 0.0
        %4886 = vmatprep.subr.mxu0 0.0
        %4887 = vmatpush1.msra.mxu0 0.0
        %4888 = vmatprep.subr.mxu0 0.0
        %4889 = vmatpush1.msra.mxu0 0.0
        %4890 = vmatprep.subr.mxu0 0.0
        %4891 = vmatpush1.msra.mxu0 0.0
        %4892 = vmatprep.subr.mxu0 0.0
        %4893 = vmatpush1.msra.mxu0 0.0
        %4894 = vmatprep.subr.mxu0 0.0
        %4895 = vmatpush1.msra.mxu0 0.0
        %4896 = vmatprep.subr.mxu0 0.0
        %4897 = vmatpush1.msra.mxu0 0.0
        %4898 = vmatprep.subr.mxu0 0.0
        %4899 = vmatpush1.msra.mxu0 0.0
        %4900 = vmatprep.subr.mxu0 0.0
        %4901 = vmatpush1.msra.mxu0 0.0
        %4902 = vmatprep.subr.mxu0 0.0
        %4903 = vmatpush1.msra.mxu0 0.0
        %4904 = vmatprep.subr.mxu0 0.0
        %4905 = vmatpush1.msra.mxu0 0.0
        %4906 = vmatprep.subr.mxu0 0.0
        %4907 = vmatpush1.msra.mxu0 0.0
        %4908 = vmatprep.subr.mxu0 0.0
        %4909 = vmatpush1.msra.mxu0 0.0
        %4910 = vmatprep.subr.mxu0 0.0
        %4911 = vmatpush1.msra.mxu0 0.0
        %4912 = vmatprep.subr.mxu0 0.0
        %4913 = vmatpush1.msra.mxu0 0.0
        %4914 = vmatprep.subr.mxu0 0.0
        %4915 = vmatpush1.msra.mxu0 0.0
        %4916 = vmatprep.subr.mxu0 0.0
        %4917 = vmatpush1.msra.mxu0 0.0
        %4918 = vmatprep.subr.mxu0 0.0
        %4919 = vmatpush1.msra.mxu0 0.0
        %4920 = vmatprep.subr.mxu0 0.0
        %4921 = vmatpush1.msra.mxu0 0.0
        %4922 = vmatprep.subr.mxu0 0.0
        %4923 = vmatpush1.msra.mxu0 0.0
        %4924 = vmatprep.subr.mxu0 0.0
        %4925 = vmatpush1.msra.mxu0 0.0
        %4926 = vmatprep.subr.mxu0 0.0
        %4927 = vmatpush1.msra.mxu0 0.0
        %4928 = vmatprep.subr.mxu0 0.0
        %4929 = vmatpush1.msra.mxu0 0.0
        %4930 = vmatprep.subr.mxu0 0.0
        %4931 = vmatpush1.msra.mxu0 0.0
        %4932 = vmatprep.subr.mxu0 0.0
        %4933 = vmatpush1.msra.mxu0 0.0
        %4934 = vmatprep.mubr.f32.mxu0 0.0
        %v4935 = vand.u32 %v4641, 4294901760
        %v4936 = vsub.f32 %v4641, %v4935
        %v4937 = vand.u32 %v4936, 4294901760
        %4938 = vmatmul.mubr.f32.gmra.mrb[0].mxu0 %v4937
        %v4939 = vpop.f32.mrb[0].mxu0
        %v4940 = vadd.f32 %v4866, %v4939
        %v4941 = vpop.f32.mrb[0].mxu0
        %4942 = vdwg.mxu0
        %4943 = vmatprep.subr.mxu0 0.0
        %v4944 = vand.u32 %v2750, 4294901760
        %v4945 = vsub.f32 %v2750, %v4944
        %v4946 = vand.u32 %v4945, 4294901760
        %4947 = vmatpush1.msra.mxu0 %v4946
        %4948 = vmatprep.subr.mxu0 0.0
        %4949 = vmatpush1.msra.mxu0 0.0
        %4950 = vmatprep.subr.mxu0 0.0
        %4951 = vmatpush1.msra.mxu0 0.0
        %4952 = vmatprep.subr.mxu0 0.0
        %4953 = vmatpush1.msra.mxu0 0.0
        %4954 = vmatprep.subr.mxu0 0.0
        %4955 = vmatpush1.msra.mxu0 0.0
        %4956 = vmatprep.subr.mxu0 0.0
        %4957 = vmatpush1.msra.mxu0 0.0
        %4958 = vmatprep.subr.mxu0 0.0
        %4959 = vmatpush1.msra.mxu0 0.0
        %4960 = vmatprep.subr.mxu0 0.0
        %4961 = vmatpush1.msra.mxu0 0.0
        %4962 = vmatprep.subr.mxu0 0.0
        %4963 = vmatpush1.msra.mxu0 0.0
        %4964 = vmatprep.subr.mxu0 0.0
        %4965 = vmatpush1.msra.mxu0 0.0
        %4966 = vmatprep.subr.mxu0 0.0
        %4967 = vmatpush1.msra.mxu0 0.0
        %4968 = vmatprep.subr.mxu0 0.0
        %4969 = vmatpush1.msra.mxu0 0.0
        %4970 = vmatprep.subr.mxu0 0.0
        %4971 = vmatpush1.msra.mxu0 0.0
        %4972 = vmatprep.subr.mxu0 0.0
        %4973 = vmatpush1.msra.mxu0 0.0
        %4974 = vmatprep.subr.mxu0 0.0
        %4975 = vmatpush1.msra.mxu0 0.0
        %4976 = vmatprep.subr.mxu0 0.0
        %4977 = vmatpush1.msra.mxu0 0.0
        %4978 = vmatprep.subr.mxu0 0.0
        %4979 = vmatpush1.msra.mxu0 0.0
        %4980 = vmatprep.subr.mxu0 0.0
        %4981 = vmatpush1.msra.mxu0 0.0
        %4982 = vmatprep.subr.mxu0 0.0
        %4983 = vmatpush1.msra.mxu0 0.0
        %4984 = vmatprep.subr.mxu0 0.0
        %4985 = vmatpush1.msra.mxu0 0.0
        %4986 = vmatprep.subr.mxu0 0.0
        %4987 = vmatpush1.msra.mxu0 0.0
        %4988 = vmatprep.subr.mxu0 0.0
        %4989 = vmatpush1.msra.mxu0 0.0
        %4990 = vmatprep.subr.mxu0 0.0
        %4991 = vmatpush1.msra.mxu0 0.0
        %4992 = vmatprep.subr.mxu0 0.0
        %4993 = vmatpush1.msra.mxu0 0.0
        %4994 = vmatprep.subr.mxu0 0.0
        %4995 = vmatpush1.msra.mxu0 0.0
        %4996 = vmatprep.subr.mxu0 0.0
        %4997 = vmatpush1.msra.mxu0 0.0
        %4998 = vmatprep.subr.mxu0 0.0
        %4999 = vmatpush1.msra.mxu0 0.0
        %5000 = vmatprep.subr.mxu0 0.0
        %5001 = vmatpush1.msra.mxu0 0.0
        %5002 = vmatprep.subr.mxu0 0.0
        %5003 = vmatpush1.msra.mxu0 0.0
        %5004 = vmatprep.subr.mxu0 0.0
        %5005 = vmatpush1.msra.mxu0 0.0
        %5006 = vmatprep.subr.mxu0 0.0
        %5007 = vmatpush1.msra.mxu0 0.0
        %5008 = vmatprep.subr.mxu0 0.0
        %5009 = vmatpush1.msra.mxu0 0.0
        %5010 = vmatprep.mubr.f32.mxu0 0.0
        %v5011 = vand.u32 %v4641, 4294901760
        %5012 = vmatmul.mubr.f32.gmra.mrb[0].mxu0 %v5011
        %v5013 = vpop.f32.mrb[0].mxu0
        %v5014 = vadd.f32 %v4940, %v5013
        %v5015 = vpop.f32.mrb[0].mxu0
        %5016 = vdwg.mxu0
        %5017 = vmatprep.subr.mxu0 0.0
        %v5018 = vand.u32 %v2750, 4294901760
        %5019 = vmatpush1.msra.mxu0 %v5018
        %5020 = vmatprep.subr.mxu0 0.0
        %5021 = vmatpush1.msra.mxu0 0.0
        %5022 = vmatprep.subr.mxu0 0.0
        %5023 = vmatpush1.msra.mxu0 0.0
        %5024 = vmatprep.subr.mxu0 0.0
        %5025 = vmatpush1.msra.mxu0 0.0
        %5026 = vmatprep.subr.mxu0 0.0
        %5027 = vmatpush1.msra.mxu0 0.0
        %5028 = vmatprep.subr.mxu0 0.0
        %5029 = vmatpush1.msra.mxu0 0.0
        %5030 = vmatprep.subr.mxu0 0.0
        %5031 = vmatpush1.msra.mxu0 0.0
        %5032 = vmatprep.subr.mxu0 0.0
        %5033 = vmatpush1.msra.mxu0 0.0
        %5034 = vmatprep.subr.mxu0 0.0
        %5035 = vmatpush1.msra.mxu0 0.0
        %5036 = vmatprep.subr.mxu0 0.0
        %5037 = vmatpush1.msra.mxu0 0.0
        %5038 = vmatprep.subr.mxu0 0.0
        %5039 = vmatpush1.msra.mxu0 0.0
        %5040 = vmatprep.subr.mxu0 0.0
        %5041 = vmatpush1.msra.mxu0 0.0
        %5042 = vmatprep.subr.mxu0 0.0
        %5043 = vmatpush1.msra.mxu0 0.0
        %5044 = vmatprep.subr.mxu0 0.0
        %5045 = vmatpush1.msra.mxu0 0.0
        %5046 = vmatprep.subr.mxu0 0.0
        %5047 = vmatpush1.msra.mxu0 0.0
        %5048 = vmatprep.subr.mxu0 0.0
        %5049 = vmatpush1.msra.mxu0 0.0
        %5050 = vmatprep.subr.mxu0 0.0
        %5051 = vmatpush1.msra.mxu0 0.0
        %5052 = vmatprep.subr.mxu0 0.0
        %5053 = vmatpush1.msra.mxu0 0.0
        %5054 = vmatprep.subr.mxu0 0.0
        %5055 = vmatpush1.msra.mxu0 0.0
        %5056 = vmatprep.subr.mxu0 0.0
        %5057 = vmatpush1.msra.mxu0 0.0
        %5058 = vmatprep.subr.mxu0 0.0
        %5059 = vmatpush1.msra.mxu0 0.0
        %5060 = vmatprep.subr.mxu0 0.0
        %5061 = vmatpush1.msra.mxu0 0.0
        %5062 = vmatprep.subr.mxu0 0.0
        %5063 = vmatpush1.msra.mxu0 0.0
        %5064 = vmatprep.subr.mxu0 0.0
        %5065 = vmatpush1.msra.mxu0 0.0
        %5066 = vmatprep.subr.mxu0 0.0
        %5067 = vmatpush1.msra.mxu0 0.0
        %5068 = vmatprep.subr.mxu0 0.0
        %5069 = vmatpush1.msra.mxu0 0.0
        %5070 = vmatprep.subr.mxu0 0.0
        %5071 = vmatpush1.msra.mxu0 0.0
        %5072 = vmatprep.subr.mxu0 0.0
        %5073 = vmatpush1.msra.mxu0 0.0
        %5074 = vmatprep.subr.mxu0 0.0
        %5075 = vmatpush1.msra.mxu0 0.0
        %5076 = vmatprep.subr.mxu0 0.0
        %5077 = vmatpush1.msra.mxu0 0.0
        %5078 = vmatprep.subr.mxu0 0.0
        %5079 = vmatpush1.msra.mxu0 0.0
        %5080 = vmatprep.subr.mxu0 0.0
        %5081 = vmatpush1.msra.mxu0 0.0
        %5082 = vmatprep.mubr.f32.mxu0 0.0
        %v5083 = vand.u32 %v4641, 4294901760
        %5084 = vmatmul.mubr.f32.gmra.mrb[0].mxu0 %v5083
        %v5085 = vpop.f32.mrb[0].mxu0
        %v5086 = vadd.f32 %v5014, %v5085
        %v5087 = vpop.f32.mrb[0].mxu0
        %5088 = vdwg.mxu0
        %v5090 = vsel %vm2777, %v4637, 0
        %5092 = vmatprep.subr.mxu0 0.0
        %v5093 = vand.u32 %v2769, 4294901760
        %5094 = vmatpush1.msra.mxu0 %v5093
        %5095 = vmatprep.subr.mxu0 0.0
        %5096 = vmatpush1.msra.mxu0 0.0
        %5097 = vmatprep.subr.mxu0 0.0
        %5098 = vmatpush1.msra.mxu0 0.0
        %5099 = vmatprep.subr.mxu0 0.0
        %5100 = vmatpush1.msra.mxu0 0.0
        %5101 = vmatprep.subr.mxu0 0.0
        %5102 = vmatpush1.msra.mxu0 0.0
        %5103 = vmatprep.subr.mxu0 0.0
        %5104 = vmatpush1.msra.mxu0 0.0
        %5105 = vmatprep.subr.mxu0 0.0
        %5106 = vmatpush1.msra.mxu0 0.0
        %5107 = vmatprep.subr.mxu0 0.0
        %5108 = vmatpush1.msra.mxu0 0.0
        %5109 = vmatprep.subr.mxu0 0.0
        %5110 = vmatpush1.msra.mxu0 0.0
        %5111 = vmatprep.subr.mxu0 0.0
        %5112 = vmatpush1.msra.mxu0 0.0
        %5113 = vmatprep.subr.mxu0 0.0
        %5114 = vmatpush1.msra.mxu0 0.0
        %5115 = vmatprep.subr.mxu0 0.0
        %5116 = vmatpush1.msra.mxu0 0.0
        %5117 = vmatprep.subr.mxu0 0.0
        %5118 = vmatpush1.msra.mxu0 0.0
        %5119 = vmatprep.subr.mxu0 0.0
        %5120 = vmatpush1.msra.mxu0 0.0
        %5121 = vmatprep.subr.mxu0 0.0
        %5122 = vmatpush1.msra.mxu0 0.0
        %5123 = vmatprep.subr.mxu0 0.0
        %5124 = vmatpush1.msra.mxu0 0.0
        %5125 = vmatprep.subr.mxu0 0.0
        %5126 = vmatpush1.msra.mxu0 0.0
        %5127 = vmatprep.subr.mxu0 0.0
        %5128 = vmatpush1.msra.mxu0 0.0
        %5129 = vmatprep.subr.mxu0 0.0
        %5130 = vmatpush1.msra.mxu0 0.0
        %5131 = vmatprep.subr.mxu0 0.0
        %5132 = vmatpush1.msra.mxu0 0.0
        %5133 = vmatprep.subr.mxu0 0.0
        %5134 = vmatpush1.msra.mxu0 0.0
        %5135 = vmatprep.subr.mxu0 0.0
        %5136 = vmatpush1.msra.mxu0 0.0
        %5137 = vmatprep.subr.mxu0 0.0
        %5138 = vmatpush1.msra.mxu0 0.0
        %5139 = vmatprep.subr.mxu0 0.0
        %5140 = vmatpush1.msra.mxu0 0.0
        %5141 = vmatprep.subr.mxu0 0.0
        %5142 = vmatpush1.msra.mxu0 0.0
        %5143 = vmatprep.subr.mxu0 0.0
        %5144 = vmatpush1.msra.mxu0 0.0
        %5145 = vmatprep.subr.mxu0 0.0
        %5146 = vmatpush1.msra.mxu0 0.0
        %5147 = vmatprep.subr.mxu0 0.0
        %5148 = vmatpush1.msra.mxu0 0.0
        %5149 = vmatprep.subr.mxu0 0.0
        %5150 = vmatpush1.msra.mxu0 0.0
        %5151 = vmatprep.subr.mxu0 0.0
        %5152 = vmatpush1.msra.mxu0 0.0
        %5153 = vmatprep.subr.mxu0 0.0
        %5154 = vmatpush1.msra.mxu0 0.0
        %5155 = vmatprep.subr.mxu0 0.0
        %5156 = vmatpush1.msra.mxu0 0.0
        %5157 = vmatprep.mubr.f32.mxu0 0.0
        %v5158 = vand.u32 %v5090, 4294901760
        %v5159 = vsub.f32 %v5090, %v5158
        %v5160 = vand.u32 %v5159, 4294901760
        %v5161 = vsub.f32 %v5159, %v5160
        %v5162 = vand.u32 %v5161, 4294901760
        %5163 = vmatmul.mubr.f32.gmra.mrb[0].mxu0 %v5162
        %v5164 = vpop.f32.mrb[0].mxu0
        %v5165 = vadd.f32 0.0, %v5164
        %v5166 = vpop.f32.mrb[0].mxu0
        %5167 = vdwg.mxu0
        %5168 = vmatprep.subr.mxu0 0.0
        %v5169 = vand.u32 %v2769, 4294901760
        %v5170 = vsub.f32 %v2769, %v5169
        %v5171 = vand.u32 %v5170, 4294901760
        %v5172 = vsub.f32 %v5170, %v5171
        %v5173 = vand.u32 %v5172, 4294901760
        %5174 = vmatpush1.msra.mxu0 %v5173
        %5175 = vmatprep.subr.mxu0 0.0
        %5176 = vmatpush1.msra.mxu0 0.0
        %5177 = vmatprep.subr.mxu0 0.0
        %5178 = vmatpush1.msra.mxu0 0.0
        %5179 = vmatprep.subr.mxu0 0.0
        %5180 = vmatpush1.msra.mxu0 0.0
        %5181 = vmatprep.subr.mxu0 0.0
        %5182 = vmatpush1.msra.mxu0 0.0
        %5183 = vmatprep.subr.mxu0 0.0
        %5184 = vmatpush1.msra.mxu0 0.0
        %5185 = vmatprep.subr.mxu0 0.0
        %5186 = vmatpush1.msra.mxu0 0.0
        %5187 = vmatprep.subr.mxu0 0.0
        %5188 = vmatpush1.msra.mxu0 0.0
        %5189 = vmatprep.subr.mxu0 0.0
        %5190 = vmatpush1.msra.mxu0 0.0
        %5191 = vmatprep.subr.mxu0 0.0
        %5192 = vmatpush1.msra.mxu0 0.0
        %5193 = vmatprep.subr.mxu0 0.0
        %5194 = vmatpush1.msra.mxu0 0.0
        %5195 = vmatprep.subr.mxu0 0.0
        %5196 = vmatpush1.msra.mxu0 0.0
        %5197 = vmatprep.subr.mxu0 0.0
        %5198 = vmatpush1.msra.mxu0 0.0
        %5199 = vmatprep.subr.mxu0 0.0
        %5200 = vmatpush1.msra.mxu0 0.0
        %5201 = vmatprep.subr.mxu0 0.0
        %5202 = vmatpush1.msra.mxu0 0.0
        %5203 = vmatprep.subr.mxu0 0.0
        %5204 = vmatpush1.msra.mxu0 0.0
        %5205 = vmatprep.subr.mxu0 0.0
        %5206 = vmatpush1.msra.mxu0 0.0
        %5207 = vmatprep.subr.mxu0 0.0
        %5208 = vmatpush1.msra.mxu0 0.0
        %5209 = vmatprep.subr.mxu0 0.0
        %5210 = vmatpush1.msra.mxu0 0.0
        %5211 = vmatprep.subr.mxu0 0.0
        %5212 = vmatpush1.msra.mxu0 0.0
        %5213 = vmatprep.subr.mxu0 0.0
        %5214 = vmatpush1.msra.mxu0 0.0
        %5215 = vmatprep.subr.mxu0 0.0
        %5216 = vmatpush1.msra.mxu0 0.0
        %5217 = vmatprep.subr.mxu0 0.0
        %5218 = vmatpush1.msra.mxu0 0.0
        %5219 = vmatprep.subr.mxu0 0.0
        %5220 = vmatpush1.msra.mxu0 0.0
        %5221 = vmatprep.subr.mxu0 0.0
        %5222 = vmatpush1.msra.mxu0 0.0
        %5223 = vmatprep.subr.mxu0 0.0
        %5224 = vmatpush1.msra.mxu0 0.0
        %5225 = vmatprep.subr.mxu0 0.0
        %5226 = vmatpush1.msra.mxu0 0.0
        %5227 = vmatprep.subr.mxu0 0.0
        %5228 = vmatpush1.msra.mxu0 0.0
        %5229 = vmatprep.subr.mxu0 0.0
        %5230 = vmatpush1.msra.mxu0 0.0
        %5231 = vmatprep.subr.mxu0 0.0
        %5232 = vmatpush1.msra.mxu0 0.0
        %5233 = vmatprep.subr.mxu0 0.0
        %5234 = vmatpush1.msra.mxu0 0.0
        %5235 = vmatprep.subr.mxu0 0.0
        %5236 = vmatpush1.msra.mxu0 0.0
        %5237 = vmatprep.mubr.f32.mxu0 0.0
        %v5238 = vand.u32 %v5090, 4294901760
        %5239 = vmatmul.mubr.f32.gmra.mrb[0].mxu0 %v5238
        %v5240 = vpop.f32.mrb[0].mxu0
        %v5241 = vadd.f32 %v5165, %v5240
        %v5242 = vpop.f32.mrb[0].mxu0
        %5243 = vdwg.mxu0
        %5244 = vmatprep.subr.mxu0 0.0
        %v5245 = vand.u32 %v2769, 4294901760
        %v5246 = vsub.f32 %v2769, %v5245
        %5247 = vmatpush1.msra.mxu0 %v5246
        %5248 = vmatprep.subr.mxu0 0.0
        %5249 = vmatpush1.msra.mxu0 0.0
        %5250 = vmatprep.subr.mxu0 0.0
        %5251 = vmatpush1.msra.mxu0 0.0
        %5252 = vmatprep.subr.mxu0 0.0
        %5253 = vmatpush1.msra.mxu0 0.0
        %5254 = vmatprep.subr.mxu0 0.0
        %5255 = vmatpush1.msra.mxu0 0.0
        %5256 = vmatprep.subr.mxu0 0.0
        %5257 = vmatpush1.msra.mxu0 0.0
        %5258 = vmatprep.subr.mxu0 0.0
        %5259 = vmatpush1.msra.mxu0 0.0
        %5260 = vmatprep.subr.mxu0 0.0
        %5261 = vmatpush1.msra.mxu0 0.0
        %5262 = vmatprep.subr.mxu0 0.0
        %5263 = vmatpush1.msra.mxu0 0.0
        %5264 = vmatprep.subr.mxu0 0.0
        %5265 = vmatpush1.msra.mxu0 0.0
        %5266 = vmatprep.subr.mxu0 0.0
        %5267 = vmatpush1.msra.mxu0 0.0
        %5268 = vmatprep.subr.mxu0 0.0
        %5269 = vmatpush1.msra.mxu0 0.0
        %5270 = vmatprep.subr.mxu0 0.0
        %5271 = vmatpush1.msra.mxu0 0.0
        %5272 = vmatprep.subr.mxu0 0.0
        %5273 = vmatpush1.msra.mxu0 0.0
        %5274 = vmatprep.subr.mxu0 0.0
        %5275 = vmatpush1.msra.mxu0 0.0
        %5276 = vmatprep.subr.mxu0 0.0
        %5277 = vmatpush1.msra.mxu0 0.0
        %5278 = vmatprep.subr.mxu0 0.0
        %5279 = vmatpush1.msra.mxu0 0.0
        %5280 = vmatprep.subr.mxu0 0.0
        %5281 = vmatpush1.msra.mxu0 0.0
        %5282 = vmatprep.subr.mxu0 0.0
        %5283 = vmatpush1.msra.mxu0 0.0
        %5284 = vmatprep.subr.mxu0 0.0
        %5285 = vmatpush1.msra.mxu0 0.0
        %5286 = vmatprep.subr.mxu0 0.0
        %5287 = vmatpush1.msra.mxu0 0.0
        %5288 = vmatprep.subr.mxu0 0.0
        %5289 = vmatpush1.msra.mxu0 0.0
        %5290 = vmatprep.subr.mxu0 0.0
        %5291 = vmatpush1.msra.mxu0 0.0
        %5292 = vmatprep.subr.mxu0 0.0
        %5293 = vmatpush1.msra.mxu0 0.0
        %5294 = vmatprep.subr.mxu0 0.0
        %5295 = vmatpush1.msra.mxu0 0.0
        %5296 = vmatprep.subr.mxu0 0.0
        %5297 = vmatpush1.msra.mxu0 0.0
        %5298 = vmatprep.subr.mxu0 0.0
        %5299 = vmatpush1.msra.mxu0 0.0
        %5300 = vmatprep.subr.mxu0 0.0
        %5301 = vmatpush1.msra.mxu0 0.0
        %5302 = vmatprep.subr.mxu0 0.0
        %5303 = vmatpush1.msra.mxu0 0.0
        %5304 = vmatprep.subr.mxu0 0.0
        %5305 = vmatpush1.msra.mxu0 0.0
        %5306 = vmatprep.subr.mxu0 0.0
        %5307 = vmatpush1.msra.mxu0 0.0
        %5308 = vmatprep.subr.mxu0 0.0
        %5309 = vmatpush1.msra.mxu0 0.0
        %5310 = vmatprep.mubr.f32.mxu0 0.0
        %v5311 = vand.u32 %v5090, 4294901760
        %v5312 = vsub.f32 %v5090, %v5311
        %5313 = vmatmul.mubr.f32.gmra.mrb[0].mxu0 %v5312
        %v5314 = vpop.f32.mrb[0].mxu0
        %v5315 = vadd.f32 %v5241, %v5314
        %v5316 = vpop.f32.mrb[0].mxu0
        %5317 = vdwg.mxu0
        %5318 = vmatprep.subr.mxu0 0.0
        %v5319 = vand.u32 %v2769, 4294901760
        %5320 = vmatpush1.msra.mxu0 %v5319
        %5321 = vmatprep.subr.mxu0 0.0
        %5322 = vmatpush1.msra.mxu0 0.0
        %5323 = vmatprep.subr.mxu0 0.0
        %5324 = vmatpush1.msra.mxu0 0.0
        %5325 = vmatprep.subr.mxu0 0.0
        %5326 = vmatpush1.msra.mxu0 0.0
        %5327 = vmatprep.subr.mxu0 0.0
        %5328 = vmatpush1.msra.mxu0 0.0
        %5329 = vmatprep.subr.mxu0 0.0
        %5330 = vmatpush1.msra.mxu0 0.0
        %5331 = vmatprep.subr.mxu0 0.0
        %5332 = vmatpush1.msra.mxu0 0.0
        %5333 = vmatprep.subr.mxu0 0.0
        %5334 = vmatpush1.msra.mxu0 0.0
        %5335 = vmatprep.subr.mxu0 0.0
        %5336 = vmatpush1.msra.mxu0 0.0
        %5337 = vmatprep.subr.mxu0 0.0
        %5338 = vmatpush1.msra.mxu0 0.0
        %5339 = vmatprep.subr.mxu0 0.0
        %5340 = vmatpush1.msra.mxu0 0.0
        %5341 = vmatprep.subr.mxu0 0.0
        %5342 = vmatpush1.msra.mxu0 0.0
        %5343 = vmatprep.subr.mxu0 0.0
        %5344 = vmatpush1.msra.mxu0 0.0
        %5345 = vmatprep.subr.mxu0 0.0
        %5346 = vmatpush1.msra.mxu0 0.0
        %5347 = vmatprep.subr.mxu0 0.0
        %5348 = vmatpush1.msra.mxu0 0.0
        %5349 = vmatprep.subr.mxu0 0.0
        %5350 = vmatpush1.msra.mxu0 0.0
        %5351 = vmatprep.subr.mxu0 0.0
        %5352 = vmatpush1.msra.mxu0 0.0
        %5353 = vmatprep.subr.mxu0 0.0
        %5354 = vmatpush1.msra.mxu0 0.0
        %5355 = vmatprep.subr.mxu0 0.0
        %5356 = vmatpush1.msra.mxu0 0.0
        %5357 = vmatprep.subr.mxu0 0.0
        %5358 = vmatpush1.msra.mxu0 0.0
        %5359 = vmatprep.subr.mxu0 0.0
        %5360 = vmatpush1.msra.mxu0 0.0
        %5361 = vmatprep.subr.mxu0 0.0
        %5362 = vmatpush1.msra.mxu0 0.0
        %5363 = vmatprep.subr.mxu0 0.0
        %5364 = vmatpush1.msra.mxu0 0.0
        %5365 = vmatprep.subr.mxu0 0.0
        %5366 = vmatpush1.msra.mxu0 0.0
        %5367 = vmatprep.subr.mxu0 0.0
        %5368 = vmatpush1.msra.mxu0 0.0
        %5369 = vmatprep.subr.mxu0 0.0
        %5370 = vmatpush1.msra.mxu0 0.0
        %5371 = vmatprep.subr.mxu0 0.0
        %5372 = vmatpush1.msra.mxu0 0.0
        %5373 = vmatprep.subr.mxu0 0.0
        %5374 = vmatpush1.msra.mxu0 0.0
        %5375 = vmatprep.subr.mxu0 0.0
        %5376 = vmatpush1.msra.mxu0 0.0
        %5377 = vmatprep.subr.mxu0 0.0
        %5378 = vmatpush1.msra.mxu0 0.0
        %5379 = vmatprep.subr.mxu0 0.0
        %5380 = vmatpush1.msra.mxu0 0.0
        %5381 = vmatprep.subr.mxu0 0.0
        %5382 = vmatpush1.msra.mxu0 0.0
        %5383 = vmatprep.mubr.f32.mxu0 0.0
        %v5384 = vand.u32 %v5090, 4294901760
        %v5385 = vsub.f32 %v5090, %v5384
        %v5386 = vand.u32 %v5385, 4294901760
        %5387 = vmatmul.mubr.f32.gmra.mrb[0].mxu0 %v5386
        %v5388 = vpop.f32.mrb[0].mxu0
        %v5389 = vadd.f32 %v5315, %v5388
        %v5390 = vpop.f32.mrb[0].mxu0
        %5391 = vdwg.mxu0
        %5392 = vmatprep.subr.mxu0 0.0
        %v5393 = vand.u32 %v2769, 4294901760
        %v5394 = vsub.f32 %v2769, %v5393
        %v5395 = vand.u32 %v5394, 4294901760
        %5396 = vmatpush1.msra.mxu0 %v5395
        %5397 = vmatprep.subr.mxu0 0.0
        %5398 = vmatpush1.msra.mxu0 0.0
        %5399 = vmatprep.subr.mxu0 0.0
        %5400 = vmatpush1.msra.mxu0 0.0
        %5401 = vmatprep.subr.mxu0 0.0
        %5402 = vmatpush1.msra.mxu0 0.0
        %5403 = vmatprep.subr.mxu0 0.0
        %5404 = vmatpush1.msra.mxu0 0.0
        %5405 = vmatprep.subr.mxu0 0.0
        %5406 = vmatpush1.msra.mxu0 0.0
        %5407 = vmatprep.subr.mxu0 0.0
        %5408 = vmatpush1.msra.mxu0 0.0
        %5409 = vmatprep.subr.mxu0 0.0
        %5410 = vmatpush1.msra.mxu0 0.0
        %5411 = vmatprep.subr.mxu0 0.0
        %5412 = vmatpush1.msra.mxu0 0.0
        %5413 = vmatprep.subr.mxu0 0.0
        %5414 = vmatpush1.msra.mxu0 0.0
        %5415 = vmatprep.subr.mxu0 0.0
        %5416 = vmatpush1.msra.mxu0 0.0
        %5417 = vmatprep.subr.mxu0 0.0
        %5418 = vmatpush1.msra.mxu0 0.0
        %5419 = vmatprep.subr.mxu0 0.0
        %5420 = vmatpush1.msra.mxu0 0.0
        %5421 = vmatprep.subr.mxu0 0.0
        %5422 = vmatpush1.msra.mxu0 0.0
        %5423 = vmatprep.subr.mxu0 0.0
        %5424 = vmatpush1.msra.mxu0 0.0
        %5425 = vmatprep.subr.mxu0 0.0
        %5426 = vmatpush1.msra.mxu0 0.0
        %5427 = vmatprep.subr.mxu0 0.0
        %5428 = vmatpush1.msra.mxu0 0.0
        %5429 = vmatprep.subr.mxu0 0.0
        %5430 = vmatpush1.msra.mxu0 0.0
        %5431 = vmatprep.subr.mxu0 0.0
        %5432 = vmatpush1.msra.mxu0 0.0
        %5433 = vmatprep.subr.mxu0 0.0
        %5434 = vmatpush1.msra.mxu0 0.0
        %5435 = vmatprep.subr.mxu0 0.0
        %5436 = vmatpush1.msra.mxu0 0.0
        %5437 = vmatprep.subr.mxu0 0.0
        %5438 = vmatpush1.msra.mxu0 0.0
        %5439 = vmatprep.subr.mxu0 0.0
        %5440 = vmatpush1.msra.mxu0 0.0
        %5441 = vmatprep.subr.mxu0 0.0
        %5442 = vmatpush1.msra.mxu0 0.0
        %5443 = vmatprep.subr.mxu0 0.0
        %5444 = vmatpush1.msra.mxu0 0.0
        %5445 = vmatprep.subr.mxu0 0.0
        %5446 = vmatpush1.msra.mxu0 0.0
        %5447 = vmatprep.subr.mxu0 0.0
        %5448 = vmatpush1.msra.mxu0 0.0
        %5449 = vmatprep.subr.mxu0 0.0
        %5450 = vmatpush1.msra.mxu0 0.0
        %5451 = vmatprep.subr.mxu0 0.0
        %5452 = vmatpush1.msra.mxu0 0.0
        %5453 = vmatprep.subr.mxu0 0.0
        %5454 = vmatpush1.msra.mxu0 0.0
        %5455 = vmatprep.subr.mxu0 0.0
        %5456 = vmatpush1.msra.mxu0 0.0
        %5457 = vmatprep.subr.mxu0 0.0
        %5458 = vmatpush1.msra.mxu0 0.0
        %5459 = vmatprep.mubr.f32.mxu0 0.0
        %v5460 = vand.u32 %v5090, 4294901760
        %5461 = vmatmul.mubr.f32.gmra.mrb[0].mxu0 %v5460
        %v5462 = vpop.f32.mrb[0].mxu0
        %v5463 = vadd.f32 %v5389, %v5462
        %v5464 = vpop.f32.mrb[0].mxu0
        %5465 = vdwg.mxu0
        %5466 = vmatprep.subr.mxu0 0.0
        %v5467 = vand.u32 %v2769, 4294901760
        %5468 = vmatpush1.msra.mxu0 %v5467
        %5469 = vmatprep.subr.mxu0 0.0
        %5470 = vmatpush1.msra.mxu0 0.0
        %5471 = vmatprep.subr.mxu0 0.0
        %5472 = vmatpush1.msra.mxu0 0.0
        %5473 = vmatprep.subr.mxu0 0.0
        %5474 = vmatpush1.msra.mxu0 0.0
        %5475 = vmatprep.subr.mxu0 0.0
        %5476 = vmatpush1.msra.mxu0 0.0
        %5477 = vmatprep.subr.mxu0 0.0
        %5478 = vmatpush1.msra.mxu0 0.0
        %5479 = vmatprep.subr.mxu0 0.0
        %5480 = vmatpush1.msra.mxu0 0.0
        %5481 = vmatprep.subr.mxu0 0.0
        %5482 = vmatpush1.msra.mxu0 0.0
        %5483 = vmatprep.subr.mxu0 0.0
        %5484 = vmatpush1.msra.mxu0 0.0
        %5485 = vmatprep.subr.mxu0 0.0
        %5486 = vmatpush1.msra.mxu0 0.0
        %5487 = vmatprep.subr.mxu0 0.0
        %5488 = vmatpush1.msra.mxu0 0.0
        %5489 = vmatprep.subr.mxu0 0.0
        %5490 = vmatpush1.msra.mxu0 0.0
        %5491 = vmatprep.subr.mxu0 0.0
        %5492 = vmatpush1.msra.mxu0 0.0
        %5493 = vmatprep.subr.mxu0 0.0
        %5494 = vmatpush1.msra.mxu0 0.0
        %5495 = vmatprep.subr.mxu0 0.0
        %5496 = vmatpush1.msra.mxu0 0.0
        %5497 = vmatprep.subr.mxu0 0.0
        %5498 = vmatpush1.msra.mxu0 0.0
        %5499 = vmatprep.subr.mxu0 0.0
        %5500 = vmatpush1.msra.mxu0 0.0
        %5501 = vmatprep.subr.mxu0 0.0
        %5502 = vmatpush1.msra.mxu0 0.0
        %5503 = vmatprep.subr.mxu0 0.0
        %5504 = vmatpush1.msra.mxu0 0.0
        %5505 = vmatprep.subr.mxu0 0.0
        %5506 = vmatpush1.msra.mxu0 0.0
        %5507 = vmatprep.subr.mxu0 0.0
        %5508 = vmatpush1.msra.mxu0 0.0
        %5509 = vmatprep.subr.mxu0 0.0
        %5510 = vmatpush1.msra.mxu0 0.0
        %5511 = vmatprep.subr.mxu0 0.0
        %5512 = vmatpush1.msra.mxu0 0.0
        %5513 = vmatprep.subr.mxu0 0.0
        %5514 = vmatpush1.msra.mxu0 0.0
        %5515 = vmatprep.subr.mxu0 0.0
        %5516 = vmatpush1.msra.mxu0 0.0
        %5517 = vmatprep.subr.mxu0 0.0
        %5518 = vmatpush1.msra.mxu0 0.0
        %5519 = vmatprep.subr.mxu0 0.0
        %5520 = vmatpush1.msra.mxu0 0.0
        %5521 = vmatprep.subr.mxu0 0.0
        %5522 = vmatpush1.msra.mxu0 0.0
        %5523 = vmatprep.subr.mxu0 0.0
        %5524 = vmatpush1.msra.mxu0 0.0
        %5525 = vmatprep.subr.mxu0 0.0
        %5526 = vmatpush1.msra.mxu0 0.0
        %5527 = vmatprep.subr.mxu0 0.0
        %5528 = vmatpush1.msra.mxu0 0.0
        %5529 = vmatprep.subr.mxu0 0.0
        %5530 = vmatpush1.msra.mxu0 0.0
        %5531 = vmatprep.mubr.f32.mxu0 0.0
        %v5532 = vand.u32 %v5090, 4294901760
        %5533 = vmatmul.mubr.f32.gmra.mrb[0].mxu0 %v5532
        %v5534 = vpop.f32.mrb[0].mxu0
        %v5535 = vadd.f32 %v5463, %v5534
        %v5536 = vpop.f32.mrb[0].mxu0
        %5537 = vdwg.mxu0
        %v5539 = vsel %vm2777, %v4638, 0
        %5541 = vmatprep.subr.mxu0 0.0
        %v5542 = vand.u32 %v2772, 4294901760
        %5543 = vmatpush1.msra.mxu0 %v5542
        %5544 = vmatprep.subr.mxu0 0.0
        %5545 = vmatpush1.msra.mxu0 0.0
        %5546 = vmatprep.subr.mxu0 0.0
        %5547 = vmatpush1.msra.mxu0 0.0
        %5548 = vmatprep.subr.mxu0 0.0
        %5549 = vmatpush1.msra.mxu0 0.0
        %5550 = vmatprep.subr.mxu0 0.0
        %5551 = vmatpush1.msra.mxu0 0.0
        %5552 = vmatprep.subr.mxu0 0.0
        %5553 = vmatpush1.msra.mxu0 0.0
        %5554 = vmatprep.subr.mxu0 0.0
        %5555 = vmatpush1.msra.mxu0 0.0
        %5556 = vmatprep.subr.mxu0 0.0
        %5557 = vmatpush1.msra.mxu0 0.0
        %5558 = vmatprep.subr.mxu0 0.0
        %5559 = vmatpush1.msra.mxu0 0.0
        %5560 = vmatprep.subr.mxu0 0.0
        %5561 = vmatpush1.msra.mxu0 0.0
        %5562 = vmatprep.subr.mxu0 0.0
        %5563 = vmatpush1.msra.mxu0 0.0
        %5564 = vmatprep.subr.mxu0 0.0
        %5565 = vmatpush1.msra.mxu0 0.0
        %5566 = vmatprep.subr.mxu0 0.0
        %5567 = vmatpush1.msra.mxu0 0.0
        %5568 = vmatprep.subr.mxu0 0.0
        %5569 = vmatpush1.msra.mxu0 0.0
        %5570 = vmatprep.subr.mxu0 0.0
        %5571 = vmatpush1.msra.mxu0 0.0
        %5572 = vmatprep.subr.mxu0 0.0
        %5573 = vmatpush1.msra.mxu0 0.0
        %5574 = vmatprep.subr.mxu0 0.0
        %5575 = vmatpush1.msra.mxu0 0.0
        %5576 = vmatprep.subr.mxu0 0.0
        %5577 = vmatpush1.msra.mxu0 0.0
        %5578 = vmatprep.subr.mxu0 0.0
        %5579 = vmatpush1.msra.mxu0 0.0
        %5580 = vmatprep.subr.mxu0 0.0
        %5581 = vmatpush1.msra.mxu0 0.0
        %5582 = vmatprep.subr.mxu0 0.0
        %5583 = vmatpush1.msra.mxu0 0.0
        %5584 = vmatprep.subr.mxu0 0.0
        %5585 = vmatpush1.msra.mxu0 0.0
        %5586 = vmatprep.subr.mxu0 0.0
        %5587 = vmatpush1.msra.mxu0 0.0
        %5588 = vmatprep.subr.mxu0 0.0
        %5589 = vmatpush1.msra.mxu0 0.0
        %5590 = vmatprep.subr.mxu0 0.0
        %5591 = vmatpush1.msra.mxu0 0.0
        %5592 = vmatprep.subr.mxu0 0.0
        %5593 = vmatpush1.msra.mxu0 0.0
        %5594 = vmatprep.subr.mxu0 0.0
        %5595 = vmatpush1.msra.mxu0 0.0
        %5596 = vmatprep.subr.mxu0 0.0
        %5597 = vmatpush1.msra.mxu0 0.0
        %5598 = vmatprep.subr.mxu0 0.0
        %5599 = vmatpush1.msra.mxu0 0.0
        %5600 = vmatprep.subr.mxu0 0.0
        %5601 = vmatpush1.msra.mxu0 0.0
        %5602 = vmatprep.subr.mxu0 0.0
        %5603 = vmatpush1.msra.mxu0 0.0
        %5604 = vmatprep.subr.mxu0 0.0
        %5605 = vmatpush1.msra.mxu0 0.0
        %5606 = vmatprep.mubr.f32.mxu0 0.0
        %v5607 = vand.u32 %v5539, 4294901760
        %v5608 = vsub.f32 %v5539, %v5607
        %v5609 = vand.u32 %v5608, 4294901760
        %v5610 = vsub.f32 %v5608, %v5609
        %v5611 = vand.u32 %v5610, 4294901760
        %5612 = vmatmul.mubr.f32.gmra.mrb[0].mxu0 %v5611
        %v5613 = vpop.f32.mrb[0].mxu0
        %v5614 = vadd.f32 0.0, %v5613
        %v5615 = vpop.f32.mrb[0].mxu0
        %5616 = vdwg.mxu0
        %5617 = vmatprep.subr.mxu0 0.0
        %v5618 = vand.u32 %v2772, 4294901760
        %v5619 = vsub.f32 %v2772, %v5618
        %v5620 = vand.u32 %v5619, 4294901760
        %v5621 = vsub.f32 %v5619, %v5620
        %v5622 = vand.u32 %v5621, 4294901760
        %5623 = vmatpush1.msra.mxu0 %v5622
        %5624 = vmatprep.subr.mxu0 0.0
        %5625 = vmatpush1.msra.mxu0 0.0
        %5626 = vmatprep.subr.mxu0 0.0
        %5627 = vmatpush1.msra.mxu0 0.0
        %5628 = vmatprep.subr.mxu0 0.0
        %5629 = vmatpush1.msra.mxu0 0.0
        %5630 = vmatprep.subr.mxu0 0.0
        %5631 = vmatpush1.msra.mxu0 0.0
        %5632 = vmatprep.subr.mxu0 0.0
        %5633 = vmatpush1.msra.mxu0 0.0
        %5634 = vmatprep.subr.mxu0 0.0
        %5635 = vmatpush1.msra.mxu0 0.0
        %5636 = vmatprep.subr.mxu0 0.0
        %5637 = vmatpush1.msra.mxu0 0.0
        %5638 = vmatprep.subr.mxu0 0.0
        %5639 = vmatpush1.msra.mxu0 0.0
        %5640 = vmatprep.subr.mxu0 0.0
        %5641 = vmatpush1.msra.mxu0 0.0
        %5642 = vmatprep.subr.mxu0 0.0
        %5643 = vmatpush1.msra.mxu0 0.0
        %5644 = vmatprep.subr.mxu0 0.0
        %5645 = vmatpush1.msra.mxu0 0.0
        %5646 = vmatprep.subr.mxu0 0.0
        %5647 = vmatpush1.msra.mxu0 0.0
        %5648 = vmatprep.subr.mxu0 0.0
        %5649 = vmatpush1.msra.mxu0 0.0
        %5650 = vmatprep.subr.mxu0 0.0
        %5651 = vmatpush1.msra.mxu0 0.0
        %5652 = vmatprep.subr.mxu0 0.0
        %5653 = vmatpush1.msra.mxu0 0.0
        %5654 = vmatprep.subr.mxu0 0.0
        %5655 = vmatpush1.msra.mxu0 0.0
        %5656 = vmatprep.subr.mxu0 0.0
        %5657 = vmatpush1.msra.mxu0 0.0
        %5658 = vmatprep.subr.mxu0 0.0
        %5659 = vmatpush1.msra.mxu0 0.0
        %5660 = vmatprep.subr.mxu0 0.0
        %5661 = vmatpush1.msra.mxu0 0.0
        %5662 = vmatprep.subr.mxu0 0.0
        %5663 = vmatpush1.msra.mxu0 0.0
        %5664 = vmatprep.subr.mxu0 0.0
        %5665 = vmatpush1.msra.mxu0 0.0
        %5666 = vmatprep.subr.mxu0 0.0
        %5667 = vmatpush1.msra.mxu0 0.0
        %5668 = vmatprep.subr.mxu0 0.0
        %5669 = vmatpush1.msra.mxu0 0.0
        %5670 = vmatprep.subr.mxu0 0.0
        %5671 = vmatpush1.msra.mxu0 0.0
        %5672 = vmatprep.subr.mxu0 0.0
        %5673 = vmatpush1.msra.mxu0 0.0
        %5674 = vmatprep.subr.mxu0 0.0
        %5675 = vmatpush1.msra.mxu0 0.0
        %5676 = vmatprep.subr.mxu0 0.0
        %5677 = vmatpush1.msra.mxu0 0.0
        %5678 = vmatprep.subr.mxu0 0.0
        %5679 = vmatpush1.msra.mxu0 0.0
        %5680 = vmatprep.subr.mxu0 0.0
        %5681 = vmatpush1.msra.mxu0 0.0
        %5682 = vmatprep.subr.mxu0 0.0
        %5683 = vmatpush1.msra.mxu0 0.0
        %5684 = vmatprep.subr.mxu0 0.0
        %5685 = vmatpush1.msra.mxu0 0.0
        %5686 = vmatprep.mubr.f32.mxu0 0.0
        %v5687 = vand.u32 %v5539, 4294901760
        %5688 = vmatmul.mubr.f32.gmra.mrb[0].mxu0 %v5687
        %v5689 = vpop.f32.mrb[0].mxu0
        %v5690 = vadd.f32 %v5614, %v5689
        %v5691 = vpop.f32.mrb[0].mxu0
        %5692 = vdwg.mxu0
        %5693 = vmatprep.subr.mxu0 0.0
        %v5694 = vand.u32 %v2772, 4294901760
        %v5695 = vsub.f32 %v2772, %v5694
        %5696 = vmatpush1.msra.mxu0 %v5695
        %5697 = vmatprep.subr.mxu0 0.0
        %5698 = vmatpush1.msra.mxu0 0.0
        %5699 = vmatprep.subr.mxu0 0.0
        %5700 = vmatpush1.msra.mxu0 0.0
        %5701 = vmatprep.subr.mxu0 0.0
        %5702 = vmatpush1.msra.mxu0 0.0
        %5703 = vmatprep.subr.mxu0 0.0
        %5704 = vmatpush1.msra.mxu0 0.0
        %5705 = vmatprep.subr.mxu0 0.0
        %5706 = vmatpush1.msra.mxu0 0.0
        %5707 = vmatprep.subr.mxu0 0.0
        %5708 = vmatpush1.msra.mxu0 0.0
        %5709 = vmatprep.subr.mxu0 0.0
        %5710 = vmatpush1.msra.mxu0 0.0
        %5711 = vmatprep.subr.mxu0 0.0
        %5712 = vmatpush1.msra.mxu0 0.0
        %5713 = vmatprep.subr.mxu0 0.0
        %5714 = vmatpush1.msra.mxu0 0.0
        %5715 = vmatprep.subr.mxu0 0.0
        %5716 = vmatpush1.msra.mxu0 0.0
        %5717 = vmatprep.subr.mxu0 0.0
        %5718 = vmatpush1.msra.mxu0 0.0
        %5719 = vmatprep.subr.mxu0 0.0
        %5720 = vmatpush1.msra.mxu0 0.0
        %5721 = vmatprep.subr.mxu0 0.0
        %5722 = vmatpush1.msra.mxu0 0.0
        %5723 = vmatprep.subr.mxu0 0.0
        %5724 = vmatpush1.msra.mxu0 0.0
        %5725 = vmatprep.subr.mxu0 0.0
        %5726 = vmatpush1.msra.mxu0 0.0
        %5727 = vmatprep.subr.mxu0 0.0
        %5728 = vmatpush1.msra.mxu0 0.0
        %5729 = vmatprep.subr.mxu0 0.0
        %5730 = vmatpush1.msra.mxu0 0.0
        %5731 = vmatprep.subr.mxu0 0.0
        %5732 = vmatpush1.msra.mxu0 0.0
        %5733 = vmatprep.subr.mxu0 0.0
        %5734 = vmatpush1.msra.mxu0 0.0
        %5735 = vmatprep.subr.mxu0 0.0
        %5736 = vmatpush1.msra.mxu0 0.0
        %5737 = vmatprep.subr.mxu0 0.0
        %5738 = vmatpush1.msra.mxu0 0.0
        %5739 = vmatprep.subr.mxu0 0.0
        %5740 = vmatpush1.msra.mxu0 0.0
        %5741 = vmatprep.subr.mxu0 0.0
        %5742 = vmatpush1.msra.mxu0 0.0
        %5743 = vmatprep.subr.mxu0 0.0
        %5744 = vmatpush1.msra.mxu0 0.0
        %5745 = vmatprep.subr.mxu0 0.0
        %5746 = vmatpush1.msra.mxu0 0.0
        %5747 = vmatprep.subr.mxu0 0.0
        %5748 = vmatpush1.msra.mxu0 0.0
        %5749 = vmatprep.subr.mxu0 0.0
        %5750 = vmatpush1.msra.mxu0 0.0
        %5751 = vmatprep.subr.mxu0 0.0
        %5752 = vmatpush1.msra.mxu0 0.0
        %5753 = vmatprep.subr.mxu0 0.0
        %5754 = vmatpush1.msra.mxu0 0.0
        %5755 = vmatprep.subr.mxu0 0.0
        %5756 = vmatpush1.msra.mxu0 0.0
        %5757 = vmatprep.subr.mxu0 0.0
        %5758 = vmatpush1.msra.mxu0 0.0
        %5759 = vmatprep.mubr.f32.mxu0 0.0
        %v5760 = vand.u32 %v5539, 4294901760
        %v5761 = vsub.f32 %v5539, %v5760
        %5762 = vmatmul.mubr.f32.gmra.mrb[0].mxu0 %v5761
        %v5763 = vpop.f32.mrb[0].mxu0
        %v5764 = vadd.f32 %v5690, %v5763
        %v5765 = vpop.f32.mrb[0].mxu0
        %5766 = vdwg.mxu0
        %5767 = vmatprep.subr.mxu0 0.0
        %v5768 = vand.u32 %v2772, 4294901760
        %5769 = vmatpush1.msra.mxu0 %v5768
        %5770 = vmatprep.subr.mxu0 0.0
        %5771 = vmatpush1.msra.mxu0 0.0
        %5772 = vmatprep.subr.mxu0 0.0
        %5773 = vmatpush1.msra.mxu0 0.0
        %5774 = vmatprep.subr.mxu0 0.0
        %5775 = vmatpush1.msra.mxu0 0.0
        %5776 = vmatprep.subr.mxu0 0.0
        %5777 = vmatpush1.msra.mxu0 0.0
        %5778 = vmatprep.subr.mxu0 0.0
        %5779 = vmatpush1.msra.mxu0 0.0
        %5780 = vmatprep.subr.mxu0 0.0
        %5781 = vmatpush1.msra.mxu0 0.0
        %5782 = vmatprep.subr.mxu0 0.0
        %5783 = vmatpush1.msra.mxu0 0.0
        %5784 = vmatprep.subr.mxu0 0.0
        %5785 = vmatpush1.msra.mxu0 0.0
        %5786 = vmatprep.subr.mxu0 0.0
        %5787 = vmatpush1.msra.mxu0 0.0
        %5788 = vmatprep.subr.mxu0 0.0
        %5789 = vmatpush1.msra.mxu0 0.0
        %5790 = vmatprep.subr.mxu0 0.0
        %5791 = vmatpush1.msra.mxu0 0.0
        %5792 = vmatprep.subr.mxu0 0.0
        %5793 = vmatpush1.msra.mxu0 0.0
        %5794 = vmatprep.subr.mxu0 0.0
        %5795 = vmatpush1.msra.mxu0 0.0
        %5796 = vmatprep.subr.mxu0 0.0
        %5797 = vmatpush1.msra.mxu0 0.0
        %5798 = vmatprep.subr.mxu0 0.0
        %5799 = vmatpush1.msra.mxu0 0.0
        %5800 = vmatprep.subr.mxu0 0.0
        %5801 = vmatpush1.msra.mxu0 0.0
        %5802 = vmatprep.subr.mxu0 0.0
        %5803 = vmatpush1.msra.mxu0 0.0
        %5804 = vmatprep.subr.mxu0 0.0
        %5805 = vmatpush1.msra.mxu0 0.0
        %5806 = vmatprep.subr.mxu0 0.0
        %5807 = vmatpush1.msra.mxu0 0.0
        %5808 = vmatprep.subr.mxu0 0.0
        %5809 = vmatpush1.msra.mxu0 0.0
        %5810 = vmatprep.subr.mxu0 0.0
        %5811 = vmatpush1.msra.mxu0 0.0
        %5812 = vmatprep.subr.mxu0 0.0
        %5813 = vmatpush1.msra.mxu0 0.0
        %5814 = vmatprep.subr.mxu0 0.0
        %5815 = vmatpush1.msra.mxu0 0.0
        %5816 = vmatprep.subr.mxu0 0.0
        %5817 = vmatpush1.msra.mxu0 0.0
        %5818 = vmatprep.subr.mxu0 0.0
        %5819 = vmatpush1.msra.mxu0 0.0
        %5820 = vmatprep.subr.mxu0 0.0
        %5821 = vmatpush1.msra.mxu0 0.0
        %5822 = vmatprep.subr.mxu0 0.0
        %5823 = vmatpush1.msra.mxu0 0.0
        %5824 = vmatprep.subr.mxu0 0.0
        %5825 = vmatpush1.msra.mxu0 0.0
        %5826 = vmatprep.subr.mxu0 0.0
        %5827 = vmatpush1.msra.mxu0 0.0
        %5828 = vmatprep.subr.mxu0 0.0
        %5829 = vmatpush1.msra.mxu0 0.0
        %5830 = vmatprep.subr.mxu0 0.0
        %5831 = vmatpush1.msra.mxu0 0.0
        %5832 = vmatprep.mubr.f32.mxu0 0.0
        %v5833 = vand.u32 %v5539, 4294901760
        %v5834 = vsub.f32 %v5539, %v5833
        %v5835 = vand.u32 %v5834, 4294901760
        %5836 = vmatmul.mubr.f32.gmra.mrb[0].mxu0 %v5835
        %v5837 = vpop.f32.mrb[0].mxu0
        %v5838 = vadd.f32 %v5764, %v5837
        %v5839 = vpop.f32.mrb[0].mxu0
        %5840 = vdwg.mxu0
        %5841 = vmatprep.subr.mxu0 0.0
        %v5842 = vand.u32 %v2772, 4294901760
        %v5843 = vsub.f32 %v2772, %v5842
        %v5844 = vand.u32 %v5843, 4294901760
        %5845 = vmatpush1.msra.mxu0 %v5844
        %5846 = vmatprep.subr.mxu0 0.0
        %5847 = vmatpush1.msra.mxu0 0.0
        %5848 = vmatprep.subr.mxu0 0.0
        %5849 = vmatpush1.msra.mxu0 0.0
        %5850 = vmatprep.subr.mxu0 0.0
        %5851 = vmatpush1.msra.mxu0 0.0
        %5852 = vmatprep.subr.mxu0 0.0
        %5853 = vmatpush1.msra.mxu0 0.0
        %5854 = vmatprep.subr.mxu0 0.0
        %5855 = vmatpush1.msra.mxu0 0.0
        %5856 = vmatprep.subr.mxu0 0.0
        %5857 = vmatpush1.msra.mxu0 0.0
        %5858 = vmatprep.subr.mxu0 0.0
        %5859 = vmatpush1.msra.mxu0 0.0
        %5860 = vmatprep.subr.mxu0 0.0
        %5861 = vmatpush1.msra.mxu0 0.0
        %5862 = vmatprep.subr.mxu0 0.0
        %5863 = vmatpush1.msra.mxu0 0.0
        %5864 = vmatprep.subr.mxu0 0.0
        %5865 = vmatpush1.msra.mxu0 0.0
        %5866 = vmatprep.subr.mxu0 0.0
        %5867 = vmatpush1.msra.mxu0 0.0
        %5868 = vmatprep.subr.mxu0 0.0
        %5869 = vmatpush1.msra.mxu0 0.0
        %5870 = vmatprep.subr.mxu0 0.0
        %5871 = vmatpush1.msra.mxu0 0.0
        %5872 = vmatprep.subr.mxu0 0.0
        %5873 = vmatpush1.msra.mxu0 0.0
        %5874 = vmatprep.subr.mxu0 0.0
        %5875 = vmatpush1.msra.mxu0 0.0
        %5876 = vmatprep.subr.mxu0 0.0
        %5877 = vmatpush1.msra.mxu0 0.0
        %5878 = vmatprep.subr.mxu0 0.0
        %5879 = vmatpush1.msra.mxu0 0.0
        %5880 = vmatprep.subr.mxu0 0.0
        %5881 = vmatpush1.msra.mxu0 0.0
        %5882 = vmatprep.subr.mxu0 0.0
        %5883 = vmatpush1.msra.mxu0 0.0
        %5884 = vmatprep.subr.mxu0 0.0
        %5885 = vmatpush1.msra.mxu0 0.0
        %5886 = vmatprep.subr.mxu0 0.0
        %5887 = vmatpush1.msra.mxu0 0.0
        %5888 = vmatprep.subr.mxu0 0.0
        %5889 = vmatpush1.msra.mxu0 0.0
        %5890 = vmatprep.subr.mxu0 0.0
        %5891 = vmatpush1.msra.mxu0 0.0
        %5892 = vmatprep.subr.mxu0 0.0
        %5893 = vmatpush1.msra.mxu0 0.0
        %5894 = vmatprep.subr.mxu0 0.0
        %5895 = vmatpush1.msra.mxu0 0.0
        %5896 = vmatprep.subr.mxu0 0.0
        %5897 = vmatpush1.msra.mxu0 0.0
        %5898 = vmatprep.subr.mxu0 0.0
        %5899 = vmatpush1.msra.mxu0 0.0
        %5900 = vmatprep.subr.mxu0 0.0
        %5901 = vmatpush1.msra.mxu0 0.0
        %5902 = vmatprep.subr.mxu0 0.0
        %5903 = vmatpush1.msra.mxu0 0.0
        %5904 = vmatprep.subr.mxu0 0.0
        %5905 = vmatpush1.msra.mxu0 0.0
        %5906 = vmatprep.subr.mxu0 0.0
        %5907 = vmatpush1.msra.mxu0 0.0
        %5908 = vmatprep.mubr.f32.mxu0 0.0
        %v5909 = vand.u32 %v5539, 4294901760
        %5910 = vmatmul.mubr.f32.gmra.mrb[0].mxu0 %v5909
        %v5911 = vpop.f32.mrb[0].mxu0
        %v5912 = vadd.f32 %v5838, %v5911
        %v5913 = vpop.f32.mrb[0].mxu0
        %5914 = vdwg.mxu0
        %5915 = vmatprep.subr.mxu0 0.0
        %v5916 = vand.u32 %v2772, 4294901760
        %5917 = vmatpush1.msra.mxu0 %v5916
        %5918 = vmatprep.subr.mxu0 0.0
        %5919 = vmatpush1.msra.mxu0 0.0
        %5920 = vmatprep.subr.mxu0 0.0
        %5921 = vmatpush1.msra.mxu0 0.0
        %5922 = vmatprep.subr.mxu0 0.0
        %5923 = vmatpush1.msra.mxu0 0.0
        %5924 = vmatprep.subr.mxu0 0.0
        %5925 = vmatpush1.msra.mxu0 0.0
        %5926 = vmatprep.subr.mxu0 0.0
        %5927 = vmatpush1.msra.mxu0 0.0
        %5928 = vmatprep.subr.mxu0 0.0
        %5929 = vmatpush1.msra.mxu0 0.0
        %5930 = vmatprep.subr.mxu0 0.0
        %5931 = vmatpush1.msra.mxu0 0.0
        %5932 = vmatprep.subr.mxu0 0.0
        %5933 = vmatpush1.msra.mxu0 0.0
        %5934 = vmatprep.subr.mxu0 0.0
        %5935 = vmatpush1.msra.mxu0 0.0
        %5936 = vmatprep.subr.mxu0 0.0
        %5937 = vmatpush1.msra.mxu0 0.0
        %5938 = vmatprep.subr.mxu0 0.0
        %5939 = vmatpush1.msra.mxu0 0.0
        %5940 = vmatprep.subr.mxu0 0.0
        %5941 = vmatpush1.msra.mxu0 0.0
        %5942 = vmatprep.subr.mxu0 0.0
        %5943 = vmatpush1.msra.mxu0 0.0
        %5944 = vmatprep.subr.mxu0 0.0
        %5945 = vmatpush1.msra.mxu0 0.0
        %5946 = vmatprep.subr.mxu0 0.0
        %5947 = vmatpush1.msra.mxu0 0.0
        %5948 = vmatprep.subr.mxu0 0.0
        %5949 = vmatpush1.msra.mxu0 0.0
        %5950 = vmatprep.subr.mxu0 0.0
        %5951 = vmatpush1.msra.mxu0 0.0
        %5952 = vmatprep.subr.mxu0 0.0
        %5953 = vmatpush1.msra.mxu0 0.0
        %5954 = vmatprep.subr.mxu0 0.0
        %5955 = vmatpush1.msra.mxu0 0.0
        %5956 = vmatprep.subr.mxu0 0.0
        %5957 = vmatpush1.msra.mxu0 0.0
        %5958 = vmatprep.subr.mxu0 0.0
        %5959 = vmatpush1.msra.mxu0 0.0
        %5960 = vmatprep.subr.mxu0 0.0
        %5961 = vmatpush1.msra.mxu0 0.0
        %5962 = vmatprep.subr.mxu0 0.0
        %5963 = vmatpush1.msra.mxu0 0.0
        %5964 = vmatprep.subr.mxu0 0.0
        %5965 = vmatpush1.msra.mxu0 0.0
        %5966 = vmatprep.subr.mxu0 0.0
        %5967 = vmatpush1.msra.mxu0 0.0
        %5968 = vmatprep.subr.mxu0 0.0
        %5969 = vmatpush1.msra.mxu0 0.0
        %5970 = vmatprep.subr.mxu0 0.0
        %5971 = vmatpush1.msra.mxu0 0.0
        %5972 = vmatprep.subr.mxu0 0.0
        %5973 = vmatpush1.msra.mxu0 0.0
        %5974 = vmatprep.subr.mxu0 0.0
        %5975 = vmatpush1.msra.mxu0 0.0
        %5976 = vmatprep.subr.mxu0 0.0
        %5977 = vmatpush1.msra.mxu0 0.0
        %5978 = vmatprep.subr.mxu0 0.0
        %5979 = vmatpush1.msra.mxu0 0.0
        %5980 = vmatprep.mubr.f32.mxu0 0.0
        %v5981 = vand.u32 %v5539, 4294901760
        %5982 = vmatmul.mubr.f32.gmra.mrb[0].mxu0 %v5981
        %v5983 = vpop.f32.mrb[0].mxu0
        %v5984 = vadd.f32 %v5912, %v5983
        %v5985 = vpop.f32.mrb[0].mxu0
        %5986 = vdwg.mxu0
        %v5988 = vsel %vm2777, %v4639, 0
        %5990 = vmatprep.subr.mxu0 0.0
        %v5991 = vand.u32 %v2775, 4294901760
        %5992 = vmatpush1.msra.mxu0 %v5991
        %5993 = vmatprep.subr.mxu0 0.0
        %5994 = vmatpush1.msra.mxu0 0.0
        %5995 = vmatprep.subr.mxu0 0.0
        %5996 = vmatpush1.msra.mxu0 0.0
        %5997 = vmatprep.subr.mxu0 0.0
        %5998 = vmatpush1.msra.mxu0 0.0
        %5999 = vmatprep.subr.mxu0 0.0
        %6000 = vmatpush1.msra.mxu0 0.0
        %6001 = vmatprep.subr.mxu0 0.0
        %6002 = vmatpush1.msra.mxu0 0.0
        %6003 = vmatprep.subr.mxu0 0.0
        %6004 = vmatpush1.msra.mxu0 0.0
        %6005 = vmatprep.subr.mxu0 0.0
        %6006 = vmatpush1.msra.mxu0 0.0
        %6007 = vmatprep.subr.mxu0 0.0
        %6008 = vmatpush1.msra.mxu0 0.0
        %6009 = vmatprep.subr.mxu0 0.0
        %6010 = vmatpush1.msra.mxu0 0.0
        %6011 = vmatprep.subr.mxu0 0.0
        %6012 = vmatpush1.msra.mxu0 0.0
        %6013 = vmatprep.subr.mxu0 0.0
        %6014 = vmatpush1.msra.mxu0 0.0
        %6015 = vmatprep.subr.mxu0 0.0
        %6016 = vmatpush1.msra.mxu0 0.0
        %6017 = vmatprep.subr.mxu0 0.0
        %6018 = vmatpush1.msra.mxu0 0.0
        %6019 = vmatprep.subr.mxu0 0.0
        %6020 = vmatpush1.msra.mxu0 0.0
        %6021 = vmatprep.subr.mxu0 0.0
        %6022 = vmatpush1.msra.mxu0 0.0
        %6023 = vmatprep.subr.mxu0 0.0
        %6024 = vmatpush1.msra.mxu0 0.0
        %6025 = vmatprep.subr.mxu0 0.0
        %6026 = vmatpush1.msra.mxu0 0.0
        %6027 = vmatprep.subr.mxu0 0.0
        %6028 = vmatpush1.msra.mxu0 0.0
        %6029 = vmatprep.subr.mxu0 0.0
        %6030 = vmatpush1.msra.mxu0 0.0
        %6031 = vmatprep.subr.mxu0 0.0
        %6032 = vmatpush1.msra.mxu0 0.0
        %6033 = vmatprep.subr.mxu0 0.0
        %6034 = vmatpush1.msra.mxu0 0.0
        %6035 = vmatprep.subr.mxu0 0.0
        %6036 = vmatpush1.msra.mxu0 0.0
        %6037 = vmatprep.subr.mxu0 0.0
        %6038 = vmatpush1.msra.mxu0 0.0
        %6039 = vmatprep.subr.mxu0 0.0
        %6040 = vmatpush1.msra.mxu0 0.0
        %6041 = vmatprep.subr.mxu0 0.0
        %6042 = vmatpush1.msra.mxu0 0.0
        %6043 = vmatprep.subr.mxu0 0.0
        %6044 = vmatpush1.msra.mxu0 0.0
        %6045 = vmatprep.subr.mxu0 0.0
        %6046 = vmatpush1.msra.mxu0 0.0
        %6047 = vmatprep.subr.mxu0 0.0
        %6048 = vmatpush1.msra.mxu0 0.0
        %6049 = vmatprep.subr.mxu0 0.0
        %6050 = vmatpush1.msra.mxu0 0.0
        %6051 = vmatprep.subr.mxu0 0.0
        %6052 = vmatpush1.msra.mxu0 0.0
        %6053 = vmatprep.subr.mxu0 0.0
        %6054 = vmatpush1.msra.mxu0 0.0
        %6055 = vmatprep.mubr.f32.mxu0 0.0
        %v6056 = vand.u32 %v5988, 4294901760
        %v6057 = vsub.f32 %v5988, %v6056
        %v6058 = vand.u32 %v6057, 4294901760
        %v6059 = vsub.f32 %v6057, %v6058
        %v6060 = vand.u32 %v6059, 4294901760
        %6061 = vmatmul.mubr.f32.gmra.mrb[0].mxu0 %v6060
        %v6062 = vpop.f32.mrb[0].mxu0
        %v6063 = vadd.f32 0.0, %v6062
        %v6064 = vpop.f32.mrb[0].mxu0
        %6065 = vdwg.mxu0
        %6066 = vmatprep.subr.mxu0 0.0
        %v6067 = vand.u32 %v2775, 4294901760
        %v6068 = vsub.f32 %v2775, %v6067
        %v6069 = vand.u32 %v6068, 4294901760
        %v6070 = vsub.f32 %v6068, %v6069
        %v6071 = vand.u32 %v6070, 4294901760
        %6072 = vmatpush1.msra.mxu0 %v6071
        %6073 = vmatprep.subr.mxu0 0.0
        %6074 = vmatpush1.msra.mxu0 0.0
        %6075 = vmatprep.subr.mxu0 0.0
        %6076 = vmatpush1.msra.mxu0 0.0
        %6077 = vmatprep.subr.mxu0 0.0
        %6078 = vmatpush1.msra.mxu0 0.0
        %6079 = vmatprep.subr.mxu0 0.0
        %6080 = vmatpush1.msra.mxu0 0.0
        %6081 = vmatprep.subr.mxu0 0.0
        %6082 = vmatpush1.msra.mxu0 0.0
        %6083 = vmatprep.subr.mxu0 0.0
        %6084 = vmatpush1.msra.mxu0 0.0
        %6085 = vmatprep.subr.mxu0 0.0
        %6086 = vmatpush1.msra.mxu0 0.0
        %6087 = vmatprep.subr.mxu0 0.0
        %6088 = vmatpush1.msra.mxu0 0.0
        %6089 = vmatprep.subr.mxu0 0.0
        %6090 = vmatpush1.msra.mxu0 0.0
        %6091 = vmatprep.subr.mxu0 0.0
        %6092 = vmatpush1.msra.mxu0 0.0
        %6093 = vmatprep.subr.mxu0 0.0
        %6094 = vmatpush1.msra.mxu0 0.0
        %6095 = vmatprep.subr.mxu0 0.0
        %6096 = vmatpush1.msra.mxu0 0.0
        %6097 = vmatprep.subr.mxu0 0.0
        %6098 = vmatpush1.msra.mxu0 0.0
        %6099 = vmatprep.subr.mxu0 0.0
        %6100 = vmatpush1.msra.mxu0 0.0
        %6101 = vmatprep.subr.mxu0 0.0
        %6102 = vmatpush1.msra.mxu0 0.0
        %6103 = vmatprep.subr.mxu0 0.0
        %6104 = vmatpush1.msra.mxu0 0.0
        %6105 = vmatprep.subr.mxu0 0.0
        %6106 = vmatpush1.msra.mxu0 0.0
        %6107 = vmatprep.subr.mxu0 0.0
        %6108 = vmatpush1.msra.mxu0 0.0
        %6109 = vmatprep.subr.mxu0 0.0
        %6110 = vmatpush1.msra.mxu0 0.0
        %6111 = vmatprep.subr.mxu0 0.0
        %6112 = vmatpush1.msra.mxu0 0.0
        %6113 = vmatprep.subr.mxu0 0.0
        %6114 = vmatpush1.msra.mxu0 0.0
        %6115 = vmatprep.subr.mxu0 0.0
        %6116 = vmatpush1.msra.mxu0 0.0
        %6117 = vmatprep.subr.mxu0 0.0
        %6118 = vmatpush1.msra.mxu0 0.0
        %6119 = vmatprep.subr.mxu0 0.0
        %6120 = vmatpush1.msra.mxu0 0.0
        %6121 = vmatprep.subr.mxu0 0.0
        %6122 = vmatpush1.msra.mxu0 0.0
        %6123 = vmatprep.subr.mxu0 0.0
        %6124 = vmatpush1.msra.mxu0 0.0
        %6125 = vmatprep.subr.mxu0 0.0
        %6126 = vmatpush1.msra.mxu0 0.0
        %6127 = vmatprep.subr.mxu0 0.0
        %6128 = vmatpush1.msra.mxu0 0.0
        %6129 = vmatprep.subr.mxu0 0.0
        %6130 = vmatpush1.msra.mxu0 0.0
        %6131 = vmatprep.subr.mxu0 0.0
        %6132 = vmatpush1.msra.mxu0 0.0
        %6133 = vmatprep.subr.mxu0 0.0
        %6134 = vmatpush1.msra.mxu0 0.0
        %6135 = vmatprep.mubr.f32.mxu0 0.0
        %v6136 = vand.u32 %v5988, 4294901760
        %6137 = vmatmul.mubr.f32.gmra.mrb[0].mxu0 %v6136
        %v6138 = vpop.f32.mrb[0].mxu0
        %v6139 = vadd.f32 %v6063, %v6138
        %v6140 = vpop.f32.mrb[0].mxu0
        %6141 = vdwg.mxu0
        %6142 = vmatprep.subr.mxu0 0.0
        %v6143 = vand.u32 %v2775, 4294901760
        %v6144 = vsub.f32 %v2775, %v6143
        %6145 = vmatpush1.msra.mxu0 %v6144
        %6146 = vmatprep.subr.mxu0 0.0
        %6147 = vmatpush1.msra.mxu0 0.0
        %6148 = vmatprep.subr.mxu0 0.0
        %6149 = vmatpush1.msra.mxu0 0.0
        %6150 = vmatprep.subr.mxu0 0.0
        %6151 = vmatpush1.msra.mxu0 0.0
        %6152 = vmatprep.subr.mxu0 0.0
        %6153 = vmatpush1.msra.mxu0 0.0
        %6154 = vmatprep.subr.mxu0 0.0
        %6155 = vmatpush1.msra.mxu0 0.0
        %6156 = vmatprep.subr.mxu0 0.0
        %6157 = vmatpush1.msra.mxu0 0.0
        %6158 = vmatprep.subr.mxu0 0.0
        %6159 = vmatpush1.msra.mxu0 0.0
        %6160 = vmatprep.subr.mxu0 0.0
        %6161 = vmatpush1.msra.mxu0 0.0
        %6162 = vmatprep.subr.mxu0 0.0
        %6163 = vmatpush1.msra.mxu0 0.0
        %6164 = vmatprep.subr.mxu0 0.0
        %6165 = vmatpush1.msra.mxu0 0.0
        %6166 = vmatprep.subr.mxu0 0.0
        %6167 = vmatpush1.msra.mxu0 0.0
        %6168 = vmatprep.subr.mxu0 0.0
        %6169 = vmatpush1.msra.mxu0 0.0
        %6170 = vmatprep.subr.mxu0 0.0
        %6171 = vmatpush1.msra.mxu0 0.0
        %6172 = vmatprep.subr.mxu0 0.0
        %6173 = vmatpush1.msra.mxu0 0.0
        %6174 = vmatprep.subr.mxu0 0.0
        %6175 = vmatpush1.msra.mxu0 0.0
        %6176 = vmatprep.subr.mxu0 0.0
        %6177 = vmatpush1.msra.mxu0 0.0
        %6178 = vmatprep.subr.mxu0 0.0
        %6179 = vmatpush1.msra.mxu0 0.0
        %6180 = vmatprep.subr.mxu0 0.0
        %6181 = vmatpush1.msra.mxu0 0.0
        %6182 = vmatprep.subr.mxu0 0.0
        %6183 = vmatpush1.msra.mxu0 0.0
        %6184 = vmatprep.subr.mxu0 0.0
        %6185 = vmatpush1.msra.mxu0 0.0
        %6186 = vmatprep.subr.mxu0 0.0
        %6187 = vmatpush1.msra.mxu0 0.0
        %6188 = vmatprep.subr.mxu0 0.0
        %6189 = vmatpush1.msra.mxu0 0.0
        %6190 = vmatprep.subr.mxu0 0.0
        %6191 = vmatpush1.msra.mxu0 0.0
        %6192 = vmatprep.subr.mxu0 0.0
        %6193 = vmatpush1.msra.mxu0 0.0
        %6194 = vmatprep.subr.mxu0 0.0
        %6195 = vmatpush1.msra.mxu0 0.0
        %6196 = vmatprep.subr.mxu0 0.0
        %6197 = vmatpush1.msra.mxu0 0.0
        %6198 = vmatprep.subr.mxu0 0.0
        %6199 = vmatpush1.msra.mxu0 0.0
        %6200 = vmatprep.subr.mxu0 0.0
        %6201 = vmatpush1.msra.mxu0 0.0
        %6202 = vmatprep.subr.mxu0 0.0
        %6203 = vmatpush1.msra.mxu0 0.0
        %6204 = vmatprep.subr.mxu0 0.0
        %6205 = vmatpush1.msra.mxu0 0.0
        %6206 = vmatprep.subr.mxu0 0.0
        %6207 = vmatpush1.msra.mxu0 0.0
        %6208 = vmatprep.mubr.f32.mxu0 0.0
        %v6209 = vand.u32 %v5988, 4294901760
        %v6210 = vsub.f32 %v5988, %v6209
        %6211 = vmatmul.mubr.f32.gmra.mrb[0].mxu0 %v6210
        %v6212 = vpop.f32.mrb[0].mxu0
        %v6213 = vadd.f32 %v6139, %v6212
        %v6214 = vpop.f32.mrb[0].mxu0
        %6215 = vdwg.mxu0
        %6216 = vmatprep.subr.mxu0 0.0
        %v6217 = vand.u32 %v2775, 4294901760
        %6218 = vmatpush1.msra.mxu0 %v6217
        %6219 = vmatprep.subr.mxu0 0.0
        %6220 = vmatpush1.msra.mxu0 0.0
        %6221 = vmatprep.subr.mxu0 0.0
        %6222 = vmatpush1.msra.mxu0 0.0
        %6223 = vmatprep.subr.mxu0 0.0
        %6224 = vmatpush1.msra.mxu0 0.0
        %6225 = vmatprep.subr.mxu0 0.0
        %6226 = vmatpush1.msra.mxu0 0.0
        %6227 = vmatprep.subr.mxu0 0.0
        %6228 = vmatpush1.msra.mxu0 0.0
        %6229 = vmatprep.subr.mxu0 0.0
        %6230 = vmatpush1.msra.mxu0 0.0
        %6231 = vmatprep.subr.mxu0 0.0
        %6232 = vmatpush1.msra.mxu0 0.0
        %6233 = vmatprep.subr.mxu0 0.0
        %6234 = vmatpush1.msra.mxu0 0.0
        %6235 = vmatprep.subr.mxu0 0.0
        %6236 = vmatpush1.msra.mxu0 0.0
        %6237 = vmatprep.subr.mxu0 0.0
        %6238 = vmatpush1.msra.mxu0 0.0
        %6239 = vmatprep.subr.mxu0 0.0
        %6240 = vmatpush1.msra.mxu0 0.0
        %6241 = vmatprep.subr.mxu0 0.0
        %6242 = vmatpush1.msra.mxu0 0.0
        %6243 = vmatprep.subr.mxu0 0.0
        %6244 = vmatpush1.msra.mxu0 0.0
        %6245 = vmatprep.subr.mxu0 0.0
        %6246 = vmatpush1.msra.mxu0 0.0
        %6247 = vmatprep.subr.mxu0 0.0
        %6248 = vmatpush1.msra.mxu0 0.0
        %6249 = vmatprep.subr.mxu0 0.0
        %6250 = vmatpush1.msra.mxu0 0.0
        %6251 = vmatprep.subr.mxu0 0.0
        %6252 = vmatpush1.msra.mxu0 0.0
        %6253 = vmatprep.subr.mxu0 0.0
        %6254 = vmatpush1.msra.mxu0 0.0
        %6255 = vmatprep.subr.mxu0 0.0
        %6256 = vmatpush1.msra.mxu0 0.0
        %6257 = vmatprep.subr.mxu0 0.0
        %6258 = vmatpush1.msra.mxu0 0.0
        %6259 = vmatprep.subr.mxu0 0.0
        %6260 = vmatpush1.msra.mxu0 0.0
        %6261 = vmatprep.subr.mxu0 0.0
        %6262 = vmatpush1.msra.mxu0 0.0
        %6263 = vmatprep.subr.mxu0 0.0
        %6264 = vmatpush1.msra.mxu0 0.0
        %6265 = vmatprep.subr.mxu0 0.0
        %6266 = vmatpush1.msra.mxu0 0.0
        %6267 = vmatprep.subr.mxu0 0.0
        %6268 = vmatpush1.msra.mxu0 0.0
        %6269 = vmatprep.subr.mxu0 0.0
        %6270 = vmatpush1.msra.mxu0 0.0
        %6271 = vmatprep.subr.mxu0 0.0
        %6272 = vmatpush1.msra.mxu0 0.0
        %6273 = vmatprep.subr.mxu0 0.0
        %6274 = vmatpush1.msra.mxu0 0.0
        %6275 = vmatprep.subr.mxu0 0.0
        %6276 = vmatpush1.msra.mxu0 0.0
        %6277 = vmatprep.subr.mxu0 0.0
        %6278 = vmatpush1.msra.mxu0 0.0
        %6279 = vmatprep.subr.mxu0 0.0
        %6280 = vmatpush1.msra.mxu0 0.0
        %6281 = vmatprep.mubr.f32.mxu0 0.0
        %v6282 = vand.u32 %v5988, 4294901760
        %v6283 = vsub.f32 %v5988, %v6282
        %v6284 = vand.u32 %v6283, 4294901760
        %6285 = vmatmul.mubr.f32.gmra.mrb[0].mxu0 %v6284
        %v6286 = vpop.f32.mrb[0].mxu0
        %v6287 = vadd.f32 %v6213, %v6286
        %v6288 = vpop.f32.mrb[0].mxu0
        %6289 = vdwg.mxu0
        %6290 = vmatprep.subr.mxu0 0.0
        %v6291 = vand.u32 %v2775, 4294901760
        %v6292 = vsub.f32 %v2775, %v6291
        %v6293 = vand.u32 %v6292, 4294901760
        %6294 = vmatpush1.msra.mxu0 %v6293
        %6295 = vmatprep.subr.mxu0 0.0
        %6296 = vmatpush1.msra.mxu0 0.0
        %6297 = vmatprep.subr.mxu0 0.0
        %6298 = vmatpush1.msra.mxu0 0.0
        %6299 = vmatprep.subr.mxu0 0.0
        %6300 = vmatpush1.msra.mxu0 0.0
        %6301 = vmatprep.subr.mxu0 0.0
        %6302 = vmatpush1.msra.mxu0 0.0
        %6303 = vmatprep.subr.mxu0 0.0
        %6304 = vmatpush1.msra.mxu0 0.0
        %6305 = vmatprep.subr.mxu0 0.0
        %6306 = vmatpush1.msra.mxu0 0.0
        %6307 = vmatprep.subr.mxu0 0.0
        %6308 = vmatpush1.msra.mxu0 0.0
        %6309 = vmatprep.subr.mxu0 0.0
        %6310 = vmatpush1.msra.mxu0 0.0
        %6311 = vmatprep.subr.mxu0 0.0
        %6312 = vmatpush1.msra.mxu0 0.0
        %6313 = vmatprep.subr.mxu0 0.0
        %6314 = vmatpush1.msra.mxu0 0.0
        %6315 = vmatprep.subr.mxu0 0.0
        %6316 = vmatpush1.msra.mxu0 0.0
        %6317 = vmatprep.subr.mxu0 0.0
        %6318 = vmatpush1.msra.mxu0 0.0
        %6319 = vmatprep.subr.mxu0 0.0
        %6320 = vmatpush1.msra.mxu0 0.0
        %6321 = vmatprep.subr.mxu0 0.0
        %6322 = vmatpush1.msra.mxu0 0.0
        %6323 = vmatprep.subr.mxu0 0.0
        %6324 = vmatpush1.msra.mxu0 0.0
        %6325 = vmatprep.subr.mxu0 0.0
        %6326 = vmatpush1.msra.mxu0 0.0
        %6327 = vmatprep.subr.mxu0 0.0
        %6328 = vmatpush1.msra.mxu0 0.0
        %6329 = vmatprep.subr.mxu0 0.0
        %6330 = vmatpush1.msra.mxu0 0.0
        %6331 = vmatprep.subr.mxu0 0.0
        %6332 = vmatpush1.msra.mxu0 0.0
        %6333 = vmatprep.subr.mxu0 0.0
        %6334 = vmatpush1.msra.mxu0 0.0
        %6335 = vmatprep.subr.mxu0 0.0
        %6336 = vmatpush1.msra.mxu0 0.0
        %6337 = vmatprep.subr.mxu0 0.0
        %6338 = vmatpush1.msra.mxu0 0.0
        %6339 = vmatprep.subr.mxu0 0.0
        %6340 = vmatpush1.msra.mxu0 0.0
        %6341 = vmatprep.subr.mxu0 0.0
        %6342 = vmatpush1.msra.mxu0 0.0
        %6343 = vmatprep.subr.mxu0 0.0
        %6344 = vmatpush1.msra.mxu0 0.0
        %6345 = vmatprep.subr.mxu0 0.0
        %6346 = vmatpush1.msra.mxu0 0.0
        %6347 = vmatprep.subr.mxu0 0.0
        %6348 = vmatpush1.msra.mxu0 0.0
        %6349 = vmatprep.subr.mxu0 0.0
        %6350 = vmatpush1.msra.mxu0 0.0
        %6351 = vmatprep.subr.mxu0 0.0
        %6352 = vmatpush1.msra.mxu0 0.0
        %6353 = vmatprep.subr.mxu0 0.0
        %6354 = vmatpush1.msra.mxu0 0.0
        %6355 = vmatprep.subr.mxu0 0.0
        %6356 = vmatpush1.msra.mxu0 0.0
        %6357 = vmatprep.mubr.f32.mxu0 0.0
        %v6358 = vand.u32 %v5988, 4294901760
        %6359 = vmatmul.mubr.f32.gmra.mrb[0].mxu0 %v6358
        %v6360 = vpop.f32.mrb[0].mxu0
        %v6361 = vadd.f32 %v6287, %v6360
        %v6362 = vpop.f32.mrb[0].mxu0
        %6363 = vdwg.mxu0
        %6364 = vmatprep.subr.mxu0 0.0
        %v6365 = vand.u32 %v2775, 4294901760
        %6366 = vmatpush1.msra.mxu0 %v6365
        %6367 = vmatprep.subr.mxu0 0.0
        %6368 = vmatpush1.msra.mxu0 0.0
        %6369 = vmatprep.subr.mxu0 0.0
        %6370 = vmatpush1.msra.mxu0 0.0
        %6371 = vmatprep.subr.mxu0 0.0
        %6372 = vmatpush1.msra.mxu0 0.0
        %6373 = vmatprep.subr.mxu0 0.0
        %6374 = vmatpush1.msra.mxu0 0.0
        %6375 = vmatprep.subr.mxu0 0.0
        %6376 = vmatpush1.msra.mxu0 0.0
        %6377 = vmatprep.subr.mxu0 0.0
        %6378 = vmatpush1.msra.mxu0 0.0
        %6379 = vmatprep.subr.mxu0 0.0
        %6380 = vmatpush1.msra.mxu0 0.0
        %6381 = vmatprep.subr.mxu0 0.0
        %6382 = vmatpush1.msra.mxu0 0.0
        %6383 = vmatprep.subr.mxu0 0.0
        %6384 = vmatpush1.msra.mxu0 0.0
        %6385 = vmatprep.subr.mxu0 0.0
        %6386 = vmatpush1.msra.mxu0 0.0
        %6387 = vmatprep.subr.mxu0 0.0
        %6388 = vmatpush1.msra.mxu0 0.0
        %6389 = vmatprep.subr.mxu0 0.0
        %6390 = vmatpush1.msra.mxu0 0.0
        %6391 = vmatprep.subr.mxu0 0.0
        %6392 = vmatpush1.msra.mxu0 0.0
        %6393 = vmatprep.subr.mxu0 0.0
        %6394 = vmatpush1.msra.mxu0 0.0
        %6395 = vmatprep.subr.mxu0 0.0
        %6396 = vmatpush1.msra.mxu0 0.0
        %6397 = vmatprep.subr.mxu0 0.0
        %6398 = vmatpush1.msra.mxu0 0.0
        %6399 = vmatprep.subr.mxu0 0.0
        %6400 = vmatpush1.msra.mxu0 0.0
        %6401 = vmatprep.subr.mxu0 0.0
        %6402 = vmatpush1.msra.mxu0 0.0
        %6403 = vmatprep.subr.mxu0 0.0
        %6404 = vmatpush1.msra.mxu0 0.0
        %6405 = vmatprep.subr.mxu0 0.0
        %6406 = vmatpush1.msra.mxu0 0.0
        %6407 = vmatprep.subr.mxu0 0.0
        %6408 = vmatpush1.msra.mxu0 0.0
        %6409 = vmatprep.subr.mxu0 0.0
        %6410 = vmatpush1.msra.mxu0 0.0
        %6411 = vmatprep.subr.mxu0 0.0
        %6412 = vmatpush1.msra.mxu0 0.0
        %6413 = vmatprep.subr.mxu0 0.0
        %6414 = vmatpush1.msra.mxu0 0.0
        %6415 = vmatprep.subr.mxu0 0.0
        %6416 = vmatpush1.msra.mxu0 0.0
        %6417 = vmatprep.subr.mxu0 0.0
        %6418 = vmatpush1.msra.mxu0 0.0
        %6419 = vmatprep.subr.mxu0 0.0
        %6420 = vmatpush1.msra.mxu0 0.0
        %6421 = vmatprep.subr.mxu0 0.0
        %6422 = vmatpush1.msra.mxu0 0.0
        %6423 = vmatprep.subr.mxu0 0.0
        %6424 = vmatpush1.msra.mxu0 0.0
        %6425 = vmatprep.subr.mxu0 0.0
        %6426 = vmatpush1.msra.mxu0 0.0
        %6427 = vmatprep.subr.mxu0 0.0
        %6428 = vmatpush1.msra.mxu0 0.0
        %6429 = vmatprep.mubr.f32.mxu0 0.0
        %v6430 = vand.u32 %v5988, 4294901760
        %6431 = vmatmul.mubr.f32.gmra.mrb[0].mxu0 %v6430
        %v6432 = vpop.f32.mrb[0].mxu0
        %v6433 = vadd.f32 %v6361, %v6432
        %v6434 = vpop.f32.mrb[0].mxu0
        %6435 = vdwg.mxu0
        %6437 = vrot.lane.b32.xlu0 %v5535, 8
        %v6438 = vpop.permute.xlu0 %6437
        %6441 = vrot.lane.b32.xlu0 %v5984, 16
        %v6442 = vpop.permute.xlu0 %6441
        %6445 = vrot.lane.b32.xlu0 %v6433, 24
        %v6446 = vpop.permute.xlu0 %6445
        %v6448 = vsel %vm2777, %v5086, %v6438
        %vm6449 = vcmask 130048
        %v6450 = vsel %vm6449, %v6448, %v6442
        %vm6451 = vcmask 195584
        %v6452 = vsel %vm6451, %v6450, %v6446
        %vm6453 = vcmp.ge.f32.partialorder %v6452, 0.0
        %v6454 = vmul.f32 %v6452, 0.01
        %v6455 = vsel %vm6453, %v6452, %v6454
        %v6456 = vadd.f32 %v6455, %v279
        %v6457 = vsel %vm321, %v6456, 0.0
        %6458 = vadd.xlane.f32.xlu0 %v6457
        %v6459 = vpop.xlane.xlu0 %6458
        %v6460 = vrcp.pop 32.0
        %v6461 = vmul.f32 %v6459, %v6460
        %v6462 = vsub.f32 %v6456, %v6461
        %v6463 = vmul.f32 %v6462, %v6462
        %v6464 = vsel %vm321, %v6463, 0.0
        %6465 = vadd.xlane.f32.xlu0 %v6464
        %v6466 = vpop.xlane.xlu0 %6465
        %v6467 = vmul.f32 %v6466, %v6460
        %v6468 = vadd.f32 %v6467, 1e-05
        %v6469 = vrsqrt.pop %v6468
        %v6470 = vmul.f32 %v6462, %v6469
        %v6471 = vlaneseq
        %v6472 = vshrl.u32 %v6471, 7
        %v6473 = vsub.s32 0, %v6472
        %v6474 = vrot.slane %v283, %v6473
        %v6475 = vmul.f32 %v6470, %v6474
        %v6476 = vlaneseq
        %v6477 = vshrl.u32 %v6476, 7
        %v6478 = vsub.s32 0, %v6477
        %v6479 = vrot.slane %v284, %v6478
        %v6480 = vadd.f32 %v6475, %v6479
        %v6481 = vld [vmem:[%s3] sm:$0xff]
        %v6482 = vld [vmem:[%s3 + $0x8] sm:$0xff]
        %v6483 = vld [vmem:[%s3 + $0x10] sm:$0xff]
        %v6484 = vld [vmem:[%s3 + $0x18] sm:$0xff]
        %v6485 = vlaneseq
        %v6486 = vshrl.u32 %v6485, 7
        %v6487 = vsub.s32 0, %v6486
        %v6488 = vrot.slane %v281, %v6487
        %v6490 = vsel %vm321, %v6480, 0
        %6492 = vmatprep.subr.mxu0 0.0
        %v6493 = vand.u32 %v6481, 4294901760
        %6494 = vmatpush1.msra.mxu0 %v6493
        %6495 = vmatprep.subr.mxu0 0.0
        %v6496 = vand.u32 %v6482, 4294901760
        %6497 = vmatpush1.msra.mxu0 %v6496
        %6498 = vmatprep.subr.mxu0 0.0
        %v6499 = vand.u32 %v6483, 4294901760
        %6500 = vmatpush1.msra.mxu0 %v6499
        %6501 = vmatprep.subr.mxu0 0.0
        %v6502 = vand.u32 %v6484, 4294901760
        %6503 = vmatpush1.msra.mxu0 %v6502
        %6504 = vmatprep.subr.mxu0 0.0
        %6505 = vmatpush1.msra.mxu0 0.0
        %6506 = vmatprep.subr.mxu0 0.0
        %6507 = vmatpush1.msra.mxu0 0.0
        %6508 = vmatprep.subr.mxu0 0.0
        %6509 = vmatpush1.msra.mxu0 0.0
        %6510 = vmatprep.subr.mxu0 0.0
        %6511 = vmatpush1.msra.mxu0 0.0
        %6512 = vmatprep.subr.mxu0 0.0
        %6513 = vmatpush1.msra.mxu0 0.0
        %6514 = vmatprep.subr.mxu0 0.0
        %6515 = vmatpush1.msra.mxu0 0.0
        %6516 = vmatprep.subr.mxu0 0.0
        %6517 = vmatpush1.msra.mxu0 0.0
        %6518 = vmatprep.subr.mxu0 0.0
        %6519 = vmatpush1.msra.mxu0 0.0
        %6520 = vmatprep.subr.mxu0 0.0
        %6521 = vmatpush1.msra.mxu0 0.0
        %6522 = vmatprep.subr.mxu0 0.0
        %6523 = vmatpush1.msra.mxu0 0.0
        %6524 = vmatprep.subr.mxu0 0.0
        %6525 = vmatpush1.msra.mxu0 0.0
        %6526 = vmatprep.subr.mxu0 0.0
        %6527 = vmatpush1.msra.mxu0 0.0
        %6528 = vmatprep.subr.mxu0 0.0
        %6529 = vmatpush1.msra.mxu0 0.0
        %6530 = vmatprep.subr.mxu0 0.0
        %6531 = vmatpush1.msra.mxu0 0.0
        %6532 = vmatprep.subr.mxu0 0.0
        %6533 = vmatpush1.msra.mxu0 0.0
        %6534 = vmatprep.subr.mxu0 0.0
        %6535 = vmatpush1.msra.mxu0 0.0
        %6536 = vmatprep.subr.mxu0 0.0
        %6537 = vmatpush1.msra.mxu0 0.0
        %6538 = vmatprep.subr.mxu0 0.0
        %6539 = vmatpush1.msra.mxu0 0.0
        %6540 = vmatprep.subr.mxu0 0.0
        %6541 = vmatpush1.msra.mxu0 0.0
        %6542 = vmatprep.subr.mxu0 0.0
        %6543 = vmatpush1.msra.mxu0 0.0
        %6544 = vmatprep.subr.mxu0 0.0
        %6545 = vmatpush1.msra.mxu0 0.0
        %6546 = vmatprep.subr.mxu0 0.0
        %6547 = vmatpush1.msra.mxu0 0.0
        %6548 = vmatprep.subr.mxu0 0.0
        %6549 = vmatpush1.msra.mxu0 0.0
        %6550 = vmatprep.subr.mxu0 0.0
        %6551 = vmatpush1.msra.mxu0 0.0
        %6552 = vmatprep.subr.mxu0 0.0
        %6553 = vmatpush1.msra.mxu0 0.0
        %6554 = vmatprep.subr.mxu0 0.0
        %6555 = vmatpush1.msra.mxu0 0.0
        %6556 = vmatprep.subr.mxu0 0.0
        %6557 = vmatpush1.msra.mxu0 0.0
        %6558 = vmatprep.subr.mxu0 0.0
        %6559 = vmatpush1.msra.mxu0 0.0
        %6560 = vmatprep.mubr.f32.mxu0 0.0
        %v6561 = vand.u32 %v6490, 4294901760
        %v6562 = vsub.f32 %v6490, %v6561
        %v6563 = vand.u32 %v6562, 4294901760
        %v6564 = vsub.f32 %v6562, %v6563
        %v6565 = vand.u32 %v6564, 4294901760
        %6566 = vmatmul.mubr.f32.gmra.mrb[0].mxu0 %v6565
        %v6567 = vpop.f32.mrb[0].mxu0
        %v6568 = vadd.f32 %v6488, %v6567
        %v6569 = vpop.f32.mrb[0].mxu0
        %6570 = vdwg.mxu0
        %6571 = vmatprep.subr.mxu0 0.0
        %v6572 = vand.u32 %v6481, 4294901760
        %v6573 = vsub.f32 %v6481, %v6572
        %v6574 = vand.u32 %v6573, 4294901760
        %v6575 = vsub.f32 %v6573, %v6574
        %v6576 = vand.u32 %v6575, 4294901760
        %6577 = vmatpush1.msra.mxu0 %v6576
        %6578 = vmatprep.subr.mxu0 0.0
        %v6579 = vand.u32 %v6482, 4294901760
        %v6580 = vsub.f32 %v6482, %v6579
        %v6581 = vand.u32 %v6580, 4294901760
        %v6582 = vsub.f32 %v6580, %v6581
        %v6583 = vand.u32 %v6582, 4294901760
        %6584 = vmatpush1.msra.mxu0 %v6583
        %6585 = vmatprep.subr.mxu0 0.0
        %v6586 = vand.u32 %v6483, 4294901760
        %v6587 = vsub.f32 %v6483, %v6586
        %v6588 = vand.u32 %v6587, 4294901760
        %v6589 = vsub.f32 %v6587, %v6588
        %v6590 = vand.u32 %v6589, 4294901760
        %6591 = vmatpush1.msra.mxu0 %v6590
        %6592 = vmatprep.subr.mxu0 0.0
        %v6593 = vand.u32 %v6484, 4294901760
        %v6594 = vsub.f32 %v6484, %v6593
        %v6595 = vand.u32 %v6594, 4294901760
        %v6596 = vsub.f32 %v6594, %v6595
        %v6597 = vand.u32 %v6596, 4294901760
        %6598 = vmatpush1.msra.mxu0 %v6597
        %6599 = vmatprep.subr.mxu0 0.0
        %6600 = vmatpush1.msra.mxu0 0.0
        %6601 = vmatprep.subr.mxu0 0.0
        %6602 = vmatpush1.msra.mxu0 0.0
        %6603 = vmatprep.subr.mxu0 0.0
        %6604 = vmatpush1.msra.mxu0 0.0
        %6605 = vmatprep.subr.mxu0 0.0
        %6606 = vmatpush1.msra.mxu0 0.0
        %6607 = vmatprep.subr.mxu0 0.0
        %6608 = vmatpush1.msra.mxu0 0.0
        %6609 = vmatprep.subr.mxu0 0.0
        %6610 = vmatpush1.msra.mxu0 0.0
        %6611 = vmatprep.subr.mxu0 0.0
        %6612 = vmatpush1.msra.mxu0 0.0
        %6613 = vmatprep.subr.mxu0 0.0
        %6614 = vmatpush1.msra.mxu0 0.0
        %6615 = vmatprep.subr.mxu0 0.0
        %6616 = vmatpush1.msra.mxu0 0.0
        %6617 = vmatprep.subr.mxu0 0.0
        %6618 = vmatpush1.msra.mxu0 0.0
        %6619 = vmatprep.subr.mxu0 0.0
        %6620 = vmatpush1.msra.mxu0 0.0
        %6621 = vmatprep.subr.mxu0 0.0
        %6622 = vmatpush1.msra.mxu0 0.0
        %6623 = vmatprep.subr.mxu0 0.0
        %6624 = vmatpush1.msra.mxu0 0.0
        %6625 = vmatprep.subr.mxu0 0.0
        %6626 = vmatpush1.msra.mxu0 0.0
        %6627 = vmatprep.subr.mxu0 0.0
        %6628 = vmatpush1.msra.mxu0 0.0
        %6629 = vmatprep.subr.mxu0 0.0
        %6630 = vmatpush1.msra.mxu0 0.0
        %6631 = vmatprep.subr.mxu0 0.0
        %6632 = vmatpush1.msra.mxu0 0.0
        %6633 = vmatprep.subr.mxu0 0.0
        %6634 = vmatpush1.msra.mxu0 0.0
        %6635 = vmatprep.subr.mxu0 0.0
        %6636 = vmatpush1.msra.mxu0 0.0
        %6637 = vmatprep.subr.mxu0 0.0
        %6638 = vmatpush1.msra.mxu0 0.0
        %6639 = vmatprep.subr.mxu0 0.0
        %6640 = vmatpush1.msra.mxu0 0.0
        %6641 = vmatprep.subr.mxu0 0.0
        %6642 = vmatpush1.msra.mxu0 0.0
        %6643 = vmatprep.subr.mxu0 0.0
        %6644 = vmatpush1.msra.mxu0 0.0
        %6645 = vmatprep.subr.mxu0 0.0
        %6646 = vmatpush1.msra.mxu0 0.0
        %6647 = vmatprep.subr.mxu0 0.0
        %6648 = vmatpush1.msra.mxu0 0.0
        %6649 = vmatprep.subr.mxu0 0.0
        %6650 = vmatpush1.msra.mxu0 0.0
        %6651 = vmatprep.subr.mxu0 0.0
        %6652 = vmatpush1.msra.mxu0 0.0
        %6653 = vmatprep.subr.mxu0 0.0
        %6654 = vmatpush1.msra.mxu0 0.0
        %6655 = vmatprep.mubr.f32.mxu0 0.0
        %v6656 = vand.u32 %v6490, 4294901760
        %6657 = vmatmul.mubr.f32.gmra.mrb[0].mxu0 %v6656
        %v6658 = vpop.f32.mrb[0].mxu0
        %v6659 = vadd.f32 %v6568, %v6658
        %v6660 = vpop.f32.mrb[0].mxu0
        %6661 = vdwg.mxu0
        %6662 = vmatprep.subr.mxu0 0.0
        %v6663 = vand.u32 %v6481, 4294901760
        %v6664 = vsub.f32 %v6481, %v6663
        %6665 = vmatpush1.msra.mxu0 %v6664
        %6666 = vmatprep.subr.mxu0 0.0
        %v6667 = vand.u32 %v6482, 4294901760
        %v6668 = vsub.f32 %v6482, %v6667
        %6669 = vmatpush1.msra.mxu0 %v6668
        %6670 = vmatprep.subr.mxu0 0.0
        %v6671 = vand.u32 %v6483, 4294901760
        %v6672 = vsub.f32 %v6483, %v6671
        %6673 = vmatpush1.msra.mxu0 %v6672
        %6674 = vmatprep.subr.mxu0 0.0
        %v6675 = vand.u32 %v6484, 4294901760
        %v6676 = vsub.f32 %v6484, %v6675
        %6677 = vmatpush1.msra.mxu0 %v6676
        %6678 = vmatprep.subr.mxu0 0.0
        %6679 = vmatpush1.msra.mxu0 0.0
        %6680 = vmatprep.subr.mxu0 0.0
        %6681 = vmatpush1.msra.mxu0 0.0
        %6682 = vmatprep.subr.mxu0 0.0
        %6683 = vmatpush1.msra.mxu0 0.0
        %6684 = vmatprep.subr.mxu0 0.0
        %6685 = vmatpush1.msra.mxu0 0.0
        %6686 = vmatprep.subr.mxu0 0.0
        %6687 = vmatpush1.msra.mxu0 0.0
        %6688 = vmatprep.subr.mxu0 0.0
        %6689 = vmatpush1.msra.mxu0 0.0
        %6690 = vmatprep.subr.mxu0 0.0
        %6691 = vmatpush1.msra.mxu0 0.0
        %6692 = vmatprep.subr.mxu0 0.0
        %6693 = vmatpush1.msra.mxu0 0.0
        %6694 = vmatprep.subr.mxu0 0.0
        %6695 = vmatpush1.msra.mxu0 0.0
        %6696 = vmatprep.subr.mxu0 0.0
        %6697 = vmatpush1.msra.mxu0 0.0
        %6698 = vmatprep.subr.mxu0 0.0
        %6699 = vmatpush1.msra.mxu0 0.0
        %6700 = vmatprep.subr.mxu0 0.0
        %6701 = vmatpush1.msra.mxu0 0.0
        %6702 = vmatprep.subr.mxu0 0.0
        %6703 = vmatpush1.msra.mxu0 0.0
        %6704 = vmatprep.subr.mxu0 0.0
        %6705 = vmatpush1.msra.mxu0 0.0
        %6706 = vmatprep.subr.mxu0 0.0
        %6707 = vmatpush1.msra.mxu0 0.0
        %6708 = vmatprep.subr.mxu0 0.0
        %6709 = vmatpush1.msra.mxu0 0.0
        %6710 = vmatprep.subr.mxu0 0.0
        %6711 = vmatpush1.msra.mxu0 0.0
        %6712 = vmatprep.subr.mxu0 0.0
        %6713 = vmatpush1.msra.mxu0 0.0
        %6714 = vmatprep.subr.mxu0 0.0
        %6715 = vmatpush1.msra.mxu0 0.0
        %6716 = vmatprep.subr.mxu0 0.0
        %6717 = vmatpush1.msra.mxu0 0.0
        %6718 = vmatprep.subr.mxu0 0.0
        %6719 = vmatpush1.msra.mxu0 0.0
        %6720 = vmatprep.subr.mxu0 0.0
        %6721 = vmatpush1.msra.mxu0 0.0
        %6722 = vmatprep.subr.mxu0 0.0
        %6723 = vmatpush1.msra.mxu0 0.0
        %6724 = vmatprep.subr.mxu0 0.0
        %6725 = vmatpush1.msra.mxu0 0.0
        %6726 = vmatprep.subr.mxu0 0.0
        %6727 = vmatpush1.msra.mxu0 0.0
        %6728 = vmatprep.subr.mxu0 0.0
        %6729 = vmatpush1.msra.mxu0 0.0
        %6730 = vmatprep.subr.mxu0 0.0
        %6731 = vmatpush1.msra.mxu0 0.0
        %6732 = vmatprep.subr.mxu0 0.0
        %6733 = vmatpush1.msra.mxu0 0.0
        %6734 = vmatprep.mubr.f32.mxu0 0.0
        %v6735 = vand.u32 %v6490, 4294901760
        %v6736 = vsub.f32 %v6490, %v6735
        %6737 = vmatmul.mubr.f32.gmra.mrb[0].mxu0 %v6736
        %v6738 = vpop.f32.mrb[0].mxu0
        %v6739 = vadd.f32 %v6659, %v6738
        %v6740 = vpop.f32.mrb[0].mxu0
        %6741 = vdwg.mxu0
        %6742 = vmatprep.subr.mxu0 0.0
        %v6743 = vand.u32 %v6481, 4294901760
        %6744 = vmatpush1.msra.mxu0 %v6743
        %6745 = vmatprep.subr.mxu0 0.0
        %v6746 = vand.u32 %v6482, 4294901760
        %6747 = vmatpush1.msra.mxu0 %v6746
        %6748 = vmatprep.subr.mxu0 0.0
        %v6749 = vand.u32 %v6483, 4294901760
        %6750 = vmatpush1.msra.mxu0 %v6749
        %6751 = vmatprep.subr.mxu0 0.0
        %v6752 = vand.u32 %v6484, 4294901760
        %6753 = vmatpush1.msra.mxu0 %v6752
        %6754 = vmatprep.subr.mxu0 0.0
        %6755 = vmatpush1.msra.mxu0 0.0
        %6756 = vmatprep.subr.mxu0 0.0
        %6757 = vmatpush1.msra.mxu0 0.0
        %6758 = vmatprep.subr.mxu0 0.0
        %6759 = vmatpush1.msra.mxu0 0.0
        %6760 = vmatprep.subr.mxu0 0.0
        %6761 = vmatpush1.msra.mxu0 0.0
        %6762 = vmatprep.subr.mxu0 0.0
        %6763 = vmatpush1.msra.mxu0 0.0
        %6764 = vmatprep.subr.mxu0 0.0
        %6765 = vmatpush1.msra.mxu0 0.0
        %6766 = vmatprep.subr.mxu0 0.0
        %6767 = vmatpush1.msra.mxu0 0.0
        %6768 = vmatprep.subr.mxu0 0.0
        %6769 = vmatpush1.msra.mxu0 0.0
        %6770 = vmatprep.subr.mxu0 0.0
        %6771 = vmatpush1.msra.mxu0 0.0
        %6772 = vmatprep.subr.mxu0 0.0
        %6773 = vmatpush1.msra.mxu0 0.0
        %6774 = vmatprep.subr.mxu0 0.0
        %6775 = vmatpush1.msra.mxu0 0.0
        %6776 = vmatprep.subr.mxu0 0.0
        %6777 = vmatpush1.msra.mxu0 0.0
        %6778 = vmatprep.subr.mxu0 0.0
        %6779 = vmatpush1.msra.mxu0 0.0
        %6780 = vmatprep.subr.mxu0 0.0
        %6781 = vmatpush1.msra.mxu0 0.0
        %6782 = vmatprep.subr.mxu0 0.0
        %6783 = vmatpush1.msra.mxu0 0.0
        %6784 = vmatprep.subr.mxu0 0.0
        %6785 = vmatpush1.msra.mxu0 0.0
        %6786 = vmatprep.subr.mxu0 0.0
        %6787 = vmatpush1.msra.mxu0 0.0
        %6788 = vmatprep.subr.mxu0 0.0
        %6789 = vmatpush1.msra.mxu0 0.0
        %6790 = vmatprep.subr.mxu0 0.0
        %6791 = vmatpush1.msra.mxu0 0.0
        %6792 = vmatprep.subr.mxu0 0.0
        %6793 = vmatpush1.msra.mxu0 0.0
        %6794 = vmatprep.subr.mxu0 0.0
        %6795 = vmatpush1.msra.mxu0 0.0
        %6796 = vmatprep.subr.mxu0 0.0
        %6797 = vmatpush1.msra.mxu0 0.0
        %6798 = vmatprep.subr.mxu0 0.0
        %6799 = vmatpush1.msra.mxu0 0.0
        %6800 = vmatprep.subr.mxu0 0.0
        %6801 = vmatpush1.msra.mxu0 0.0
        %6802 = vmatprep.subr.mxu0 0.0
        %6803 = vmatpush1.msra.mxu0 0.0
        %6804 = vmatprep.subr.mxu0 0.0
        %6805 = vmatpush1.msra.mxu0 0.0
        %6806 = vmatprep.subr.mxu0 0.0
        %6807 = vmatpush1.msra.mxu0 0.0
        %6808 = vmatprep.subr.mxu0 0.0
        %6809 = vmatpush1.msra.mxu0 0.0
        %6810 = vmatprep.mubr.f32.mxu0 0.0
        %v6811 = vand.u32 %v6490, 4294901760
        %v6812 = vsub.f32 %v6490, %v6811
        %v6813 = vand.u32 %v6812, 4294901760
        %6814 = vmatmul.mubr.f32.gmra.mrb[0].mxu0 %v6813
        %v6815 = vpop.f32.mrb[0].mxu0
        %v6816 = vadd.f32 %v6739, %v6815
        %v6817 = vpop.f32.mrb[0].mxu0
        %6818 = vdwg.mxu0
        %6819 = vmatprep.subr.mxu0 0.0
        %v6820 = vand.u32 %v6481, 4294901760
        %v6821 = vsub.f32 %v6481, %v6820
        %v6822 = vand.u32 %v6821, 4294901760
        %6823 = vmatpush1.msra.mxu0 %v6822
        %6824 = vmatprep.subr.mxu0 0.0
        %v6825 = vand.u32 %v6482, 4294901760
        %v6826 = vsub.f32 %v6482, %v6825
        %v6827 = vand.u32 %v6826, 4294901760
        %6828 = vmatpush1.msra.mxu0 %v6827
        %6829 = vmatprep.subr.mxu0 0.0
        %v6830 = vand.u32 %v6483, 4294901760
        %v6831 = vsub.f32 %v6483, %v6830
        %v6832 = vand.u32 %v6831, 4294901760
        %6833 = vmatpush1.msra.mxu0 %v6832
        %6834 = vmatprep.subr.mxu0 0.0
        %v6835 = vand.u32 %v6484, 4294901760
        %v6836 = vsub.f32 %v6484, %v6835
        %v6837 = vand.u32 %v6836, 4294901760
        %6838 = vmatpush1.msra.mxu0 %v6837
        %6839 = vmatprep.subr.mxu0 0.0
        %6840 = vmatpush1.msra.mxu0 0.0
        %6841 = vmatprep.subr.mxu0 0.0
        %6842 = vmatpush1.msra.mxu0 0.0
        %6843 = vmatprep.subr.mxu0 0.0
        %6844 = vmatpush1.msra.mxu0 0.0
        %6845 = vmatprep.subr.mxu0 0.0
        %6846 = vmatpush1.msra.mxu0 0.0
        %6847 = vmatprep.subr.mxu0 0.0
        %6848 = vmatpush1.msra.mxu0 0.0
        %6849 = vmatprep.subr.mxu0 0.0
        %6850 = vmatpush1.msra.mxu0 0.0
        %6851 = vmatprep.subr.mxu0 0.0
        %6852 = vmatpush1.msra.mxu0 0.0
        %6853 = vmatprep.subr.mxu0 0.0
        %6854 = vmatpush1.msra.mxu0 0.0
        %6855 = vmatprep.subr.mxu0 0.0
        %6856 = vmatpush1.msra.mxu0 0.0
        %6857 = vmatprep.subr.mxu0 0.0
        %6858 = vmatpush1.msra.mxu0 0.0
        %6859 = vmatprep.subr.mxu0 0.0
        %6860 = vmatpush1.msra.mxu0 0.0
        %6861 = vmatprep.subr.mxu0 0.0
        %6862 = vmatpush1.msra.mxu0 0.0
        %6863 = vmatprep.subr.mxu0 0.0
        %6864 = vmatpush1.msra.mxu0 0.0
        %6865 = vmatprep.subr.mxu0 0.0
        %6866 = vmatpush1.msra.mxu0 0.0
        %6867 = vmatprep.subr.mxu0 0.0
        %6868 = vmatpush1.msra.mxu0 0.0
        %6869 = vmatprep.subr.mxu0 0.0
        %6870 = vmatpush1.msra.mxu0 0.0
        %6871 = vmatprep.subr.mxu0 0.0
        %6872 = vmatpush1.msra.mxu0 0.0
        %6873 = vmatprep.subr.mxu0 0.0
        %6874 = vmatpush1.msra.mxu0 0.0
        %6875 = vmatprep.subr.mxu0 0.0
        %6876 = vmatpush1.msra.mxu0 0.0
        %6877 = vmatprep.subr.mxu0 0.0
        %6878 = vmatpush1.msra.mxu0 0.0
        %6879 = vmatprep.subr.mxu0 0.0
        %6880 = vmatpush1.msra.mxu0 0.0
        %6881 = vmatprep.subr.mxu0 0.0
        %6882 = vmatpush1.msra.mxu0 0.0
        %6883 = vmatprep.subr.mxu0 0.0
        %6884 = vmatpush1.msra.mxu0 0.0
        %6885 = vmatprep.subr.mxu0 0.0
        %6886 = vmatpush1.msra.mxu0 0.0
        %6887 = vmatprep.subr.mxu0 0.0
        %6888 = vmatpush1.msra.mxu0 0.0
        %6889 = vmatprep.subr.mxu0 0.0
        %6890 = vmatpush1.msra.mxu0 0.0
        %6891 = vmatprep.subr.mxu0 0.0
        %6892 = vmatpush1.msra.mxu0 0.0
        %6893 = vmatprep.subr.mxu0 0.0
        %6894 = vmatpush1.msra.mxu0 0.0
        %6895 = vmatprep.mubr.f32.mxu0 0.0
        %v6896 = vand.u32 %v6490, 4294901760
        %6897 = vmatmul.mubr.f32.gmra.mrb[0].mxu0 %v6896
        %v6898 = vpop.f32.mrb[0].mxu0
        %v6899 = vadd.f32 %v6816, %v6898
        %v6900 = vpop.f32.mrb[0].mxu0
        %6901 = vdwg.mxu0
        %6902 = vmatprep.subr.mxu0 0.0
        %v6903 = vand.u32 %v6481, 4294901760
        %6904 = vmatpush1.msra.mxu0 %v6903
        %6905 = vmatprep.subr.mxu0 0.0
        %v6906 = vand.u32 %v6482, 4294901760
        %6907 = vmatpush1.msra.mxu0 %v6906
        %6908 = vmatprep.subr.mxu0 0.0
        %v6909 = vand.u32 %v6483, 4294901760
        %6910 = vmatpush1.msra.mxu0 %v6909
        %6911 = vmatprep.subr.mxu0 0.0
        %v6912 = vand.u32 %v6484, 4294901760
        %6913 = vmatpush1.msra.mxu0 %v6912
        %6914 = vmatprep.subr.mxu0 0.0
        %6915 = vmatpush1.msra.mxu0 0.0
        %6916 = vmatprep.subr.mxu0 0.0
        %6917 = vmatpush1.msra.mxu0 0.0
        %6918 = vmatprep.subr.mxu0 0.0
        %6919 = vmatpush1.msra.mxu0 0.0
        %6920 = vmatprep.subr.mxu0 0.0
        %6921 = vmatpush1.msra.mxu0 0.0
        %6922 = vmatprep.subr.mxu0 0.0
        %6923 = vmatpush1.msra.mxu0 0.0
        %6924 = vmatprep.subr.mxu0 0.0
        %6925 = vmatpush1.msra.mxu0 0.0
        %6926 = vmatprep.subr.mxu0 0.0
        %6927 = vmatpush1.msra.mxu0 0.0
        %6928 = vmatprep.subr.mxu0 0.0
        %6929 = vmatpush1.msra.mxu0 0.0
        %6930 = vmatprep.subr.mxu0 0.0
        %6931 = vmatpush1.msra.mxu0 0.0
        %6932 = vmatprep.subr.mxu0 0.0
        %6933 = vmatpush1.msra.mxu0 0.0
        %6934 = vmatprep.subr.mxu0 0.0
        %6935 = vmatpush1.msra.mxu0 0.0
        %6936 = vmatprep.subr.mxu0 0.0
        %6937 = vmatpush1.msra.mxu0 0.0
        %6938 = vmatprep.subr.mxu0 0.0
        %6939 = vmatpush1.msra.mxu0 0.0
        %6940 = vmatprep.subr.mxu0 0.0
        %6941 = vmatpush1.msra.mxu0 0.0
        %6942 = vmatprep.subr.mxu0 0.0
        %6943 = vmatpush1.msra.mxu0 0.0
        %6944 = vmatprep.subr.mxu0 0.0
        %6945 = vmatpush1.msra.mxu0 0.0
        %6946 = vmatprep.subr.mxu0 0.0
        %6947 = vmatpush1.msra.mxu0 0.0
        %6948 = vmatprep.subr.mxu0 0.0
        %6949 = vmatpush1.msra.mxu0 0.0
        %6950 = vmatprep.subr.mxu0 0.0
        %6951 = vmatpush1.msra.mxu0 0.0
        %6952 = vmatprep.subr.mxu0 0.0
        %6953 = vmatpush1.msra.mxu0 0.0
        %6954 = vmatprep.subr.mxu0 0.0
        %6955 = vmatpush1.msra.mxu0 0.0
        %6956 = vmatprep.subr.mxu0 0.0
        %6957 = vmatpush1.msra.mxu0 0.0
        %6958 = vmatprep.subr.mxu0 0.0
        %6959 = vmatpush1.msra.mxu0 0.0
        %6960 = vmatprep.subr.mxu0 0.0
        %6961 = vmatpush1.msra.mxu0 0.0
        %6962 = vmatprep.subr.mxu0 0.0
        %6963 = vmatpush1.msra.mxu0 0.0
        %6964 = vmatprep.subr.mxu0 0.0
        %6965 = vmatpush1.msra.mxu0 0.0
        %6966 = vmatprep.subr.mxu0 0.0
        %6967 = vmatpush1.msra.mxu0 0.0
        %6968 = vmatprep.subr.mxu0 0.0
        %6969 = vmatpush1.msra.mxu0 0.0
        %6970 = vmatprep.mubr.f32.mxu0 0.0
        %v6971 = vand.u32 %v6490, 4294901760
        %6972 = vmatmul.mubr.f32.gmra.mrb[0].mxu0 %v6971
        %v6973 = vpop.f32.mrb[0].mxu0
        %v6974 = vadd.f32 %v6899, %v6973
        %v6975 = vpop.f32.mrb[0].mxu0
        %6976 = vdwg.mxu0
        %vm6977 = vcmp.ge.f32.partialorder %v6974, 0.0
        %v6978 = vmul.f32 %v6974, 0.01
        %v6979 = vsel %vm6977, %v6974, %v6978
        %v6980 = vld [vmem:[%s4] sm:$0xff]
        %v6981 = vld [vmem:[%s4 + $0x8] sm:$0xff]
        %v6982 = vld [vmem:[%s4 + $0x10] sm:$0xff]
        %v6983 = vld [vmem:[%s4 + $0x18] sm:$0xff]
        %v6984 = vld [vmem:[%s4 + $0x20] sm:$0xff]
        %v6985 = vld [vmem:[%s4 + $0x28] sm:$0xff]
        %v6986 = vld [vmem:[%s4 + $0x30] sm:$0xff]
        %v6987 = vld [vmem:[%s4 + $0x38] sm:$0xff]
        %v6988 = vlaneseq
        %v6989 = vshrl.u32 %v6988, 7
        %v6990 = vsub.s32 0, %v6989
        %v6991 = vrot.slane %v282, %v6990
        %vm6992 = vcmask 523264
        %v6994 = vsel %vm6992, %v6979, 0
        %6996 = vmatprep.subr.mxu0 0.0
        %v6997 = vand.u32 %v6980, 4294901760
        %6998 = vmatpush1.msra.mxu0 %v6997
        %6999 = vmatprep.subr.mxu0 0.0
        %v7000 = vand.u32 %v6981, 4294901760
        %7001 = vmatpush1.msra.mxu0 %v7000
        %7002 = vmatprep.subr.mxu0 0.0
        %v7003 = vand.u32 %v6982, 4294901760
        %7004 = vmatpush1.msra.mxu0 %v7003
        %7005 = vmatprep.subr.mxu0 0.0
        %v7006 = vand.u32 %v6983, 4294901760
        %7007 = vmatpush1.msra.mxu0 %v7006
        %7008 = vmatprep.subr.mxu0 0.0
        %v7009 = vand.u32 %v6984, 4294901760
        %7010 = vmatpush1.msra.mxu0 %v7009
        %7011 = vmatprep.subr.mxu0 0.0
        %v7012 = vand.u32 %v6985, 4294901760
        %7013 = vmatpush1.msra.mxu0 %v7012
        %7014 = vmatprep.subr.mxu0 0.0
        %v7015 = vand.u32 %v6986, 4294901760
        %7016 = vmatpush1.msra.mxu0 %v7015
        %7017 = vmatprep.subr.mxu0 0.0
        %v7018 = vand.u32 %v6987, 4294901760
        %7019 = vmatpush1.msra.mxu0 %v7018
        %7020 = vmatprep.subr.mxu0 0.0
        %7021 = vmatpush1.msra.mxu0 0.0
        %7022 = vmatprep.subr.mxu0 0.0
        %7023 = vmatpush1.msra.mxu0 0.0
        %7024 = vmatprep.subr.mxu0 0.0
        %7025 = vmatpush1.msra.mxu0 0.0
        %7026 = vmatprep.subr.mxu0 0.0
        %7027 = vmatpush1.msra.mxu0 0.0
        %7028 = vmatprep.subr.mxu0 0.0
        %7029 = vmatpush1.msra.mxu0 0.0
        %7030 = vmatprep.subr.mxu0 0.0
        %7031 = vmatpush1.msra.mxu0 0.0
        %7032 = vmatprep.subr.mxu0 0.0
        %7033 = vmatpush1.msra.mxu0 0.0
        %7034 = vmatprep.subr.mxu0 0.0
        %7035 = vmatpush1.msra.mxu0 0.0
        %7036 = vmatprep.subr.mxu0 0.0
        %7037 = vmatpush1.msra.mxu0 0.0
        %7038 = vmatprep.subr.mxu0 0.0
        %7039 = vmatpush1.msra.mxu0 0.0
        %7040 = vmatprep.subr.mxu0 0.0
        %7041 = vmatpush1.msra.mxu0 0.0
        %7042 = vmatprep.subr.mxu0 0.0
        %7043 = vmatpush1.msra.mxu0 0.0
        %7044 = vmatprep.subr.mxu0 0.0
        %7045 = vmatpush1.msra.mxu0 0.0
        %7046 = vmatprep.subr.mxu0 0.0
        %7047 = vmatpush1.msra.mxu0 0.0
        %7048 = vmatprep.subr.mxu0 0.0
        %7049 = vmatpush1.msra.mxu0 0.0
        %7050 = vmatprep.subr.mxu0 0.0
        %7051 = vmatpush1.msra.mxu0 0.0
        %7052 = vmatprep.subr.mxu0 0.0
        %7053 = vmatpush1.msra.mxu0 0.0
        %7054 = vmatprep.subr.mxu0 0.0
        %7055 = vmatpush1.msra.mxu0 0.0
        %7056 = vmatprep.subr.mxu0 0.0
        %7057 = vmatpush1.msra.mxu0 0.0
        %7058 = vmatprep.subr.mxu0 0.0
        %7059 = vmatpush1.msra.mxu0 0.0
        %7060 = vmatprep.subr.mxu0 0.0
        %7061 = vmatpush1.msra.mxu0 0.0
        %7062 = vmatprep.subr.mxu0 0.0
        %7063 = vmatpush1.msra.mxu0 0.0
        %7064 = vmatprep.subr.mxu0 0.0
        %7065 = vmatpush1.msra.mxu0 0.0
        %7066 = vmatprep.subr.mxu0 0.0
        %7067 = vmatpush1.msra.mxu0 0.0
        %7068 = vmatprep.mubr.f32.mxu0 0.0
        %v7069 = vand.u32 %v6994, 4294901760
        %v7070 = vsub.f32 %v6994, %v7069
        %v7071 = vand.u32 %v7070, 4294901760
        %v7072 = vsub.f32 %v7070, %v7071
        %v7073 = vand.u32 %v7072, 4294901760
        %7074 = vmatmul.mubr.f32.gmra.mrb[0].mxu0 %v7073
        %v7075 = vpop.f32.mrb[0].mxu0
        %v7076 = vadd.f32 %v6991, %v7075
        %v7077 = vpop.f32.mrb[0].mxu0
        %7078 = vdwg.mxu0
        %7079 = vmatprep.subr.mxu0 0.0
        %v7080 = vand.u32 %v6980, 4294901760
        %v7081 = vsub.f32 %v6980, %v7080
        %v7082 = vand.u32 %v7081, 4294901760
        %v7083 = vsub.f32 %v7081, %v7082
        %v7084 = vand.u32 %v7083, 4294901760
        %7085 = vmatpush1.msra.mxu0 %v7084
        %7086 = vmatprep.subr.mxu0 0.0
        %v7087 = vand.u32 %v6981, 4294901760
        %v7088 = vsub.f32 %v6981, %v7087
        %v7089 = vand.u32 %v7088, 4294901760
        %v7090 = vsub.f32 %v7088, %v7089
        %v7091 = vand.u32 %v7090, 4294901760
        %7092 = vmatpush1.msra.mxu0 %v7091
        %7093 = vmatprep.subr.mxu0 0.0
        %v7094 = vand.u32 %v6982, 4294901760
        %v7095 = vsub.f32 %v6982, %v7094
        %v7096 = vand.u32 %v7095, 4294901760
        %v7097 = vsub.f32 %v7095, %v7096
        %v7098 = vand.u32 %v7097, 4294901760
        %7099 = vmatpush1.msra.mxu0 %v7098
        %7100 = vmatprep.subr.mxu0 0.0
        %v7101 = vand.u32 %v6983, 4294901760
        %v7102 = vsub.f32 %v6983, %v7101
        %v7103 = vand.u32 %v7102, 4294901760
        %v7104 = vsub.f32 %v7102, %v7103
        %v7105 = vand.u32 %v7104, 4294901760
        %7106 = vmatpush1.msra.mxu0 %v7105
        %7107 = vmatprep.subr.mxu0 0.0
        %v7108 = vand.u32 %v6984, 4294901760
        %v7109 = vsub.f32 %v6984, %v7108
        %v7110 = vand.u32 %v7109, 4294901760
        %v7111 = vsub.f32 %v7109, %v7110
        %v7112 = vand.u32 %v7111, 4294901760
        %7113 = vmatpush1.msra.mxu0 %v7112
        %7114 = vmatprep.subr.mxu0 0.0
        %v7115 = vand.u32 %v6985, 4294901760
        %v7116 = vsub.f32 %v6985, %v7115
        %v7117 = vand.u32 %v7116, 4294901760
        %v7118 = vsub.f32 %v7116, %v7117
        %v7119 = vand.u32 %v7118, 4294901760
        %7120 = vmatpush1.msra.mxu0 %v7119
        %7121 = vmatprep.subr.mxu0 0.0
        %v7122 = vand.u32 %v6986, 4294901760
        %v7123 = vsub.f32 %v6986, %v7122
        %v7124 = vand.u32 %v7123, 4294901760
        %v7125 = vsub.f32 %v7123, %v7124
        %v7126 = vand.u32 %v7125, 4294901760
        %7127 = vmatpush1.msra.mxu0 %v7126
        %7128 = vmatprep.subr.mxu0 0.0
        %v7129 = vand.u32 %v6987, 4294901760
        %v7130 = vsub.f32 %v6987, %v7129
        %v7131 = vand.u32 %v7130, 4294901760
        %v7132 = vsub.f32 %v7130, %v7131
        %v7133 = vand.u32 %v7132, 4294901760
        %7134 = vmatpush1.msra.mxu0 %v7133
        %7135 = vmatprep.subr.mxu0 0.0
        %7136 = vmatpush1.msra.mxu0 0.0
        %7137 = vmatprep.subr.mxu0 0.0
        %7138 = vmatpush1.msra.mxu0 0.0
        %7139 = vmatprep.subr.mxu0 0.0
        %7140 = vmatpush1.msra.mxu0 0.0
        %7141 = vmatprep.subr.mxu0 0.0
        %7142 = vmatpush1.msra.mxu0 0.0
        %7143 = vmatprep.subr.mxu0 0.0
        %7144 = vmatpush1.msra.mxu0 0.0
        %7145 = vmatprep.subr.mxu0 0.0
        %7146 = vmatpush1.msra.mxu0 0.0
        %7147 = vmatprep.subr.mxu0 0.0
        %7148 = vmatpush1.msra.mxu0 0.0
        %7149 = vmatprep.subr.mxu0 0.0
        %7150 = vmatpush1.msra.mxu0 0.0
        %7151 = vmatprep.subr.mxu0 0.0
        %7152 = vmatpush1.msra.mxu0 0.0
        %7153 = vmatprep.subr.mxu0 0.0
        %7154 = vmatpush1.msra.mxu0 0.0
        %7155 = vmatprep.subr.mxu0 0.0
        %7156 = vmatpush1.msra.mxu0 0.0
        %7157 = vmatprep.subr.mxu0 0.0
        %7158 = vmatpush1.msra.mxu0 0.0
        %7159 = vmatprep.subr.mxu0 0.0
        %7160 = vmatpush1.msra.mxu0 0.0
        %7161 = vmatprep.subr.mxu0 0.0
        %7162 = vmatpush1.msra.mxu0 0.0
        %7163 = vmatprep.subr.mxu0 0.0
        %7164 = vmatpush1.msra.mxu0 0.0
        %7165 = vmatprep.subr.mxu0 0.0
        %7166 = vmatpush1.msra.mxu0 0.0
        %7167 = vmatprep.subr.mxu0 0.0
        %7168 = vmatpush1.msra.mxu0 0.0
        %7169 = vmatprep.subr.mxu0 0.0
        %7170 = vmatpush1.msra.mxu0 0.0
        %7171 = vmatprep.subr.mxu0 0.0
        %7172 = vmatpush1.msra.mxu0 0.0
        %7173 = vmatprep.subr.mxu0 0.0
        %7174 = vmatpush1.msra.mxu0 0.0
        %7175 = vmatprep.subr.mxu0 0.0
        %7176 = vmatpush1.msra.mxu0 0.0
        %7177 = vmatprep.subr.mxu0 0.0
        %7178 = vmatpush1.msra.mxu0 0.0
        %7179 = vmatprep.subr.mxu0 0.0
        %7180 = vmatpush1.msra.mxu0 0.0
        %7181 = vmatprep.subr.mxu0 0.0
        %7182 = vmatpush1.msra.mxu0 0.0
        %7183 = vmatprep.mubr.f32.mxu0 0.0
        %v7184 = vand.u32 %v6994, 4294901760
        %7185 = vmatmul.mubr.f32.gmra.mrb[0].mxu0 %v7184
        %v7186 = vpop.f32.mrb[0].mxu0
        %v7187 = vadd.f32 %v7076, %v7186
        %v7188 = vpop.f32.mrb[0].mxu0
        %7189 = vdwg.mxu0
        %7190 = vmatprep.subr.mxu0 0.0
        %v7191 = vand.u32 %v6980, 4294901760
        %v7192 = vsub.f32 %v6980, %v7191
        %7193 = vmatpush1.msra.mxu0 %v7192
        %7194 = vmatprep.subr.mxu0 0.0
        %v7195 = vand.u32 %v6981, 4294901760
        %v7196 = vsub.f32 %v6981, %v7195
        %7197 = vmatpush1.msra.mxu0 %v7196
        %7198 = vmatprep.subr.mxu0 0.0
        %v7199 = vand.u32 %v6982, 4294901760
        %v7200 = vsub.f32 %v6982, %v7199
        %7201 = vmatpush1.msra.mxu0 %v7200
        %7202 = vmatprep.subr.mxu0 0.0
        %v7203 = vand.u32 %v6983, 4294901760
        %v7204 = vsub.f32 %v6983, %v7203
        %7205 = vmatpush1.msra.mxu0 %v7204
        %7206 = vmatprep.subr.mxu0 0.0
        %v7207 = vand.u32 %v6984, 4294901760
        %v7208 = vsub.f32 %v6984, %v7207
        %7209 = vmatpush1.msra.mxu0 %v7208
        %7210 = vmatprep.subr.mxu0 0.0
        %v7211 = vand.u32 %v6985, 4294901760
        %v7212 = vsub.f32 %v6985, %v7211
        %7213 = vmatpush1.msra.mxu0 %v7212
        %7214 = vmatprep.subr.mxu0 0.0
        %v7215 = vand.u32 %v6986, 4294901760
        %v7216 = vsub.f32 %v6986, %v7215
        %7217 = vmatpush1.msra.mxu0 %v7216
        %7218 = vmatprep.subr.mxu0 0.0
        %v7219 = vand.u32 %v6987, 4294901760
        %v7220 = vsub.f32 %v6987, %v7219
        %7221 = vmatpush1.msra.mxu0 %v7220
        %7222 = vmatprep.subr.mxu0 0.0
        %7223 = vmatpush1.msra.mxu0 0.0
        %7224 = vmatprep.subr.mxu0 0.0
        %7225 = vmatpush1.msra.mxu0 0.0
        %7226 = vmatprep.subr.mxu0 0.0
        %7227 = vmatpush1.msra.mxu0 0.0
        %7228 = vmatprep.subr.mxu0 0.0
        %7229 = vmatpush1.msra.mxu0 0.0
        %7230 = vmatprep.subr.mxu0 0.0
        %7231 = vmatpush1.msra.mxu0 0.0
        %7232 = vmatprep.subr.mxu0 0.0
        %7233 = vmatpush1.msra.mxu0 0.0
        %7234 = vmatprep.subr.mxu0 0.0
        %7235 = vmatpush1.msra.mxu0 0.0
        %7236 = vmatprep.subr.mxu0 0.0
        %7237 = vmatpush1.msra.mxu0 0.0
        %7238 = vmatprep.subr.mxu0 0.0
        %7239 = vmatpush1.msra.mxu0 0.0
        %7240 = vmatprep.subr.mxu0 0.0
        %7241 = vmatpush1.msra.mxu0 0.0
        %7242 = vmatprep.subr.mxu0 0.0
        %7243 = vmatpush1.msra.mxu0 0.0
        %7244 = vmatprep.subr.mxu0 0.0
        %7245 = vmatpush1.msra.mxu0 0.0
        %7246 = vmatprep.subr.mxu0 0.0
        %7247 = vmatpush1.msra.mxu0 0.0
        %7248 = vmatprep.subr.mxu0 0.0
        %7249 = vmatpush1.msra.mxu0 0.0
        %7250 = vmatprep.subr.mxu0 0.0
        %7251 = vmatpush1.msra.mxu0 0.0
        %7252 = vmatprep.subr.mxu0 0.0
        %7253 = vmatpush1.msra.mxu0 0.0
        %7254 = vmatprep.subr.mxu0 0.0
        %7255 = vmatpush1.msra.mxu0 0.0
        %7256 = vmatprep.subr.mxu0 0.0
        %7257 = vmatpush1.msra.mxu0 0.0
        %7258 = vmatprep.subr.mxu0 0.0
        %7259 = vmatpush1.msra.mxu0 0.0
        %7260 = vmatprep.subr.mxu0 0.0
        %7261 = vmatpush1.msra.mxu0 0.0
        %7262 = vmatprep.subr.mxu0 0.0
        %7263 = vmatpush1.msra.mxu0 0.0
        %7264 = vmatprep.subr.mxu0 0.0
        %7265 = vmatpush1.msra.mxu0 0.0
        %7266 = vmatprep.subr.mxu0 0.0
        %7267 = vmatpush1.msra.mxu0 0.0
        %7268 = vmatprep.subr.mxu0 0.0
        %7269 = vmatpush1.msra.mxu0 0.0
        %7270 = vmatprep.mubr.f32.mxu0 0.0
        %v7271 = vand.u32 %v6994, 4294901760
        %v7272 = vsub.f32 %v6994, %v7271
        %7273 = vmatmul.mubr.f32.gmra.mrb[0].mxu0 %v7272
        %v7274 = vpop.f32.mrb[0].mxu0
        %v7275 = vadd.f32 %v7187, %v7274
        %v7276 = vpop.f32.mrb[0].mxu0
        %7277 = vdwg.mxu0
        %7278 = vmatprep.subr.mxu0 0.0
        %v7279 = vand.u32 %v6980, 4294901760
        %7280 = vmatpush1.msra.mxu0 %v7279
        %7281 = vmatprep.subr.mxu0 0.0
        %v7282 = vand.u32 %v6981, 4294901760
        %7283 = vmatpush1.msra.mxu0 %v7282
        %7284 = vmatprep.subr.mxu0 0.0
        %v7285 = vand.u32 %v6982, 4294901760
        %7286 = vmatpush1.msra.mxu0 %v7285
        %7287 = vmatprep.subr.mxu0 0.0
        %v7288 = vand.u32 %v6983, 4294901760
        %7289 = vmatpush1.msra.mxu0 %v7288
        %7290 = vmatprep.subr.mxu0 0.0
        %v7291 = vand.u32 %v6984, 4294901760
        %7292 = vmatpush1.msra.mxu0 %v7291
        %7293 = vmatprep.subr.mxu0 0.0
        %v7294 = vand.u32 %v6985, 4294901760
        %7295 = vmatpush1.msra.mxu0 %v7294
        %7296 = vmatprep.subr.mxu0 0.0
        %v7297 = vand.u32 %v6986, 4294901760
        %7298 = vmatpush1.msra.mxu0 %v7297
        %7299 = vmatprep.subr.mxu0 0.0
        %v7300 = vand.u32 %v6987, 4294901760
        %7301 = vmatpush1.msra.mxu0 %v7300
        %7302 = vmatprep.subr.mxu0 0.0
        %7303 = vmatpush1.msra.mxu0 0.0
        %7304 = vmatprep.subr.mxu0 0.0
        %7305 = vmatpush1.msra.mxu0 0.0
        %7306 = vmatprep.subr.mxu0 0.0
        %7307 = vmatpush1.msra.mxu0 0.0
        %7308 = vmatprep.subr.mxu0 0.0
        %7309 = vmatpush1.msra.mxu0 0.0
        %7310 = vmatprep.subr.mxu0 0.0
        %7311 = vmatpush1.msra.mxu0 0.0
        %7312 = vmatprep.subr.mxu0 0.0
        %7313 = vmatpush1.msra.mxu0 0.0
        %7314 = vmatprep.subr.mxu0 0.0
        %7315 = vmatpush1.msra.mxu0 0.0
        %7316 = vmatprep.subr.mxu0 0.0
        %7317 = vmatpush1.msra.mxu0 0.0
        %7318 = vmatprep.subr.mxu0 0.0
        %7319 = vmatpush1.msra.mxu0 0.0
        %7320 = vmatprep.subr.mxu0 0.0
        %7321 = vmatpush1.msra.mxu0 0.0
        %7322 = vmatprep.subr.mxu0 0.0
        %7323 = vmatpush1.msra.mxu0 0.0
        %7324 = vmatprep.subr.mxu0 0.0
        %7325 = vmatpush1.msra.mxu0 0.0
        %7326 = vmatprep.subr.mxu0 0.0
        %7327 = vmatpush1.msra.mxu0 0.0
        %7328 = vmatprep.subr.mxu0 0.0
        %7329 = vmatpush1.msra.mxu0 0.0
        %7330 = vmatprep.subr.mxu0 0.0
        %7331 = vmatpush1.msra.mxu0 0.0
        %7332 = vmatprep.subr.mxu0 0.0
        %7333 = vmatpush1.msra.mxu0 0.0
        %7334 = vmatprep.subr.mxu0 0.0
        %7335 = vmatpush1.msra.mxu0 0.0
        %7336 = vmatprep.subr.mxu0 0.0
        %7337 = vmatpush1.msra.mxu0 0.0
        %7338 = vmatprep.subr.mxu0 0.0
        %7339 = vmatpush1.msra.mxu0 0.0
        %7340 = vmatprep.subr.mxu0 0.0
        %7341 = vmatpush1.msra.mxu0 0.0
        %7342 = vmatprep.subr.mxu0 0.0
        %7343 = vmatpush1.msra.mxu0 0.0
        %7344 = vmatprep.subr.mxu0 0.0
        %7345 = vmatpush1.msra.mxu0 0.0
        %7346 = vmatprep.subr.mxu0 0.0
        %7347 = vmatpush1.msra.mxu0 0.0
        %7348 = vmatprep.subr.mxu0 0.0
        %7349 = vmatpush1.msra.mxu0 0.0
        %7350 = vmatprep.mubr.f32.mxu0 0.0
        %v7351 = vand.u32 %v6994, 4294901760
        %v7352 = vsub.f32 %v6994, %v7351
        %v7353 = vand.u32 %v7352, 4294901760
        %7354 = vmatmul.mubr.f32.gmra.mrb[0].mxu0 %v7353
        %v7355 = vpop.f32.mrb[0].mxu0
        %v7356 = vadd.f32 %v7275, %v7355
        %v7357 = vpop.f32.mrb[0].mxu0
        %7358 = vdwg.mxu0
        %7359 = vmatprep.subr.mxu0 0.0
        %v7360 = vand.u32 %v6980, 4294901760
        %v7361 = vsub.f32 %v6980, %v7360
        %v7362 = vand.u32 %v7361, 4294901760
        %7363 = vmatpush1.msra.mxu0 %v7362
        %7364 = vmatprep.subr.mxu0 0.0
        %v7365 = vand.u32 %v6981, 4294901760
        %v7366 = vsub.f32 %v6981, %v7365
        %v7367 = vand.u32 %v7366, 4294901760
        %7368 = vmatpush1.msra.mxu0 %v7367
        %7369 = vmatprep.subr.mxu0 0.0
        %v7370 = vand.u32 %v6982, 4294901760
        %v7371 = vsub.f32 %v6982, %v7370
        %v7372 = vand.u32 %v7371, 4294901760
        %7373 = vmatpush1.msra.mxu0 %v7372
        %7374 = vmatprep.subr.mxu0 0.0
        %v7375 = vand.u32 %v6983, 4294901760
        %v7376 = vsub.f32 %v6983, %v7375
        %v7377 = vand.u32 %v7376, 4294901760
        %7378 = vmatpush1.msra.mxu0 %v7377
        %7379 = vmatprep.subr.mxu0 0.0
        %v7380 = vand.u32 %v6984, 4294901760
        %v7381 = vsub.f32 %v6984, %v7380
        %v7382 = vand.u32 %v7381, 4294901760
        %7383 = vmatpush1.msra.mxu0 %v7382
        %7384 = vmatprep.subr.mxu0 0.0
        %v7385 = vand.u32 %v6985, 4294901760
        %v7386 = vsub.f32 %v6985, %v7385
        %v7387 = vand.u32 %v7386, 4294901760
        %7388 = vmatpush1.msra.mxu0 %v7387
        %7389 = vmatprep.subr.mxu0 0.0
        %v7390 = vand.u32 %v6986, 4294901760
        %v7391 = vsub.f32 %v6986, %v7390
        %v7392 = vand.u32 %v7391, 4294901760
        %7393 = vmatpush1.msra.mxu0 %v7392
        %7394 = vmatprep.subr.mxu0 0.0
        %v7395 = vand.u32 %v6987, 4294901760
        %v7396 = vsub.f32 %v6987, %v7395
        %v7397 = vand.u32 %v7396, 4294901760
        %7398 = vmatpush1.msra.mxu0 %v7397
        %7399 = vmatprep.subr.mxu0 0.0
        %7400 = vmatpush1.msra.mxu0 0.0
        %7401 = vmatprep.subr.mxu0 0.0
        %7402 = vmatpush1.msra.mxu0 0.0
        %7403 = vmatprep.subr.mxu0 0.0
        %7404 = vmatpush1.msra.mxu0 0.0
        %7405 = vmatprep.subr.mxu0 0.0
        %7406 = vmatpush1.msra.mxu0 0.0
        %7407 = vmatprep.subr.mxu0 0.0
        %7408 = vmatpush1.msra.mxu0 0.0
        %7409 = vmatprep.subr.mxu0 0.0
        %7410 = vmatpush1.msra.mxu0 0.0
        %7411 = vmatprep.subr.mxu0 0.0
        %7412 = vmatpush1.msra.mxu0 0.0
        %7413 = vmatprep.subr.mxu0 0.0
        %7414 = vmatpush1.msra.mxu0 0.0
        %7415 = vmatprep.subr.mxu0 0.0
        %7416 = vmatpush1.msra.mxu0 0.0
        %7417 = vmatprep.subr.mxu0 0.0
        %7418 = vmatpush1.msra.mxu0 0.0
        %7419 = vmatprep.subr.mxu0 0.0
        %7420 = vmatpush1.msra.mxu0 0.0
        %7421 = vmatprep.subr.mxu0 0.0
        %7422 = vmatpush1.msra.mxu0 0.0
        %7423 = vmatprep.subr.mxu0 0.0
        %7424 = vmatpush1.msra.mxu0 0.0
        %7425 = vmatprep.subr.mxu0 0.0
        %7426 = vmatpush1.msra.mxu0 0.0
        %7427 = vmatprep.subr.mxu0 0.0
        %7428 = vmatpush1.msra.mxu0 0.0
        %7429 = vmatprep.subr.mxu0 0.0
        %7430 = vmatpush1.msra.mxu0 0.0
        %7431 = vmatprep.subr.mxu0 0.0
        %7432 = vmatpush1.msra.mxu0 0.0
        %7433 = vmatprep.subr.mxu0 0.0
        %7434 = vmatpush1.msra.mxu0 0.0
        %7435 = vmatprep.subr.mxu0 0.0
        %7436 = vmatpush1.msra.mxu0 0.0
        %7437 = vmatprep.subr.mxu0 0.0
        %7438 = vmatpush1.msra.mxu0 0.0
        %7439 = vmatprep.subr.mxu0 0.0
        %7440 = vmatpush1.msra.mxu0 0.0
        %7441 = vmatprep.subr.mxu0 0.0
        %7442 = vmatpush1.msra.mxu0 0.0
        %7443 = vmatprep.subr.mxu0 0.0
        %7444 = vmatpush1.msra.mxu0 0.0
        %7445 = vmatprep.subr.mxu0 0.0
        %7446 = vmatpush1.msra.mxu0 0.0
        %7447 = vmatprep.mubr.f32.mxu0 0.0
        %v7448 = vand.u32 %v6994, 4294901760
        %7449 = vmatmul.mubr.f32.gmra.mrb[0].mxu0 %v7448
        %v7450 = vpop.f32.mrb[0].mxu0
        %v7451 = vadd.f32 %v7356, %v7450
        %v7452 = vpop.f32.mrb[0].mxu0
        %7453 = vdwg.mxu0
        %7454 = vmatprep.subr.mxu0 0.0
        %v7455 = vand.u32 %v6980, 4294901760
        %7456 = vmatpush1.msra.mxu0 %v7455
        %7457 = vmatprep.subr.mxu0 0.0
        %v7458 = vand.u32 %v6981, 4294901760
        %7459 = vmatpush1.msra.mxu0 %v7458
        %7460 = vmatprep.subr.mxu0 0.0
        %v7461 = vand.u32 %v6982, 4294901760
        %7462 = vmatpush1.msra.mxu0 %v7461
        %7463 = vmatprep.subr.mxu0 0.0
        %v7464 = vand.u32 %v6983, 4294901760
        %7465 = vmatpush1.msra.mxu0 %v7464
        %7466 = vmatprep.subr.mxu0 0.0
        %v7467 = vand.u32 %v6984, 4294901760
        %7468 = vmatpush1.msra.mxu0 %v7467
        %7469 = vmatprep.subr.mxu0 0.0
        %v7470 = vand.u32 %v6985, 4294901760
        %7471 = vmatpush1.msra.mxu0 %v7470
        %7472 = vmatprep.subr.mxu0 0.0
        %v7473 = vand.u32 %v6986, 4294901760
        %7474 = vmatpush1.msra.mxu0 %v7473
        %7475 = vmatprep.subr.mxu0 0.0
        %v7476 = vand.u32 %v6987, 4294901760
        %7477 = vmatpush1.msra.mxu0 %v7476
        %7478 = vmatprep.subr.mxu0 0.0
        %7479 = vmatpush1.msra.mxu0 0.0
        %7480 = vmatprep.subr.mxu0 0.0
        %7481 = vmatpush1.msra.mxu0 0.0
        %7482 = vmatprep.subr.mxu0 0.0
        %7483 = vmatpush1.msra.mxu0 0.0
        %7484 = vmatprep.subr.mxu0 0.0
        %7485 = vmatpush1.msra.mxu0 0.0
        %7486 = vmatprep.subr.mxu0 0.0
        %7487 = vmatpush1.msra.mxu0 0.0
        %7488 = vmatprep.subr.mxu0 0.0
        %7489 = vmatpush1.msra.mxu0 0.0
        %7490 = vmatprep.subr.mxu0 0.0
        %7491 = vmatpush1.msra.mxu0 0.0
        %7492 = vmatprep.subr.mxu0 0.0
        %7493 = vmatpush1.msra.mxu0 0.0
        %7494 = vmatprep.subr.mxu0 0.0
        %7495 = vmatpush1.msra.mxu0 0.0
        %7496 = vmatprep.subr.mxu0 0.0
        %7497 = vmatpush1.msra.mxu0 0.0
        %7498 = vmatprep.subr.mxu0 0.0
        %7499 = vmatpush1.msra.mxu0 0.0
        %7500 = vmatprep.subr.mxu0 0.0
        %7501 = vmatpush1.msra.mxu0 0.0
        %7502 = vmatprep.subr.mxu0 0.0
        %7503 = vmatpush1.msra.mxu0 0.0
        %7504 = vmatprep.subr.mxu0 0.0
        %7505 = vmatpush1.msra.mxu0 0.0
        %7506 = vmatprep.subr.mxu0 0.0
        %7507 = vmatpush1.msra.mxu0 0.0
        %7508 = vmatprep.subr.mxu0 0.0
        %7509 = vmatpush1.msra.mxu0 0.0
        %7510 = vmatprep.subr.mxu0 0.0
        %7511 = vmatpush1.msra.mxu0 0.0
        %7512 = vmatprep.subr.mxu0 0.0
        %7513 = vmatpush1.msra.mxu0 0.0
        %7514 = vmatprep.subr.mxu0 0.0
        %7515 = vmatpush1.msra.mxu0 0.0
        %7516 = vmatprep.subr.mxu0 0.0
        %7517 = vmatpush1.msra.mxu0 0.0
        %7518 = vmatprep.subr.mxu0 0.0
        %7519 = vmatpush1.msra.mxu0 0.0
        %7520 = vmatprep.subr.mxu0 0.0
        %7521 = vmatpush1.msra.mxu0 0.0
        %7522 = vmatprep.subr.mxu0 0.0
        %7523 = vmatpush1.msra.mxu0 0.0
        %7524 = vmatprep.subr.mxu0 0.0
        %7525 = vmatpush1.msra.mxu0 0.0
        %7526 = vmatprep.mubr.f32.mxu0 0.0
        %v7527 = vand.u32 %v6994, 4294901760
        %7528 = vmatmul.mubr.f32.gmra.mrb[0].mxu0 %v7527
        %v7529 = vpop.f32.mrb[0].mxu0
        %v7530 = vadd.f32 %v7451, %v7529
        %v7531 = vpop.f32.mrb[0].mxu0
        %7532 = vdwg.mxu0
        %v7533 = vadd.f32 %v7530, %v6480
        %v7534 = vsel %vm321, %v7533, 0.0
        %7535 = vadd.xlane.f32.xlu0 %v7534
        %v7536 = vpop.xlane.xlu0 %7535
        %v7537 = vmul.f32 %v7536, %v6460
        %v7538 = vsub.f32 %v7533, %v7537
        %v7539 = vmul.f32 %v7538, %v7538
        %v7540 = vsel %vm321, %v7539, 0.0
        %7541 = vadd.xlane.f32.xlu0 %v7540
        %v7542 = vpop.xlane.xlu0 %7541
        %v7543 = vmul.f32 %v7542, %v6460
        %v7544 = vadd.f32 %v7543, 1e-05
        %v7545 = vrsqrt.pop %v7544
        %v7546 = vmul.f32 %v7538, %v7545
        %v7547 = vlaneseq
        %v7548 = vshrl.u32 %v7547, 7
        %v7549 = vsub.s32 0, %v7548
        %v7550 = vrot.slane %v285, %v7549
        %v7551 = vmul.f32 %v7546, %v7550
        %v7552 = vlaneseq
        %v7553 = vshrl.u32 %v7552, 7
        %v7554 = vsub.s32 0, %v7553
        %v7555 = vrot.slane %v286, %v7554
        %v7556 = vadd.f32 %v7551, %v7555
        %v7557 = vmul.f32 %v7556, %v294
        %v7559 = vrot.slane %v7557, 1
        %7560 = vrot.lane.b32.xlu0 %v7559, 32
        %v7561 = vpop.permute.xlu0 %7560
        %v7563 = vrot.slane %v7557, 2
        %7564 = vrot.lane.b32.xlu0 %v7563, 64
        %v7565 = vpop.permute.xlu0 %7564
        %v7567 = vrot.slane %v7557, 3
        %7568 = vrot.lane.b32.xlu0 %v7567, 96
        %v7569 = vpop.permute.xlu0 %7568
        %v7571 = vsel %vm321, %v7557, %v7561
        %v7572 = vsel %vm6992, %v7571, %v7565
        %vm7573 = vcmask 785408
        %v7574 = vsel %vm7573, %v7572, %v7569
        %v7576 = vrot.slane %v7574, 3
        %vm7578 = vcmask 1040384
        %v7579 = vsel %vm7578, %v7574, %v7576
        %7580 = vst [vmem:[%s270] sm:$0x3] %v7579
        %s7581 = sand.u32 %s165, 1
        %s7582 = scalar_lea.sflag [#allocation4], %s7581
        %s7583 = sand.u32 %s165, 1
        %s7584 = smul.addr %s7583, 2
        %s7585 = scalar_lea.vmem [#allocation5], %s7584
        // Predicated region
        $region49: #{tpu_custom_call.1} parent=43 // pred_check
          %p7586 = pneg %p175
        $region50: #{tpu_custom_call.1} parent=43 // pred_check_branch
          %7588 = sbr.rel (%p7586) target = $region52
        $region51: #{tpu_custom_call.1} parent=43 // pred_region
          %s7590 = ssub.s32 32, 32
          %7591 = vsyncadd %s7582, %s7590
          %s7592 = smul.addr %s21, 32
          %s7593 = scalar_lea.hbm %s6, %s7592
          %s7595 = sshll.u32 %s7585, 4
          %s7596 = int_to_ptr.vmem [resolvable:$true] %s7595
          %7598 = dma.vmem_to_hbm [thread:$0]  %s7596, 32, %s7593, %s7582
        $region52: #{tpu_custom_call.1} parent=43 // pred_fallthru
          _
      $region44: #{tpu_custom_call.1} parent=5 // pred_fallthru
        _
      %p7599 = scmp.le.s32.totalorder 2, %s16
      // Predicated region
      $region53: #{tpu_custom_call.1} parent=5 // pred_check
        %p7600 = pneg %p7599
      $region54: #{tpu_custom_call.1} parent=5 // pred_check_branch
        %7602 = sbr.rel (%p7600) target = $region56
      $region55: #{tpu_custom_call.1} parent=5 // pred_region
        %s7603 = ssub.s32 %s16, 2
        // Predicated region
        $region57: #{tpu_custom_call.1} parent=55 // pred_check
          %p7604 = pneg %p181
        $region58: #{tpu_custom_call.1} parent=55 // pred_check_branch
          %7606 = sbr.rel (%p7604) target = $region60
        $region59: #{tpu_custom_call.1} parent=55 // pred_region
          %s7607 = sand.u32 %s166, 1
          %s7608 = scalar_lea.sflag [#allocation4], %s7607
          %s7609 = sand.u32 %s166, 1
          %s7610 = smul.addr %s7609, 2
          %s7611 = scalar_lea.vmem [#allocation5], %s7610
          %7612 = dma.done %s7608, 32
        $region60: #{tpu_custom_call.1} parent=55 // pred_fallthru
          _
      $region56: #{tpu_custom_call.1} parent=5 // pred_fallthru
        _
    $region6: #{tpu_custom_call.1} parent=1 // loop_footer
      %s20 = sadd.s32 1, %s16
    $region7: #{tpu_custom_call.1} parent=1 // loop_footer_branch
      %15 = sbr.rel target = $region3
    $region8: #{tpu_custom_call.1} parent=1 // loop_exit
      _
    %7613 = vsyncpa [#allocation3], 1
    %s7614 = scalar_lea.sflag [#allocation3], 1
    %7615 = vsyncpa %s7614, 1
    %7616 = vsyncpa [#allocation4], 1
    %s7617 = scalar_lea.sflag [#allocation4], 1
    %7618 = vsyncpa %s7617, 1

</llo_original>
